<compile_context>
chip_gen: v6e
topology: v6e:2x2x1
jax: 0.10.0
libtpu: 0.0.40
codegen_flags: <defaults>
</compile_context>

<pallas_src>
import jax
import jax.numpy as jnp
from jax import lax
from jax.experimental import pallas as pl
from jax.experimental.pallas import tpu as pltpu


def simple_rnn_kernel(
    x_ref,      # [tT*B, D_in]  time-major chunk rows (row = t*B + b)
    w_ih_ref,   # [D_in, 4H]    LSTM input weights (pre-transposed)
    w_hh_ref,   # [H, 4H]       LSTM recurrent weights (pre-transposed)
    b_ref,      # [1, 4H]       b_ih + b_hh
    lr_ref,     # [B, L]
    w1h_ref,    # [H, M]        MLP layer 1, rows that multiply `last`
    w1l_ref,    # [L, M]        MLP layer 1, rows that multiply `lr`
    b1_ref,     # [1, M]
    w2_ref,     # [M, O]        MLP layer 2
    b2_ref,     # [1, O]
    out_ref,    # [B, O]
    h_scr,      # VMEM [B, H]   recurrent hidden state (persists across grid)
    c_scr,      # VMEM [B, H]   recurrent cell state
    xw_scr,     # VMEM [tT, B, 4H]  chunk-wide input projection
):
    j = pl.program_id(0)
    B, H = h_scr.shape
    G = w_hh_ref.shape[1]            # 4H
    t_chunk = xw_scr.shape[0]

    @pl.when(j == 0)
    def _init():
        h_scr[...] = jnp.zeros_like(h_scr)
        c_scr[...] = jnp.zeros_like(c_scr)

    # ---- Hoisted chunk-wide input projection (one big MXU call + bias) ----
    xw = (
        jnp.dot(x_ref[...], w_ih_ref[...],
                preferred_element_type=jnp.float32,
                precision=lax.Precision.HIGHEST)
        + b_ref[...]
    )                                                   # [t_chunk*B, 4H]
    xw_scr[...] = xw.reshape(t_chunk, B, G)

    # Loop-invariant values hoisted out of the (unrolled) recurrence.
    w_hh = w_hh_ref[...]
    lane = lax.broadcasted_iota(jnp.int32, (B, G), dimension=1)
    g_mask = (lane >= 2 * H) & (lane < 3 * H)           # PyTorch order i|f|g|o

    def step(s, carry):
        h, c = carry
        gates = xw_scr[s] + jnp.dot(h, w_hh,
                                    preferred_element_type=jnp.float32,
                                    precision=lax.Precision.HIGHEST)
        # One full-width tanh does all four gates:
        #   g lanes -> tanh(x); i/f/o lanes -> sigmoid(x) = 0.5*tanh(0.5x)+0.5
        tanh_act = jnp.tanh(jnp.where(g_mask, gates, 0.5 * gates))
        act = jnp.where(g_mask, tanh_act, 0.5 * tanh_act + 0.5)
        i_g = act[:, 0 * H:1 * H]
        f_g = act[:, 1 * H:2 * H]
        g_g = act[:, 2 * H:3 * H]
        o_g = act[:, 3 * H:4 * H]
        c_new = f_g * c + i_g * g_g
        h_new = o_g * jnp.tanh(c_new)
        return h_new, c_new

    h, c = lax.fori_loop(0, t_chunk, step, (h_scr[...], c_scr[...]),
                         unroll=max(1, min(8, t_chunk)))
    h_scr[...] = h
    c_scr[...] = c

    @pl.when(j == pl.num_programs(0) - 1)
    def _finalize():
        # mlp(concat([last, lr], dim=1)) with the concat folded into a split
        # first-layer matmul (no lane-axis concat).
        z = (
            jnp.dot(h, w1h_ref[...], preferred_element_type=jnp.float32,
                    precision=lax.Precision.HIGHEST)
            + jnp.dot(lr_ref[...], w1l_ref[...],
                      preferred_element_type=jnp.float32,
                      precision=lax.Precision.HIGHEST)
            + b1_ref[...]
        )
        z = jnp.maximum(z, 0.0)                         # ReLU
        y = jnp.dot(z, w2_ref[...], preferred_element_type=jnp.float32,
                    precision=lax.Precision.HIGHEST) + b2_ref[...]
        out_ref[...] = y.astype(out_ref.dtype)


def _largest_divisor_le(n, k):
    k = max(1, min(n, k))
    for d in range(k, 0, -1):
        if n % d == 0:
            return d
    return 1


def _pick_seq_chunk(T, B, D_in):
    # Single grid step unless the input is large enough that per-step overhead
    # (~0.35us) can be hidden behind DMA/compute overlap; then aim ~512 KiB.
    bytes_per_step = B * D_in * 4
    if T * bytes_per_step <= (1 << 20):
        return T
    target = max(1, (512 * 1024) // bytes_per_step)
    return _largest_divisor_le(T, target)


def simple_rnn_forward(x, lr, params, *, seq_chunk=None):
    """x: [B, T, D_in] (batch_first), lr: [B, L]  ->  [B, O]."""
    B, T, D_in = x.shape
    w_ih = params["weight_ih"]                 # [4H, D_in] (PyTorch layout)
    w_hh = params["weight_hh"]                 # [4H, H]
    H = w_hh.shape[1]
    L = lr.shape[1]
    M = params["mlp_w1"].shape[0]
    O = params["mlp_w2"].shape[0]

    if seq_chunk is None:
        seq_chunk = _pick_seq_chunk(T, B, D_in)
    if T % seq_chunk != 0:
        # Pick a divisor instead of silently falling back to a full unroll.
        seq_chunk = _largest_divisor_le(T, seq_chunk)
    n_chunks = T // seq_chunk

    # Parameter / layout glue (plain JAX, done once per call):
    x_2d = jnp.transpose(x, (1, 0, 2)).reshape(T * B, D_in)   # time-major rows
    w_ih_t = w_ih.T                                           # [D_in, 4H]
    w_hh_t = w_hh.T                                           # [H, 4H]
    b = (params["bias_ih"] + params["bias_hh"])[None, :]      # [1, 4H]
    w1_t = params["mlp_w1"].T                                 # [H+L, M]
    w1h, w1l = w1_t[:H], w1_t[H:]                             # [H, M], [L, M]
    b1 = params["mlp_b1"][None, :]                            # [1, M]
    w2_t = params["mlp_w2"].T                                 # [M, O]
    b2 = params["mlp_b2"][None, :]                            # [1, O]

    const2 = lambda j: (0, 0)

    return pl.pallas_call(
        simple_rnn_kernel,
        out_shape=jax.ShapeDtypeStruct((B, O), x.dtype),
        grid_spec=pltpu.PrefetchScalarGridSpec(
            num_scalar_prefetch=0,
            grid=(n_chunks,),
            in_specs=[
                pl.BlockSpec((seq_chunk * B, D_in), lambda j: (j, 0)),
                pl.BlockSpec((D_in, 4 * H), const2),
                pl.BlockSpec((H, 4 * H), const2),
                pl.BlockSpec((1, 4 * H), const2),
                pl.BlockSpec((B, L), const2),
                pl.BlockSpec((H, M), const2),
                pl.BlockSpec((L, M), const2),
                pl.BlockSpec((1, M), const2),
                pl.BlockSpec((M, O), const2),
                pl.BlockSpec((1, O), const2),
            ],
            out_specs=pl.BlockSpec((B, O), const2),
            scratch_shapes=[
                pltpu.VMEM((B, H), jnp.float32),               # h state
                pltpu.VMEM((B, H), jnp.float32),               # c state
                pltpu.VMEM((seq_chunk, B, 4 * H), jnp.float32),  # x @ W_ih + b
            ],
        ),
        compiler_params=pltpu.CompilerParams(
            # Sequential recurrence + revisited output block => "arbitrary".
            dimension_semantics=("arbitrary",),
            vmem_limit_bytes=64 * 1024 * 1024,
        ),
    )(x_2d, w_ih_t, w_hh_t, b, lr, w1h, w1l, b1, w2_t, b2)


# -----------------------------------------------------------------------------
# Pure-JAX reference (PyTorch semantics) for the correctness check
# -----------------------------------------------------------------------------
def simple_rnn_ref(x, lr, params):
    w_ih, w_hh = params["weight_ih"], params["weight_hh"]
    b_ih, b_hh = params["bias_ih"], params["bias_hh"]
    B, T, _ = x.shape
    H = w_hh.shape[1]

    def step(carry, x_t):
        h, c = carry
        gates = x_t @ w_ih.T + h @ w_hh.T + b_ih + b_hh
        i = jax.nn.sigmoid(gates[:, 0 * H:1 * H])
        f = jax.nn.sigmoid(gates[:, 1 * H:2 * H])
        g = jnp.tanh(gates[:, 2 * H:3 * H])
        o = jax.nn.sigmoid(gates[:, 3 * H:4 * H])
        c = f * c + i * g
        h = o * jnp.tanh(c)
        return (h, c), None

    init = (jnp.zeros((B, H), jnp.float32), jnp.zeros((B, H), jnp.float32))
    (h_last, _), _ = lax.scan(step, init, jnp.transpose(x, (1, 0, 2)))

    feat = jnp.concatenate([h_last, lr], axis=1)
    z = jnp.maximum(feat @ params["mlp_w1"].T + params["mlp_b1"], 0.0)
    return z @ params["mlp_w2"].T + params["mlp_b2"]


if __name__ == "__main__":
    B, T, D_in = 8, 8, 32      # batch, seq_len, input features
    H = 32                      # LSTM hidden size
    L = 16                      # lr feature size
    M = 64                      # MLP hidden width
    O = 32                      # MLP output size

    key = jax.random.PRNGKey(0)
    ks = jax.random.split(key, 10)

    def u(k, shape, bound):
        return jax.random.uniform(k, shape, jnp.float32, -bound, bound)

    k_lstm = 1.0 / (H ** 0.5)
    k_mlp1 = 1.0 / ((H + L) ** 0.5)
    k_mlp2 = 1.0 / (M ** 0.5)
    params = {
        "weight_ih": u(ks[0], (4 * H, D_in), k_lstm),
        "weight_hh": u(ks[1], (4 * H, H), k_lstm),
        "bias_ih":   u(ks[2], (4 * H,), k_lstm),
        "bias_hh":   u(ks[3], (4 * H,), k_lstm),
        "mlp_w1":    u(ks[4], (M, H + L), k_mlp1),
        "mlp_b1":    u(ks[5], (M,), k_mlp1),
        "mlp_w2":    u(ks[6], (O, M), k_mlp2),
        "mlp_b2":    u(ks[7], (O,), k_mlp2),
    }
    x = jax.random.normal(ks[8], (B, T, D_in), jnp.float32)
    lr = jax.random.normal(ks[9], (B, L), jnp.float32)

    out = simple_rnn_forward(x, lr, params)
    out = jax.block_until_ready(out)

    ref = simple_rnn_ref(x, lr, params)
    assert out.shape == (B, O)
    max_err = float(jnp.max(jnp.abs(out - ref)))
    # precision=HIGHEST on every matmul -> tight tolerance despite recurrence.
    assert jnp.allclose(out, ref, atol=2e-3, rtol=2e-3), (
        "mismatch vs reference, max abs err = %g" % max_err)

    print("KERNEL_OK")
</pallas_src>

<mosaic_0001>
module attributes {stable_mosaic.version = 11 : i64} {
  func.func @simple_rnn_kernel(%arg0: i32, %arg1: memref<64x32xf32, #tpu.memory_space<vmem>>, %arg2: memref<32x128xf32, #tpu.memory_space<vmem>>, %arg3: memref<32x128xf32, #tpu.memory_space<vmem>>, %arg4: memref<1x128xf32, #tpu.memory_space<vmem>>, %arg5: memref<8x16xf32, #tpu.memory_space<vmem>>, %arg6: memref<32x64xf32, #tpu.memory_space<vmem>>, %arg7: memref<16x64xf32, #tpu.memory_space<vmem>>, %arg8: memref<1x64xf32, #tpu.memory_space<vmem>>, %arg9: memref<64x32xf32, #tpu.memory_space<vmem>>, %arg10: memref<1x32xf32, #tpu.memory_space<vmem>>, %arg11: memref<8x32xf32, #tpu.memory_space<vmem>>, %arg12: memref<8x32xf32, #tpu.memory_space<vmem>>, %arg13: memref<8x32xf32, #tpu.memory_space<vmem>>, %arg14: memref<8x8x128xf32, #tpu.memory_space<vmem>>) attributes {dimension_semantics = [#tpu.dimension_semantics<arbitrary>], iteration_bounds = array<i64: 1>, scalar_prefetch = 0 : i64, scratch_operands = 3 : i64, tpu.core_type = #tpu.core_type<tc>, window_params = [{transform_indices = @transform_0, window_bounds = array<i64: 64, 32>}, {pipeline_mode = #tpu.pipeline_mode<synchronous>, transform_indices = @transform_1, window_bounds = array<i64: 32, 128>}, {pipeline_mode = #tpu.pipeline_mode<synchronous>, transform_indices = @transform_2, window_bounds = array<i64: 32, 128>}, {pipeline_mode = #tpu.pipeline_mode<synchronous>, transform_indices = @transform_3, window_bounds = array<i64: 1, 128>}, {pipeline_mode = #tpu.pipeline_mode<synchronous>, transform_indices = @transform_4, window_bounds = array<i64: 8, 16>}, {pipeline_mode = #tpu.pipeline_mode<synchronous>, transform_indices = @transform_5, window_bounds = array<i64: 32, 64>}, {pipeline_mode = #tpu.pipeline_mode<synchronous>, transform_indices = @transform_6, window_bounds = array<i64: 16, 64>}, {pipeline_mode = #tpu.pipeline_mode<synchronous>, transform_indices = @transform_7, window_bounds = array<i64: 1, 64>}, {pipeline_mode = #tpu.pipeline_mode<synchronous>, transform_indices = @transform_8, window_bounds = array<i64: 64, 32>}, {pipeline_mode = #tpu.pipeline_mode<synchronous>, transform_indices = @transform_9, window_bounds = array<i64: 1, 32>}, {pipeline_mode = #tpu.pipeline_mode<synchronous>, transform_indices = @transform_10, window_bounds = array<i64: 8, 32>}]} {
    %c0_i32 = arith.constant 0 : i32
    %0 = arith.cmpi eq, %arg0, %c0_i32 : i32
    %1 = arith.extui %0 : i1 to i32
    %c0_i32_0 = arith.constant 0 : i32
    %2 = arith.cmpi ne, %1, %c0_i32_0 : i32
    scf.if %2 {
      %cst_70 = arith.constant 0.000000e+00 : f32
      %209 = vector.broadcast %cst_70 : f32 to vector<8x32xf32>
      %c0_71 = arith.constant 0 : index
      %c0_72 = arith.constant 0 : index
      %210 = vector.load %arg12[%c0_71, %c0_72] : memref<8x32xf32, #tpu.memory_space<vmem>>, vector<8x32xf32>
      tpu.vector_store %arg12[%c0_71, %c0_72], %209 {strides = array<i32>} : memref<8x32xf32, #tpu.memory_space<vmem>>, vector<8x32xf32>,
      %cst_73 = arith.constant 0.000000e+00 : f32
      %211 = vector.broadcast %cst_73 : f32 to vector<8x32xf32>
      %c0_74 = arith.constant 0 : index
      %c0_75 = arith.constant 0 : index
      %212 = vector.load %arg13[%c0_74, %c0_75] : memref<8x32xf32, #tpu.memory_space<vmem>>, vector<8x32xf32>
      tpu.vector_store %arg13[%c0_74, %c0_75], %211 {strides = array<i32>} : memref<8x32xf32, #tpu.memory_space<vmem>>, vector<8x32xf32>,
    } else {
    }
    %c0 = arith.constant 0 : index
    %c0_1 = arith.constant 0 : index
    %3 = vector.load %arg1[%c0, %c0_1] : memref<64x32xf32, #tpu.memory_space<vmem>>, vector<64x32xf32>
    %c0_2 = arith.constant 0 : index
    %c0_3 = arith.constant 0 : index
    %4 = vector.load %arg2[%c0_2, %c0_3] : memref<32x128xf32, #tpu.memory_space<vmem>>, vector<32x128xf32>
    %cst = arith.constant dense<0.000000e+00> : vector<64x128xf32>
    %5 = tpu.matmul %3, %4, %cst {dimension_numbers = #tpu.dot_dimension_numbers<[1], [0], [0], [1], [0, 0, 1, 1], [], []>, precision = #tpu.contract_precision<fp32>} : vector<64x32xf32>, vector<32x128xf32>, vector<64x128xf32> -> vector<64x128xf32>
    %c0_4 = arith.constant 0 : index
    %c0_5 = arith.constant 0 : index
    %6 = vector.load %arg4[%c0_4, %c0_5] : memref<1x128xf32, #tpu.memory_space<vmem>>, vector<1x128xf32>
    %7 = vector.broadcast %6 : vector<1x128xf32> to vector<64x128xf32>
    %8 = arith.addf %5, %7 : vector<64x128xf32>
    %9 = vector.shape_cast %8 : vector<64x128xf32> to vector<8x8x128xf32>
    %c0_6 = arith.constant 0 : index
    %c0_7 = arith.constant 0 : index
    %c0_8 = arith.constant 0 : index
    %10 = vector.load %arg14[%c0_6, %c0_7, %c0_8] : memref<8x8x128xf32, #tpu.memory_space<vmem>>, vector<8x8x128xf32>
    tpu.vector_store %arg14[%c0_6, %c0_7, %c0_8], %9 {strides = array<i32>} : memref<8x8x128xf32, #tpu.memory_space<vmem>>, vector<8x8x128xf32>,
    %c0_9 = arith.constant 0 : index
    %c0_10 = arith.constant 0 : index
    %11 = vector.load %arg3[%c0_9, %c0_10] : memref<32x128xf32, #tpu.memory_space<vmem>>, vector<32x128xf32>
    %12 = tpu.iota {dimensions = array<i32: 1>} : vector<8x128xi32>
    %c64_i32 = arith.constant 64 : i32
    %13 = vector.broadcast %c64_i32 : i32 to vector<8x128xi32>
    %14 = arith.cmpi sge, %12, %13 : vector<8x128xi32>
    %c96_i32 = arith.constant 96 : i32
    %15 = vector.broadcast %c96_i32 : i32 to vector<8x128xi32>
    %16 = arith.cmpi slt, %12, %15 : vector<8x128xi32>
    %17 = arith.andi %14, %16 : vector<8x128xi1>
    %c0_11 = arith.constant 0 : index
    %c0_12 = arith.constant 0 : index
    %18 = vector.load %arg12[%c0_11, %c0_12] : memref<8x32xf32, #tpu.memory_space<vmem>>, vector<8x32xf32>
    %c0_13 = arith.constant 0 : index
    %c0_14 = arith.constant 0 : index
    %19 = vector.load %arg13[%c0_13, %c0_14] : memref<8x32xf32, #tpu.memory_space<vmem>>, vector<8x32xf32>
    %c0_i32_15 = arith.constant 0 : i32
    %20 = arith.index_cast %c0_i32_15 : i32 to index
    %c0_16 = arith.constant 0 : index
    %c0_17 = arith.constant 0 : index
    %21 = vector.load %arg14[%20, %c0_16, %c0_17] : memref<8x8x128xf32, #tpu.memory_space<vmem>>, vector<1x8x128xf32>
    %22 = vector.shape_cast %21 : vector<1x8x128xf32> to vector<8x128xf32>
    %cst_18 = arith.constant dense<0.000000e+00> : vector<8x128xf32>
    %23 = tpu.matmul %18, %11, %cst_18 {dimension_numbers = #tpu.dot_dimension_numbers<[1], [0], [0], [1], [0, 0, 1, 1], [], []>, precision = #tpu.contract_precision<fp32>} : vector<8x32xf32>, vector<32x128xf32>, vector<8x128xf32> -> vector<8x128xf32>
    %24 = arith.addf %22, %23 : vector<8x128xf32>
    %cst_19 = arith.constant 5.000000e-01 : f32
    %25 = vector.broadcast %cst_19 : f32 to vector<8x128xf32>
    %26 = arith.mulf %25, %24 : vector<8x128xf32>
    %27 = arith.select %17, %24, %26 : vector<8x128xi1>, vector<8x128xf32>
    %28 = math.tanh %27 : vector<8x128xf32>
    %cst_20 = arith.constant 5.000000e-01 : f32
    %29 = vector.broadcast %cst_20 : f32 to vector<8x128xf32>
    %30 = arith.mulf %29, %28 : vector<8x128xf32>
    %cst_21 = arith.constant 5.000000e-01 : f32
    %31 = vector.broadcast %cst_21 : f32 to vector<8x128xf32>
    %32 = arith.addf %30, %31 : vector<8x128xf32>
    %33 = arith.select %17, %28, %32 : vector<8x128xi1>, vector<8x128xf32>
    %34 = vector.extract_strided_slice %33 {offsets = [0, 0], sizes = [8, 32], strides = [1, 1]} : vector<8x128xf32> to vector<8x32xf32>
    %35 = vector.extract_strided_slice %33 {offsets = [0, 32], sizes = [8, 32], strides = [1, 1]} : vector<8x128xf32> to vector<8x32xf32>
    %36 = vector.extract_strided_slice %33 {offsets = [0, 64], sizes = [8, 32], strides = [1, 1]} : vector<8x128xf32> to vector<8x32xf32>
    %37 = vector.extract_strided_slice %33 {offsets = [0, 96], sizes = [8, 32], strides = [1, 1]} : vector<8x128xf32> to vector<8x32xf32>
    %38 = arith.mulf %35, %19 : vector<8x32xf32>
    %39 = arith.mulf %34, %36 : vector<8x32xf32>
    %40 = arith.addf %38, %39 : vector<8x32xf32>
    %41 = math.tanh %40 : vector<8x32xf32>
    %42 = arith.mulf %37, %41 : vector<8x32xf32>
    %c1_i32 = arith.constant 1 : i32
    %43 = arith.index_cast %c1_i32 : i32 to index
    %c0_22 = arith.constant 0 : index
    %c0_23 = arith.constant 0 : index
    %44 = vector.load %arg14[%43, %c0_22, %c0_23] : memref<8x8x128xf32, #tpu.memory_space<vmem>>, vector<1x8x128xf32>
    %45 = vector.shape_cast %44 : vector<1x8x128xf32> to vector<8x128xf32>
    %cst_24 = arith.constant dense<0.000000e+00> : vector<8x128xf32>
    %46 = tpu.matmul %42, %11, %cst_24 {dimension_numbers = #tpu.dot_dimension_numbers<[1], [0], [0], [1], [0, 0, 1, 1], [], []>, precision = #tpu.contract_precision<fp32>} : vector<8x32xf32>, vector<32x128xf32>, vector<8x128xf32> -> vector<8x128xf32>
    %47 = arith.addf %45, %46 : vector<8x128xf32>
    %cst_25 = arith.constant 5.000000e-01 : f32
    %48 = vector.broadcast %cst_25 : f32 to vector<8x128xf32>
    %49 = arith.mulf %48, %47 : vector<8x128xf32>
    %50 = arith.select %17, %47, %49 : vector<8x128xi1>, vector<8x128xf32>
    %51 = math.tanh %50 : vector<8x128xf32>
    %cst_26 = arith.constant 5.000000e-01 : f32
    %52 = vector.broadcast %cst_26 : f32 to vector<8x128xf32>
    %53 = arith.mulf %52, %51 : vector<8x128xf32>
    %cst_27 = arith.constant 5.000000e-01 : f32
    %54 = vector.broadcast %cst_27 : f32 to vector<8x128xf32>
    %55 = arith.addf %53, %54 : vector<8x128xf32>
    %56 = arith.select %17, %51, %55 : vector<8x128xi1>, vector<8x128xf32>
    %57 = vector.extract_strided_slice %56 {offsets = [0, 0], sizes = [8, 32], strides = [1, 1]} : vector<8x128xf32> to vector<8x32xf32>
    %58 = vector.extract_strided_slice %56 {offsets = [0, 32], sizes = [8, 32], strides = [1, 1]} : vector<8x128xf32> to vector<8x32xf32>
    %59 = vector.extract_strided_slice %56 {offsets = [0, 64], sizes = [8, 32], strides = [1, 1]} : vector<8x128xf32> to vector<8x32xf32>
    %60 = vector.extract_strided_slice %56 {offsets = [0, 96], sizes = [8, 32], strides = [1, 1]} : vector<8x128xf32> to vector<8x32xf32>
    %61 = arith.mulf %58, %40 : vector<8x32xf32>
    %62 = arith.mulf %57, %59 : vector<8x32xf32>
    %63 = arith.addf %61, %62 : vector<8x32xf32>
    %64 = math.tanh %63 : vector<8x32xf32>
    %65 = arith.mulf %60, %64 : vector<8x32xf32>
    %c2_i32 = arith.constant 2 : i32
    %66 = arith.index_cast %c2_i32 : i32 to index
    %c0_28 = arith.constant 0 : index
    %c0_29 = arith.constant 0 : index
    %67 = vector.load %arg14[%66, %c0_28, %c0_29] : memref<8x8x128xf32, #tpu.memory_space<vmem>>, vector<1x8x128xf32>
    %68 = vector.shape_cast %67 : vector<1x8x128xf32> to vector<8x128xf32>
    %cst_30 = arith.constant dense<0.000000e+00> : vector<8x128xf32>
    %69 = tpu.matmul %65, %11, %cst_30 {dimension_numbers = #tpu.dot_dimension_numbers<[1], [0], [0], [1], [0, 0, 1, 1], [], []>, precision = #tpu.contract_precision<fp32>} : vector<8x32xf32>, vector<32x128xf32>, vector<8x128xf32> -> vector<8x128xf32>
    %70 = arith.addf %68, %69 : vector<8x128xf32>
    %cst_31 = arith.constant 5.000000e-01 : f32
    %71 = vector.broadcast %cst_31 : f32 to vector<8x128xf32>
    %72 = arith.mulf %71, %70 : vector<8x128xf32>
    %73 = arith.select %17, %70, %72 : vector<8x128xi1>, vector<8x128xf32>
    %74 = math.tanh %73 : vector<8x128xf32>
    %cst_32 = arith.constant 5.000000e-01 : f32
    %75 = vector.broadcast %cst_32 : f32 to vector<8x128xf32>
    %76 = arith.mulf %75, %74 : vector<8x128xf32>
    %cst_33 = arith.constant 5.000000e-01 : f32
    %77 = vector.broadcast %cst_33 : f32 to vector<8x128xf32>
    %78 = arith.addf %76, %77 : vector<8x128xf32>
    %79 = arith.select %17, %74, %78 : vector<8x128xi1>, vector<8x128xf32>
    %80 = vector.extract_strided_slice %79 {offsets = [0, 0], sizes = [8, 32], strides = [1, 1]} : vector<8x128xf32> to vector<8x32xf32>
    %81 = vector.extract_strided_slice %79 {offsets = [0, 32], sizes = [8, 32], strides = [1, 1]} : vector<8x128xf32> to vector<8x32xf32>
    %82 = vector.extract_strided_slice %79 {offsets = [0, 64], sizes = [8, 32], strides = [1, 1]} : vector<8x128xf32> to vector<8x32xf32>
    %83 = vector.extract_strided_slice %79 {offsets = [0, 96], sizes = [8, 32], strides = [1, 1]} : vector<8x128xf32> to vector<8x32xf32>
    %84 = arith.mulf %81, %63 : vector<8x32xf32>
    %85 = arith.mulf %80, %82 : vector<8x32xf32>
    %86 = arith.addf %84, %85 : vector<8x32xf32>
    %87 = math.tanh %86 : vector<8x32xf32>
    %88 = arith.mulf %83, %87 : vector<8x32xf32>
    %c3_i32 = arith.constant 3 : i32
    %89 = arith.index_cast %c3_i32 : i32 to index
    %c0_34 = arith.constant 0 : index
    %c0_35 = arith.constant 0 : index
    %90 = vector.load %arg14[%89, %c0_34, %c0_35] : memref<8x8x128xf32, #tpu.memory_space<vmem>>, vector<1x8x128xf32>
    %91 = vector.shape_cast %90 : vector<1x8x128xf32> to vector<8x128xf32>
    %cst_36 = arith.constant dense<0.000000e+00> : vector<8x128xf32>
    %92 = tpu.matmul %88, %11, %cst_36 {dimension_numbers = #tpu.dot_dimension_numbers<[1], [0], [0], [1], [0, 0, 1, 1], [], []>, precision = #tpu.contract_precision<fp32>} : vector<8x32xf32>, vector<32x128xf32>, vector<8x128xf32> -> vector<8x128xf32>
    %93 = arith.addf %91, %92 : vector<8x128xf32>
    %cst_37 = arith.constant 5.000000e-01 : f32
    %94 = vector.broadcast %cst_37 : f32 to vector<8x128xf32>
    %95 = arith.mulf %94, %93 : vector<8x128xf32>
    %96 = arith.select %17, %93, %95 : vector<8x128xi1>, vector<8x128xf32>
    %97 = math.tanh %96 : vector<8x128xf32>
    %cst_38 = arith.constant 5.000000e-01 : f32
    %98 = vector.broadcast %cst_38 : f32 to vector<8x128xf32>
    %99 = arith.mulf %98, %97 : vector<8x128xf32>
    %cst_39 = arith.constant 5.000000e-01 : f32
    %100 = vector.broadcast %cst_39 : f32 to vector<8x128xf32>
    %101 = arith.addf %99, %100 : vector<8x128xf32>
    %102 = arith.select %17, %97, %101 : vector<8x128xi1>, vector<8x128xf32>
    %103 = vector.extract_strided_slice %102 {offsets = [0, 0], sizes = [8, 32], strides = [1, 1]} : vector<8x128xf32> to vector<8x32xf32>
    %104 = vector.extract_strided_slice %102 {offsets = [0, 32], sizes = [8, 32], strides = [1, 1]} : vector<8x128xf32> to vector<8x32xf32>
    %105 = vector.extract_strided_slice %102 {offsets = [0, 64], sizes = [8, 32], strides = [1, 1]} : vector<8x128xf32> to vector<8x32xf32>
    %106 = vector.extract_strided_slice %102 {offsets = [0, 96], sizes = [8, 32], strides = [1, 1]} : vector<8x128xf32> to vector<8x32xf32>
    %107 = arith.mulf %104, %86 : vector<8x32xf32>
    %108 = arith.mulf %103, %105 : vector<8x32xf32>
    %109 = arith.addf %107, %108 : vector<8x32xf32>
    %110 = math.tanh %109 : vector<8x32xf32>
    %111 = arith.mulf %106, %110 : vector<8x32xf32>
    %c4_i32 = arith.constant 4 : i32
    %112 = arith.index_cast %c4_i32 : i32 to index
    %c0_40 = arith.constant 0 : index
    %c0_41 = arith.constant 0 : index
    %113 = vector.load %arg14[%112, %c0_40, %c0_41] : memref<8x8x128xf32, #tpu.memory_space<vmem>>, vector<1x8x128xf32>
    %114 = vector.shape_cast %113 : vector<1x8x128xf32> to vector<8x128xf32>
    %cst_42 = arith.constant dense<0.000000e+00> : vector<8x128xf32>
    %115 = tpu.matmul %111, %11, %cst_42 {dimension_numbers = #tpu.dot_dimension_numbers<[1], [0], [0], [1], [0, 0, 1, 1], [], []>, precision = #tpu.contract_precision<fp32>} : vector<8x32xf32>, vector<32x128xf32>, vector<8x128xf32> -> vector<8x128xf32>
    %116 = arith.addf %114, %115 : vector<8x128xf32>
    %cst_43 = arith.constant 5.000000e-01 : f32
    %117 = vector.broadcast %cst_43 : f32 to vector<8x128xf32>
    %118 = arith.mulf %117, %116 : vector<8x128xf32>
    %119 = arith.select %17, %116, %118 : vector<8x128xi1>, vector<8x128xf32>
    %120 = math.tanh %119 : vector<8x128xf32>
    %cst_44 = arith.constant 5.000000e-01 : f32
    %121 = vector.broadcast %cst_44 : f32 to vector<8x128xf32>
    %122 = arith.mulf %121, %120 : vector<8x128xf32>
    %cst_45 = arith.constant 5.000000e-01 : f32
    %123 = vector.broadcast %cst_45 : f32 to vector<8x128xf32>
    %124 = arith.addf %122, %123 : vector<8x128xf32>
    %125 = arith.select %17, %120, %124 : vector<8x128xi1>, vector<8x128xf32>
    %126 = vector.extract_strided_slice %125 {offsets = [0, 0], sizes = [8, 32], strides = [1, 1]} : vector<8x128xf32> to vector<8x32xf32>
    %127 = vector.extract_strided_slice %125 {offsets = [0, 32], sizes = [8, 32], strides = [1, 1]} : vector<8x128xf32> to vector<8x32xf32>
    %128 = vector.extract_strided_slice %125 {offsets = [0, 64], sizes = [8, 32], strides = [1, 1]} : vector<8x128xf32> to vector<8x32xf32>
    %129 = vector.extract_strided_slice %125 {offsets = [0, 96], sizes = [8, 32], strides = [1, 1]} : vector<8x128xf32> to vector<8x32xf32>
    %130 = arith.mulf %127, %109 : vector<8x32xf32>
    %131 = arith.mulf %126, %128 : vector<8x32xf32>
    %132 = arith.addf %130, %131 : vector<8x32xf32>
    %133 = math.tanh %132 : vector<8x32xf32>
    %134 = arith.mulf %129, %133 : vector<8x32xf32>
    %c5_i32 = arith.constant 5 : i32
    %135 = arith.index_cast %c5_i32 : i32 to index
    %c0_46 = arith.constant 0 : index
    %c0_47 = arith.constant 0 : index
    %136 = vector.load %arg14[%135, %c0_46, %c0_47] : memref<8x8x128xf32, #tpu.memory_space<vmem>>, vector<1x8x128xf32>
    %137 = vector.shape_cast %136 : vector<1x8x128xf32> to vector<8x128xf32>
    %cst_48 = arith.constant dense<0.000000e+00> : vector<8x128xf32>
    %138 = tpu.matmul %134, %11, %cst_48 {dimension_numbers = #tpu.dot_dimension_numbers<[1], [0], [0], [1], [0, 0, 1, 1], [], []>, precision = #tpu.contract_precision<fp32>} : vector<8x32xf32>, vector<32x128xf32>, vector<8x128xf32> -> vector<8x128xf32>
    %139 = arith.addf %137, %138 : vector<8x128xf32>
    %cst_49 = arith.constant 5.000000e-01 : f32
    %140 = vector.broadcast %cst_49 : f32 to vector<8x128xf32>
    %141 = arith.mulf %140, %139 : vector<8x128xf32>
    %142 = arith.select %17, %139, %141 : vector<8x128xi1>, vector<8x128xf32>
    %143 = math.tanh %142 : vector<8x128xf32>
    %cst_50 = arith.constant 5.000000e-01 : f32
    %144 = vector.broadcast %cst_50 : f32 to vector<8x128xf32>
    %145 = arith.mulf %144, %143 : vector<8x128xf32>
    %cst_51 = arith.constant 5.000000e-01 : f32
    %146 = vector.broadcast %cst_51 : f32 to vector<8x128xf32>
    %147 = arith.addf %145, %146 : vector<8x128xf32>
    %148 = arith.select %17, %143, %147 : vector<8x128xi1>, vector<8x128xf32>
    %149 = vector.extract_strided_slice %148 {offsets = [0, 0], sizes = [8, 32], strides = [1, 1]} : vector<8x128xf32> to vector<8x32xf32>
    %150 = vector.extract_strided_slice %148 {offsets = [0, 32], sizes = [8, 32], strides = [1, 1]} : vector<8x128xf32> to vector<8x32xf32>
    %151 = vector.extract_strided_slice %148 {offsets = [0, 64], sizes = [8, 32], strides = [1, 1]} : vector<8x128xf32> to vector<8x32xf32>
    %152 = vector.extract_strided_slice %148 {offsets = [0, 96], sizes = [8, 32], strides = [1, 1]} : vector<8x128xf32> to vector<8x32xf32>
    %153 = arith.mulf %150, %132 : vector<8x32xf32>
    %154 = arith.mulf %149, %151 : vector<8x32xf32>
    %155 = arith.addf %153, %154 : vector<8x32xf32>
    %156 = math.tanh %155 : vector<8x32xf32>
    %157 = arith.mulf %152, %156 : vector<8x32xf32>
    %c6_i32 = arith.constant 6 : i32
    %158 = arith.index_cast %c6_i32 : i32 to index
    %c0_52 = arith.constant 0 : index
    %c0_53 = arith.constant 0 : index
    %159 = vector.load %arg14[%158, %c0_52, %c0_53] : memref<8x8x128xf32, #tpu.memory_space<vmem>>, vector<1x8x128xf32>
    %160 = vector.shape_cast %159 : vector<1x8x128xf32> to vector<8x128xf32>
    %cst_54 = arith.constant dense<0.000000e+00> : vector<8x128xf32>
    %161 = tpu.matmul %157, %11, %cst_54 {dimension_numbers = #tpu.dot_dimension_numbers<[1], [0], [0], [1], [0, 0, 1, 1], [], []>, precision = #tpu.contract_precision<fp32>} : vector<8x32xf32>, vector<32x128xf32>, vector<8x128xf32> -> vector<8x128xf32>
    %162 = arith.addf %160, %161 : vector<8x128xf32>
    %cst_55 = arith.constant 5.000000e-01 : f32
    %163 = vector.broadcast %cst_55 : f32 to vector<8x128xf32>
    %164 = arith.mulf %163, %162 : vector<8x128xf32>
    %165 = arith.select %17, %162, %164 : vector<8x128xi1>, vector<8x128xf32>
    %166 = math.tanh %165 : vector<8x128xf32>
    %cst_56 = arith.constant 5.000000e-01 : f32
    %167 = vector.broadcast %cst_56 : f32 to vector<8x128xf32>
    %168 = arith.mulf %167, %166 : vector<8x128xf32>
    %cst_57 = arith.constant 5.000000e-01 : f32
    %169 = vector.broadcast %cst_57 : f32 to vector<8x128xf32>
    %170 = arith.addf %168, %169 : vector<8x128xf32>
    %171 = arith.select %17, %166, %170 : vector<8x128xi1>, vector<8x128xf32>
    %172 = vector.extract_strided_slice %171 {offsets = [0, 0], sizes = [8, 32], strides = [1, 1]} : vector<8x128xf32> to vector<8x32xf32>
    %173 = vector.extract_strided_slice %171 {offsets = [0, 32], sizes = [8, 32], strides = [1, 1]} : vector<8x128xf32> to vector<8x32xf32>
    %174 = vector.extract_strided_slice %171 {offsets = [0, 64], sizes = [8, 32], strides = [1, 1]} : vector<8x128xf32> to vector<8x32xf32>
    %175 = vector.extract_strided_slice %171 {offsets = [0, 96], sizes = [8, 32], strides = [1, 1]} : vector<8x128xf32> to vector<8x32xf32>
    %176 = arith.mulf %173, %155 : vector<8x32xf32>
    %177 = arith.mulf %172, %174 : vector<8x32xf32>
    %178 = arith.addf %176, %177 : vector<8x32xf32>
    %179 = math.tanh %178 : vector<8x32xf32>
    %180 = arith.mulf %175, %179 : vector<8x32xf32>
    %c7_i32 = arith.constant 7 : i32
    %181 = arith.index_cast %c7_i32 : i32 to index
    %c0_58 = arith.constant 0 : index
    %c0_59 = arith.constant 0 : index
    %182 = vector.load %arg14[%181, %c0_58, %c0_59] : memref<8x8x128xf32, #tpu.memory_space<vmem>>, vector<1x8x128xf32>
    %183 = vector.shape_cast %182 : vector<1x8x128xf32> to vector<8x128xf32>
    %cst_60 = arith.constant dense<0.000000e+00> : vector<8x128xf32>
    %184 = tpu.matmul %180, %11, %cst_60 {dimension_numbers = #tpu.dot_dimension_numbers<[1], [0], [0], [1], [0, 0, 1, 1], [], []>, precision = #tpu.contract_precision<fp32>} : vector<8x32xf32>, vector<32x128xf32>, vector<8x128xf32> -> vector<8x128xf32>
    %185 = arith.addf %183, %184 : vector<8x128xf32>
    %cst_61 = arith.constant 5.000000e-01 : f32
    %186 = vector.broadcast %cst_61 : f32 to vector<8x128xf32>
    %187 = arith.mulf %186, %185 : vector<8x128xf32>
    %188 = arith.select %17, %185, %187 : vector<8x128xi1>, vector<8x128xf32>
    %189 = math.tanh %188 : vector<8x128xf32>
    %cst_62 = arith.constant 5.000000e-01 : f32
    %190 = vector.broadcast %cst_62 : f32 to vector<8x128xf32>
    %191 = arith.mulf %190, %189 : vector<8x128xf32>
    %cst_63 = arith.constant 5.000000e-01 : f32
    %192 = vector.broadcast %cst_63 : f32 to vector<8x128xf32>
    %193 = arith.addf %191, %192 : vector<8x128xf32>
    %194 = arith.select %17, %189, %193 : vector<8x128xi1>, vector<8x128xf32>
    %195 = vector.extract_strided_slice %194 {offsets = [0, 0], sizes = [8, 32], strides = [1, 1]} : vector<8x128xf32> to vector<8x32xf32>
    %196 = vector.extract_strided_slice %194 {offsets = [0, 32], sizes = [8, 32], strides = [1, 1]} : vector<8x128xf32> to vector<8x32xf32>
    %197 = vector.extract_strided_slice %194 {offsets = [0, 64], sizes = [8, 32], strides = [1, 1]} : vector<8x128xf32> to vector<8x32xf32>
    %198 = vector.extract_strided_slice %194 {offsets = [0, 96], sizes = [8, 32], strides = [1, 1]} : vector<8x128xf32> to vector<8x32xf32>
    %199 = arith.mulf %196, %178 : vector<8x32xf32>
    %200 = arith.mulf %195, %197 : vector<8x32xf32>
    %201 = arith.addf %199, %200 : vector<8x32xf32>
    %202 = math.tanh %201 : vector<8x32xf32>
    %203 = arith.mulf %198, %202 : vector<8x32xf32>
    %c8_i32 = arith.constant 8 : i32
    %c0_64 = arith.constant 0 : index
    %c0_65 = arith.constant 0 : index
    %204 = vector.load %arg12[%c0_64, %c0_65] : memref<8x32xf32, #tpu.memory_space<vmem>>, vector<8x32xf32>
    tpu.vector_store %arg12[%c0_64, %c0_65], %203 {strides = array<i32>} : memref<8x32xf32, #tpu.memory_space<vmem>>, vector<8x32xf32>,
    %c0_66 = arith.constant 0 : index
    %c0_67 = arith.constant 0 : index
    %205 = vector.load %arg13[%c0_66, %c0_67] : memref<8x32xf32, #tpu.memory_space<vmem>>, vector<8x32xf32>
    tpu.vector_store %arg13[%c0_66, %c0_67], %201 {strides = array<i32>} : memref<8x32xf32, #tpu.memory_space<vmem>>, vector<8x32xf32>,
    %c0_i32_68 = arith.constant 0 : i32
    %206 = arith.cmpi eq, %arg0, %c0_i32_68 : i32
    %207 = arith.extui %206 : i1 to i32
    %c0_i32_69 = arith.constant 0 : i32
    %208 = arith.cmpi ne, %207, %c0_i32_69 : i32
    scf.if %208 {
      %c0_70 = arith.constant 0 : index
      %c0_71 = arith.constant 0 : index
      %209 = vector.load %arg6[%c0_70, %c0_71] : memref<32x64xf32, #tpu.memory_space<vmem>>, vector<32x64xf32>
      %cst_72 = arith.constant dense<0.000000e+00> : vector<8x64xf32>
      %210 = tpu.matmul %203, %209, %cst_72 {dimension_numbers = #tpu.dot_dimension_numbers<[1], [0], [0], [1], [0, 0, 1, 1], [], []>, precision = #tpu.contract_precision<fp32>} : vector<8x32xf32>, vector<32x64xf32>, vector<8x64xf32> -> vector<8x64xf32>
      %c0_73 = arith.constant 0 : index
      %c0_74 = arith.constant 0 : index
      %211 = vector.load %arg5[%c0_73, %c0_74] : memref<8x16xf32, #tpu.memory_space<vmem>>, vector<8x16xf32>
      %c0_75 = arith.constant 0 : index
      %c0_76 = arith.constant 0 : index
      %212 = vector.load %arg7[%c0_75, %c0_76] : memref<16x64xf32, #tpu.memory_space<vmem>>, vector<16x64xf32>
      %cst_77 = arith.constant dense<0.000000e+00> : vector<8x64xf32>
      %213 = tpu.matmul %211, %212, %cst_77 {dimension_numbers = #tpu.dot_dimension_numbers<[1], [0], [0], [1], [0, 0, 1, 1], [], []>, precision = #tpu.contract_precision<fp32>} : vector<8x16xf32>, vector<16x64xf32>, vector<8x64xf32> -> vector<8x64xf32>
      %214 = arith.addf %210, %213 : vector<8x64xf32>
      %c0_78 = arith.constant 0 : index
      %c0_79 = arith.constant 0 : index
      %215 = vector.load %arg8[%c0_78, %c0_79] : memref<1x64xf32, #tpu.memory_space<vmem>>, vector<1x64xf32>
      %216 = vector.broadcast %215 : vector<1x64xf32> to vector<8x64xf32>
      %217 = arith.addf %214, %216 : vector<8x64xf32>
      %cst_80 = arith.constant 0.000000e+00 : f32
      %218 = vector.broadcast %cst_80 : f32 to vector<8x64xf32>
      %219 = arith.maximumf %217, %218 : vector<8x64xf32>
      %c0_81 = arith.constant 0 : index
      %c0_82 = arith.constant 0 : index
      %220 = vector.load %arg9[%c0_81, %c0_82] : memref<64x32xf32, #tpu.memory_space<vmem>>, vector<64x32xf32>
      %cst_83 = arith.constant dense<0.000000e+00> : vector<8x32xf32>
      %221 = tpu.matmul %219, %220, %cst_83 {dimension_numbers = #tpu.dot_dimension_numbers<[1], [0], [0], [1], [0, 0, 1, 1], [], []>, precision = #tpu.contract_precision<fp32>} : vector<8x64xf32>, vector<64x32xf32>, vector<8x32xf32> -> vector<8x32xf32>
      %c0_84 = arith.constant 0 : index
      %c0_85 = arith.constant 0 : index
      %222 = vector.load %arg10[%c0_84, %c0_85] : memref<1x32xf32, #tpu.memory_space<vmem>>, vector<1x32xf32>
      %223 = vector.broadcast %222 : vector<1x32xf32> to vector<8x32xf32>
      %224 = arith.addf %221, %223 : vector<8x32xf32>
      %c0_86 = arith.constant 0 : index
      %c0_87 = arith.constant 0 : index
      %225 = vector.load %arg11[%c0_86, %c0_87] : memref<8x32xf32, #tpu.memory_space<vmem>>, vector<8x32xf32>
      tpu.vector_store %arg11[%c0_86, %c0_87], %224 {strides = array<i32>} : memref<8x32xf32, #tpu.memory_space<vmem>>, vector<8x32xf32>,
    } else {
    }
    return
  }
  func.func @transform_0(%arg0: i32) -> (i32, i32) {
    %c0_i32 = arith.constant 0 : i32
    %c0_i32_0 = arith.constant 0 : i32
    return %arg0, %c0_i32 : i32, i32
  }
  func.func @transform_1(%arg0: i32) -> (i32, i32) {
    %c0_i32 = arith.constant 0 : i32
    %c0_i32_0 = arith.constant 0 : i32
    %c0_i32_1 = arith.constant 0 : i32
    return %c0_i32, %c0_i32_0 : i32, i32
  }
  func.func @transform_2(%arg0: i32) -> (i32, i32) {
    %c0_i32 = arith.constant 0 : i32
    %c0_i32_0 = arith.constant 0 : i32
    %c0_i32_1 = arith.constant 0 : i32
    return %c0_i32, %c0_i32_0 : i32, i32
  }
  func.func @transform_3(%arg0: i32) -> (i32, i32) {
    %c0_i32 = arith.constant 0 : i32
    %c0_i32_0 = arith.constant 0 : i32
    %c0_i32_1 = arith.constant 0 : i32
    return %c0_i32, %c0_i32_0 : i32, i32
  }
  func.func @transform_4(%arg0: i32) -> (i32, i32) {
    %c0_i32 = arith.constant 0 : i32
    %c0_i32_0 = arith.constant 0 : i32
    %c0_i32_1 = arith.constant 0 : i32
    return %c0_i32, %c0_i32_0 : i32, i32
  }
  func.func @transform_5(%arg0: i32) -> (i32, i32) {
    %c0_i32 = arith.constant 0 : i32
    %c0_i32_0 = arith.constant 0 : i32
    %c0_i32_1 = arith.constant 0 : i32
    return %c0_i32, %c0_i32_0 : i32, i32
  }
  func.func @transform_6(%arg0: i32) -> (i32, i32) {
    %c0_i32 = arith.constant 0 : i32
    %c0_i32_0 = arith.constant 0 : i32
    %c0_i32_1 = arith.constant 0 : i32
    return %c0_i32, %c0_i32_0 : i32, i32
  }
  func.func @transform_7(%arg0: i32) -> (i32, i32) {
    %c0_i32 = arith.constant 0 : i32
    %c0_i32_0 = arith.constant 0 : i32
    %c0_i32_1 = arith.constant 0 : i32
    return %c0_i32, %c0_i32_0 : i32, i32
  }
  func.func @transform_8(%arg0: i32) -> (i32, i32) {
    %c0_i32 = arith.constant 0 : i32
    %c0_i32_0 = arith.constant 0 : i32
    %c0_i32_1 = arith.constant 0 : i32
    return %c0_i32, %c0_i32_0 : i32, i32
  }
  func.func @transform_9(%arg0: i32) -> (i32, i32) {
    %c0_i32 = arith.constant 0 : i32
    %c0_i32_0 = arith.constant 0 : i32
    %c0_i32_1 = arith.constant 0 : i32
    return %c0_i32, %c0_i32_0 : i32, i32
  }
  func.func @transform_10(%arg0: i32) -> (i32, i32) {
    %c0_i32 = arith.constant 0 : i32
    %c0_i32_0 = arith.constant 0 : i32
    %c0_i32_1 = arith.constant 0 : i32
    return %c0_i32, %c0_i32_0 : i32, i32
  }
}

</mosaic_0001>

<llo_original>
// kernel: tpu_custom_call.1
$region0: #{tpu_custom_call.1}
  #allocation0 [shape = 'u32[]', space=smem, size = 0x4, offset = 0x4, fixed_abs, tag = 'smem constant byte address 0x4 - core index']
  #allocation1 [shape = 'u32[144,128]{1,0:T(1,128)}', space=vmem, size = 0x12000, scoped, tag = 'internal scratch']
  #allocation2 [shape = 'f32[8,32]{1,0:T(8,128)}', space=vmem, size = 0x1000, scoped, tag = 'scratch operand']
  #allocation3 [shape = 'f32[8,32]{1,0:T(8,128)}', space=vmem, size = 0x1000, scoped, tag = 'scratch operand']
  #allocation4 [shape = 'f32[8,8,128]{2,1,0:T(8,128)}', space=vmem, size = 0x8000, scoped, tag = 'scratch operand']
  %s0 = inlined_call_operand.vmem [shape: f32[64,32], index: 0, kind: input, shape index: {}]
  %s1 = inlined_call_operand.vmem [shape: f32[32,128], index: 1, kind: input, shape index: {}]
  %s2 = inlined_call_operand.vmem [shape: f32[32,128], index: 2, kind: input, shape index: {}]
  %s3 = inlined_call_operand.vmem [shape: f32[1,128], index: 3, kind: input, shape index: {}]
  %s4 = inlined_call_operand.vmem [shape: f32[8,16], index: 4, kind: input, shape index: {}]
  %s5 = inlined_call_operand.vmem [shape: f32[32,64], index: 5, kind: input, shape index: {}]
  %s6 = inlined_call_operand.vmem [shape: f32[16,64], index: 6, kind: input, shape index: {}]
  %s7 = inlined_call_operand.vmem [shape: f32[1,64], index: 7, kind: input, shape index: {}]
  %s8 = inlined_call_operand.vmem [shape: f32[64,32], index: 8, kind: input, shape index: {}]
  %s9 = inlined_call_operand.vmem [shape: f32[1,32], index: 9, kind: input, shape index: {}]
  %s10 = inlined_call_operand.hbm [shape: f32[8,32], index: 10, kind: output, shape index: {}]
  %s11 = sld [smem:[#allocation0]]
  $region58: #{tpu_custom_call.1} parent=0
    _
  %s13 = ssub.s32 1, %s11
  %s14 = scalar_select 0, %s13, %s11
  $region1: #{tpu_custom_call.1} parent=0
    #allocation5 [shape = 'u8[4096]{0}', space=vmem, size = 0x1000, scoped, tag = 'output window, operand 0, single buffered']
    #allocation6 [shape = 's32[1]{0}', space=sflag, size = 0x4, scoped, tag = 'scoped memory for tpu_custom_call.1']
    %15 = vsyncpa [#allocation6], 0
    // Predicated region
    $region2: #{tpu_custom_call.1} parent=1 // pred_check
      _
    $region3: #{tpu_custom_call.1} parent=1 // pred_check_branch
      %17 = sbr.rel (0) target = $region5
    $region4: #{tpu_custom_call.1} parent=1 // pred_region
      _
    $region5: #{tpu_custom_call.1} parent=1 // pred_fallthru
      _
    // Predicated region
    $region6: #{tpu_custom_call.1} parent=1 // pred_check
      _
    $region7: #{tpu_custom_call.1} parent=1 // pred_check_branch
      %19 = sbr.rel (0) target = $region9
    $region8: #{tpu_custom_call.1} parent=1 // pred_region
      _
    $region9: #{tpu_custom_call.1} parent=1 // pred_fallthru
      _
    // Predicated region
    $region10: #{tpu_custom_call.1} parent=1 // pred_check
      _
    $region11: #{tpu_custom_call.1} parent=1 // pred_check_branch
      %21 = sbr.rel (0) target = $region13
    $region12: #{tpu_custom_call.1} parent=1 // pred_region
      _
    $region13: #{tpu_custom_call.1} parent=1 // pred_fallthru
      _
    // Predicated region
    $region14: #{tpu_custom_call.1} parent=1 // pred_check
      _
    $region15: #{tpu_custom_call.1} parent=1 // pred_check_branch
      %23 = sbr.rel (0) target = $region17
    $region16: #{tpu_custom_call.1} parent=1 // pred_region
      _
    $region17: #{tpu_custom_call.1} parent=1 // pred_fallthru
      _
    // Predicated region
    $region18: #{tpu_custom_call.1} parent=1 // pred_check
      _
    $region19: #{tpu_custom_call.1} parent=1 // pred_check_branch
      %25 = sbr.rel (0) target = $region21
    $region20: #{tpu_custom_call.1} parent=1 // pred_region
      _
    $region21: #{tpu_custom_call.1} parent=1 // pred_fallthru
      _
    // Predicated region
    $region22: #{tpu_custom_call.1} parent=1 // pred_check
      _
    $region23: #{tpu_custom_call.1} parent=1 // pred_check_branch
      %27 = sbr.rel (0) target = $region25
    $region24: #{tpu_custom_call.1} parent=1 // pred_region
      _
    $region25: #{tpu_custom_call.1} parent=1 // pred_fallthru
      _
    // Predicated region
    $region26: #{tpu_custom_call.1} parent=1 // pred_check
      _
    $region27: #{tpu_custom_call.1} parent=1 // pred_check_branch
      %29 = sbr.rel (0) target = $region29
    $region28: #{tpu_custom_call.1} parent=1 // pred_region
      _
    $region29: #{tpu_custom_call.1} parent=1 // pred_fallthru
      _
    // Predicated region
    $region30: #{tpu_custom_call.1} parent=1 // pred_check
      _
    $region31: #{tpu_custom_call.1} parent=1 // pred_check_branch
      %31 = sbr.rel (0) target = $region33
    $region32: #{tpu_custom_call.1} parent=1 // pred_region
      _
    $region33: #{tpu_custom_call.1} parent=1 // pred_fallthru
      _
    // Predicated region
    $region34: #{tpu_custom_call.1} parent=1 // pred_check
      _
    $region35: #{tpu_custom_call.1} parent=1 // pred_check_branch
      %33 = sbr.rel (0) target = $region37
    $region36: #{tpu_custom_call.1} parent=1 // pred_region
      _
    $region37: #{tpu_custom_call.1} parent=1 // pred_fallthru
      _
    // Predicated region
    $region38: #{tpu_custom_call.1} parent=1 // pred_check
      _
    $region39: #{tpu_custom_call.1} parent=1 // pred_check_branch
      %35 = sbr.rel (0) target = $region41
    $region40: #{tpu_custom_call.1} parent=1 // pred_region
      _
    $region41: #{tpu_custom_call.1} parent=1 // pred_fallthru
      _
    %p36 = scmp.eq.s32.totalorder 0, 0
    // Predicated region
    $region42: #{tpu_custom_call.1} parent=1 // pred_check
      %p37 = pneg %p36
    $region43: #{tpu_custom_call.1} parent=1 // pred_check_branch
      %39 = sbr.rel (%p37) target = $region45
    $region44: #{tpu_custom_call.1} parent=1 // pred_region
      %vm40 = vcmask 261120
      %41 = vst.msk [vmem:[#allocation2] sm:$0xff] %vm40, 0.0
      %42 = vst.msk [vmem:[#allocation3] sm:$0xff] %vm40, 0.0
    $region45: #{tpu_custom_call.1} parent=1 // pred_fallthru
      _
    %v43 = vld [vmem:[%s0] sm:$0xff]
    %v44 = vld [vmem:[%s0 + $0x8] sm:$0xff]
    %v45 = vld [vmem:[%s0 + $0x10] sm:$0xff]
    %v46 = vld [vmem:[%s0 + $0x18] sm:$0xff]
    %v47 = vld [vmem:[%s0 + $0x20] sm:$0xff]
    %v48 = vld [vmem:[%s0 + $0x28] sm:$0xff]
    %v49 = vld [vmem:[%s0 + $0x30] sm:$0xff]
    %v50 = vld [vmem:[%s0 + $0x38] sm:$0xff]
    %v51 = vld [vmem:[%s1] sm:$0xff]
    %v52 = vld [vmem:[%s1 + $0x8] sm:$0xff]
    %v53 = vld [vmem:[%s1 + $0x10] sm:$0xff]
    %v54 = vld [vmem:[%s1 + $0x18] sm:$0xff]
    %v55 = vld [vmem:[%s3] sm:$0x1]
    %v57 = vlaneseq
    %v58 = vshrl.u32 %v57, 7
    %v59 = vsub.s32 0, %v58
    %v60 = vrot.slane %v55, %v59
    %vm62 = vcmask 261120
    %v64 = vsel %vm62, %v43, 0
    %v67 = vsel %vm62, %v44, 0
    %v70 = vsel %vm62, %v45, 0
    %v73 = vsel %vm62, %v46, 0
    %v76 = vsel %vm62, %v47, 0
    %v79 = vsel %vm62, %v48, 0
    %v82 = vsel %vm62, %v49, 0
    %v85 = vsel %vm62, %v50, 0
    %87 = vmatprep.subr.mxu0 0.0
    %88 = vmatpush1.msra.mxu0 0.0
    %89 = vmatprep.subr.mxu0 0.0
    %90 = vmatpush1.msra.mxu0 0.0
    %91 = vmatprep.subr.mxu0 0.0
    %92 = vmatpush1.msra.mxu0 0.0
    %93 = vmatprep.subr.mxu0 0.0
    %94 = vmatpush1.msra.mxu0 0.0
    %95 = vmatprep.subr.mxu0 0.0
    %96 = vmatpush1.msra.mxu0 0.0
    %97 = vmatprep.subr.mxu0 0.0
    %98 = vmatpush1.msra.mxu0 0.0
    %99 = vmatprep.subr.mxu0 0.0
    %100 = vmatpush1.msra.mxu0 0.0
    %101 = vmatprep.subr.mxu0 0.0
    %102 = vmatpush1.msra.mxu0 0.0
    %103 = vmatprep.subr.mxu0 0.0
    %104 = vmatpush1.msra.mxu0 0.0
    %105 = vmatprep.subr.mxu0 0.0
    %106 = vmatpush1.msra.mxu0 0.0
    %107 = vmatprep.subr.mxu0 0.0
    %108 = vmatpush1.msra.mxu0 0.0
    %109 = vmatprep.subr.mxu0 0.0
    %110 = vmatpush1.msra.mxu0 0.0
    %111 = vmatprep.subr.mxu0 0.0
    %v112 = vand.u32 %v54, 4294901760
    %113 = vmatpush1.msra.mxu0 %v112
    %114 = vmatprep.subr.mxu0 0.0
    %v115 = vand.u32 %v53, 4294901760
    %116 = vmatpush1.msra.mxu0 %v115
    %117 = vmatprep.subr.mxu0 0.0
    %v118 = vand.u32 %v52, 4294901760
    %119 = vmatpush1.msra.mxu0 %v118
    %120 = vmatprep.subr.mxu0 0.0
    %v121 = vand.u32 %v51, 4294901760
    %122 = vmatpush1.msra.mxu0 %v121
    %123 = vmatprep.subr.mxu0 0.0
    %124 = vmatpush2.msra.mxu0 0.0
    %125 = vmatprep.subr.mxu0 0.0
    %126 = vmatpush2.msra.mxu0 0.0
    %127 = vmatprep.subr.mxu0 0.0
    %128 = vmatpush2.msra.mxu0 0.0
    %129 = vmatprep.subr.mxu0 0.0
    %130 = vmatpush2.msra.mxu0 0.0
    %131 = vmatprep.subr.mxu0 0.0
    %132 = vmatpush2.msra.mxu0 0.0
    %133 = vmatprep.subr.mxu0 0.0
    %134 = vmatpush2.msra.mxu0 0.0
    %135 = vmatprep.subr.mxu0 0.0
    %136 = vmatpush2.msra.mxu0 0.0
    %137 = vmatprep.subr.mxu0 0.0
    %138 = vmatpush2.msra.mxu0 0.0
    %139 = vmatprep.subr.mxu0 0.0
    %140 = vmatpush2.msra.mxu0 0.0
    %141 = vmatprep.subr.mxu0 0.0
    %142 = vmatpush2.msra.mxu0 0.0
    %143 = vmatprep.subr.mxu0 0.0
    %144 = vmatpush2.msra.mxu0 0.0
    %145 = vmatprep.subr.mxu0 0.0
    %146 = vmatpush2.msra.mxu0 0.0
    %147 = vmatprep.subr.mxu0 0.0
    %148 = vmatpush2.msra.mxu0 0.0
    %149 = vmatprep.subr.mxu0 0.0
    %150 = vmatpush2.msra.mxu0 0.0
    %151 = vmatprep.subr.mxu0 0.0
    %152 = vmatpush2.msra.mxu0 0.0
    %153 = vmatprep.subr.mxu0 0.0
    %154 = vmatpush2.msra.mxu0 0.0
    %155 = vmatprep.mubr.f32.mxu0 0.0
    %v156 = vand.u32 %v64, 4294901760
    %v157 = vsub.f32 %v64, %v156
    %v158 = vand.u32 %v157, 4294901760
    %v159 = vsub.f32 %v157, %v158
    %v160 = vand.u32 %v159, 4294901760
    %161 = vmatmul.mubr.f32.gmra.mxu0 %v160
    %v162 = vpop.f32.mrf.mxu0
    %v163 = vadd.f32 %v60, %v162
    %v164 = vpop.f32.mrf.mxu0
    %165 = vmatprep.mubr.f32.mxu0 0.0
    %v166 = vand.u32 %v67, 4294901760
    %v167 = vsub.f32 %v67, %v166
    %v168 = vand.u32 %v167, 4294901760
    %v169 = vsub.f32 %v167, %v168
    %v170 = vand.u32 %v169, 4294901760
    %171 = vmatmul.mubr.f32.gmra.mxu0 %v170
    %v172 = vpop.f32.mrf.mxu0
    %v173 = vadd.f32 %v60, %v172
    %v174 = vpop.f32.mrf.mxu0
    %175 = vmatprep.mubr.f32.mxu0 0.0
    %v176 = vand.u32 %v70, 4294901760
    %v177 = vsub.f32 %v70, %v176
    %v178 = vand.u32 %v177, 4294901760
    %v179 = vsub.f32 %v177, %v178
    %v180 = vand.u32 %v179, 4294901760
    %181 = vmatmul.mubr.f32.gmra.mxu0 %v180
    %v182 = vpop.f32.mrf.mxu0
    %v183 = vadd.f32 %v60, %v182
    %v184 = vpop.f32.mrf.mxu0
    %185 = vmatprep.mubr.f32.mxu0 0.0
    %v186 = vand.u32 %v73, 4294901760
    %v187 = vsub.f32 %v73, %v186
    %v188 = vand.u32 %v187, 4294901760
    %v189 = vsub.f32 %v187, %v188
    %v190 = vand.u32 %v189, 4294901760
    %191 = vmatmul.mubr.f32.gmra.mxu0 %v190
    %v192 = vpop.f32.mrf.mxu0
    %v193 = vadd.f32 %v60, %v192
    %v194 = vpop.f32.mrf.mxu0
    %195 = vmatprep.mubr.f32.mxu0 0.0
    %v196 = vand.u32 %v76, 4294901760
    %v197 = vsub.f32 %v76, %v196
    %v198 = vand.u32 %v197, 4294901760
    %v199 = vsub.f32 %v197, %v198
    %v200 = vand.u32 %v199, 4294901760
    %201 = vmatmul.mubr.f32.gmra.mxu0 %v200
    %v202 = vpop.f32.mrf.mxu0
    %v203 = vadd.f32 %v60, %v202
    %v204 = vpop.f32.mrf.mxu0
    %205 = vmatprep.mubr.f32.mxu0 0.0
    %v206 = vand.u32 %v79, 4294901760
    %v207 = vsub.f32 %v79, %v206
    %v208 = vand.u32 %v207, 4294901760
    %v209 = vsub.f32 %v207, %v208
    %v210 = vand.u32 %v209, 4294901760
    %211 = vmatmul.mubr.f32.gmra.mxu0 %v210
    %v212 = vpop.f32.mrf.mxu0
    %v213 = vadd.f32 %v60, %v212
    %v214 = vpop.f32.mrf.mxu0
    %215 = vmatprep.mubr.f32.mxu0 0.0
    %v216 = vand.u32 %v82, 4294901760
    %v217 = vsub.f32 %v82, %v216
    %v218 = vand.u32 %v217, 4294901760
    %v219 = vsub.f32 %v217, %v218
    %v220 = vand.u32 %v219, 4294901760
    %221 = vmatmul.mubr.f32.gmra.mxu0 %v220
    %v222 = vpop.f32.mrf.mxu0
    %v223 = vadd.f32 %v60, %v222
    %v224 = vpop.f32.mrf.mxu0
    %225 = vmatprep.mubr.f32.mxu0 0.0
    %v226 = vand.u32 %v85, 4294901760
    %v227 = vsub.f32 %v85, %v226
    %v228 = vand.u32 %v227, 4294901760
    %v229 = vsub.f32 %v227, %v228
    %v230 = vand.u32 %v229, 4294901760
    %231 = vmatmul.mubr.f32.gmra.mxu0 %v230
    %v232 = vpop.f32.mrf.mxu0
    %v233 = vadd.f32 %v60, %v232
    %v234 = vpop.f32.mrf.mxu0
    %235 = vdwg.mxu0
    %236 = vmatprep.subr.mxu0 0.0
    %237 = vmatpush1.msra.mxu0 0.0
    %238 = vmatprep.subr.mxu0 0.0
    %239 = vmatpush1.msra.mxu0 0.0
    %240 = vmatprep.subr.mxu0 0.0
    %241 = vmatpush1.msra.mxu0 0.0
    %242 = vmatprep.subr.mxu0 0.0
    %243 = vmatpush1.msra.mxu0 0.0
    %244 = vmatprep.subr.mxu0 0.0
    %245 = vmatpush1.msra.mxu0 0.0
    %246 = vmatprep.subr.mxu0 0.0
    %247 = vmatpush1.msra.mxu0 0.0
    %248 = vmatprep.subr.mxu0 0.0
    %249 = vmatpush1.msra.mxu0 0.0
    %250 = vmatprep.subr.mxu0 0.0
    %251 = vmatpush1.msra.mxu0 0.0
    %252 = vmatprep.subr.mxu0 0.0
    %253 = vmatpush1.msra.mxu0 0.0
    %254 = vmatprep.subr.mxu0 0.0
    %255 = vmatpush1.msra.mxu0 0.0
    %256 = vmatprep.subr.mxu0 0.0
    %257 = vmatpush1.msra.mxu0 0.0
    %258 = vmatprep.subr.mxu0 0.0
    %259 = vmatpush1.msra.mxu0 0.0
    %260 = vmatprep.subr.mxu0 0.0
    %v261 = vand.u32 %v54, 4294901760
    %v262 = vsub.f32 %v54, %v261
    %v263 = vand.u32 %v262, 4294901760
    %v264 = vsub.f32 %v262, %v263
    %v265 = vand.u32 %v264, 4294901760
    %266 = vmatpush1.msra.mxu0 %v265
    %267 = vmatprep.subr.mxu0 0.0
    %v268 = vand.u32 %v53, 4294901760
    %v269 = vsub.f32 %v53, %v268
    %v270 = vand.u32 %v269, 4294901760
    %v271 = vsub.f32 %v269, %v270
    %v272 = vand.u32 %v271, 4294901760
    %273 = vmatpush1.msra.mxu0 %v272
    %274 = vmatprep.subr.mxu0 0.0
    %v275 = vand.u32 %v52, 4294901760
    %v276 = vsub.f32 %v52, %v275
    %v277 = vand.u32 %v276, 4294901760
    %v278 = vsub.f32 %v276, %v277
    %v279 = vand.u32 %v278, 4294901760
    %280 = vmatpush1.msra.mxu0 %v279
    %281 = vmatprep.subr.mxu0 0.0
    %v282 = vand.u32 %v51, 4294901760
    %v283 = vsub.f32 %v51, %v282
    %v284 = vand.u32 %v283, 4294901760
    %v285 = vsub.f32 %v283, %v284
    %v286 = vand.u32 %v285, 4294901760
    %287 = vmatpush1.msra.mxu0 %v286
    %288 = vmatprep.subr.mxu0 0.0
    %289 = vmatpush2.msra.mxu0 0.0
    %290 = vmatprep.subr.mxu0 0.0
    %291 = vmatpush2.msra.mxu0 0.0
    %292 = vmatprep.subr.mxu0 0.0
    %293 = vmatpush2.msra.mxu0 0.0
    %294 = vmatprep.subr.mxu0 0.0
    %295 = vmatpush2.msra.mxu0 0.0
    %296 = vmatprep.subr.mxu0 0.0
    %297 = vmatpush2.msra.mxu0 0.0
    %298 = vmatprep.subr.mxu0 0.0
    %299 = vmatpush2.msra.mxu0 0.0
    %300 = vmatprep.subr.mxu0 0.0
    %301 = vmatpush2.msra.mxu0 0.0
    %302 = vmatprep.subr.mxu0 0.0
    %303 = vmatpush2.msra.mxu0 0.0
    %304 = vmatprep.subr.mxu0 0.0
    %305 = vmatpush2.msra.mxu0 0.0
    %306 = vmatprep.subr.mxu0 0.0
    %307 = vmatpush2.msra.mxu0 0.0
    %308 = vmatprep.subr.mxu0 0.0
    %309 = vmatpush2.msra.mxu0 0.0
    %310 = vmatprep.subr.mxu0 0.0
    %311 = vmatpush2.msra.mxu0 0.0
    %312 = vmatprep.subr.mxu0 0.0
    %313 = vmatpush2.msra.mxu0 0.0
    %314 = vmatprep.subr.mxu0 0.0
    %315 = vmatpush2.msra.mxu0 0.0
    %316 = vmatprep.subr.mxu0 0.0
    %317 = vmatpush2.msra.mxu0 0.0
    %318 = vmatprep.subr.mxu0 0.0
    %319 = vmatpush2.msra.mxu0 0.0
    %320 = vmatprep.mubr.f32.mxu0 0.0
    %v321 = vand.u32 %v64, 4294901760
    %322 = vmatmul.mubr.f32.gmra.mxu0 %v321
    %v323 = vpop.f32.mrf.mxu0
    %v324 = vadd.f32 %v163, %v323
    %v325 = vpop.f32.mrf.mxu0
    %326 = vmatprep.mubr.f32.mxu0 0.0
    %v327 = vand.u32 %v67, 4294901760
    %328 = vmatmul.mubr.f32.gmra.mxu0 %v327
    %v329 = vpop.f32.mrf.mxu0
    %v330 = vadd.f32 %v173, %v329
    %v331 = vpop.f32.mrf.mxu0
    %332 = vmatprep.mubr.f32.mxu0 0.0
    %v333 = vand.u32 %v70, 4294901760
    %334 = vmatmul.mubr.f32.gmra.mxu0 %v333
    %v335 = vpop.f32.mrf.mxu0
    %v336 = vadd.f32 %v183, %v335
    %v337 = vpop.f32.mrf.mxu0
    %338 = vmatprep.mubr.f32.mxu0 0.0
    %v339 = vand.u32 %v73, 4294901760
    %340 = vmatmul.mubr.f32.gmra.mxu0 %v339
    %v341 = vpop.f32.mrf.mxu0
    %v342 = vadd.f32 %v193, %v341
    %v343 = vpop.f32.mrf.mxu0
    %344 = vmatprep.mubr.f32.mxu0 0.0
    %v345 = vand.u32 %v76, 4294901760
    %346 = vmatmul.mubr.f32.gmra.mxu0 %v345
    %v347 = vpop.f32.mrf.mxu0
    %v348 = vadd.f32 %v203, %v347
    %v349 = vpop.f32.mrf.mxu0
    %350 = vmatprep.mubr.f32.mxu0 0.0
    %v351 = vand.u32 %v79, 4294901760
    %352 = vmatmul.mubr.f32.gmra.mxu0 %v351
    %v353 = vpop.f32.mrf.mxu0
    %v354 = vadd.f32 %v213, %v353
    %v355 = vpop.f32.mrf.mxu0
    %356 = vmatprep.mubr.f32.mxu0 0.0
    %v357 = vand.u32 %v82, 4294901760
    %358 = vmatmul.mubr.f32.gmra.mxu0 %v357
    %v359 = vpop.f32.mrf.mxu0
    %v360 = vadd.f32 %v223, %v359
    %v361 = vpop.f32.mrf.mxu0
    %362 = vmatprep.mubr.f32.mxu0 0.0
    %v363 = vand.u32 %v85, 4294901760
    %364 = vmatmul.mubr.f32.gmra.mxu0 %v363
    %v365 = vpop.f32.mrf.mxu0
    %v366 = vadd.f32 %v233, %v365
    %v367 = vpop.f32.mrf.mxu0
    %368 = vdwg.mxu0
    %369 = vmatprep.subr.mxu0 0.0
    %370 = vmatpush1.msra.mxu0 0.0
    %371 = vmatprep.subr.mxu0 0.0
    %372 = vmatpush1.msra.mxu0 0.0
    %373 = vmatprep.subr.mxu0 0.0
    %374 = vmatpush1.msra.mxu0 0.0
    %375 = vmatprep.subr.mxu0 0.0
    %376 = vmatpush1.msra.mxu0 0.0
    %377 = vmatprep.subr.mxu0 0.0
    %378 = vmatpush1.msra.mxu0 0.0
    %379 = vmatprep.subr.mxu0 0.0
    %380 = vmatpush1.msra.mxu0 0.0
    %381 = vmatprep.subr.mxu0 0.0
    %382 = vmatpush1.msra.mxu0 0.0
    %383 = vmatprep.subr.mxu0 0.0
    %384 = vmatpush1.msra.mxu0 0.0
    %385 = vmatprep.subr.mxu0 0.0
    %386 = vmatpush1.msra.mxu0 0.0
    %387 = vmatprep.subr.mxu0 0.0
    %388 = vmatpush1.msra.mxu0 0.0
    %389 = vmatprep.subr.mxu0 0.0
    %390 = vmatpush1.msra.mxu0 0.0
    %391 = vmatprep.subr.mxu0 0.0
    %392 = vmatpush1.msra.mxu0 0.0
    %393 = vmatprep.subr.mxu0 0.0
    %v394 = vand.u32 %v54, 4294901760
    %v395 = vsub.f32 %v54, %v394
    %396 = vmatpush1.msra.mxu0 %v395
    %397 = vmatprep.subr.mxu0 0.0
    %v398 = vand.u32 %v53, 4294901760
    %v399 = vsub.f32 %v53, %v398
    %400 = vmatpush1.msra.mxu0 %v399
    %401 = vmatprep.subr.mxu0 0.0
    %v402 = vand.u32 %v52, 4294901760
    %v403 = vsub.f32 %v52, %v402
    %404 = vmatpush1.msra.mxu0 %v403
    %405 = vmatprep.subr.mxu0 0.0
    %v406 = vand.u32 %v51, 4294901760
    %v407 = vsub.f32 %v51, %v406
    %408 = vmatpush1.msra.mxu0 %v407
    %409 = vmatprep.subr.mxu0 0.0
    %410 = vmatpush2.msra.mxu0 0.0
    %411 = vmatprep.subr.mxu0 0.0
    %412 = vmatpush2.msra.mxu0 0.0
    %413 = vmatprep.subr.mxu0 0.0
    %414 = vmatpush2.msra.mxu0 0.0
    %415 = vmatprep.subr.mxu0 0.0
    %416 = vmatpush2.msra.mxu0 0.0
    %417 = vmatprep.subr.mxu0 0.0
    %418 = vmatpush2.msra.mxu0 0.0
    %419 = vmatprep.subr.mxu0 0.0
    %420 = vmatpush2.msra.mxu0 0.0
    %421 = vmatprep.subr.mxu0 0.0
    %422 = vmatpush2.msra.mxu0 0.0
    %423 = vmatprep.subr.mxu0 0.0
    %424 = vmatpush2.msra.mxu0 0.0
    %425 = vmatprep.subr.mxu0 0.0
    %426 = vmatpush2.msra.mxu0 0.0
    %427 = vmatprep.subr.mxu0 0.0
    %428 = vmatpush2.msra.mxu0 0.0
    %429 = vmatprep.subr.mxu0 0.0
    %430 = vmatpush2.msra.mxu0 0.0
    %431 = vmatprep.subr.mxu0 0.0
    %432 = vmatpush2.msra.mxu0 0.0
    %433 = vmatprep.subr.mxu0 0.0
    %434 = vmatpush2.msra.mxu0 0.0
    %435 = vmatprep.subr.mxu0 0.0
    %436 = vmatpush2.msra.mxu0 0.0
    %437 = vmatprep.subr.mxu0 0.0
    %438 = vmatpush2.msra.mxu0 0.0
    %439 = vmatprep.subr.mxu0 0.0
    %440 = vmatpush2.msra.mxu0 0.0
    %441 = vmatprep.mubr.f32.mxu0 0.0
    %v442 = vand.u32 %v64, 4294901760
    %v443 = vsub.f32 %v64, %v442
    %444 = vmatmul.mubr.f32.gmra.mxu0 %v443
    %v445 = vpop.f32.mrf.mxu0
    %v446 = vadd.f32 %v324, %v445
    %v447 = vpop.f32.mrf.mxu0
    %448 = vmatprep.mubr.f32.mxu0 0.0
    %v449 = vand.u32 %v67, 4294901760
    %v450 = vsub.f32 %v67, %v449
    %451 = vmatmul.mubr.f32.gmra.mxu0 %v450
    %v452 = vpop.f32.mrf.mxu0
    %v453 = vadd.f32 %v330, %v452
    %v454 = vpop.f32.mrf.mxu0
    %455 = vmatprep.mubr.f32.mxu0 0.0
    %v456 = vand.u32 %v70, 4294901760
    %v457 = vsub.f32 %v70, %v456
    %458 = vmatmul.mubr.f32.gmra.mxu0 %v457
    %v459 = vpop.f32.mrf.mxu0
    %v460 = vadd.f32 %v336, %v459
    %v461 = vpop.f32.mrf.mxu0
    %462 = vmatprep.mubr.f32.mxu0 0.0
    %v463 = vand.u32 %v73, 4294901760
    %v464 = vsub.f32 %v73, %v463
    %465 = vmatmul.mubr.f32.gmra.mxu0 %v464
    %v466 = vpop.f32.mrf.mxu0
    %v467 = vadd.f32 %v342, %v466
    %v468 = vpop.f32.mrf.mxu0
    %469 = vmatprep.mubr.f32.mxu0 0.0
    %v470 = vand.u32 %v76, 4294901760
    %v471 = vsub.f32 %v76, %v470
    %472 = vmatmul.mubr.f32.gmra.mxu0 %v471
    %v473 = vpop.f32.mrf.mxu0
    %v474 = vadd.f32 %v348, %v473
    %v475 = vpop.f32.mrf.mxu0
    %476 = vmatprep.mubr.f32.mxu0 0.0
    %v477 = vand.u32 %v79, 4294901760
    %v478 = vsub.f32 %v79, %v477
    %479 = vmatmul.mubr.f32.gmra.mxu0 %v478
    %v480 = vpop.f32.mrf.mxu0
    %v481 = vadd.f32 %v354, %v480
    %v482 = vpop.f32.mrf.mxu0
    %483 = vmatprep.mubr.f32.mxu0 0.0
    %v484 = vand.u32 %v82, 4294901760
    %v485 = vsub.f32 %v82, %v484
    %486 = vmatmul.mubr.f32.gmra.mxu0 %v485
    %v487 = vpop.f32.mrf.mxu0
    %v488 = vadd.f32 %v360, %v487
    %v489 = vpop.f32.mrf.mxu0
    %490 = vmatprep.mubr.f32.mxu0 0.0
    %v491 = vand.u32 %v85, 4294901760
    %v492 = vsub.f32 %v85, %v491
    %493 = vmatmul.mubr.f32.gmra.mxu0 %v492
    %v494 = vpop.f32.mrf.mxu0
    %v495 = vadd.f32 %v366, %v494
    %v496 = vpop.f32.mrf.mxu0
    %497 = vdwg.mxu0
    %498 = vmatprep.subr.mxu0 0.0
    %499 = vmatpush1.msra.mxu0 0.0
    %500 = vmatprep.subr.mxu0 0.0
    %501 = vmatpush1.msra.mxu0 0.0
    %502 = vmatprep.subr.mxu0 0.0
    %503 = vmatpush1.msra.mxu0 0.0
    %504 = vmatprep.subr.mxu0 0.0
    %505 = vmatpush1.msra.mxu0 0.0
    %506 = vmatprep.subr.mxu0 0.0
    %507 = vmatpush1.msra.mxu0 0.0
    %508 = vmatprep.subr.mxu0 0.0
    %509 = vmatpush1.msra.mxu0 0.0
    %510 = vmatprep.subr.mxu0 0.0
    %511 = vmatpush1.msra.mxu0 0.0
    %512 = vmatprep.subr.mxu0 0.0
    %513 = vmatpush1.msra.mxu0 0.0
    %514 = vmatprep.subr.mxu0 0.0
    %515 = vmatpush1.msra.mxu0 0.0
    %516 = vmatprep.subr.mxu0 0.0
    %517 = vmatpush1.msra.mxu0 0.0
    %518 = vmatprep.subr.mxu0 0.0
    %519 = vmatpush1.msra.mxu0 0.0
    %520 = vmatprep.subr.mxu0 0.0
    %521 = vmatpush1.msra.mxu0 0.0
    %522 = vmatprep.subr.mxu0 0.0
    %v523 = vand.u32 %v54, 4294901760
    %524 = vmatpush1.msra.mxu0 %v523
    %525 = vmatprep.subr.mxu0 0.0
    %v526 = vand.u32 %v53, 4294901760
    %527 = vmatpush1.msra.mxu0 %v526
    %528 = vmatprep.subr.mxu0 0.0
    %v529 = vand.u32 %v52, 4294901760
    %530 = vmatpush1.msra.mxu0 %v529
    %531 = vmatprep.subr.mxu0 0.0
    %v532 = vand.u32 %v51, 4294901760
    %533 = vmatpush1.msra.mxu0 %v532
    %534 = vmatprep.subr.mxu0 0.0
    %535 = vmatpush2.msra.mxu0 0.0
    %536 = vmatprep.subr.mxu0 0.0
    %537 = vmatpush2.msra.mxu0 0.0
    %538 = vmatprep.subr.mxu0 0.0
    %539 = vmatpush2.msra.mxu0 0.0
    %540 = vmatprep.subr.mxu0 0.0
    %541 = vmatpush2.msra.mxu0 0.0
    %542 = vmatprep.subr.mxu0 0.0
    %543 = vmatpush2.msra.mxu0 0.0
    %544 = vmatprep.subr.mxu0 0.0
    %545 = vmatpush2.msra.mxu0 0.0
    %546 = vmatprep.subr.mxu0 0.0
    %547 = vmatpush2.msra.mxu0 0.0
    %548 = vmatprep.subr.mxu0 0.0
    %549 = vmatpush2.msra.mxu0 0.0
    %550 = vmatprep.subr.mxu0 0.0
    %551 = vmatpush2.msra.mxu0 0.0
    %552 = vmatprep.subr.mxu0 0.0
    %553 = vmatpush2.msra.mxu0 0.0
    %554 = vmatprep.subr.mxu0 0.0
    %555 = vmatpush2.msra.mxu0 0.0
    %556 = vmatprep.subr.mxu0 0.0
    %557 = vmatpush2.msra.mxu0 0.0
    %558 = vmatprep.subr.mxu0 0.0
    %559 = vmatpush2.msra.mxu0 0.0
    %560 = vmatprep.subr.mxu0 0.0
    %561 = vmatpush2.msra.mxu0 0.0
    %562 = vmatprep.subr.mxu0 0.0
    %563 = vmatpush2.msra.mxu0 0.0
    %564 = vmatprep.subr.mxu0 0.0
    %565 = vmatpush2.msra.mxu0 0.0
    %566 = vmatprep.mubr.f32.mxu0 0.0
    %v567 = vand.u32 %v64, 4294901760
    %v568 = vsub.f32 %v64, %v567
    %v569 = vand.u32 %v568, 4294901760
    %570 = vmatmul.mubr.f32.gmra.mxu0 %v569
    %v571 = vpop.f32.mrf.mxu0
    %v572 = vadd.f32 %v446, %v571
    %v573 = vpop.f32.mrf.mxu0
    %574 = vmatprep.mubr.f32.mxu0 0.0
    %v575 = vand.u32 %v67, 4294901760
    %v576 = vsub.f32 %v67, %v575
    %v577 = vand.u32 %v576, 4294901760
    %578 = vmatmul.mubr.f32.gmra.mxu0 %v577
    %v579 = vpop.f32.mrf.mxu0
    %v580 = vadd.f32 %v453, %v579
    %v581 = vpop.f32.mrf.mxu0
    %582 = vmatprep.mubr.f32.mxu0 0.0
    %v583 = vand.u32 %v70, 4294901760
    %v584 = vsub.f32 %v70, %v583
    %v585 = vand.u32 %v584, 4294901760
    %586 = vmatmul.mubr.f32.gmra.mxu0 %v585
    %v587 = vpop.f32.mrf.mxu0
    %v588 = vadd.f32 %v460, %v587
    %v589 = vpop.f32.mrf.mxu0
    %590 = vmatprep.mubr.f32.mxu0 0.0
    %v591 = vand.u32 %v73, 4294901760
    %v592 = vsub.f32 %v73, %v591
    %v593 = vand.u32 %v592, 4294901760
    %594 = vmatmul.mubr.f32.gmra.mxu0 %v593
    %v595 = vpop.f32.mrf.mxu0
    %v596 = vadd.f32 %v467, %v595
    %v597 = vpop.f32.mrf.mxu0
    %598 = vmatprep.mubr.f32.mxu0 0.0
    %v599 = vand.u32 %v76, 4294901760
    %v600 = vsub.f32 %v76, %v599
    %v601 = vand.u32 %v600, 4294901760
    %602 = vmatmul.mubr.f32.gmra.mxu0 %v601
    %v603 = vpop.f32.mrf.mxu0
    %v604 = vadd.f32 %v474, %v603
    %v605 = vpop.f32.mrf.mxu0
    %606 = vmatprep.mubr.f32.mxu0 0.0
    %v607 = vand.u32 %v79, 4294901760
    %v608 = vsub.f32 %v79, %v607
    %v609 = vand.u32 %v608, 4294901760
    %610 = vmatmul.mubr.f32.gmra.mxu0 %v609
    %v611 = vpop.f32.mrf.mxu0
    %v612 = vadd.f32 %v481, %v611
    %v613 = vpop.f32.mrf.mxu0
    %614 = vmatprep.mubr.f32.mxu0 0.0
    %v615 = vand.u32 %v82, 4294901760
    %v616 = vsub.f32 %v82, %v615
    %v617 = vand.u32 %v616, 4294901760
    %618 = vmatmul.mubr.f32.gmra.mxu0 %v617
    %v619 = vpop.f32.mrf.mxu0
    %v620 = vadd.f32 %v488, %v619
    %v621 = vpop.f32.mrf.mxu0
    %622 = vmatprep.mubr.f32.mxu0 0.0
    %v623 = vand.u32 %v85, 4294901760
    %v624 = vsub.f32 %v85, %v623
    %v625 = vand.u32 %v624, 4294901760
    %626 = vmatmul.mubr.f32.gmra.mxu0 %v625
    %v627 = vpop.f32.mrf.mxu0
    %v628 = vadd.f32 %v495, %v627
    %v629 = vpop.f32.mrf.mxu0
    %630 = vdwg.mxu0
    %631 = vmatprep.subr.mxu0 0.0
    %632 = vmatpush1.msra.mxu0 0.0
    %633 = vmatprep.subr.mxu0 0.0
    %634 = vmatpush1.msra.mxu0 0.0
    %635 = vmatprep.subr.mxu0 0.0
    %636 = vmatpush1.msra.mxu0 0.0
    %637 = vmatprep.subr.mxu0 0.0
    %638 = vmatpush1.msra.mxu0 0.0
    %639 = vmatprep.subr.mxu0 0.0
    %640 = vmatpush1.msra.mxu0 0.0
    %641 = vmatprep.subr.mxu0 0.0
    %642 = vmatpush1.msra.mxu0 0.0
    %643 = vmatprep.subr.mxu0 0.0
    %644 = vmatpush1.msra.mxu0 0.0
    %645 = vmatprep.subr.mxu0 0.0
    %646 = vmatpush1.msra.mxu0 0.0
    %647 = vmatprep.subr.mxu0 0.0
    %648 = vmatpush1.msra.mxu0 0.0
    %649 = vmatprep.subr.mxu0 0.0
    %650 = vmatpush1.msra.mxu0 0.0
    %651 = vmatprep.subr.mxu0 0.0
    %652 = vmatpush1.msra.mxu0 0.0
    %653 = vmatprep.subr.mxu0 0.0
    %654 = vmatpush1.msra.mxu0 0.0
    %655 = vmatprep.subr.mxu0 0.0
    %v656 = vand.u32 %v54, 4294901760
    %v657 = vsub.f32 %v54, %v656
    %v658 = vand.u32 %v657, 4294901760
    %659 = vmatpush1.msra.mxu0 %v658
    %660 = vmatprep.subr.mxu0 0.0
    %v661 = vand.u32 %v53, 4294901760
    %v662 = vsub.f32 %v53, %v661
    %v663 = vand.u32 %v662, 4294901760
    %664 = vmatpush1.msra.mxu0 %v663
    %665 = vmatprep.subr.mxu0 0.0
    %v666 = vand.u32 %v52, 4294901760
    %v667 = vsub.f32 %v52, %v666
    %v668 = vand.u32 %v667, 4294901760
    %669 = vmatpush1.msra.mxu0 %v668
    %670 = vmatprep.subr.mxu0 0.0
    %v671 = vand.u32 %v51, 4294901760
    %v672 = vsub.f32 %v51, %v671
    %v673 = vand.u32 %v672, 4294901760
    %674 = vmatpush1.msra.mxu0 %v673
    %675 = vmatprep.subr.mxu0 0.0
    %676 = vmatpush2.msra.mxu0 0.0
    %677 = vmatprep.subr.mxu0 0.0
    %678 = vmatpush2.msra.mxu0 0.0
    %679 = vmatprep.subr.mxu0 0.0
    %680 = vmatpush2.msra.mxu0 0.0
    %681 = vmatprep.subr.mxu0 0.0
    %682 = vmatpush2.msra.mxu0 0.0
    %683 = vmatprep.subr.mxu0 0.0
    %684 = vmatpush2.msra.mxu0 0.0
    %685 = vmatprep.subr.mxu0 0.0
    %686 = vmatpush2.msra.mxu0 0.0
    %687 = vmatprep.subr.mxu0 0.0
    %688 = vmatpush2.msra.mxu0 0.0
    %689 = vmatprep.subr.mxu0 0.0
    %690 = vmatpush2.msra.mxu0 0.0
    %691 = vmatprep.subr.mxu0 0.0
    %692 = vmatpush2.msra.mxu0 0.0
    %693 = vmatprep.subr.mxu0 0.0
    %694 = vmatpush2.msra.mxu0 0.0
    %695 = vmatprep.subr.mxu0 0.0
    %696 = vmatpush2.msra.mxu0 0.0
    %697 = vmatprep.subr.mxu0 0.0
    %698 = vmatpush2.msra.mxu0 0.0
    %699 = vmatprep.subr.mxu0 0.0
    %700 = vmatpush2.msra.mxu0 0.0
    %701 = vmatprep.subr.mxu0 0.0
    %702 = vmatpush2.msra.mxu0 0.0
    %703 = vmatprep.subr.mxu0 0.0
    %704 = vmatpush2.msra.mxu0 0.0
    %705 = vmatprep.subr.mxu0 0.0
    %706 = vmatpush2.msra.mxu0 0.0
    %707 = vmatprep.mubr.f32.mxu0 0.0
    %v708 = vand.u32 %v64, 4294901760
    %709 = vmatmul.mubr.f32.gmra.mxu0 %v708
    %v710 = vpop.f32.mrf.mxu0
    %v711 = vadd.f32 %v572, %v710
    %v712 = vpop.f32.mrf.mxu0
    %713 = vmatprep.mubr.f32.mxu0 0.0
    %v714 = vand.u32 %v67, 4294901760
    %715 = vmatmul.mubr.f32.gmra.mxu0 %v714
    %v716 = vpop.f32.mrf.mxu0
    %v717 = vadd.f32 %v580, %v716
    %v718 = vpop.f32.mrf.mxu0
    %719 = vmatprep.mubr.f32.mxu0 0.0
    %v720 = vand.u32 %v70, 4294901760
    %721 = vmatmul.mubr.f32.gmra.mxu0 %v720
    %v722 = vpop.f32.mrf.mxu0
    %v723 = vadd.f32 %v588, %v722
    %v724 = vpop.f32.mrf.mxu0
    %725 = vmatprep.mubr.f32.mxu0 0.0
    %v726 = vand.u32 %v73, 4294901760
    %727 = vmatmul.mubr.f32.gmra.mxu0 %v726
    %v728 = vpop.f32.mrf.mxu0
    %v729 = vadd.f32 %v596, %v728
    %v730 = vpop.f32.mrf.mxu0
    %731 = vmatprep.mubr.f32.mxu0 0.0
    %v732 = vand.u32 %v76, 4294901760
    %733 = vmatmul.mubr.f32.gmra.mxu0 %v732
    %v734 = vpop.f32.mrf.mxu0
    %v735 = vadd.f32 %v604, %v734
    %v736 = vpop.f32.mrf.mxu0
    %737 = vmatprep.mubr.f32.mxu0 0.0
    %v738 = vand.u32 %v79, 4294901760
    %739 = vmatmul.mubr.f32.gmra.mxu0 %v738
    %v740 = vpop.f32.mrf.mxu0
    %v741 = vadd.f32 %v612, %v740
    %v742 = vpop.f32.mrf.mxu0
    %743 = vmatprep.mubr.f32.mxu0 0.0
    %v744 = vand.u32 %v82, 4294901760
    %745 = vmatmul.mubr.f32.gmra.mxu0 %v744
    %v746 = vpop.f32.mrf.mxu0
    %v747 = vadd.f32 %v620, %v746
    %v748 = vpop.f32.mrf.mxu0
    %749 = vmatprep.mubr.f32.mxu0 0.0
    %v750 = vand.u32 %v85, 4294901760
    %751 = vmatmul.mubr.f32.gmra.mxu0 %v750
    %v752 = vpop.f32.mrf.mxu0
    %v753 = vadd.f32 %v628, %v752
    %v754 = vpop.f32.mrf.mxu0
    %755 = vdwg.mxu0
    %756 = vmatprep.subr.mxu0 0.0
    %757 = vmatpush1.msra.mxu0 0.0
    %758 = vmatprep.subr.mxu0 0.0
    %759 = vmatpush1.msra.mxu0 0.0
    %760 = vmatprep.subr.mxu0 0.0
    %761 = vmatpush1.msra.mxu0 0.0
    %762 = vmatprep.subr.mxu0 0.0
    %763 = vmatpush1.msra.mxu0 0.0
    %764 = vmatprep.subr.mxu0 0.0
    %765 = vmatpush1.msra.mxu0 0.0
    %766 = vmatprep.subr.mxu0 0.0
    %767 = vmatpush1.msra.mxu0 0.0
    %768 = vmatprep.subr.mxu0 0.0
    %769 = vmatpush1.msra.mxu0 0.0
    %770 = vmatprep.subr.mxu0 0.0
    %771 = vmatpush1.msra.mxu0 0.0
    %772 = vmatprep.subr.mxu0 0.0
    %773 = vmatpush1.msra.mxu0 0.0
    %774 = vmatprep.subr.mxu0 0.0
    %775 = vmatpush1.msra.mxu0 0.0
    %776 = vmatprep.subr.mxu0 0.0
    %777 = vmatpush1.msra.mxu0 0.0
    %778 = vmatprep.subr.mxu0 0.0
    %779 = vmatpush1.msra.mxu0 0.0
    %780 = vmatprep.subr.mxu0 0.0
    %v781 = vand.u32 %v54, 4294901760
    %782 = vmatpush1.msra.mxu0 %v781
    %783 = vmatprep.subr.mxu0 0.0
    %v784 = vand.u32 %v53, 4294901760
    %785 = vmatpush1.msra.mxu0 %v784
    %786 = vmatprep.subr.mxu0 0.0
    %v787 = vand.u32 %v52, 4294901760
    %788 = vmatpush1.msra.mxu0 %v787
    %789 = vmatprep.subr.mxu0 0.0
    %v790 = vand.u32 %v51, 4294901760
    %791 = vmatpush1.msra.mxu0 %v790
    %792 = vmatprep.subr.mxu0 0.0
    %793 = vmatpush2.msra.mxu0 0.0
    %794 = vmatprep.subr.mxu0 0.0
    %795 = vmatpush2.msra.mxu0 0.0
    %796 = vmatprep.subr.mxu0 0.0
    %797 = vmatpush2.msra.mxu0 0.0
    %798 = vmatprep.subr.mxu0 0.0
    %799 = vmatpush2.msra.mxu0 0.0
    %800 = vmatprep.subr.mxu0 0.0
    %801 = vmatpush2.msra.mxu0 0.0
    %802 = vmatprep.subr.mxu0 0.0
    %803 = vmatpush2.msra.mxu0 0.0
    %804 = vmatprep.subr.mxu0 0.0
    %805 = vmatpush2.msra.mxu0 0.0
    %806 = vmatprep.subr.mxu0 0.0
    %807 = vmatpush2.msra.mxu0 0.0
    %808 = vmatprep.subr.mxu0 0.0
    %809 = vmatpush2.msra.mxu0 0.0
    %810 = vmatprep.subr.mxu0 0.0
    %811 = vmatpush2.msra.mxu0 0.0
    %812 = vmatprep.subr.mxu0 0.0
    %813 = vmatpush2.msra.mxu0 0.0
    %814 = vmatprep.subr.mxu0 0.0
    %815 = vmatpush2.msra.mxu0 0.0
    %816 = vmatprep.subr.mxu0 0.0
    %817 = vmatpush2.msra.mxu0 0.0
    %818 = vmatprep.subr.mxu0 0.0
    %819 = vmatpush2.msra.mxu0 0.0
    %820 = vmatprep.subr.mxu0 0.0
    %821 = vmatpush2.msra.mxu0 0.0
    %822 = vmatprep.subr.mxu0 0.0
    %823 = vmatpush2.msra.mxu0 0.0
    %824 = vmatprep.mubr.f32.mxu0 0.0
    %v825 = vand.u32 %v64, 4294901760
    %826 = vmatmul.mubr.f32.gmra.mxu0 %v825
    %v827 = vpop.f32.mrf.mxu0
    %v828 = vadd.f32 %v711, %v827
    %v829 = vpop.f32.mrf.mxu0
    %830 = vmatprep.mubr.f32.mxu0 0.0
    %v831 = vand.u32 %v67, 4294901760
    %832 = vmatmul.mubr.f32.gmra.mxu0 %v831
    %v833 = vpop.f32.mrf.mxu0
    %v834 = vadd.f32 %v717, %v833
    %v835 = vpop.f32.mrf.mxu0
    %836 = vmatprep.mubr.f32.mxu0 0.0
    %v837 = vand.u32 %v70, 4294901760
    %838 = vmatmul.mubr.f32.gmra.mxu0 %v837
    %v839 = vpop.f32.mrf.mxu0
    %v840 = vadd.f32 %v723, %v839
    %v841 = vpop.f32.mrf.mxu0
    %842 = vmatprep.mubr.f32.mxu0 0.0
    %v843 = vand.u32 %v73, 4294901760
    %844 = vmatmul.mubr.f32.gmra.mxu0 %v843
    %v845 = vpop.f32.mrf.mxu0
    %v846 = vadd.f32 %v729, %v845
    %v847 = vpop.f32.mrf.mxu0
    %848 = vmatprep.mubr.f32.mxu0 0.0
    %v849 = vand.u32 %v76, 4294901760
    %850 = vmatmul.mubr.f32.gmra.mxu0 %v849
    %v851 = vpop.f32.mrf.mxu0
    %v852 = vadd.f32 %v735, %v851
    %v853 = vpop.f32.mrf.mxu0
    %854 = vmatprep.mubr.f32.mxu0 0.0
    %v855 = vand.u32 %v79, 4294901760
    %856 = vmatmul.mubr.f32.gmra.mxu0 %v855
    %v857 = vpop.f32.mrf.mxu0
    %v858 = vadd.f32 %v741, %v857
    %v859 = vpop.f32.mrf.mxu0
    %860 = vmatprep.mubr.f32.mxu0 0.0
    %v861 = vand.u32 %v82, 4294901760
    %862 = vmatmul.mubr.f32.gmra.mxu0 %v861
    %v863 = vpop.f32.mrf.mxu0
    %v864 = vadd.f32 %v747, %v863
    %v865 = vpop.f32.mrf.mxu0
    %866 = vmatprep.mubr.f32.mxu0 0.0
    %v867 = vand.u32 %v85, 4294901760
    %868 = vmatmul.mubr.f32.gmra.mxu0 %v867
    %v869 = vpop.f32.mrf.mxu0
    %v870 = vadd.f32 %v753, %v869
    %v871 = vpop.f32.mrf.mxu0
    %872 = vdwg.mxu0
    %873 = vst [vmem:[#allocation4] sm:$0xff] %v828
    %874 = vst [vmem:[#allocation4 + $0x8] sm:$0xff] %v834
    %875 = vst [vmem:[#allocation4 + $0x10] sm:$0xff] %v840
    %876 = vst [vmem:[#allocation4 + $0x18] sm:$0xff] %v846
    %877 = vst [vmem:[#allocation4 + $0x20] sm:$0xff] %v852
    %878 = vst [vmem:[#allocation4 + $0x28] sm:$0xff] %v858
    %879 = vst [vmem:[#allocation4 + $0x30] sm:$0xff] %v864
    %880 = vst [vmem:[#allocation4 + $0x38] sm:$0xff] %v870
    %v881 = vld [vmem:[%s2] sm:$0xff]
    %v882 = vld [vmem:[%s2 + $0x8] sm:$0xff]
    %v883 = vld [vmem:[%s2 + $0x10] sm:$0xff]
    %v884 = vld [vmem:[%s2 + $0x18] sm:$0xff]
    %v885 = vlaneseq
    %v886 = vand.u32 %v885, 127
    %vm887 = vcmp.ge.s32.totalorder %v886, 64
    %vm888 = vcmp.lt.s32.totalorder %v886, 96
    %vm889 = vmand %vm887, %vm888
    %v890 = vld [vmem:[#allocation2] sm:$0xff]
    %v891 = vld [vmem:[#allocation3] sm:$0xff]
    %v892 = vld [vmem:[#allocation4] sm:$0xff]
    %v894 = vsel %vm62, %v890, 0
    %896 = vmatprep.subr.mxu0 0.0
    %897 = vmatpush1.msra.mxu0 0.0
    %898 = vmatprep.subr.mxu0 0.0
    %899 = vmatpush1.msra.mxu0 0.0
    %900 = vmatprep.subr.mxu0 0.0
    %901 = vmatpush1.msra.mxu0 0.0
    %902 = vmatprep.subr.mxu0 0.0
    %903 = vmatpush1.msra.mxu0 0.0
    %904 = vmatprep.subr.mxu0 0.0
    %905 = vmatpush1.msra.mxu0 0.0
    %906 = vmatprep.subr.mxu0 0.0
    %907 = vmatpush1.msra.mxu0 0.0
    %908 = vmatprep.subr.mxu0 0.0
    %909 = vmatpush1.msra.mxu0 0.0
    %910 = vmatprep.subr.mxu0 0.0
    %911 = vmatpush1.msra.mxu0 0.0
    %912 = vmatprep.subr.mxu0 0.0
    %913 = vmatpush1.msra.mxu0 0.0
    %914 = vmatprep.subr.mxu0 0.0
    %915 = vmatpush1.msra.mxu0 0.0
    %916 = vmatprep.subr.mxu0 0.0
    %917 = vmatpush1.msra.mxu0 0.0
    %918 = vmatprep.subr.mxu0 0.0
    %919 = vmatpush1.msra.mxu0 0.0
    %920 = vmatprep.subr.mxu0 0.0
    %v921 = vand.u32 %v884, 4294901760
    %922 = vmatpush1.msra.mxu0 %v921
    %923 = vmatprep.subr.mxu0 0.0
    %v924 = vand.u32 %v883, 4294901760
    %925 = vmatpush1.msra.mxu0 %v924
    %926 = vmatprep.subr.mxu0 0.0
    %v927 = vand.u32 %v882, 4294901760
    %928 = vmatpush1.msra.mxu0 %v927
    %929 = vmatprep.subr.mxu0 0.0
    %v930 = vand.u32 %v881, 4294901760
    %931 = vmatpush1.msra.mxu0 %v930
    %932 = vmatprep.subr.mxu0 0.0
    %933 = vmatpush2.msra.mxu0 0.0
    %934 = vmatprep.subr.mxu0 0.0
    %935 = vmatpush2.msra.mxu0 0.0
    %936 = vmatprep.subr.mxu0 0.0
    %937 = vmatpush2.msra.mxu0 0.0
    %938 = vmatprep.subr.mxu0 0.0
    %939 = vmatpush2.msra.mxu0 0.0
    %940 = vmatprep.subr.mxu0 0.0
    %941 = vmatpush2.msra.mxu0 0.0
    %942 = vmatprep.subr.mxu0 0.0
    %943 = vmatpush2.msra.mxu0 0.0
    %944 = vmatprep.subr.mxu0 0.0
    %945 = vmatpush2.msra.mxu0 0.0
    %946 = vmatprep.subr.mxu0 0.0
    %947 = vmatpush2.msra.mxu0 0.0
    %948 = vmatprep.subr.mxu0 0.0
    %949 = vmatpush2.msra.mxu0 0.0
    %950 = vmatprep.subr.mxu0 0.0
    %951 = vmatpush2.msra.mxu0 0.0
    %952 = vmatprep.subr.mxu0 0.0
    %953 = vmatpush2.msra.mxu0 0.0
    %954 = vmatprep.subr.mxu0 0.0
    %955 = vmatpush2.msra.mxu0 0.0
    %956 = vmatprep.subr.mxu0 0.0
    %957 = vmatpush2.msra.mxu0 0.0
    %958 = vmatprep.subr.mxu0 0.0
    %959 = vmatpush2.msra.mxu0 0.0
    %960 = vmatprep.subr.mxu0 0.0
    %961 = vmatpush2.msra.mxu0 0.0
    %962 = vmatprep.subr.mxu0 0.0
    %963 = vmatpush2.msra.mxu0 0.0
    %964 = vmatprep.mubr.f32.mxu0 0.0
    %v965 = vand.u32 %v894, 4294901760
    %v966 = vsub.f32 %v894, %v965
    %v967 = vand.u32 %v966, 4294901760
    %v968 = vsub.f32 %v966, %v967
    %v969 = vand.u32 %v968, 4294901760
    %970 = vmatmul.mubr.f32.gmra.mxu0 %v969
    %v971 = vpop.f32.mrf.mxu0
    %v972 = vadd.f32 0.0, %v971
    %v973 = vpop.f32.mrf.mxu0
    %974 = vdwg.mxu0
    %975 = vmatprep.subr.mxu0 0.0
    %976 = vmatpush1.msra.mxu0 0.0
    %977 = vmatprep.subr.mxu0 0.0
    %978 = vmatpush1.msra.mxu0 0.0
    %979 = vmatprep.subr.mxu0 0.0
    %980 = vmatpush1.msra.mxu0 0.0
    %981 = vmatprep.subr.mxu0 0.0
    %982 = vmatpush1.msra.mxu0 0.0
    %983 = vmatprep.subr.mxu0 0.0
    %984 = vmatpush1.msra.mxu0 0.0
    %985 = vmatprep.subr.mxu0 0.0
    %986 = vmatpush1.msra.mxu0 0.0
    %987 = vmatprep.subr.mxu0 0.0
    %988 = vmatpush1.msra.mxu0 0.0
    %989 = vmatprep.subr.mxu0 0.0
    %990 = vmatpush1.msra.mxu0 0.0
    %991 = vmatprep.subr.mxu0 0.0
    %992 = vmatpush1.msra.mxu0 0.0
    %993 = vmatprep.subr.mxu0 0.0
    %994 = vmatpush1.msra.mxu0 0.0
    %995 = vmatprep.subr.mxu0 0.0
    %996 = vmatpush1.msra.mxu0 0.0
    %997 = vmatprep.subr.mxu0 0.0
    %998 = vmatpush1.msra.mxu0 0.0
    %999 = vmatprep.subr.mxu0 0.0
    %v1000 = vand.u32 %v884, 4294901760
    %v1001 = vsub.f32 %v884, %v1000
    %v1002 = vand.u32 %v1001, 4294901760
    %v1003 = vsub.f32 %v1001, %v1002
    %v1004 = vand.u32 %v1003, 4294901760
    %1005 = vmatpush1.msra.mxu0 %v1004
    %1006 = vmatprep.subr.mxu0 0.0
    %v1007 = vand.u32 %v883, 4294901760
    %v1008 = vsub.f32 %v883, %v1007
    %v1009 = vand.u32 %v1008, 4294901760
    %v1010 = vsub.f32 %v1008, %v1009
    %v1011 = vand.u32 %v1010, 4294901760
    %1012 = vmatpush1.msra.mxu0 %v1011
    %1013 = vmatprep.subr.mxu0 0.0
    %v1014 = vand.u32 %v882, 4294901760
    %v1015 = vsub.f32 %v882, %v1014
    %v1016 = vand.u32 %v1015, 4294901760
    %v1017 = vsub.f32 %v1015, %v1016
    %v1018 = vand.u32 %v1017, 4294901760
    %1019 = vmatpush1.msra.mxu0 %v1018
    %1020 = vmatprep.subr.mxu0 0.0
    %v1021 = vand.u32 %v881, 4294901760
    %v1022 = vsub.f32 %v881, %v1021
    %v1023 = vand.u32 %v1022, 4294901760
    %v1024 = vsub.f32 %v1022, %v1023
    %v1025 = vand.u32 %v1024, 4294901760
    %1026 = vmatpush1.msra.mxu0 %v1025
    %1027 = vmatprep.subr.mxu0 0.0
    %1028 = vmatpush2.msra.mxu0 0.0
    %1029 = vmatprep.subr.mxu0 0.0
    %1030 = vmatpush2.msra.mxu0 0.0
    %1031 = vmatprep.subr.mxu0 0.0
    %1032 = vmatpush2.msra.mxu0 0.0
    %1033 = vmatprep.subr.mxu0 0.0
    %1034 = vmatpush2.msra.mxu0 0.0
    %1035 = vmatprep.subr.mxu0 0.0
    %1036 = vmatpush2.msra.mxu0 0.0
    %1037 = vmatprep.subr.mxu0 0.0
    %1038 = vmatpush2.msra.mxu0 0.0
    %1039 = vmatprep.subr.mxu0 0.0
    %1040 = vmatpush2.msra.mxu0 0.0
    %1041 = vmatprep.subr.mxu0 0.0
    %1042 = vmatpush2.msra.mxu0 0.0
    %1043 = vmatprep.subr.mxu0 0.0
    %1044 = vmatpush2.msra.mxu0 0.0
    %1045 = vmatprep.subr.mxu0 0.0
    %1046 = vmatpush2.msra.mxu0 0.0
    %1047 = vmatprep.subr.mxu0 0.0
    %1048 = vmatpush2.msra.mxu0 0.0
    %1049 = vmatprep.subr.mxu0 0.0
    %1050 = vmatpush2.msra.mxu0 0.0
    %1051 = vmatprep.subr.mxu0 0.0
    %1052 = vmatpush2.msra.mxu0 0.0
    %1053 = vmatprep.subr.mxu0 0.0
    %1054 = vmatpush2.msra.mxu0 0.0
    %1055 = vmatprep.subr.mxu0 0.0
    %1056 = vmatpush2.msra.mxu0 0.0
    %1057 = vmatprep.subr.mxu0 0.0
    %1058 = vmatpush2.msra.mxu0 0.0
    %1059 = vmatprep.mubr.f32.mxu0 0.0
    %v1060 = vand.u32 %v894, 4294901760
    %1061 = vmatmul.mubr.f32.gmra.mxu0 %v1060
    %v1062 = vpop.f32.mrf.mxu0
    %v1063 = vadd.f32 %v972, %v1062
    %v1064 = vpop.f32.mrf.mxu0
    %1065 = vdwg.mxu0
    %1066 = vmatprep.subr.mxu0 0.0
    %1067 = vmatpush1.msra.mxu0 0.0
    %1068 = vmatprep.subr.mxu0 0.0
    %1069 = vmatpush1.msra.mxu0 0.0
    %1070 = vmatprep.subr.mxu0 0.0
    %1071 = vmatpush1.msra.mxu0 0.0
    %1072 = vmatprep.subr.mxu0 0.0
    %1073 = vmatpush1.msra.mxu0 0.0
    %1074 = vmatprep.subr.mxu0 0.0
    %1075 = vmatpush1.msra.mxu0 0.0
    %1076 = vmatprep.subr.mxu0 0.0
    %1077 = vmatpush1.msra.mxu0 0.0
    %1078 = vmatprep.subr.mxu0 0.0
    %1079 = vmatpush1.msra.mxu0 0.0
    %1080 = vmatprep.subr.mxu0 0.0
    %1081 = vmatpush1.msra.mxu0 0.0
    %1082 = vmatprep.subr.mxu0 0.0
    %1083 = vmatpush1.msra.mxu0 0.0
    %1084 = vmatprep.subr.mxu0 0.0
    %1085 = vmatpush1.msra.mxu0 0.0
    %1086 = vmatprep.subr.mxu0 0.0
    %1087 = vmatpush1.msra.mxu0 0.0
    %1088 = vmatprep.subr.mxu0 0.0
    %1089 = vmatpush1.msra.mxu0 0.0
    %1090 = vmatprep.subr.mxu0 0.0
    %v1091 = vand.u32 %v884, 4294901760
    %v1092 = vsub.f32 %v884, %v1091
    %1093 = vmatpush1.msra.mxu0 %v1092
    %1094 = vmatprep.subr.mxu0 0.0
    %v1095 = vand.u32 %v883, 4294901760
    %v1096 = vsub.f32 %v883, %v1095
    %1097 = vmatpush1.msra.mxu0 %v1096
    %1098 = vmatprep.subr.mxu0 0.0
    %v1099 = vand.u32 %v882, 4294901760
    %v1100 = vsub.f32 %v882, %v1099
    %1101 = vmatpush1.msra.mxu0 %v1100
    %1102 = vmatprep.subr.mxu0 0.0
    %v1103 = vand.u32 %v881, 4294901760
    %v1104 = vsub.f32 %v881, %v1103
    %1105 = vmatpush1.msra.mxu0 %v1104
    %1106 = vmatprep.subr.mxu0 0.0
    %1107 = vmatpush2.msra.mxu0 0.0
    %1108 = vmatprep.subr.mxu0 0.0
    %1109 = vmatpush2.msra.mxu0 0.0
    %1110 = vmatprep.subr.mxu0 0.0
    %1111 = vmatpush2.msra.mxu0 0.0
    %1112 = vmatprep.subr.mxu0 0.0
    %1113 = vmatpush2.msra.mxu0 0.0
    %1114 = vmatprep.subr.mxu0 0.0
    %1115 = vmatpush2.msra.mxu0 0.0
    %1116 = vmatprep.subr.mxu0 0.0
    %1117 = vmatpush2.msra.mxu0 0.0
    %1118 = vmatprep.subr.mxu0 0.0
    %1119 = vmatpush2.msra.mxu0 0.0
    %1120 = vmatprep.subr.mxu0 0.0
    %1121 = vmatpush2.msra.mxu0 0.0
    %1122 = vmatprep.subr.mxu0 0.0
    %1123 = vmatpush2.msra.mxu0 0.0
    %1124 = vmatprep.subr.mxu0 0.0
    %1125 = vmatpush2.msra.mxu0 0.0
    %1126 = vmatprep.subr.mxu0 0.0
    %1127 = vmatpush2.msra.mxu0 0.0
    %1128 = vmatprep.subr.mxu0 0.0
    %1129 = vmatpush2.msra.mxu0 0.0
    %1130 = vmatprep.subr.mxu0 0.0
    %1131 = vmatpush2.msra.mxu0 0.0
    %1132 = vmatprep.subr.mxu0 0.0
    %1133 = vmatpush2.msra.mxu0 0.0
    %1134 = vmatprep.subr.mxu0 0.0
    %1135 = vmatpush2.msra.mxu0 0.0
    %1136 = vmatprep.subr.mxu0 0.0
    %1137 = vmatpush2.msra.mxu0 0.0
    %1138 = vmatprep.mubr.f32.mxu0 0.0
    %v1139 = vand.u32 %v894, 4294901760
    %v1140 = vsub.f32 %v894, %v1139
    %1141 = vmatmul.mubr.f32.gmra.mxu0 %v1140
    %v1142 = vpop.f32.mrf.mxu0
    %v1143 = vadd.f32 %v1063, %v1142
    %v1144 = vpop.f32.mrf.mxu0
    %1145 = vdwg.mxu0
    %1146 = vmatprep.subr.mxu0 0.0
    %1147 = vmatpush1.msra.mxu0 0.0
    %1148 = vmatprep.subr.mxu0 0.0
    %1149 = vmatpush1.msra.mxu0 0.0
    %1150 = vmatprep.subr.mxu0 0.0
    %1151 = vmatpush1.msra.mxu0 0.0
    %1152 = vmatprep.subr.mxu0 0.0
    %1153 = vmatpush1.msra.mxu0 0.0
    %1154 = vmatprep.subr.mxu0 0.0
    %1155 = vmatpush1.msra.mxu0 0.0
    %1156 = vmatprep.subr.mxu0 0.0
    %1157 = vmatpush1.msra.mxu0 0.0
    %1158 = vmatprep.subr.mxu0 0.0
    %1159 = vmatpush1.msra.mxu0 0.0
    %1160 = vmatprep.subr.mxu0 0.0
    %1161 = vmatpush1.msra.mxu0 0.0
    %1162 = vmatprep.subr.mxu0 0.0
    %1163 = vmatpush1.msra.mxu0 0.0
    %1164 = vmatprep.subr.mxu0 0.0
    %1165 = vmatpush1.msra.mxu0 0.0
    %1166 = vmatprep.subr.mxu0 0.0
    %1167 = vmatpush1.msra.mxu0 0.0
    %1168 = vmatprep.subr.mxu0 0.0
    %1169 = vmatpush1.msra.mxu0 0.0
    %1170 = vmatprep.subr.mxu0 0.0
    %v1171 = vand.u32 %v884, 4294901760
    %1172 = vmatpush1.msra.mxu0 %v1171
    %1173 = vmatprep.subr.mxu0 0.0
    %v1174 = vand.u32 %v883, 4294901760
    %1175 = vmatpush1.msra.mxu0 %v1174
    %1176 = vmatprep.subr.mxu0 0.0
    %v1177 = vand.u32 %v882, 4294901760
    %1178 = vmatpush1.msra.mxu0 %v1177
    %1179 = vmatprep.subr.mxu0 0.0
    %v1180 = vand.u32 %v881, 4294901760
    %1181 = vmatpush1.msra.mxu0 %v1180
    %1182 = vmatprep.subr.mxu0 0.0
    %1183 = vmatpush2.msra.mxu0 0.0
    %1184 = vmatprep.subr.mxu0 0.0
    %1185 = vmatpush2.msra.mxu0 0.0
    %1186 = vmatprep.subr.mxu0 0.0
    %1187 = vmatpush2.msra.mxu0 0.0
    %1188 = vmatprep.subr.mxu0 0.0
    %1189 = vmatpush2.msra.mxu0 0.0
    %1190 = vmatprep.subr.mxu0 0.0
    %1191 = vmatpush2.msra.mxu0 0.0
    %1192 = vmatprep.subr.mxu0 0.0
    %1193 = vmatpush2.msra.mxu0 0.0
    %1194 = vmatprep.subr.mxu0 0.0
    %1195 = vmatpush2.msra.mxu0 0.0
    %1196 = vmatprep.subr.mxu0 0.0
    %1197 = vmatpush2.msra.mxu0 0.0
    %1198 = vmatprep.subr.mxu0 0.0
    %1199 = vmatpush2.msra.mxu0 0.0
    %1200 = vmatprep.subr.mxu0 0.0
    %1201 = vmatpush2.msra.mxu0 0.0
    %1202 = vmatprep.subr.mxu0 0.0
    %1203 = vmatpush2.msra.mxu0 0.0
    %1204 = vmatprep.subr.mxu0 0.0
    %1205 = vmatpush2.msra.mxu0 0.0
    %1206 = vmatprep.subr.mxu0 0.0
    %1207 = vmatpush2.msra.mxu0 0.0
    %1208 = vmatprep.subr.mxu0 0.0
    %1209 = vmatpush2.msra.mxu0 0.0
    %1210 = vmatprep.subr.mxu0 0.0
    %1211 = vmatpush2.msra.mxu0 0.0
    %1212 = vmatprep.subr.mxu0 0.0
    %1213 = vmatpush2.msra.mxu0 0.0
    %1214 = vmatprep.mubr.f32.mxu0 0.0
    %v1215 = vand.u32 %v894, 4294901760
    %v1216 = vsub.f32 %v894, %v1215
    %v1217 = vand.u32 %v1216, 4294901760
    %1218 = vmatmul.mubr.f32.gmra.mxu0 %v1217
    %v1219 = vpop.f32.mrf.mxu0
    %v1220 = vadd.f32 %v1143, %v1219
    %v1221 = vpop.f32.mrf.mxu0
    %1222 = vdwg.mxu0
    %1223 = vmatprep.subr.mxu0 0.0
    %1224 = vmatpush1.msra.mxu0 0.0
    %1225 = vmatprep.subr.mxu0 0.0
    %1226 = vmatpush1.msra.mxu0 0.0
    %1227 = vmatprep.subr.mxu0 0.0
    %1228 = vmatpush1.msra.mxu0 0.0
    %1229 = vmatprep.subr.mxu0 0.0
    %1230 = vmatpush1.msra.mxu0 0.0
    %1231 = vmatprep.subr.mxu0 0.0
    %1232 = vmatpush1.msra.mxu0 0.0
    %1233 = vmatprep.subr.mxu0 0.0
    %1234 = vmatpush1.msra.mxu0 0.0
    %1235 = vmatprep.subr.mxu0 0.0
    %1236 = vmatpush1.msra.mxu0 0.0
    %1237 = vmatprep.subr.mxu0 0.0
    %1238 = vmatpush1.msra.mxu0 0.0
    %1239 = vmatprep.subr.mxu0 0.0
    %1240 = vmatpush1.msra.mxu0 0.0
    %1241 = vmatprep.subr.mxu0 0.0
    %1242 = vmatpush1.msra.mxu0 0.0
    %1243 = vmatprep.subr.mxu0 0.0
    %1244 = vmatpush1.msra.mxu0 0.0
    %1245 = vmatprep.subr.mxu0 0.0
    %1246 = vmatpush1.msra.mxu0 0.0
    %1247 = vmatprep.subr.mxu0 0.0
    %v1248 = vand.u32 %v884, 4294901760
    %v1249 = vsub.f32 %v884, %v1248
    %v1250 = vand.u32 %v1249, 4294901760
    %1251 = vmatpush1.msra.mxu0 %v1250
    %1252 = vmatprep.subr.mxu0 0.0
    %v1253 = vand.u32 %v883, 4294901760
    %v1254 = vsub.f32 %v883, %v1253
    %v1255 = vand.u32 %v1254, 4294901760
    %1256 = vmatpush1.msra.mxu0 %v1255
    %1257 = vmatprep.subr.mxu0 0.0
    %v1258 = vand.u32 %v882, 4294901760
    %v1259 = vsub.f32 %v882, %v1258
    %v1260 = vand.u32 %v1259, 4294901760
    %1261 = vmatpush1.msra.mxu0 %v1260
    %1262 = vmatprep.subr.mxu0 0.0
    %v1263 = vand.u32 %v881, 4294901760
    %v1264 = vsub.f32 %v881, %v1263
    %v1265 = vand.u32 %v1264, 4294901760
    %1266 = vmatpush1.msra.mxu0 %v1265
    %1267 = vmatprep.subr.mxu0 0.0
    %1268 = vmatpush2.msra.mxu0 0.0
    %1269 = vmatprep.subr.mxu0 0.0
    %1270 = vmatpush2.msra.mxu0 0.0
    %1271 = vmatprep.subr.mxu0 0.0
    %1272 = vmatpush2.msra.mxu0 0.0
    %1273 = vmatprep.subr.mxu0 0.0
    %1274 = vmatpush2.msra.mxu0 0.0
    %1275 = vmatprep.subr.mxu0 0.0
    %1276 = vmatpush2.msra.mxu0 0.0
    %1277 = vmatprep.subr.mxu0 0.0
    %1278 = vmatpush2.msra.mxu0 0.0
    %1279 = vmatprep.subr.mxu0 0.0
    %1280 = vmatpush2.msra.mxu0 0.0
    %1281 = vmatprep.subr.mxu0 0.0
    %1282 = vmatpush2.msra.mxu0 0.0
    %1283 = vmatprep.subr.mxu0 0.0
    %1284 = vmatpush2.msra.mxu0 0.0
    %1285 = vmatprep.subr.mxu0 0.0
    %1286 = vmatpush2.msra.mxu0 0.0
    %1287 = vmatprep.subr.mxu0 0.0
    %1288 = vmatpush2.msra.mxu0 0.0
    %1289 = vmatprep.subr.mxu0 0.0
    %1290 = vmatpush2.msra.mxu0 0.0
    %1291 = vmatprep.subr.mxu0 0.0
    %1292 = vmatpush2.msra.mxu0 0.0
    %1293 = vmatprep.subr.mxu0 0.0
    %1294 = vmatpush2.msra.mxu0 0.0
    %1295 = vmatprep.subr.mxu0 0.0
    %1296 = vmatpush2.msra.mxu0 0.0
    %1297 = vmatprep.subr.mxu0 0.0
    %1298 = vmatpush2.msra.mxu0 0.0
    %1299 = vmatprep.mubr.f32.mxu0 0.0
    %v1300 = vand.u32 %v894, 4294901760
    %1301 = vmatmul.mubr.f32.gmra.mxu0 %v1300
    %v1302 = vpop.f32.mrf.mxu0
    %v1303 = vadd.f32 %v1220, %v1302
    %v1304 = vpop.f32.mrf.mxu0
    %1305 = vdwg.mxu0
    %1306 = vmatprep.subr.mxu0 0.0
    %1307 = vmatpush1.msra.mxu0 0.0
    %1308 = vmatprep.subr.mxu0 0.0
    %1309 = vmatpush1.msra.mxu0 0.0
    %1310 = vmatprep.subr.mxu0 0.0
    %1311 = vmatpush1.msra.mxu0 0.0
    %1312 = vmatprep.subr.mxu0 0.0
    %1313 = vmatpush1.msra.mxu0 0.0
    %1314 = vmatprep.subr.mxu0 0.0
    %1315 = vmatpush1.msra.mxu0 0.0
    %1316 = vmatprep.subr.mxu0 0.0
    %1317 = vmatpush1.msra.mxu0 0.0
    %1318 = vmatprep.subr.mxu0 0.0
    %1319 = vmatpush1.msra.mxu0 0.0
    %1320 = vmatprep.subr.mxu0 0.0
    %1321 = vmatpush1.msra.mxu0 0.0
    %1322 = vmatprep.subr.mxu0 0.0
    %1323 = vmatpush1.msra.mxu0 0.0
    %1324 = vmatprep.subr.mxu0 0.0
    %1325 = vmatpush1.msra.mxu0 0.0
    %1326 = vmatprep.subr.mxu0 0.0
    %1327 = vmatpush1.msra.mxu0 0.0
    %1328 = vmatprep.subr.mxu0 0.0
    %1329 = vmatpush1.msra.mxu0 0.0
    %1330 = vmatprep.subr.mxu0 0.0
    %v1331 = vand.u32 %v884, 4294901760
    %1332 = vmatpush1.msra.mxu0 %v1331
    %1333 = vmatprep.subr.mxu0 0.0
    %v1334 = vand.u32 %v883, 4294901760
    %1335 = vmatpush1.msra.mxu0 %v1334
    %1336 = vmatprep.subr.mxu0 0.0
    %v1337 = vand.u32 %v882, 4294901760
    %1338 = vmatpush1.msra.mxu0 %v1337
    %1339 = vmatprep.subr.mxu0 0.0
    %v1340 = vand.u32 %v881, 4294901760
    %1341 = vmatpush1.msra.mxu0 %v1340
    %1342 = vmatprep.subr.mxu0 0.0
    %1343 = vmatpush2.msra.mxu0 0.0
    %1344 = vmatprep.subr.mxu0 0.0
    %1345 = vmatpush2.msra.mxu0 0.0
    %1346 = vmatprep.subr.mxu0 0.0
    %1347 = vmatpush2.msra.mxu0 0.0
    %1348 = vmatprep.subr.mxu0 0.0
    %1349 = vmatpush2.msra.mxu0 0.0
    %1350 = vmatprep.subr.mxu0 0.0
    %1351 = vmatpush2.msra.mxu0 0.0
    %1352 = vmatprep.subr.mxu0 0.0
    %1353 = vmatpush2.msra.mxu0 0.0
    %1354 = vmatprep.subr.mxu0 0.0
    %1355 = vmatpush2.msra.mxu0 0.0
    %1356 = vmatprep.subr.mxu0 0.0
    %1357 = vmatpush2.msra.mxu0 0.0
    %1358 = vmatprep.subr.mxu0 0.0
    %1359 = vmatpush2.msra.mxu0 0.0
    %1360 = vmatprep.subr.mxu0 0.0
    %1361 = vmatpush2.msra.mxu0 0.0
    %1362 = vmatprep.subr.mxu0 0.0
    %1363 = vmatpush2.msra.mxu0 0.0
    %1364 = vmatprep.subr.mxu0 0.0
    %1365 = vmatpush2.msra.mxu0 0.0
    %1366 = vmatprep.subr.mxu0 0.0
    %1367 = vmatpush2.msra.mxu0 0.0
    %1368 = vmatprep.subr.mxu0 0.0
    %1369 = vmatpush2.msra.mxu0 0.0
    %1370 = vmatprep.subr.mxu0 0.0
    %1371 = vmatpush2.msra.mxu0 0.0
    %1372 = vmatprep.subr.mxu0 0.0
    %1373 = vmatpush2.msra.mxu0 0.0
    %1374 = vmatprep.mubr.f32.mxu0 0.0
    %v1375 = vand.u32 %v894, 4294901760
    %1376 = vmatmul.mubr.f32.gmra.mxu0 %v1375
    %v1377 = vpop.f32.mrf.mxu0
    %v1378 = vadd.f32 %v1303, %v1377
    %v1379 = vpop.f32.mrf.mxu0
    %1380 = vdwg.mxu0
    %v1381 = vadd.f32 %v892, %v1378
    %v1382 = vmul.f32 %v1381, 0.5
    %v1383 = vsel %vm889, %v1381, %v1382
    %v1384 = vtanh.pop %v1383
    %v1385 = vmul.f32 %v1384, 0.5
    %v1386 = vadd.f32 %v1385, 0.5
    %v1387 = vsel %vm889, %v1384, %v1386
    %1389 = vrot.lane.b32.xlu0 %v891, 32
    %v1390 = vpop.permute.xlu0 %1389
    %v1392 = vmul.f32 %v1387, %v1390
    %1394 = vrot.lane.b32.xlu0 %v1387, 64
    %v1395 = vpop.permute.xlu0 %1394
    %v1397 = vmul.f32 %v1387, %v1395
    %1399 = vrot.lane.b32.xlu0 %v1397, 32
    %v1400 = vpop.permute.xlu0 %1399
    %v1402 = vadd.f32 %v1392, %v1400
    %v1403 = vtanh.pop %v1402
    %1405 = vrot.lane.b32.xlu0 %v1403, 64
    %v1406 = vpop.permute.xlu0 %1405
    %v1408 = vmul.f32 %v1387, %v1406
    %s1409 = scalar_lea.vmem [#allocation4], 8
    %v1410 = vld [vmem:[%s1409] sm:$0xff]
    %1412 = vrot.lane.b32.xlu0 %v1408, 32
    %v1413 = vpop.permute.xlu0 %1412
    %v1414 = vsel %vm62, %v1413, 0
    %1416 = vmatprep.subr.mxu0 0.0
    %1417 = vmatpush1.msra.mxu0 0.0
    %1418 = vmatprep.subr.mxu0 0.0
    %1419 = vmatpush1.msra.mxu0 0.0
    %1420 = vmatprep.subr.mxu0 0.0
    %1421 = vmatpush1.msra.mxu0 0.0
    %1422 = vmatprep.subr.mxu0 0.0
    %1423 = vmatpush1.msra.mxu0 0.0
    %1424 = vmatprep.subr.mxu0 0.0
    %1425 = vmatpush1.msra.mxu0 0.0
    %1426 = vmatprep.subr.mxu0 0.0
    %1427 = vmatpush1.msra.mxu0 0.0
    %1428 = vmatprep.subr.mxu0 0.0
    %1429 = vmatpush1.msra.mxu0 0.0
    %1430 = vmatprep.subr.mxu0 0.0
    %1431 = vmatpush1.msra.mxu0 0.0
    %1432 = vmatprep.subr.mxu0 0.0
    %1433 = vmatpush1.msra.mxu0 0.0
    %1434 = vmatprep.subr.mxu0 0.0
    %1435 = vmatpush1.msra.mxu0 0.0
    %1436 = vmatprep.subr.mxu0 0.0
    %1437 = vmatpush1.msra.mxu0 0.0
    %1438 = vmatprep.subr.mxu0 0.0
    %1439 = vmatpush1.msra.mxu0 0.0
    %1440 = vmatprep.subr.mxu0 0.0
    %v1441 = vand.u32 %v884, 4294901760
    %1442 = vmatpush1.msra.mxu0 %v1441
    %1443 = vmatprep.subr.mxu0 0.0
    %v1444 = vand.u32 %v883, 4294901760
    %1445 = vmatpush1.msra.mxu0 %v1444
    %1446 = vmatprep.subr.mxu0 0.0
    %v1447 = vand.u32 %v882, 4294901760
    %1448 = vmatpush1.msra.mxu0 %v1447
    %1449 = vmatprep.subr.mxu0 0.0
    %v1450 = vand.u32 %v881, 4294901760
    %1451 = vmatpush1.msra.mxu0 %v1450
    %1452 = vmatprep.subr.mxu0 0.0
    %1453 = vmatpush2.msra.mxu0 0.0
    %1454 = vmatprep.subr.mxu0 0.0
    %1455 = vmatpush2.msra.mxu0 0.0
    %1456 = vmatprep.subr.mxu0 0.0
    %1457 = vmatpush2.msra.mxu0 0.0
    %1458 = vmatprep.subr.mxu0 0.0
    %1459 = vmatpush2.msra.mxu0 0.0
    %1460 = vmatprep.subr.mxu0 0.0
    %1461 = vmatpush2.msra.mxu0 0.0
    %1462 = vmatprep.subr.mxu0 0.0
    %1463 = vmatpush2.msra.mxu0 0.0
    %1464 = vmatprep.subr.mxu0 0.0
    %1465 = vmatpush2.msra.mxu0 0.0
    %1466 = vmatprep.subr.mxu0 0.0
    %1467 = vmatpush2.msra.mxu0 0.0
    %1468 = vmatprep.subr.mxu0 0.0
    %1469 = vmatpush2.msra.mxu0 0.0
    %1470 = vmatprep.subr.mxu0 0.0
    %1471 = vmatpush2.msra.mxu0 0.0
    %1472 = vmatprep.subr.mxu0 0.0
    %1473 = vmatpush2.msra.mxu0 0.0
    %1474 = vmatprep.subr.mxu0 0.0
    %1475 = vmatpush2.msra.mxu0 0.0
    %1476 = vmatprep.subr.mxu0 0.0
    %1477 = vmatpush2.msra.mxu0 0.0
    %1478 = vmatprep.subr.mxu0 0.0
    %1479 = vmatpush2.msra.mxu0 0.0
    %1480 = vmatprep.subr.mxu0 0.0
    %1481 = vmatpush2.msra.mxu0 0.0
    %1482 = vmatprep.subr.mxu0 0.0
    %1483 = vmatpush2.msra.mxu0 0.0
    %1484 = vmatprep.mubr.f32.mxu0 0.0
    %v1485 = vand.u32 %v1414, 4294901760
    %v1486 = vsub.f32 %v1414, %v1485
    %v1487 = vand.u32 %v1486, 4294901760
    %v1488 = vsub.f32 %v1486, %v1487
    %v1489 = vand.u32 %v1488, 4294901760
    %1490 = vmatmul.mubr.f32.gmra.mxu0 %v1489
    %v1491 = vpop.f32.mrf.mxu0
    %v1492 = vadd.f32 0.0, %v1491
    %v1493 = vpop.f32.mrf.mxu0
    %1494 = vdwg.mxu0
    %1495 = vmatprep.subr.mxu0 0.0
    %1496 = vmatpush1.msra.mxu0 0.0
    %1497 = vmatprep.subr.mxu0 0.0
    %1498 = vmatpush1.msra.mxu0 0.0
    %1499 = vmatprep.subr.mxu0 0.0
    %1500 = vmatpush1.msra.mxu0 0.0
    %1501 = vmatprep.subr.mxu0 0.0
    %1502 = vmatpush1.msra.mxu0 0.0
    %1503 = vmatprep.subr.mxu0 0.0
    %1504 = vmatpush1.msra.mxu0 0.0
    %1505 = vmatprep.subr.mxu0 0.0
    %1506 = vmatpush1.msra.mxu0 0.0
    %1507 = vmatprep.subr.mxu0 0.0
    %1508 = vmatpush1.msra.mxu0 0.0
    %1509 = vmatprep.subr.mxu0 0.0
    %1510 = vmatpush1.msra.mxu0 0.0
    %1511 = vmatprep.subr.mxu0 0.0
    %1512 = vmatpush1.msra.mxu0 0.0
    %1513 = vmatprep.subr.mxu0 0.0
    %1514 = vmatpush1.msra.mxu0 0.0
    %1515 = vmatprep.subr.mxu0 0.0
    %1516 = vmatpush1.msra.mxu0 0.0
    %1517 = vmatprep.subr.mxu0 0.0
    %1518 = vmatpush1.msra.mxu0 0.0
    %1519 = vmatprep.subr.mxu0 0.0
    %v1520 = vand.u32 %v884, 4294901760
    %v1521 = vsub.f32 %v884, %v1520
    %v1522 = vand.u32 %v1521, 4294901760
    %v1523 = vsub.f32 %v1521, %v1522
    %v1524 = vand.u32 %v1523, 4294901760
    %1525 = vmatpush1.msra.mxu0 %v1524
    %1526 = vmatprep.subr.mxu0 0.0
    %v1527 = vand.u32 %v883, 4294901760
    %v1528 = vsub.f32 %v883, %v1527
    %v1529 = vand.u32 %v1528, 4294901760
    %v1530 = vsub.f32 %v1528, %v1529
    %v1531 = vand.u32 %v1530, 4294901760
    %1532 = vmatpush1.msra.mxu0 %v1531
    %1533 = vmatprep.subr.mxu0 0.0
    %v1534 = vand.u32 %v882, 4294901760
    %v1535 = vsub.f32 %v882, %v1534
    %v1536 = vand.u32 %v1535, 4294901760
    %v1537 = vsub.f32 %v1535, %v1536
    %v1538 = vand.u32 %v1537, 4294901760
    %1539 = vmatpush1.msra.mxu0 %v1538
    %1540 = vmatprep.subr.mxu0 0.0
    %v1541 = vand.u32 %v881, 4294901760
    %v1542 = vsub.f32 %v881, %v1541
    %v1543 = vand.u32 %v1542, 4294901760
    %v1544 = vsub.f32 %v1542, %v1543
    %v1545 = vand.u32 %v1544, 4294901760
    %1546 = vmatpush1.msra.mxu0 %v1545
    %1547 = vmatprep.subr.mxu0 0.0
    %1548 = vmatpush2.msra.mxu0 0.0
    %1549 = vmatprep.subr.mxu0 0.0
    %1550 = vmatpush2.msra.mxu0 0.0
    %1551 = vmatprep.subr.mxu0 0.0
    %1552 = vmatpush2.msra.mxu0 0.0
    %1553 = vmatprep.subr.mxu0 0.0
    %1554 = vmatpush2.msra.mxu0 0.0
    %1555 = vmatprep.subr.mxu0 0.0
    %1556 = vmatpush2.msra.mxu0 0.0
    %1557 = vmatprep.subr.mxu0 0.0
    %1558 = vmatpush2.msra.mxu0 0.0
    %1559 = vmatprep.subr.mxu0 0.0
    %1560 = vmatpush2.msra.mxu0 0.0
    %1561 = vmatprep.subr.mxu0 0.0
    %1562 = vmatpush2.msra.mxu0 0.0
    %1563 = vmatprep.subr.mxu0 0.0
    %1564 = vmatpush2.msra.mxu0 0.0
    %1565 = vmatprep.subr.mxu0 0.0
    %1566 = vmatpush2.msra.mxu0 0.0
    %1567 = vmatprep.subr.mxu0 0.0
    %1568 = vmatpush2.msra.mxu0 0.0
    %1569 = vmatprep.subr.mxu0 0.0
    %1570 = vmatpush2.msra.mxu0 0.0
    %1571 = vmatprep.subr.mxu0 0.0
    %1572 = vmatpush2.msra.mxu0 0.0
    %1573 = vmatprep.subr.mxu0 0.0
    %1574 = vmatpush2.msra.mxu0 0.0
    %1575 = vmatprep.subr.mxu0 0.0
    %1576 = vmatpush2.msra.mxu0 0.0
    %1577 = vmatprep.subr.mxu0 0.0
    %1578 = vmatpush2.msra.mxu0 0.0
    %1579 = vmatprep.mubr.f32.mxu0 0.0
    %v1580 = vand.u32 %v1414, 4294901760
    %1581 = vmatmul.mubr.f32.gmra.mxu0 %v1580
    %v1582 = vpop.f32.mrf.mxu0
    %v1583 = vadd.f32 %v1492, %v1582
    %v1584 = vpop.f32.mrf.mxu0
    %1585 = vdwg.mxu0
    %1586 = vmatprep.subr.mxu0 0.0
    %1587 = vmatpush1.msra.mxu0 0.0
    %1588 = vmatprep.subr.mxu0 0.0
    %1589 = vmatpush1.msra.mxu0 0.0
    %1590 = vmatprep.subr.mxu0 0.0
    %1591 = vmatpush1.msra.mxu0 0.0
    %1592 = vmatprep.subr.mxu0 0.0
    %1593 = vmatpush1.msra.mxu0 0.0
    %1594 = vmatprep.subr.mxu0 0.0
    %1595 = vmatpush1.msra.mxu0 0.0
    %1596 = vmatprep.subr.mxu0 0.0
    %1597 = vmatpush1.msra.mxu0 0.0
    %1598 = vmatprep.subr.mxu0 0.0
    %1599 = vmatpush1.msra.mxu0 0.0
    %1600 = vmatprep.subr.mxu0 0.0
    %1601 = vmatpush1.msra.mxu0 0.0
    %1602 = vmatprep.subr.mxu0 0.0
    %1603 = vmatpush1.msra.mxu0 0.0
    %1604 = vmatprep.subr.mxu0 0.0
    %1605 = vmatpush1.msra.mxu0 0.0
    %1606 = vmatprep.subr.mxu0 0.0
    %1607 = vmatpush1.msra.mxu0 0.0
    %1608 = vmatprep.subr.mxu0 0.0
    %1609 = vmatpush1.msra.mxu0 0.0
    %1610 = vmatprep.subr.mxu0 0.0
    %v1611 = vand.u32 %v884, 4294901760
    %v1612 = vsub.f32 %v884, %v1611
    %1613 = vmatpush1.msra.mxu0 %v1612
    %1614 = vmatprep.subr.mxu0 0.0
    %v1615 = vand.u32 %v883, 4294901760
    %v1616 = vsub.f32 %v883, %v1615
    %1617 = vmatpush1.msra.mxu0 %v1616
    %1618 = vmatprep.subr.mxu0 0.0
    %v1619 = vand.u32 %v882, 4294901760
    %v1620 = vsub.f32 %v882, %v1619
    %1621 = vmatpush1.msra.mxu0 %v1620
    %1622 = vmatprep.subr.mxu0 0.0
    %v1623 = vand.u32 %v881, 4294901760
    %v1624 = vsub.f32 %v881, %v1623
    %1625 = vmatpush1.msra.mxu0 %v1624
    %1626 = vmatprep.subr.mxu0 0.0
    %1627 = vmatpush2.msra.mxu0 0.0
    %1628 = vmatprep.subr.mxu0 0.0
    %1629 = vmatpush2.msra.mxu0 0.0
    %1630 = vmatprep.subr.mxu0 0.0
    %1631 = vmatpush2.msra.mxu0 0.0
    %1632 = vmatprep.subr.mxu0 0.0
    %1633 = vmatpush2.msra.mxu0 0.0
    %1634 = vmatprep.subr.mxu0 0.0
    %1635 = vmatpush2.msra.mxu0 0.0
    %1636 = vmatprep.subr.mxu0 0.0
    %1637 = vmatpush2.msra.mxu0 0.0
    %1638 = vmatprep.subr.mxu0 0.0
    %1639 = vmatpush2.msra.mxu0 0.0
    %1640 = vmatprep.subr.mxu0 0.0
    %1641 = vmatpush2.msra.mxu0 0.0
    %1642 = vmatprep.subr.mxu0 0.0
    %1643 = vmatpush2.msra.mxu0 0.0
    %1644 = vmatprep.subr.mxu0 0.0
    %1645 = vmatpush2.msra.mxu0 0.0
    %1646 = vmatprep.subr.mxu0 0.0
    %1647 = vmatpush2.msra.mxu0 0.0
    %1648 = vmatprep.subr.mxu0 0.0
    %1649 = vmatpush2.msra.mxu0 0.0
    %1650 = vmatprep.subr.mxu0 0.0
    %1651 = vmatpush2.msra.mxu0 0.0
    %1652 = vmatprep.subr.mxu0 0.0
    %1653 = vmatpush2.msra.mxu0 0.0
    %1654 = vmatprep.subr.mxu0 0.0
    %1655 = vmatpush2.msra.mxu0 0.0
    %1656 = vmatprep.subr.mxu0 0.0
    %1657 = vmatpush2.msra.mxu0 0.0
    %1658 = vmatprep.mubr.f32.mxu0 0.0
    %v1659 = vand.u32 %v1414, 4294901760
    %v1660 = vsub.f32 %v1414, %v1659
    %1661 = vmatmul.mubr.f32.gmra.mxu0 %v1660
    %v1662 = vpop.f32.mrf.mxu0
    %v1663 = vadd.f32 %v1583, %v1662
    %v1664 = vpop.f32.mrf.mxu0
    %1665 = vdwg.mxu0
    %1666 = vmatprep.subr.mxu0 0.0
    %1667 = vmatpush1.msra.mxu0 0.0
    %1668 = vmatprep.subr.mxu0 0.0
    %1669 = vmatpush1.msra.mxu0 0.0
    %1670 = vmatprep.subr.mxu0 0.0
    %1671 = vmatpush1.msra.mxu0 0.0
    %1672 = vmatprep.subr.mxu0 0.0
    %1673 = vmatpush1.msra.mxu0 0.0
    %1674 = vmatprep.subr.mxu0 0.0
    %1675 = vmatpush1.msra.mxu0 0.0
    %1676 = vmatprep.subr.mxu0 0.0
    %1677 = vmatpush1.msra.mxu0 0.0
    %1678 = vmatprep.subr.mxu0 0.0
    %1679 = vmatpush1.msra.mxu0 0.0
    %1680 = vmatprep.subr.mxu0 0.0
    %1681 = vmatpush1.msra.mxu0 0.0
    %1682 = vmatprep.subr.mxu0 0.0
    %1683 = vmatpush1.msra.mxu0 0.0
    %1684 = vmatprep.subr.mxu0 0.0
    %1685 = vmatpush1.msra.mxu0 0.0
    %1686 = vmatprep.subr.mxu0 0.0
    %1687 = vmatpush1.msra.mxu0 0.0
    %1688 = vmatprep.subr.mxu0 0.0
    %1689 = vmatpush1.msra.mxu0 0.0
    %1690 = vmatprep.subr.mxu0 0.0
    %v1691 = vand.u32 %v884, 4294901760
    %1692 = vmatpush1.msra.mxu0 %v1691
    %1693 = vmatprep.subr.mxu0 0.0
    %v1694 = vand.u32 %v883, 4294901760
    %1695 = vmatpush1.msra.mxu0 %v1694
    %1696 = vmatprep.subr.mxu0 0.0
    %v1697 = vand.u32 %v882, 4294901760
    %1698 = vmatpush1.msra.mxu0 %v1697
    %1699 = vmatprep.subr.mxu0 0.0
    %v1700 = vand.u32 %v881, 4294901760
    %1701 = vmatpush1.msra.mxu0 %v1700
    %1702 = vmatprep.subr.mxu0 0.0
    %1703 = vmatpush2.msra.mxu0 0.0
    %1704 = vmatprep.subr.mxu0 0.0
    %1705 = vmatpush2.msra.mxu0 0.0
    %1706 = vmatprep.subr.mxu0 0.0
    %1707 = vmatpush2.msra.mxu0 0.0
    %1708 = vmatprep.subr.mxu0 0.0
    %1709 = vmatpush2.msra.mxu0 0.0
    %1710 = vmatprep.subr.mxu0 0.0
    %1711 = vmatpush2.msra.mxu0 0.0
    %1712 = vmatprep.subr.mxu0 0.0
    %1713 = vmatpush2.msra.mxu0 0.0
    %1714 = vmatprep.subr.mxu0 0.0
    %1715 = vmatpush2.msra.mxu0 0.0
    %1716 = vmatprep.subr.mxu0 0.0
    %1717 = vmatpush2.msra.mxu0 0.0
    %1718 = vmatprep.subr.mxu0 0.0
    %1719 = vmatpush2.msra.mxu0 0.0
    %1720 = vmatprep.subr.mxu0 0.0
    %1721 = vmatpush2.msra.mxu0 0.0
    %1722 = vmatprep.subr.mxu0 0.0
    %1723 = vmatpush2.msra.mxu0 0.0
    %1724 = vmatprep.subr.mxu0 0.0
    %1725 = vmatpush2.msra.mxu0 0.0
    %1726 = vmatprep.subr.mxu0 0.0
    %1727 = vmatpush2.msra.mxu0 0.0
    %1728 = vmatprep.subr.mxu0 0.0
    %1729 = vmatpush2.msra.mxu0 0.0
    %1730 = vmatprep.subr.mxu0 0.0
    %1731 = vmatpush2.msra.mxu0 0.0
    %1732 = vmatprep.subr.mxu0 0.0
    %1733 = vmatpush2.msra.mxu0 0.0
    %1734 = vmatprep.mubr.f32.mxu0 0.0
    %v1735 = vand.u32 %v1414, 4294901760
    %v1736 = vsub.f32 %v1414, %v1735
    %v1737 = vand.u32 %v1736, 4294901760
    %1738 = vmatmul.mubr.f32.gmra.mxu0 %v1737
    %v1739 = vpop.f32.mrf.mxu0
    %v1740 = vadd.f32 %v1663, %v1739
    %v1741 = vpop.f32.mrf.mxu0
    %1742 = vdwg.mxu0
    %1743 = vmatprep.subr.mxu0 0.0
    %1744 = vmatpush1.msra.mxu0 0.0
    %1745 = vmatprep.subr.mxu0 0.0
    %1746 = vmatpush1.msra.mxu0 0.0
    %1747 = vmatprep.subr.mxu0 0.0
    %1748 = vmatpush1.msra.mxu0 0.0
    %1749 = vmatprep.subr.mxu0 0.0
    %1750 = vmatpush1.msra.mxu0 0.0
    %1751 = vmatprep.subr.mxu0 0.0
    %1752 = vmatpush1.msra.mxu0 0.0
    %1753 = vmatprep.subr.mxu0 0.0
    %1754 = vmatpush1.msra.mxu0 0.0
    %1755 = vmatprep.subr.mxu0 0.0
    %1756 = vmatpush1.msra.mxu0 0.0
    %1757 = vmatprep.subr.mxu0 0.0
    %1758 = vmatpush1.msra.mxu0 0.0
    %1759 = vmatprep.subr.mxu0 0.0
    %1760 = vmatpush1.msra.mxu0 0.0
    %1761 = vmatprep.subr.mxu0 0.0
    %1762 = vmatpush1.msra.mxu0 0.0
    %1763 = vmatprep.subr.mxu0 0.0
    %1764 = vmatpush1.msra.mxu0 0.0
    %1765 = vmatprep.subr.mxu0 0.0
    %1766 = vmatpush1.msra.mxu0 0.0
    %1767 = vmatprep.subr.mxu0 0.0
    %v1768 = vand.u32 %v884, 4294901760
    %v1769 = vsub.f32 %v884, %v1768
    %v1770 = vand.u32 %v1769, 4294901760
    %1771 = vmatpush1.msra.mxu0 %v1770
    %1772 = vmatprep.subr.mxu0 0.0
    %v1773 = vand.u32 %v883, 4294901760
    %v1774 = vsub.f32 %v883, %v1773
    %v1775 = vand.u32 %v1774, 4294901760
    %1776 = vmatpush1.msra.mxu0 %v1775
    %1777 = vmatprep.subr.mxu0 0.0
    %v1778 = vand.u32 %v882, 4294901760
    %v1779 = vsub.f32 %v882, %v1778
    %v1780 = vand.u32 %v1779, 4294901760
    %1781 = vmatpush1.msra.mxu0 %v1780
    %1782 = vmatprep.subr.mxu0 0.0
    %v1783 = vand.u32 %v881, 4294901760
    %v1784 = vsub.f32 %v881, %v1783
    %v1785 = vand.u32 %v1784, 4294901760
    %1786 = vmatpush1.msra.mxu0 %v1785
    %1787 = vmatprep.subr.mxu0 0.0
    %1788 = vmatpush2.msra.mxu0 0.0
    %1789 = vmatprep.subr.mxu0 0.0
    %1790 = vmatpush2.msra.mxu0 0.0
    %1791 = vmatprep.subr.mxu0 0.0
    %1792 = vmatpush2.msra.mxu0 0.0
    %1793 = vmatprep.subr.mxu0 0.0
    %1794 = vmatpush2.msra.mxu0 0.0
    %1795 = vmatprep.subr.mxu0 0.0
    %1796 = vmatpush2.msra.mxu0 0.0
    %1797 = vmatprep.subr.mxu0 0.0
    %1798 = vmatpush2.msra.mxu0 0.0
    %1799 = vmatprep.subr.mxu0 0.0
    %1800 = vmatpush2.msra.mxu0 0.0
    %1801 = vmatprep.subr.mxu0 0.0
    %1802 = vmatpush2.msra.mxu0 0.0
    %1803 = vmatprep.subr.mxu0 0.0
    %1804 = vmatpush2.msra.mxu0 0.0
    %1805 = vmatprep.subr.mxu0 0.0
    %1806 = vmatpush2.msra.mxu0 0.0
    %1807 = vmatprep.subr.mxu0 0.0
    %1808 = vmatpush2.msra.mxu0 0.0
    %1809 = vmatprep.subr.mxu0 0.0
    %1810 = vmatpush2.msra.mxu0 0.0
    %1811 = vmatprep.subr.mxu0 0.0
    %1812 = vmatpush2.msra.mxu0 0.0
    %1813 = vmatprep.subr.mxu0 0.0
    %1814 = vmatpush2.msra.mxu0 0.0
    %1815 = vmatprep.subr.mxu0 0.0
    %1816 = vmatpush2.msra.mxu0 0.0
    %1817 = vmatprep.subr.mxu0 0.0
    %1818 = vmatpush2.msra.mxu0 0.0
    %1819 = vmatprep.mubr.f32.mxu0 0.0
    %v1820 = vand.u32 %v1414, 4294901760
    %1821 = vmatmul.mubr.f32.gmra.mxu0 %v1820
    %v1822 = vpop.f32.mrf.mxu0
    %v1823 = vadd.f32 %v1740, %v1822
    %v1824 = vpop.f32.mrf.mxu0
    %1825 = vdwg.mxu0
    %1826 = vmatprep.subr.mxu0 0.0
    %1827 = vmatpush1.msra.mxu0 0.0
    %1828 = vmatprep.subr.mxu0 0.0
    %1829 = vmatpush1.msra.mxu0 0.0
    %1830 = vmatprep.subr.mxu0 0.0
    %1831 = vmatpush1.msra.mxu0 0.0
    %1832 = vmatprep.subr.mxu0 0.0
    %1833 = vmatpush1.msra.mxu0 0.0
    %1834 = vmatprep.subr.mxu0 0.0
    %1835 = vmatpush1.msra.mxu0 0.0
    %1836 = vmatprep.subr.mxu0 0.0
    %1837 = vmatpush1.msra.mxu0 0.0
    %1838 = vmatprep.subr.mxu0 0.0
    %1839 = vmatpush1.msra.mxu0 0.0
    %1840 = vmatprep.subr.mxu0 0.0
    %1841 = vmatpush1.msra.mxu0 0.0
    %1842 = vmatprep.subr.mxu0 0.0
    %1843 = vmatpush1.msra.mxu0 0.0
    %1844 = vmatprep.subr.mxu0 0.0
    %1845 = vmatpush1.msra.mxu0 0.0
    %1846 = vmatprep.subr.mxu0 0.0
    %1847 = vmatpush1.msra.mxu0 0.0
    %1848 = vmatprep.subr.mxu0 0.0
    %1849 = vmatpush1.msra.mxu0 0.0
    %1850 = vmatprep.subr.mxu0 0.0
    %v1851 = vand.u32 %v884, 4294901760
    %1852 = vmatpush1.msra.mxu0 %v1851
    %1853 = vmatprep.subr.mxu0 0.0
    %v1854 = vand.u32 %v883, 4294901760
    %1855 = vmatpush1.msra.mxu0 %v1854
    %1856 = vmatprep.subr.mxu0 0.0
    %v1857 = vand.u32 %v882, 4294901760
    %1858 = vmatpush1.msra.mxu0 %v1857
    %1859 = vmatprep.subr.mxu0 0.0
    %v1860 = vand.u32 %v881, 4294901760
    %1861 = vmatpush1.msra.mxu0 %v1860
    %1862 = vmatprep.subr.mxu0 0.0
    %1863 = vmatpush2.msra.mxu0 0.0
    %1864 = vmatprep.subr.mxu0 0.0
    %1865 = vmatpush2.msra.mxu0 0.0
    %1866 = vmatprep.subr.mxu0 0.0
    %1867 = vmatpush2.msra.mxu0 0.0
    %1868 = vmatprep.subr.mxu0 0.0
    %1869 = vmatpush2.msra.mxu0 0.0
    %1870 = vmatprep.subr.mxu0 0.0
    %1871 = vmatpush2.msra.mxu0 0.0
    %1872 = vmatprep.subr.mxu0 0.0
    %1873 = vmatpush2.msra.mxu0 0.0
    %1874 = vmatprep.subr.mxu0 0.0
    %1875 = vmatpush2.msra.mxu0 0.0
    %1876 = vmatprep.subr.mxu0 0.0
    %1877 = vmatpush2.msra.mxu0 0.0
    %1878 = vmatprep.subr.mxu0 0.0
    %1879 = vmatpush2.msra.mxu0 0.0
    %1880 = vmatprep.subr.mxu0 0.0
    %1881 = vmatpush2.msra.mxu0 0.0
    %1882 = vmatprep.subr.mxu0 0.0
    %1883 = vmatpush2.msra.mxu0 0.0
    %1884 = vmatprep.subr.mxu0 0.0
    %1885 = vmatpush2.msra.mxu0 0.0
    %1886 = vmatprep.subr.mxu0 0.0
    %1887 = vmatpush2.msra.mxu0 0.0
    %1888 = vmatprep.subr.mxu0 0.0
    %1889 = vmatpush2.msra.mxu0 0.0
    %1890 = vmatprep.subr.mxu0 0.0
    %1891 = vmatpush2.msra.mxu0 0.0
    %1892 = vmatprep.subr.mxu0 0.0
    %1893 = vmatpush2.msra.mxu0 0.0
    %1894 = vmatprep.mubr.f32.mxu0 0.0
    %v1895 = vand.u32 %v1414, 4294901760
    %1896 = vmatmul.mubr.f32.gmra.mxu0 %v1895
    %v1897 = vpop.f32.mrf.mxu0
    %v1898 = vadd.f32 %v1823, %v1897
    %v1899 = vpop.f32.mrf.mxu0
    %1900 = vdwg.mxu0
    %v1901 = vadd.f32 %v1410, %v1898
    %v1902 = vmul.f32 %v1901, 0.5
    %v1903 = vsel %vm889, %v1901, %v1902
    %v1904 = vtanh.pop %v1903
    %v1905 = vmul.f32 %v1904, 0.5
    %v1906 = vadd.f32 %v1905, 0.5
    %v1907 = vsel %vm889, %v1904, %v1906
    %v1908 = vmul.f32 %v1907, %v1402
    %1910 = vrot.lane.b32.xlu0 %v1907, 64
    %v1911 = vpop.permute.xlu0 %1910
    %v1913 = vmul.f32 %v1907, %v1911
    %1915 = vrot.lane.b32.xlu0 %v1913, 32
    %v1916 = vpop.permute.xlu0 %1915
    %v1918 = vadd.f32 %v1908, %v1916
    %v1919 = vtanh.pop %v1918
    %1921 = vrot.lane.b32.xlu0 %v1919, 64
    %v1922 = vpop.permute.xlu0 %1921
    %v1924 = vmul.f32 %v1907, %v1922
    %s1925 = scalar_lea.vmem [#allocation4], 16
    %v1926 = vld [vmem:[%s1925] sm:$0xff]
    %1928 = vrot.lane.b32.xlu0 %v1924, 32
    %v1929 = vpop.permute.xlu0 %1928
    %v1930 = vsel %vm62, %v1929, 0
    %1932 = vmatprep.subr.mxu0 0.0
    %1933 = vmatpush1.msra.mxu0 0.0
    %1934 = vmatprep.subr.mxu0 0.0
    %1935 = vmatpush1.msra.mxu0 0.0
    %1936 = vmatprep.subr.mxu0 0.0
    %1937 = vmatpush1.msra.mxu0 0.0
    %1938 = vmatprep.subr.mxu0 0.0
    %1939 = vmatpush1.msra.mxu0 0.0
    %1940 = vmatprep.subr.mxu0 0.0
    %1941 = vmatpush1.msra.mxu0 0.0
    %1942 = vmatprep.subr.mxu0 0.0
    %1943 = vmatpush1.msra.mxu0 0.0
    %1944 = vmatprep.subr.mxu0 0.0
    %1945 = vmatpush1.msra.mxu0 0.0
    %1946 = vmatprep.subr.mxu0 0.0
    %1947 = vmatpush1.msra.mxu0 0.0
    %1948 = vmatprep.subr.mxu0 0.0
    %1949 = vmatpush1.msra.mxu0 0.0
    %1950 = vmatprep.subr.mxu0 0.0
    %1951 = vmatpush1.msra.mxu0 0.0
    %1952 = vmatprep.subr.mxu0 0.0
    %1953 = vmatpush1.msra.mxu0 0.0
    %1954 = vmatprep.subr.mxu0 0.0
    %1955 = vmatpush1.msra.mxu0 0.0
    %1956 = vmatprep.subr.mxu0 0.0
    %v1957 = vand.u32 %v884, 4294901760
    %1958 = vmatpush1.msra.mxu0 %v1957
    %1959 = vmatprep.subr.mxu0 0.0
    %v1960 = vand.u32 %v883, 4294901760
    %1961 = vmatpush1.msra.mxu0 %v1960
    %1962 = vmatprep.subr.mxu0 0.0
    %v1963 = vand.u32 %v882, 4294901760
    %1964 = vmatpush1.msra.mxu0 %v1963
    %1965 = vmatprep.subr.mxu0 0.0
    %v1966 = vand.u32 %v881, 4294901760
    %1967 = vmatpush1.msra.mxu0 %v1966
    %1968 = vmatprep.subr.mxu0 0.0
    %1969 = vmatpush2.msra.mxu0 0.0
    %1970 = vmatprep.subr.mxu0 0.0
    %1971 = vmatpush2.msra.mxu0 0.0
    %1972 = vmatprep.subr.mxu0 0.0
    %1973 = vmatpush2.msra.mxu0 0.0
    %1974 = vmatprep.subr.mxu0 0.0
    %1975 = vmatpush2.msra.mxu0 0.0
    %1976 = vmatprep.subr.mxu0 0.0
    %1977 = vmatpush2.msra.mxu0 0.0
    %1978 = vmatprep.subr.mxu0 0.0
    %1979 = vmatpush2.msra.mxu0 0.0
    %1980 = vmatprep.subr.mxu0 0.0
    %1981 = vmatpush2.msra.mxu0 0.0
    %1982 = vmatprep.subr.mxu0 0.0
    %1983 = vmatpush2.msra.mxu0 0.0
    %1984 = vmatprep.subr.mxu0 0.0
    %1985 = vmatpush2.msra.mxu0 0.0
    %1986 = vmatprep.subr.mxu0 0.0
    %1987 = vmatpush2.msra.mxu0 0.0
    %1988 = vmatprep.subr.mxu0 0.0
    %1989 = vmatpush2.msra.mxu0 0.0
    %1990 = vmatprep.subr.mxu0 0.0
    %1991 = vmatpush2.msra.mxu0 0.0
    %1992 = vmatprep.subr.mxu0 0.0
    %1993 = vmatpush2.msra.mxu0 0.0
    %1994 = vmatprep.subr.mxu0 0.0
    %1995 = vmatpush2.msra.mxu0 0.0
    %1996 = vmatprep.subr.mxu0 0.0
    %1997 = vmatpush2.msra.mxu0 0.0
    %1998 = vmatprep.subr.mxu0 0.0
    %1999 = vmatpush2.msra.mxu0 0.0
    %2000 = vmatprep.mubr.f32.mxu0 0.0
    %v2001 = vand.u32 %v1930, 4294901760
    %v2002 = vsub.f32 %v1930, %v2001
    %v2003 = vand.u32 %v2002, 4294901760
    %v2004 = vsub.f32 %v2002, %v2003
    %v2005 = vand.u32 %v2004, 4294901760
    %2006 = vmatmul.mubr.f32.gmra.mxu0 %v2005
    %v2007 = vpop.f32.mrf.mxu0
    %v2008 = vadd.f32 0.0, %v2007
    %v2009 = vpop.f32.mrf.mxu0
    %2010 = vdwg.mxu0
    %2011 = vmatprep.subr.mxu0 0.0
    %2012 = vmatpush1.msra.mxu0 0.0
    %2013 = vmatprep.subr.mxu0 0.0
    %2014 = vmatpush1.msra.mxu0 0.0
    %2015 = vmatprep.subr.mxu0 0.0
    %2016 = vmatpush1.msra.mxu0 0.0
    %2017 = vmatprep.subr.mxu0 0.0
    %2018 = vmatpush1.msra.mxu0 0.0
    %2019 = vmatprep.subr.mxu0 0.0
    %2020 = vmatpush1.msra.mxu0 0.0
    %2021 = vmatprep.subr.mxu0 0.0
    %2022 = vmatpush1.msra.mxu0 0.0
    %2023 = vmatprep.subr.mxu0 0.0
    %2024 = vmatpush1.msra.mxu0 0.0
    %2025 = vmatprep.subr.mxu0 0.0
    %2026 = vmatpush1.msra.mxu0 0.0
    %2027 = vmatprep.subr.mxu0 0.0
    %2028 = vmatpush1.msra.mxu0 0.0
    %2029 = vmatprep.subr.mxu0 0.0
    %2030 = vmatpush1.msra.mxu0 0.0
    %2031 = vmatprep.subr.mxu0 0.0
    %2032 = vmatpush1.msra.mxu0 0.0
    %2033 = vmatprep.subr.mxu0 0.0
    %2034 = vmatpush1.msra.mxu0 0.0
    %2035 = vmatprep.subr.mxu0 0.0
    %v2036 = vand.u32 %v884, 4294901760
    %v2037 = vsub.f32 %v884, %v2036
    %v2038 = vand.u32 %v2037, 4294901760
    %v2039 = vsub.f32 %v2037, %v2038
    %v2040 = vand.u32 %v2039, 4294901760
    %2041 = vmatpush1.msra.mxu0 %v2040
    %2042 = vmatprep.subr.mxu0 0.0
    %v2043 = vand.u32 %v883, 4294901760
    %v2044 = vsub.f32 %v883, %v2043
    %v2045 = vand.u32 %v2044, 4294901760
    %v2046 = vsub.f32 %v2044, %v2045
    %v2047 = vand.u32 %v2046, 4294901760
    %2048 = vmatpush1.msra.mxu0 %v2047
    %2049 = vmatprep.subr.mxu0 0.0
    %v2050 = vand.u32 %v882, 4294901760
    %v2051 = vsub.f32 %v882, %v2050
    %v2052 = vand.u32 %v2051, 4294901760
    %v2053 = vsub.f32 %v2051, %v2052
    %v2054 = vand.u32 %v2053, 4294901760
    %2055 = vmatpush1.msra.mxu0 %v2054
    %2056 = vmatprep.subr.mxu0 0.0
    %v2057 = vand.u32 %v881, 4294901760
    %v2058 = vsub.f32 %v881, %v2057
    %v2059 = vand.u32 %v2058, 4294901760
    %v2060 = vsub.f32 %v2058, %v2059
    %v2061 = vand.u32 %v2060, 4294901760
    %2062 = vmatpush1.msra.mxu0 %v2061
    %2063 = vmatprep.subr.mxu0 0.0
    %2064 = vmatpush2.msra.mxu0 0.0
    %2065 = vmatprep.subr.mxu0 0.0
    %2066 = vmatpush2.msra.mxu0 0.0
    %2067 = vmatprep.subr.mxu0 0.0
    %2068 = vmatpush2.msra.mxu0 0.0
    %2069 = vmatprep.subr.mxu0 0.0
    %2070 = vmatpush2.msra.mxu0 0.0
    %2071 = vmatprep.subr.mxu0 0.0
    %2072 = vmatpush2.msra.mxu0 0.0
    %2073 = vmatprep.subr.mxu0 0.0
    %2074 = vmatpush2.msra.mxu0 0.0
    %2075 = vmatprep.subr.mxu0 0.0
    %2076 = vmatpush2.msra.mxu0 0.0
    %2077 = vmatprep.subr.mxu0 0.0
    %2078 = vmatpush2.msra.mxu0 0.0
    %2079 = vmatprep.subr.mxu0 0.0
    %2080 = vmatpush2.msra.mxu0 0.0
    %2081 = vmatprep.subr.mxu0 0.0
    %2082 = vmatpush2.msra.mxu0 0.0
    %2083 = vmatprep.subr.mxu0 0.0
    %2084 = vmatpush2.msra.mxu0 0.0
    %2085 = vmatprep.subr.mxu0 0.0
    %2086 = vmatpush2.msra.mxu0 0.0
    %2087 = vmatprep.subr.mxu0 0.0
    %2088 = vmatpush2.msra.mxu0 0.0
    %2089 = vmatprep.subr.mxu0 0.0
    %2090 = vmatpush2.msra.mxu0 0.0
    %2091 = vmatprep.subr.mxu0 0.0
    %2092 = vmatpush2.msra.mxu0 0.0
    %2093 = vmatprep.subr.mxu0 0.0
    %2094 = vmatpush2.msra.mxu0 0.0
    %2095 = vmatprep.mubr.f32.mxu0 0.0
    %v2096 = vand.u32 %v1930, 4294901760
    %2097 = vmatmul.mubr.f32.gmra.mxu0 %v2096
    %v2098 = vpop.f32.mrf.mxu0
    %v2099 = vadd.f32 %v2008, %v2098
    %v2100 = vpop.f32.mrf.mxu0
    %2101 = vdwg.mxu0
    %2102 = vmatprep.subr.mxu0 0.0
    %2103 = vmatpush1.msra.mxu0 0.0
    %2104 = vmatprep.subr.mxu0 0.0
    %2105 = vmatpush1.msra.mxu0 0.0
    %2106 = vmatprep.subr.mxu0 0.0
    %2107 = vmatpush1.msra.mxu0 0.0
    %2108 = vmatprep.subr.mxu0 0.0
    %2109 = vmatpush1.msra.mxu0 0.0
    %2110 = vmatprep.subr.mxu0 0.0
    %2111 = vmatpush1.msra.mxu0 0.0
    %2112 = vmatprep.subr.mxu0 0.0
    %2113 = vmatpush1.msra.mxu0 0.0
    %2114 = vmatprep.subr.mxu0 0.0
    %2115 = vmatpush1.msra.mxu0 0.0
    %2116 = vmatprep.subr.mxu0 0.0
    %2117 = vmatpush1.msra.mxu0 0.0
    %2118 = vmatprep.subr.mxu0 0.0
    %2119 = vmatpush1.msra.mxu0 0.0
    %2120 = vmatprep.subr.mxu0 0.0
    %2121 = vmatpush1.msra.mxu0 0.0
    %2122 = vmatprep.subr.mxu0 0.0
    %2123 = vmatpush1.msra.mxu0 0.0
    %2124 = vmatprep.subr.mxu0 0.0
    %2125 = vmatpush1.msra.mxu0 0.0
    %2126 = vmatprep.subr.mxu0 0.0
    %v2127 = vand.u32 %v884, 4294901760
    %v2128 = vsub.f32 %v884, %v2127
    %2129 = vmatpush1.msra.mxu0 %v2128
    %2130 = vmatprep.subr.mxu0 0.0
    %v2131 = vand.u32 %v883, 4294901760
    %v2132 = vsub.f32 %v883, %v2131
    %2133 = vmatpush1.msra.mxu0 %v2132
    %2134 = vmatprep.subr.mxu0 0.0
    %v2135 = vand.u32 %v882, 4294901760
    %v2136 = vsub.f32 %v882, %v2135
    %2137 = vmatpush1.msra.mxu0 %v2136
    %2138 = vmatprep.subr.mxu0 0.0
    %v2139 = vand.u32 %v881, 4294901760
    %v2140 = vsub.f32 %v881, %v2139
    %2141 = vmatpush1.msra.mxu0 %v2140
    %2142 = vmatprep.subr.mxu0 0.0
    %2143 = vmatpush2.msra.mxu0 0.0
    %2144 = vmatprep.subr.mxu0 0.0
    %2145 = vmatpush2.msra.mxu0 0.0
    %2146 = vmatprep.subr.mxu0 0.0
    %2147 = vmatpush2.msra.mxu0 0.0
    %2148 = vmatprep.subr.mxu0 0.0
    %2149 = vmatpush2.msra.mxu0 0.0
    %2150 = vmatprep.subr.mxu0 0.0
    %2151 = vmatpush2.msra.mxu0 0.0
    %2152 = vmatprep.subr.mxu0 0.0
    %2153 = vmatpush2.msra.mxu0 0.0
    %2154 = vmatprep.subr.mxu0 0.0
    %2155 = vmatpush2.msra.mxu0 0.0
    %2156 = vmatprep.subr.mxu0 0.0
    %2157 = vmatpush2.msra.mxu0 0.0
    %2158 = vmatprep.subr.mxu0 0.0
    %2159 = vmatpush2.msra.mxu0 0.0
    %2160 = vmatprep.subr.mxu0 0.0
    %2161 = vmatpush2.msra.mxu0 0.0
    %2162 = vmatprep.subr.mxu0 0.0
    %2163 = vmatpush2.msra.mxu0 0.0
    %2164 = vmatprep.subr.mxu0 0.0
    %2165 = vmatpush2.msra.mxu0 0.0
    %2166 = vmatprep.subr.mxu0 0.0
    %2167 = vmatpush2.msra.mxu0 0.0
    %2168 = vmatprep.subr.mxu0 0.0
    %2169 = vmatpush2.msra.mxu0 0.0
    %2170 = vmatprep.subr.mxu0 0.0
    %2171 = vmatpush2.msra.mxu0 0.0
    %2172 = vmatprep.subr.mxu0 0.0
    %2173 = vmatpush2.msra.mxu0 0.0
    %2174 = vmatprep.mubr.f32.mxu0 0.0
    %v2175 = vand.u32 %v1930, 4294901760
    %v2176 = vsub.f32 %v1930, %v2175
    %2177 = vmatmul.mubr.f32.gmra.mxu0 %v2176
    %v2178 = vpop.f32.mrf.mxu0
    %v2179 = vadd.f32 %v2099, %v2178
    %v2180 = vpop.f32.mrf.mxu0
    %2181 = vdwg.mxu0
    %2182 = vmatprep.subr.mxu0 0.0
    %2183 = vmatpush1.msra.mxu0 0.0
    %2184 = vmatprep.subr.mxu0 0.0
    %2185 = vmatpush1.msra.mxu0 0.0
    %2186 = vmatprep.subr.mxu0 0.0
    %2187 = vmatpush1.msra.mxu0 0.0
    %2188 = vmatprep.subr.mxu0 0.0
    %2189 = vmatpush1.msra.mxu0 0.0
    %2190 = vmatprep.subr.mxu0 0.0
    %2191 = vmatpush1.msra.mxu0 0.0
    %2192 = vmatprep.subr.mxu0 0.0
    %2193 = vmatpush1.msra.mxu0 0.0
    %2194 = vmatprep.subr.mxu0 0.0
    %2195 = vmatpush1.msra.mxu0 0.0
    %2196 = vmatprep.subr.mxu0 0.0
    %2197 = vmatpush1.msra.mxu0 0.0
    %2198 = vmatprep.subr.mxu0 0.0
    %2199 = vmatpush1.msra.mxu0 0.0
    %2200 = vmatprep.subr.mxu0 0.0
    %2201 = vmatpush1.msra.mxu0 0.0
    %2202 = vmatprep.subr.mxu0 0.0
    %2203 = vmatpush1.msra.mxu0 0.0
    %2204 = vmatprep.subr.mxu0 0.0
    %2205 = vmatpush1.msra.mxu0 0.0
    %2206 = vmatprep.subr.mxu0 0.0
    %v2207 = vand.u32 %v884, 4294901760
    %2208 = vmatpush1.msra.mxu0 %v2207
    %2209 = vmatprep.subr.mxu0 0.0
    %v2210 = vand.u32 %v883, 4294901760
    %2211 = vmatpush1.msra.mxu0 %v2210
    %2212 = vmatprep.subr.mxu0 0.0
    %v2213 = vand.u32 %v882, 4294901760
    %2214 = vmatpush1.msra.mxu0 %v2213
    %2215 = vmatprep.subr.mxu0 0.0
    %v2216 = vand.u32 %v881, 4294901760
    %2217 = vmatpush1.msra.mxu0 %v2216
    %2218 = vmatprep.subr.mxu0 0.0
    %2219 = vmatpush2.msra.mxu0 0.0
    %2220 = vmatprep.subr.mxu0 0.0
    %2221 = vmatpush2.msra.mxu0 0.0
    %2222 = vmatprep.subr.mxu0 0.0
    %2223 = vmatpush2.msra.mxu0 0.0
    %2224 = vmatprep.subr.mxu0 0.0
    %2225 = vmatpush2.msra.mxu0 0.0
    %2226 = vmatprep.subr.mxu0 0.0
    %2227 = vmatpush2.msra.mxu0 0.0
    %2228 = vmatprep.subr.mxu0 0.0
    %2229 = vmatpush2.msra.mxu0 0.0
    %2230 = vmatprep.subr.mxu0 0.0
    %2231 = vmatpush2.msra.mxu0 0.0
    %2232 = vmatprep.subr.mxu0 0.0
    %2233 = vmatpush2.msra.mxu0 0.0
    %2234 = vmatprep.subr.mxu0 0.0
    %2235 = vmatpush2.msra.mxu0 0.0
    %2236 = vmatprep.subr.mxu0 0.0
    %2237 = vmatpush2.msra.mxu0 0.0
    %2238 = vmatprep.subr.mxu0 0.0
    %2239 = vmatpush2.msra.mxu0 0.0
    %2240 = vmatprep.subr.mxu0 0.0
    %2241 = vmatpush2.msra.mxu0 0.0
    %2242 = vmatprep.subr.mxu0 0.0
    %2243 = vmatpush2.msra.mxu0 0.0
    %2244 = vmatprep.subr.mxu0 0.0
    %2245 = vmatpush2.msra.mxu0 0.0
    %2246 = vmatprep.subr.mxu0 0.0
    %2247 = vmatpush2.msra.mxu0 0.0
    %2248 = vmatprep.subr.mxu0 0.0
    %2249 = vmatpush2.msra.mxu0 0.0
    %2250 = vmatprep.mubr.f32.mxu0 0.0
    %v2251 = vand.u32 %v1930, 4294901760
    %v2252 = vsub.f32 %v1930, %v2251
    %v2253 = vand.u32 %v2252, 4294901760
    %2254 = vmatmul.mubr.f32.gmra.mxu0 %v2253
    %v2255 = vpop.f32.mrf.mxu0
    %v2256 = vadd.f32 %v2179, %v2255
    %v2257 = vpop.f32.mrf.mxu0
    %2258 = vdwg.mxu0
    %2259 = vmatprep.subr.mxu0 0.0
    %2260 = vmatpush1.msra.mxu0 0.0
    %2261 = vmatprep.subr.mxu0 0.0
    %2262 = vmatpush1.msra.mxu0 0.0
    %2263 = vmatprep.subr.mxu0 0.0
    %2264 = vmatpush1.msra.mxu0 0.0
    %2265 = vmatprep.subr.mxu0 0.0
    %2266 = vmatpush1.msra.mxu0 0.0
    %2267 = vmatprep.subr.mxu0 0.0
    %2268 = vmatpush1.msra.mxu0 0.0
    %2269 = vmatprep.subr.mxu0 0.0
    %2270 = vmatpush1.msra.mxu0 0.0
    %2271 = vmatprep.subr.mxu0 0.0
    %2272 = vmatpush1.msra.mxu0 0.0
    %2273 = vmatprep.subr.mxu0 0.0
    %2274 = vmatpush1.msra.mxu0 0.0
    %2275 = vmatprep.subr.mxu0 0.0
    %2276 = vmatpush1.msra.mxu0 0.0
    %2277 = vmatprep.subr.mxu0 0.0
    %2278 = vmatpush1.msra.mxu0 0.0
    %2279 = vmatprep.subr.mxu0 0.0
    %2280 = vmatpush1.msra.mxu0 0.0
    %2281 = vmatprep.subr.mxu0 0.0
    %2282 = vmatpush1.msra.mxu0 0.0
    %2283 = vmatprep.subr.mxu0 0.0
    %v2284 = vand.u32 %v884, 4294901760
    %v2285 = vsub.f32 %v884, %v2284
    %v2286 = vand.u32 %v2285, 4294901760
    %2287 = vmatpush1.msra.mxu0 %v2286
    %2288 = vmatprep.subr.mxu0 0.0
    %v2289 = vand.u32 %v883, 4294901760
    %v2290 = vsub.f32 %v883, %v2289
    %v2291 = vand.u32 %v2290, 4294901760
    %2292 = vmatpush1.msra.mxu0 %v2291
    %2293 = vmatprep.subr.mxu0 0.0
    %v2294 = vand.u32 %v882, 4294901760
    %v2295 = vsub.f32 %v882, %v2294
    %v2296 = vand.u32 %v2295, 4294901760
    %2297 = vmatpush1.msra.mxu0 %v2296
    %2298 = vmatprep.subr.mxu0 0.0
    %v2299 = vand.u32 %v881, 4294901760
    %v2300 = vsub.f32 %v881, %v2299
    %v2301 = vand.u32 %v2300, 4294901760
    %2302 = vmatpush1.msra.mxu0 %v2301
    %2303 = vmatprep.subr.mxu0 0.0
    %2304 = vmatpush2.msra.mxu0 0.0
    %2305 = vmatprep.subr.mxu0 0.0
    %2306 = vmatpush2.msra.mxu0 0.0
    %2307 = vmatprep.subr.mxu0 0.0
    %2308 = vmatpush2.msra.mxu0 0.0
    %2309 = vmatprep.subr.mxu0 0.0
    %2310 = vmatpush2.msra.mxu0 0.0
    %2311 = vmatprep.subr.mxu0 0.0
    %2312 = vmatpush2.msra.mxu0 0.0
    %2313 = vmatprep.subr.mxu0 0.0
    %2314 = vmatpush2.msra.mxu0 0.0
    %2315 = vmatprep.subr.mxu0 0.0
    %2316 = vmatpush2.msra.mxu0 0.0
    %2317 = vmatprep.subr.mxu0 0.0
    %2318 = vmatpush2.msra.mxu0 0.0
    %2319 = vmatprep.subr.mxu0 0.0
    %2320 = vmatpush2.msra.mxu0 0.0
    %2321 = vmatprep.subr.mxu0 0.0
    %2322 = vmatpush2.msra.mxu0 0.0
    %2323 = vmatprep.subr.mxu0 0.0
    %2324 = vmatpush2.msra.mxu0 0.0
    %2325 = vmatprep.subr.mxu0 0.0
    %2326 = vmatpush2.msra.mxu0 0.0
    %2327 = vmatprep.subr.mxu0 0.0
    %2328 = vmatpush2.msra.mxu0 0.0
    %2329 = vmatprep.subr.mxu0 0.0
    %2330 = vmatpush2.msra.mxu0 0.0
    %2331 = vmatprep.subr.mxu0 0.0
    %2332 = vmatpush2.msra.mxu0 0.0
    %2333 = vmatprep.subr.mxu0 0.0
    %2334 = vmatpush2.msra.mxu0 0.0
    %2335 = vmatprep.mubr.f32.mxu0 0.0
    %v2336 = vand.u32 %v1930, 4294901760
    %2337 = vmatmul.mubr.f32.gmra.mxu0 %v2336
    %v2338 = vpop.f32.mrf.mxu0
    %v2339 = vadd.f32 %v2256, %v2338
    %v2340 = vpop.f32.mrf.mxu0
    %2341 = vdwg.mxu0
    %2342 = vmatprep.subr.mxu0 0.0
    %2343 = vmatpush1.msra.mxu0 0.0
    %2344 = vmatprep.subr.mxu0 0.0
    %2345 = vmatpush1.msra.mxu0 0.0
    %2346 = vmatprep.subr.mxu0 0.0
    %2347 = vmatpush1.msra.mxu0 0.0
    %2348 = vmatprep.subr.mxu0 0.0
    %2349 = vmatpush1.msra.mxu0 0.0
    %2350 = vmatprep.subr.mxu0 0.0
    %2351 = vmatpush1.msra.mxu0 0.0
    %2352 = vmatprep.subr.mxu0 0.0
    %2353 = vmatpush1.msra.mxu0 0.0
    %2354 = vmatprep.subr.mxu0 0.0
    %2355 = vmatpush1.msra.mxu0 0.0
    %2356 = vmatprep.subr.mxu0 0.0
    %2357 = vmatpush1.msra.mxu0 0.0
    %2358 = vmatprep.subr.mxu0 0.0
    %2359 = vmatpush1.msra.mxu0 0.0
    %2360 = vmatprep.subr.mxu0 0.0
    %2361 = vmatpush1.msra.mxu0 0.0
    %2362 = vmatprep.subr.mxu0 0.0
    %2363 = vmatpush1.msra.mxu0 0.0
    %2364 = vmatprep.subr.mxu0 0.0
    %2365 = vmatpush1.msra.mxu0 0.0
    %2366 = vmatprep.subr.mxu0 0.0
    %v2367 = vand.u32 %v884, 4294901760
    %2368 = vmatpush1.msra.mxu0 %v2367
    %2369 = vmatprep.subr.mxu0 0.0
    %v2370 = vand.u32 %v883, 4294901760
    %2371 = vmatpush1.msra.mxu0 %v2370
    %2372 = vmatprep.subr.mxu0 0.0
    %v2373 = vand.u32 %v882, 4294901760
    %2374 = vmatpush1.msra.mxu0 %v2373
    %2375 = vmatprep.subr.mxu0 0.0
    %v2376 = vand.u32 %v881, 4294901760
    %2377 = vmatpush1.msra.mxu0 %v2376
    %2378 = vmatprep.subr.mxu0 0.0
    %2379 = vmatpush2.msra.mxu0 0.0
    %2380 = vmatprep.subr.mxu0 0.0
    %2381 = vmatpush2.msra.mxu0 0.0
    %2382 = vmatprep.subr.mxu0 0.0
    %2383 = vmatpush2.msra.mxu0 0.0
    %2384 = vmatprep.subr.mxu0 0.0
    %2385 = vmatpush2.msra.mxu0 0.0
    %2386 = vmatprep.subr.mxu0 0.0
    %2387 = vmatpush2.msra.mxu0 0.0
    %2388 = vmatprep.subr.mxu0 0.0
    %2389 = vmatpush2.msra.mxu0 0.0
    %2390 = vmatprep.subr.mxu0 0.0
    %2391 = vmatpush2.msra.mxu0 0.0
    %2392 = vmatprep.subr.mxu0 0.0
    %2393 = vmatpush2.msra.mxu0 0.0
    %2394 = vmatprep.subr.mxu0 0.0
    %2395 = vmatpush2.msra.mxu0 0.0
    %2396 = vmatprep.subr.mxu0 0.0
    %2397 = vmatpush2.msra.mxu0 0.0
    %2398 = vmatprep.subr.mxu0 0.0
    %2399 = vmatpush2.msra.mxu0 0.0
    %2400 = vmatprep.subr.mxu0 0.0
    %2401 = vmatpush2.msra.mxu0 0.0
    %2402 = vmatprep.subr.mxu0 0.0
    %2403 = vmatpush2.msra.mxu0 0.0
    %2404 = vmatprep.subr.mxu0 0.0
    %2405 = vmatpush2.msra.mxu0 0.0
    %2406 = vmatprep.subr.mxu0 0.0
    %2407 = vmatpush2.msra.mxu0 0.0
    %2408 = vmatprep.subr.mxu0 0.0
    %2409 = vmatpush2.msra.mxu0 0.0
    %2410 = vmatprep.mubr.f32.mxu0 0.0
    %v2411 = vand.u32 %v1930, 4294901760
    %2412 = vmatmul.mubr.f32.gmra.mxu0 %v2411
    %v2413 = vpop.f32.mrf.mxu0
    %v2414 = vadd.f32 %v2339, %v2413
    %v2415 = vpop.f32.mrf.mxu0
    %2416 = vdwg.mxu0
    %v2417 = vadd.f32 %v1926, %v2414
    %v2418 = vmul.f32 %v2417, 0.5
    %v2419 = vsel %vm889, %v2417, %v2418
    %v2420 = vtanh.pop %v2419
    %v2421 = vmul.f32 %v2420, 0.5
    %v2422 = vadd.f32 %v2421, 0.5
    %v2423 = vsel %vm889, %v2420, %v2422
    %v2424 = vmul.f32 %v2423, %v1918
    %2426 = vrot.lane.b32.xlu0 %v2423, 64
    %v2427 = vpop.permute.xlu0 %2426
    %v2429 = vmul.f32 %v2423, %v2427
    %2431 = vrot.lane.b32.xlu0 %v2429, 32
    %v2432 = vpop.permute.xlu0 %2431
    %v2434 = vadd.f32 %v2424, %v2432
    %v2435 = vtanh.pop %v2434
    %2437 = vrot.lane.b32.xlu0 %v2435, 64
    %v2438 = vpop.permute.xlu0 %2437
    %v2440 = vmul.f32 %v2423, %v2438
    %s2441 = scalar_lea.vmem [#allocation4], 24
    %v2442 = vld [vmem:[%s2441] sm:$0xff]
    %2444 = vrot.lane.b32.xlu0 %v2440, 32
    %v2445 = vpop.permute.xlu0 %2444
    %v2446 = vsel %vm62, %v2445, 0
    %2448 = vmatprep.subr.mxu0 0.0
    %2449 = vmatpush1.msra.mxu0 0.0
    %2450 = vmatprep.subr.mxu0 0.0
    %2451 = vmatpush1.msra.mxu0 0.0
    %2452 = vmatprep.subr.mxu0 0.0
    %2453 = vmatpush1.msra.mxu0 0.0
    %2454 = vmatprep.subr.mxu0 0.0
    %2455 = vmatpush1.msra.mxu0 0.0
    %2456 = vmatprep.subr.mxu0 0.0
    %2457 = vmatpush1.msra.mxu0 0.0
    %2458 = vmatprep.subr.mxu0 0.0
    %2459 = vmatpush1.msra.mxu0 0.0
    %2460 = vmatprep.subr.mxu0 0.0
    %2461 = vmatpush1.msra.mxu0 0.0
    %2462 = vmatprep.subr.mxu0 0.0
    %2463 = vmatpush1.msra.mxu0 0.0
    %2464 = vmatprep.subr.mxu0 0.0
    %2465 = vmatpush1.msra.mxu0 0.0
    %2466 = vmatprep.subr.mxu0 0.0
    %2467 = vmatpush1.msra.mxu0 0.0
    %2468 = vmatprep.subr.mxu0 0.0
    %2469 = vmatpush1.msra.mxu0 0.0
    %2470 = vmatprep.subr.mxu0 0.0
    %2471 = vmatpush1.msra.mxu0 0.0
    %2472 = vmatprep.subr.mxu0 0.0
    %v2473 = vand.u32 %v884, 4294901760
    %2474 = vmatpush1.msra.mxu0 %v2473
    %2475 = vmatprep.subr.mxu0 0.0
    %v2476 = vand.u32 %v883, 4294901760
    %2477 = vmatpush1.msra.mxu0 %v2476
    %2478 = vmatprep.subr.mxu0 0.0
    %v2479 = vand.u32 %v882, 4294901760
    %2480 = vmatpush1.msra.mxu0 %v2479
    %2481 = vmatprep.subr.mxu0 0.0
    %v2482 = vand.u32 %v881, 4294901760
    %2483 = vmatpush1.msra.mxu0 %v2482
    %2484 = vmatprep.subr.mxu0 0.0
    %2485 = vmatpush2.msra.mxu0 0.0
    %2486 = vmatprep.subr.mxu0 0.0
    %2487 = vmatpush2.msra.mxu0 0.0
    %2488 = vmatprep.subr.mxu0 0.0
    %2489 = vmatpush2.msra.mxu0 0.0
    %2490 = vmatprep.subr.mxu0 0.0
    %2491 = vmatpush2.msra.mxu0 0.0
    %2492 = vmatprep.subr.mxu0 0.0
    %2493 = vmatpush2.msra.mxu0 0.0
    %2494 = vmatprep.subr.mxu0 0.0
    %2495 = vmatpush2.msra.mxu0 0.0
    %2496 = vmatprep.subr.mxu0 0.0
    %2497 = vmatpush2.msra.mxu0 0.0
    %2498 = vmatprep.subr.mxu0 0.0
    %2499 = vmatpush2.msra.mxu0 0.0
    %2500 = vmatprep.subr.mxu0 0.0
    %2501 = vmatpush2.msra.mxu0 0.0
    %2502 = vmatprep.subr.mxu0 0.0
    %2503 = vmatpush2.msra.mxu0 0.0
    %2504 = vmatprep.subr.mxu0 0.0
    %2505 = vmatpush2.msra.mxu0 0.0
    %2506 = vmatprep.subr.mxu0 0.0
    %2507 = vmatpush2.msra.mxu0 0.0
    %2508 = vmatprep.subr.mxu0 0.0
    %2509 = vmatpush2.msra.mxu0 0.0
    %2510 = vmatprep.subr.mxu0 0.0
    %2511 = vmatpush2.msra.mxu0 0.0
    %2512 = vmatprep.subr.mxu0 0.0
    %2513 = vmatpush2.msra.mxu0 0.0
    %2514 = vmatprep.subr.mxu0 0.0
    %2515 = vmatpush2.msra.mxu0 0.0
    %2516 = vmatprep.mubr.f32.mxu0 0.0
    %v2517 = vand.u32 %v2446, 4294901760
    %v2518 = vsub.f32 %v2446, %v2517
    %v2519 = vand.u32 %v2518, 4294901760
    %v2520 = vsub.f32 %v2518, %v2519
    %v2521 = vand.u32 %v2520, 4294901760
    %2522 = vmatmul.mubr.f32.gmra.mxu0 %v2521
    %v2523 = vpop.f32.mrf.mxu0
    %v2524 = vadd.f32 0.0, %v2523
    %v2525 = vpop.f32.mrf.mxu0
    %2526 = vdwg.mxu0
    %2527 = vmatprep.subr.mxu0 0.0
    %2528 = vmatpush1.msra.mxu0 0.0
    %2529 = vmatprep.subr.mxu0 0.0
    %2530 = vmatpush1.msra.mxu0 0.0
    %2531 = vmatprep.subr.mxu0 0.0
    %2532 = vmatpush1.msra.mxu0 0.0
    %2533 = vmatprep.subr.mxu0 0.0
    %2534 = vmatpush1.msra.mxu0 0.0
    %2535 = vmatprep.subr.mxu0 0.0
    %2536 = vmatpush1.msra.mxu0 0.0
    %2537 = vmatprep.subr.mxu0 0.0
    %2538 = vmatpush1.msra.mxu0 0.0
    %2539 = vmatprep.subr.mxu0 0.0
    %2540 = vmatpush1.msra.mxu0 0.0
    %2541 = vmatprep.subr.mxu0 0.0
    %2542 = vmatpush1.msra.mxu0 0.0
    %2543 = vmatprep.subr.mxu0 0.0
    %2544 = vmatpush1.msra.mxu0 0.0
    %2545 = vmatprep.subr.mxu0 0.0
    %2546 = vmatpush1.msra.mxu0 0.0
    %2547 = vmatprep.subr.mxu0 0.0
    %2548 = vmatpush1.msra.mxu0 0.0
    %2549 = vmatprep.subr.mxu0 0.0
    %2550 = vmatpush1.msra.mxu0 0.0
    %2551 = vmatprep.subr.mxu0 0.0
    %v2552 = vand.u32 %v884, 4294901760
    %v2553 = vsub.f32 %v884, %v2552
    %v2554 = vand.u32 %v2553, 4294901760
    %v2555 = vsub.f32 %v2553, %v2554
    %v2556 = vand.u32 %v2555, 4294901760
    %2557 = vmatpush1.msra.mxu0 %v2556
    %2558 = vmatprep.subr.mxu0 0.0
    %v2559 = vand.u32 %v883, 4294901760
    %v2560 = vsub.f32 %v883, %v2559
    %v2561 = vand.u32 %v2560, 4294901760
    %v2562 = vsub.f32 %v2560, %v2561
    %v2563 = vand.u32 %v2562, 4294901760
    %2564 = vmatpush1.msra.mxu0 %v2563
    %2565 = vmatprep.subr.mxu0 0.0
    %v2566 = vand.u32 %v882, 4294901760
    %v2567 = vsub.f32 %v882, %v2566
    %v2568 = vand.u32 %v2567, 4294901760
    %v2569 = vsub.f32 %v2567, %v2568
    %v2570 = vand.u32 %v2569, 4294901760
    %2571 = vmatpush1.msra.mxu0 %v2570
    %2572 = vmatprep.subr.mxu0 0.0
    %v2573 = vand.u32 %v881, 4294901760
    %v2574 = vsub.f32 %v881, %v2573
    %v2575 = vand.u32 %v2574, 4294901760
    %v2576 = vsub.f32 %v2574, %v2575
    %v2577 = vand.u32 %v2576, 4294901760
    %2578 = vmatpush1.msra.mxu0 %v2577
    %2579 = vmatprep.subr.mxu0 0.0
    %2580 = vmatpush2.msra.mxu0 0.0
    %2581 = vmatprep.subr.mxu0 0.0
    %2582 = vmatpush2.msra.mxu0 0.0
    %2583 = vmatprep.subr.mxu0 0.0
    %2584 = vmatpush2.msra.mxu0 0.0
    %2585 = vmatprep.subr.mxu0 0.0
    %2586 = vmatpush2.msra.mxu0 0.0
    %2587 = vmatprep.subr.mxu0 0.0
    %2588 = vmatpush2.msra.mxu0 0.0
    %2589 = vmatprep.subr.mxu0 0.0
    %2590 = vmatpush2.msra.mxu0 0.0
    %2591 = vmatprep.subr.mxu0 0.0
    %2592 = vmatpush2.msra.mxu0 0.0
    %2593 = vmatprep.subr.mxu0 0.0
    %2594 = vmatpush2.msra.mxu0 0.0
    %2595 = vmatprep.subr.mxu0 0.0
    %2596 = vmatpush2.msra.mxu0 0.0
    %2597 = vmatprep.subr.mxu0 0.0
    %2598 = vmatpush2.msra.mxu0 0.0
    %2599 = vmatprep.subr.mxu0 0.0
    %2600 = vmatpush2.msra.mxu0 0.0
    %2601 = vmatprep.subr.mxu0 0.0
    %2602 = vmatpush2.msra.mxu0 0.0
    %2603 = vmatprep.subr.mxu0 0.0
    %2604 = vmatpush2.msra.mxu0 0.0
    %2605 = vmatprep.subr.mxu0 0.0
    %2606 = vmatpush2.msra.mxu0 0.0
    %2607 = vmatprep.subr.mxu0 0.0
    %2608 = vmatpush2.msra.mxu0 0.0
    %2609 = vmatprep.subr.mxu0 0.0
    %2610 = vmatpush2.msra.mxu0 0.0
    %2611 = vmatprep.mubr.f32.mxu0 0.0
    %v2612 = vand.u32 %v2446, 4294901760
    %2613 = vmatmul.mubr.f32.gmra.mxu0 %v2612
    %v2614 = vpop.f32.mrf.mxu0
    %v2615 = vadd.f32 %v2524, %v2614
    %v2616 = vpop.f32.mrf.mxu0
    %2617 = vdwg.mxu0
    %2618 = vmatprep.subr.mxu0 0.0
    %2619 = vmatpush1.msra.mxu0 0.0
    %2620 = vmatprep.subr.mxu0 0.0
    %2621 = vmatpush1.msra.mxu0 0.0
    %2622 = vmatprep.subr.mxu0 0.0
    %2623 = vmatpush1.msra.mxu0 0.0
    %2624 = vmatprep.subr.mxu0 0.0
    %2625 = vmatpush1.msra.mxu0 0.0
    %2626 = vmatprep.subr.mxu0 0.0
    %2627 = vmatpush1.msra.mxu0 0.0
    %2628 = vmatprep.subr.mxu0 0.0
    %2629 = vmatpush1.msra.mxu0 0.0
    %2630 = vmatprep.subr.mxu0 0.0
    %2631 = vmatpush1.msra.mxu0 0.0
    %2632 = vmatprep.subr.mxu0 0.0
    %2633 = vmatpush1.msra.mxu0 0.0
    %2634 = vmatprep.subr.mxu0 0.0
    %2635 = vmatpush1.msra.mxu0 0.0
    %2636 = vmatprep.subr.mxu0 0.0
    %2637 = vmatpush1.msra.mxu0 0.0
    %2638 = vmatprep.subr.mxu0 0.0
    %2639 = vmatpush1.msra.mxu0 0.0
    %2640 = vmatprep.subr.mxu0 0.0
    %2641 = vmatpush1.msra.mxu0 0.0
    %2642 = vmatprep.subr.mxu0 0.0
    %v2643 = vand.u32 %v884, 4294901760
    %v2644 = vsub.f32 %v884, %v2643
    %2645 = vmatpush1.msra.mxu0 %v2644
    %2646 = vmatprep.subr.mxu0 0.0
    %v2647 = vand.u32 %v883, 4294901760
    %v2648 = vsub.f32 %v883, %v2647
    %2649 = vmatpush1.msra.mxu0 %v2648
    %2650 = vmatprep.subr.mxu0 0.0
    %v2651 = vand.u32 %v882, 4294901760
    %v2652 = vsub.f32 %v882, %v2651
    %2653 = vmatpush1.msra.mxu0 %v2652
    %2654 = vmatprep.subr.mxu0 0.0
    %v2655 = vand.u32 %v881, 4294901760
    %v2656 = vsub.f32 %v881, %v2655
    %2657 = vmatpush1.msra.mxu0 %v2656
    %2658 = vmatprep.subr.mxu0 0.0
    %2659 = vmatpush2.msra.mxu0 0.0
    %2660 = vmatprep.subr.mxu0 0.0
    %2661 = vmatpush2.msra.mxu0 0.0
    %2662 = vmatprep.subr.mxu0 0.0
    %2663 = vmatpush2.msra.mxu0 0.0
    %2664 = vmatprep.subr.mxu0 0.0
    %2665 = vmatpush2.msra.mxu0 0.0
    %2666 = vmatprep.subr.mxu0 0.0
    %2667 = vmatpush2.msra.mxu0 0.0
    %2668 = vmatprep.subr.mxu0 0.0
    %2669 = vmatpush2.msra.mxu0 0.0
    %2670 = vmatprep.subr.mxu0 0.0
    %2671 = vmatpush2.msra.mxu0 0.0
    %2672 = vmatprep.subr.mxu0 0.0
    %2673 = vmatpush2.msra.mxu0 0.0
    %2674 = vmatprep.subr.mxu0 0.0
    %2675 = vmatpush2.msra.mxu0 0.0
    %2676 = vmatprep.subr.mxu0 0.0
    %2677 = vmatpush2.msra.mxu0 0.0
    %2678 = vmatprep.subr.mxu0 0.0
    %2679 = vmatpush2.msra.mxu0 0.0
    %2680 = vmatprep.subr.mxu0 0.0
    %2681 = vmatpush2.msra.mxu0 0.0
    %2682 = vmatprep.subr.mxu0 0.0
    %2683 = vmatpush2.msra.mxu0 0.0
    %2684 = vmatprep.subr.mxu0 0.0
    %2685 = vmatpush2.msra.mxu0 0.0
    %2686 = vmatprep.subr.mxu0 0.0
    %2687 = vmatpush2.msra.mxu0 0.0
    %2688 = vmatprep.subr.mxu0 0.0
    %2689 = vmatpush2.msra.mxu0 0.0
    %2690 = vmatprep.mubr.f32.mxu0 0.0
    %v2691 = vand.u32 %v2446, 4294901760
    %v2692 = vsub.f32 %v2446, %v2691
    %2693 = vmatmul.mubr.f32.gmra.mxu0 %v2692
    %v2694 = vpop.f32.mrf.mxu0
    %v2695 = vadd.f32 %v2615, %v2694
    %v2696 = vpop.f32.mrf.mxu0
    %2697 = vdwg.mxu0
    %2698 = vmatprep.subr.mxu0 0.0
    %2699 = vmatpush1.msra.mxu0 0.0
    %2700 = vmatprep.subr.mxu0 0.0
    %2701 = vmatpush1.msra.mxu0 0.0
    %2702 = vmatprep.subr.mxu0 0.0
    %2703 = vmatpush1.msra.mxu0 0.0
    %2704 = vmatprep.subr.mxu0 0.0
    %2705 = vmatpush1.msra.mxu0 0.0
    %2706 = vmatprep.subr.mxu0 0.0
    %2707 = vmatpush1.msra.mxu0 0.0
    %2708 = vmatprep.subr.mxu0 0.0
    %2709 = vmatpush1.msra.mxu0 0.0
    %2710 = vmatprep.subr.mxu0 0.0
    %2711 = vmatpush1.msra.mxu0 0.0
    %2712 = vmatprep.subr.mxu0 0.0
    %2713 = vmatpush1.msra.mxu0 0.0
    %2714 = vmatprep.subr.mxu0 0.0
    %2715 = vmatpush1.msra.mxu0 0.0
    %2716 = vmatprep.subr.mxu0 0.0
    %2717 = vmatpush1.msra.mxu0 0.0
    %2718 = vmatprep.subr.mxu0 0.0
    %2719 = vmatpush1.msra.mxu0 0.0
    %2720 = vmatprep.subr.mxu0 0.0
    %2721 = vmatpush1.msra.mxu0 0.0
    %2722 = vmatprep.subr.mxu0 0.0
    %v2723 = vand.u32 %v884, 4294901760
    %2724 = vmatpush1.msra.mxu0 %v2723
    %2725 = vmatprep.subr.mxu0 0.0
    %v2726 = vand.u32 %v883, 4294901760
    %2727 = vmatpush1.msra.mxu0 %v2726
    %2728 = vmatprep.subr.mxu0 0.0
    %v2729 = vand.u32 %v882, 4294901760
    %2730 = vmatpush1.msra.mxu0 %v2729
    %2731 = vmatprep.subr.mxu0 0.0
    %v2732 = vand.u32 %v881, 4294901760
    %2733 = vmatpush1.msra.mxu0 %v2732
    %2734 = vmatprep.subr.mxu0 0.0
    %2735 = vmatpush2.msra.mxu0 0.0
    %2736 = vmatprep.subr.mxu0 0.0
    %2737 = vmatpush2.msra.mxu0 0.0
    %2738 = vmatprep.subr.mxu0 0.0
    %2739 = vmatpush2.msra.mxu0 0.0
    %2740 = vmatprep.subr.mxu0 0.0
    %2741 = vmatpush2.msra.mxu0 0.0
    %2742 = vmatprep.subr.mxu0 0.0
    %2743 = vmatpush2.msra.mxu0 0.0
    %2744 = vmatprep.subr.mxu0 0.0
    %2745 = vmatpush2.msra.mxu0 0.0
    %2746 = vmatprep.subr.mxu0 0.0
    %2747 = vmatpush2.msra.mxu0 0.0
    %2748 = vmatprep.subr.mxu0 0.0
    %2749 = vmatpush2.msra.mxu0 0.0
    %2750 = vmatprep.subr.mxu0 0.0
    %2751 = vmatpush2.msra.mxu0 0.0
    %2752 = vmatprep.subr.mxu0 0.0
    %2753 = vmatpush2.msra.mxu0 0.0
    %2754 = vmatprep.subr.mxu0 0.0
    %2755 = vmatpush2.msra.mxu0 0.0
    %2756 = vmatprep.subr.mxu0 0.0
    %2757 = vmatpush2.msra.mxu0 0.0
    %2758 = vmatprep.subr.mxu0 0.0
    %2759 = vmatpush2.msra.mxu0 0.0
    %2760 = vmatprep.subr.mxu0 0.0
    %2761 = vmatpush2.msra.mxu0 0.0
    %2762 = vmatprep.subr.mxu0 0.0
    %2763 = vmatpush2.msra.mxu0 0.0
    %2764 = vmatprep.subr.mxu0 0.0
    %2765 = vmatpush2.msra.mxu0 0.0
    %2766 = vmatprep.mubr.f32.mxu0 0.0
    %v2767 = vand.u32 %v2446, 4294901760
    %v2768 = vsub.f32 %v2446, %v2767
    %v2769 = vand.u32 %v2768, 4294901760
    %2770 = vmatmul.mubr.f32.gmra.mxu0 %v2769
    %v2771 = vpop.f32.mrf.mxu0
    %v2772 = vadd.f32 %v2695, %v2771
    %v2773 = vpop.f32.mrf.mxu0
    %2774 = vdwg.mxu0
    %2775 = vmatprep.subr.mxu0 0.0
    %2776 = vmatpush1.msra.mxu0 0.0
    %2777 = vmatprep.subr.mxu0 0.0
    %2778 = vmatpush1.msra.mxu0 0.0
    %2779 = vmatprep.subr.mxu0 0.0
    %2780 = vmatpush1.msra.mxu0 0.0
    %2781 = vmatprep.subr.mxu0 0.0
    %2782 = vmatpush1.msra.mxu0 0.0
    %2783 = vmatprep.subr.mxu0 0.0
    %2784 = vmatpush1.msra.mxu0 0.0
    %2785 = vmatprep.subr.mxu0 0.0
    %2786 = vmatpush1.msra.mxu0 0.0
    %2787 = vmatprep.subr.mxu0 0.0
    %2788 = vmatpush1.msra.mxu0 0.0
    %2789 = vmatprep.subr.mxu0 0.0
    %2790 = vmatpush1.msra.mxu0 0.0
    %2791 = vmatprep.subr.mxu0 0.0
    %2792 = vmatpush1.msra.mxu0 0.0
    %2793 = vmatprep.subr.mxu0 0.0
    %2794 = vmatpush1.msra.mxu0 0.0
    %2795 = vmatprep.subr.mxu0 0.0
    %2796 = vmatpush1.msra.mxu0 0.0
    %2797 = vmatprep.subr.mxu0 0.0
    %2798 = vmatpush1.msra.mxu0 0.0
    %2799 = vmatprep.subr.mxu0 0.0
    %v2800 = vand.u32 %v884, 4294901760
    %v2801 = vsub.f32 %v884, %v2800
    %v2802 = vand.u32 %v2801, 4294901760
    %2803 = vmatpush1.msra.mxu0 %v2802
    %2804 = vmatprep.subr.mxu0 0.0
    %v2805 = vand.u32 %v883, 4294901760
    %v2806 = vsub.f32 %v883, %v2805
    %v2807 = vand.u32 %v2806, 4294901760
    %2808 = vmatpush1.msra.mxu0 %v2807
    %2809 = vmatprep.subr.mxu0 0.0
    %v2810 = vand.u32 %v882, 4294901760
    %v2811 = vsub.f32 %v882, %v2810
    %v2812 = vand.u32 %v2811, 4294901760
    %2813 = vmatpush1.msra.mxu0 %v2812
    %2814 = vmatprep.subr.mxu0 0.0
    %v2815 = vand.u32 %v881, 4294901760
    %v2816 = vsub.f32 %v881, %v2815
    %v2817 = vand.u32 %v2816, 4294901760
    %2818 = vmatpush1.msra.mxu0 %v2817
    %2819 = vmatprep.subr.mxu0 0.0
    %2820 = vmatpush2.msra.mxu0 0.0
    %2821 = vmatprep.subr.mxu0 0.0
    %2822 = vmatpush2.msra.mxu0 0.0
    %2823 = vmatprep.subr.mxu0 0.0
    %2824 = vmatpush2.msra.mxu0 0.0
    %2825 = vmatprep.subr.mxu0 0.0
    %2826 = vmatpush2.msra.mxu0 0.0
    %2827 = vmatprep.subr.mxu0 0.0
    %2828 = vmatpush2.msra.mxu0 0.0
    %2829 = vmatprep.subr.mxu0 0.0
    %2830 = vmatpush2.msra.mxu0 0.0
    %2831 = vmatprep.subr.mxu0 0.0
    %2832 = vmatpush2.msra.mxu0 0.0
    %2833 = vmatprep.subr.mxu0 0.0
    %2834 = vmatpush2.msra.mxu0 0.0
    %2835 = vmatprep.subr.mxu0 0.0
    %2836 = vmatpush2.msra.mxu0 0.0
    %2837 = vmatprep.subr.mxu0 0.0
    %2838 = vmatpush2.msra.mxu0 0.0
    %2839 = vmatprep.subr.mxu0 0.0
    %2840 = vmatpush2.msra.mxu0 0.0
    %2841 = vmatprep.subr.mxu0 0.0
    %2842 = vmatpush2.msra.mxu0 0.0
    %2843 = vmatprep.subr.mxu0 0.0
    %2844 = vmatpush2.msra.mxu0 0.0
    %2845 = vmatprep.subr.mxu0 0.0
    %2846 = vmatpush2.msra.mxu0 0.0
    %2847 = vmatprep.subr.mxu0 0.0
    %2848 = vmatpush2.msra.mxu0 0.0
    %2849 = vmatprep.subr.mxu0 0.0
    %2850 = vmatpush2.msra.mxu0 0.0
    %2851 = vmatprep.mubr.f32.mxu0 0.0
    %v2852 = vand.u32 %v2446, 4294901760
    %2853 = vmatmul.mubr.f32.gmra.mxu0 %v2852
    %v2854 = vpop.f32.mrf.mxu0
    %v2855 = vadd.f32 %v2772, %v2854
    %v2856 = vpop.f32.mrf.mxu0
    %2857 = vdwg.mxu0
    %2858 = vmatprep.subr.mxu0 0.0
    %2859 = vmatpush1.msra.mxu0 0.0
    %2860 = vmatprep.subr.mxu0 0.0
    %2861 = vmatpush1.msra.mxu0 0.0
    %2862 = vmatprep.subr.mxu0 0.0
    %2863 = vmatpush1.msra.mxu0 0.0
    %2864 = vmatprep.subr.mxu0 0.0
    %2865 = vmatpush1.msra.mxu0 0.0
    %2866 = vmatprep.subr.mxu0 0.0
    %2867 = vmatpush1.msra.mxu0 0.0
    %2868 = vmatprep.subr.mxu0 0.0
    %2869 = vmatpush1.msra.mxu0 0.0
    %2870 = vmatprep.subr.mxu0 0.0
    %2871 = vmatpush1.msra.mxu0 0.0
    %2872 = vmatprep.subr.mxu0 0.0
    %2873 = vmatpush1.msra.mxu0 0.0
    %2874 = vmatprep.subr.mxu0 0.0
    %2875 = vmatpush1.msra.mxu0 0.0
    %2876 = vmatprep.subr.mxu0 0.0
    %2877 = vmatpush1.msra.mxu0 0.0
    %2878 = vmatprep.subr.mxu0 0.0
    %2879 = vmatpush1.msra.mxu0 0.0
    %2880 = vmatprep.subr.mxu0 0.0
    %2881 = vmatpush1.msra.mxu0 0.0
    %2882 = vmatprep.subr.mxu0 0.0
    %v2883 = vand.u32 %v884, 4294901760
    %2884 = vmatpush1.msra.mxu0 %v2883
    %2885 = vmatprep.subr.mxu0 0.0
    %v2886 = vand.u32 %v883, 4294901760
    %2887 = vmatpush1.msra.mxu0 %v2886
    %2888 = vmatprep.subr.mxu0 0.0
    %v2889 = vand.u32 %v882, 4294901760
    %2890 = vmatpush1.msra.mxu0 %v2889
    %2891 = vmatprep.subr.mxu0 0.0
    %v2892 = vand.u32 %v881, 4294901760
    %2893 = vmatpush1.msra.mxu0 %v2892
    %2894 = vmatprep.subr.mxu0 0.0
    %2895 = vmatpush2.msra.mxu0 0.0
    %2896 = vmatprep.subr.mxu0 0.0
    %2897 = vmatpush2.msra.mxu0 0.0
    %2898 = vmatprep.subr.mxu0 0.0
    %2899 = vmatpush2.msra.mxu0 0.0
    %2900 = vmatprep.subr.mxu0 0.0
    %2901 = vmatpush2.msra.mxu0 0.0
    %2902 = vmatprep.subr.mxu0 0.0
    %2903 = vmatpush2.msra.mxu0 0.0
    %2904 = vmatprep.subr.mxu0 0.0
    %2905 = vmatpush2.msra.mxu0 0.0
    %2906 = vmatprep.subr.mxu0 0.0
    %2907 = vmatpush2.msra.mxu0 0.0
    %2908 = vmatprep.subr.mxu0 0.0
    %2909 = vmatpush2.msra.mxu0 0.0
    %2910 = vmatprep.subr.mxu0 0.0
    %2911 = vmatpush2.msra.mxu0 0.0
    %2912 = vmatprep.subr.mxu0 0.0
    %2913 = vmatpush2.msra.mxu0 0.0
    %2914 = vmatprep.subr.mxu0 0.0
    %2915 = vmatpush2.msra.mxu0 0.0
    %2916 = vmatprep.subr.mxu0 0.0
    %2917 = vmatpush2.msra.mxu0 0.0
    %2918 = vmatprep.subr.mxu0 0.0
    %2919 = vmatpush2.msra.mxu0 0.0
    %2920 = vmatprep.subr.mxu0 0.0
    %2921 = vmatpush2.msra.mxu0 0.0
    %2922 = vmatprep.subr.mxu0 0.0
    %2923 = vmatpush2.msra.mxu0 0.0
    %2924 = vmatprep.subr.mxu0 0.0
    %2925 = vmatpush2.msra.mxu0 0.0
    %2926 = vmatprep.mubr.f32.mxu0 0.0
    %v2927 = vand.u32 %v2446, 4294901760
    %2928 = vmatmul.mubr.f32.gmra.mxu0 %v2927
    %v2929 = vpop.f32.mrf.mxu0
    %v2930 = vadd.f32 %v2855, %v2929
    %v2931 = vpop.f32.mrf.mxu0
    %2932 = vdwg.mxu0
    %v2933 = vadd.f32 %v2442, %v2930
    %v2934 = vmul.f32 %v2933, 0.5
    %v2935 = vsel %vm889, %v2933, %v2934
    %v2936 = vtanh.pop %v2935
    %v2937 = vmul.f32 %v2936, 0.5
    %v2938 = vadd.f32 %v2937, 0.5
    %v2939 = vsel %vm889, %v2936, %v2938
    %v2940 = vmul.f32 %v2939, %v2434
    %2942 = vrot.lane.b32.xlu0 %v2939, 64
    %v2943 = vpop.permute.xlu0 %2942
    %v2945 = vmul.f32 %v2939, %v2943
    %2947 = vrot.lane.b32.xlu0 %v2945, 32
    %v2948 = vpop.permute.xlu0 %2947
    %v2950 = vadd.f32 %v2940, %v2948
    %v2951 = vtanh.pop %v2950
    %2953 = vrot.lane.b32.xlu0 %v2951, 64
    %v2954 = vpop.permute.xlu0 %2953
    %v2956 = vmul.f32 %v2939, %v2954
    %s2957 = scalar_lea.vmem [#allocation4], 32
    %v2958 = vld [vmem:[%s2957] sm:$0xff]
    %2960 = vrot.lane.b32.xlu0 %v2956, 32
    %v2961 = vpop.permute.xlu0 %2960
    %v2962 = vsel %vm62, %v2961, 0
    %2964 = vmatprep.subr.mxu0 0.0
    %2965 = vmatpush1.msra.mxu0 0.0
    %2966 = vmatprep.subr.mxu0 0.0
    %2967 = vmatpush1.msra.mxu0 0.0
    %2968 = vmatprep.subr.mxu0 0.0
    %2969 = vmatpush1.msra.mxu0 0.0
    %2970 = vmatprep.subr.mxu0 0.0
    %2971 = vmatpush1.msra.mxu0 0.0
    %2972 = vmatprep.subr.mxu0 0.0
    %2973 = vmatpush1.msra.mxu0 0.0
    %2974 = vmatprep.subr.mxu0 0.0
    %2975 = vmatpush1.msra.mxu0 0.0
    %2976 = vmatprep.subr.mxu0 0.0
    %2977 = vmatpush1.msra.mxu0 0.0
    %2978 = vmatprep.subr.mxu0 0.0
    %2979 = vmatpush1.msra.mxu0 0.0
    %2980 = vmatprep.subr.mxu0 0.0
    %2981 = vmatpush1.msra.mxu0 0.0
    %2982 = vmatprep.subr.mxu0 0.0
    %2983 = vmatpush1.msra.mxu0 0.0
    %2984 = vmatprep.subr.mxu0 0.0
    %2985 = vmatpush1.msra.mxu0 0.0
    %2986 = vmatprep.subr.mxu0 0.0
    %2987 = vmatpush1.msra.mxu0 0.0
    %2988 = vmatprep.subr.mxu0 0.0
    %v2989 = vand.u32 %v884, 4294901760
    %2990 = vmatpush1.msra.mxu0 %v2989
    %2991 = vmatprep.subr.mxu0 0.0
    %v2992 = vand.u32 %v883, 4294901760
    %2993 = vmatpush1.msra.mxu0 %v2992
    %2994 = vmatprep.subr.mxu0 0.0
    %v2995 = vand.u32 %v882, 4294901760
    %2996 = vmatpush1.msra.mxu0 %v2995
    %2997 = vmatprep.subr.mxu0 0.0
    %v2998 = vand.u32 %v881, 4294901760
    %2999 = vmatpush1.msra.mxu0 %v2998
    %3000 = vmatprep.subr.mxu0 0.0
    %3001 = vmatpush2.msra.mxu0 0.0
    %3002 = vmatprep.subr.mxu0 0.0
    %3003 = vmatpush2.msra.mxu0 0.0
    %3004 = vmatprep.subr.mxu0 0.0
    %3005 = vmatpush2.msra.mxu0 0.0
    %3006 = vmatprep.subr.mxu0 0.0
    %3007 = vmatpush2.msra.mxu0 0.0
    %3008 = vmatprep.subr.mxu0 0.0
    %3009 = vmatpush2.msra.mxu0 0.0
    %3010 = vmatprep.subr.mxu0 0.0
    %3011 = vmatpush2.msra.mxu0 0.0
    %3012 = vmatprep.subr.mxu0 0.0
    %3013 = vmatpush2.msra.mxu0 0.0
    %3014 = vmatprep.subr.mxu0 0.0
    %3015 = vmatpush2.msra.mxu0 0.0
    %3016 = vmatprep.subr.mxu0 0.0
    %3017 = vmatpush2.msra.mxu0 0.0
    %3018 = vmatprep.subr.mxu0 0.0
    %3019 = vmatpush2.msra.mxu0 0.0
    %3020 = vmatprep.subr.mxu0 0.0
    %3021 = vmatpush2.msra.mxu0 0.0
    %3022 = vmatprep.subr.mxu0 0.0
    %3023 = vmatpush2.msra.mxu0 0.0
    %3024 = vmatprep.subr.mxu0 0.0
    %3025 = vmatpush2.msra.mxu0 0.0
    %3026 = vmatprep.subr.mxu0 0.0
    %3027 = vmatpush2.msra.mxu0 0.0
    %3028 = vmatprep.subr.mxu0 0.0
    %3029 = vmatpush2.msra.mxu0 0.0
    %3030 = vmatprep.subr.mxu0 0.0
    %3031 = vmatpush2.msra.mxu0 0.0
    %3032 = vmatprep.mubr.f32.mxu0 0.0
    %v3033 = vand.u32 %v2962, 4294901760
    %v3034 = vsub.f32 %v2962, %v3033
    %v3035 = vand.u32 %v3034, 4294901760
    %v3036 = vsub.f32 %v3034, %v3035
    %v3037 = vand.u32 %v3036, 4294901760
    %3038 = vmatmul.mubr.f32.gmra.mxu0 %v3037
    %v3039 = vpop.f32.mrf.mxu0
    %v3040 = vadd.f32 0.0, %v3039
    %v3041 = vpop.f32.mrf.mxu0
    %3042 = vdwg.mxu0
    %3043 = vmatprep.subr.mxu0 0.0
    %3044 = vmatpush1.msra.mxu0 0.0
    %3045 = vmatprep.subr.mxu0 0.0
    %3046 = vmatpush1.msra.mxu0 0.0
    %3047 = vmatprep.subr.mxu0 0.0
    %3048 = vmatpush1.msra.mxu0 0.0
    %3049 = vmatprep.subr.mxu0 0.0
    %3050 = vmatpush1.msra.mxu0 0.0
    %3051 = vmatprep.subr.mxu0 0.0
    %3052 = vmatpush1.msra.mxu0 0.0
    %3053 = vmatprep.subr.mxu0 0.0
    %3054 = vmatpush1.msra.mxu0 0.0
    %3055 = vmatprep.subr.mxu0 0.0
    %3056 = vmatpush1.msra.mxu0 0.0
    %3057 = vmatprep.subr.mxu0 0.0
    %3058 = vmatpush1.msra.mxu0 0.0
    %3059 = vmatprep.subr.mxu0 0.0
    %3060 = vmatpush1.msra.mxu0 0.0
    %3061 = vmatprep.subr.mxu0 0.0
    %3062 = vmatpush1.msra.mxu0 0.0
    %3063 = vmatprep.subr.mxu0 0.0
    %3064 = vmatpush1.msra.mxu0 0.0
    %3065 = vmatprep.subr.mxu0 0.0
    %3066 = vmatpush1.msra.mxu0 0.0
    %3067 = vmatprep.subr.mxu0 0.0
    %v3068 = vand.u32 %v884, 4294901760
    %v3069 = vsub.f32 %v884, %v3068
    %v3070 = vand.u32 %v3069, 4294901760
    %v3071 = vsub.f32 %v3069, %v3070
    %v3072 = vand.u32 %v3071, 4294901760
    %3073 = vmatpush1.msra.mxu0 %v3072
    %3074 = vmatprep.subr.mxu0 0.0
    %v3075 = vand.u32 %v883, 4294901760
    %v3076 = vsub.f32 %v883, %v3075
    %v3077 = vand.u32 %v3076, 4294901760
    %v3078 = vsub.f32 %v3076, %v3077
    %v3079 = vand.u32 %v3078, 4294901760
    %3080 = vmatpush1.msra.mxu0 %v3079
    %3081 = vmatprep.subr.mxu0 0.0
    %v3082 = vand.u32 %v882, 4294901760
    %v3083 = vsub.f32 %v882, %v3082
    %v3084 = vand.u32 %v3083, 4294901760
    %v3085 = vsub.f32 %v3083, %v3084
    %v3086 = vand.u32 %v3085, 4294901760
    %3087 = vmatpush1.msra.mxu0 %v3086
    %3088 = vmatprep.subr.mxu0 0.0
    %v3089 = vand.u32 %v881, 4294901760
    %v3090 = vsub.f32 %v881, %v3089
    %v3091 = vand.u32 %v3090, 4294901760
    %v3092 = vsub.f32 %v3090, %v3091
    %v3093 = vand.u32 %v3092, 4294901760
    %3094 = vmatpush1.msra.mxu0 %v3093
    %3095 = vmatprep.subr.mxu0 0.0
    %3096 = vmatpush2.msra.mxu0 0.0
    %3097 = vmatprep.subr.mxu0 0.0
    %3098 = vmatpush2.msra.mxu0 0.0
    %3099 = vmatprep.subr.mxu0 0.0
    %3100 = vmatpush2.msra.mxu0 0.0
    %3101 = vmatprep.subr.mxu0 0.0
    %3102 = vmatpush2.msra.mxu0 0.0
    %3103 = vmatprep.subr.mxu0 0.0
    %3104 = vmatpush2.msra.mxu0 0.0
    %3105 = vmatprep.subr.mxu0 0.0
    %3106 = vmatpush2.msra.mxu0 0.0
    %3107 = vmatprep.subr.mxu0 0.0
    %3108 = vmatpush2.msra.mxu0 0.0
    %3109 = vmatprep.subr.mxu0 0.0
    %3110 = vmatpush2.msra.mxu0 0.0
    %3111 = vmatprep.subr.mxu0 0.0
    %3112 = vmatpush2.msra.mxu0 0.0
    %3113 = vmatprep.subr.mxu0 0.0
    %3114 = vmatpush2.msra.mxu0 0.0
    %3115 = vmatprep.subr.mxu0 0.0
    %3116 = vmatpush2.msra.mxu0 0.0
    %3117 = vmatprep.subr.mxu0 0.0
    %3118 = vmatpush2.msra.mxu0 0.0
    %3119 = vmatprep.subr.mxu0 0.0
    %3120 = vmatpush2.msra.mxu0 0.0
    %3121 = vmatprep.subr.mxu0 0.0
    %3122 = vmatpush2.msra.mxu0 0.0
    %3123 = vmatprep.subr.mxu0 0.0
    %3124 = vmatpush2.msra.mxu0 0.0
    %3125 = vmatprep.subr.mxu0 0.0
    %3126 = vmatpush2.msra.mxu0 0.0
    %3127 = vmatprep.mubr.f32.mxu0 0.0
    %v3128 = vand.u32 %v2962, 4294901760
    %3129 = vmatmul.mubr.f32.gmra.mxu0 %v3128
    %v3130 = vpop.f32.mrf.mxu0
    %v3131 = vadd.f32 %v3040, %v3130
    %v3132 = vpop.f32.mrf.mxu0
    %3133 = vdwg.mxu0
    %3134 = vmatprep.subr.mxu0 0.0
    %3135 = vmatpush1.msra.mxu0 0.0
    %3136 = vmatprep.subr.mxu0 0.0
    %3137 = vmatpush1.msra.mxu0 0.0
    %3138 = vmatprep.subr.mxu0 0.0
    %3139 = vmatpush1.msra.mxu0 0.0
    %3140 = vmatprep.subr.mxu0 0.0
    %3141 = vmatpush1.msra.mxu0 0.0
    %3142 = vmatprep.subr.mxu0 0.0
    %3143 = vmatpush1.msra.mxu0 0.0
    %3144 = vmatprep.subr.mxu0 0.0
    %3145 = vmatpush1.msra.mxu0 0.0
    %3146 = vmatprep.subr.mxu0 0.0
    %3147 = vmatpush1.msra.mxu0 0.0
    %3148 = vmatprep.subr.mxu0 0.0
    %3149 = vmatpush1.msra.mxu0 0.0
    %3150 = vmatprep.subr.mxu0 0.0
    %3151 = vmatpush1.msra.mxu0 0.0
    %3152 = vmatprep.subr.mxu0 0.0
    %3153 = vmatpush1.msra.mxu0 0.0
    %3154 = vmatprep.subr.mxu0 0.0
    %3155 = vmatpush1.msra.mxu0 0.0
    %3156 = vmatprep.subr.mxu0 0.0
    %3157 = vmatpush1.msra.mxu0 0.0
    %3158 = vmatprep.subr.mxu0 0.0
    %v3159 = vand.u32 %v884, 4294901760
    %v3160 = vsub.f32 %v884, %v3159
    %3161 = vmatpush1.msra.mxu0 %v3160
    %3162 = vmatprep.subr.mxu0 0.0
    %v3163 = vand.u32 %v883, 4294901760
    %v3164 = vsub.f32 %v883, %v3163
    %3165 = vmatpush1.msra.mxu0 %v3164
    %3166 = vmatprep.subr.mxu0 0.0
    %v3167 = vand.u32 %v882, 4294901760
    %v3168 = vsub.f32 %v882, %v3167
    %3169 = vmatpush1.msra.mxu0 %v3168
    %3170 = vmatprep.subr.mxu0 0.0
    %v3171 = vand.u32 %v881, 4294901760
    %v3172 = vsub.f32 %v881, %v3171
    %3173 = vmatpush1.msra.mxu0 %v3172
    %3174 = vmatprep.subr.mxu0 0.0
    %3175 = vmatpush2.msra.mxu0 0.0
    %3176 = vmatprep.subr.mxu0 0.0
    %3177 = vmatpush2.msra.mxu0 0.0
    %3178 = vmatprep.subr.mxu0 0.0
    %3179 = vmatpush2.msra.mxu0 0.0
    %3180 = vmatprep.subr.mxu0 0.0
    %3181 = vmatpush2.msra.mxu0 0.0
    %3182 = vmatprep.subr.mxu0 0.0
    %3183 = vmatpush2.msra.mxu0 0.0
    %3184 = vmatprep.subr.mxu0 0.0
    %3185 = vmatpush2.msra.mxu0 0.0
    %3186 = vmatprep.subr.mxu0 0.0
    %3187 = vmatpush2.msra.mxu0 0.0
    %3188 = vmatprep.subr.mxu0 0.0
    %3189 = vmatpush2.msra.mxu0 0.0
    %3190 = vmatprep.subr.mxu0 0.0
    %3191 = vmatpush2.msra.mxu0 0.0
    %3192 = vmatprep.subr.mxu0 0.0
    %3193 = vmatpush2.msra.mxu0 0.0
    %3194 = vmatprep.subr.mxu0 0.0
    %3195 = vmatpush2.msra.mxu0 0.0
    %3196 = vmatprep.subr.mxu0 0.0
    %3197 = vmatpush2.msra.mxu0 0.0
    %3198 = vmatprep.subr.mxu0 0.0
    %3199 = vmatpush2.msra.mxu0 0.0
    %3200 = vmatprep.subr.mxu0 0.0
    %3201 = vmatpush2.msra.mxu0 0.0
    %3202 = vmatprep.subr.mxu0 0.0
    %3203 = vmatpush2.msra.mxu0 0.0
    %3204 = vmatprep.subr.mxu0 0.0
    %3205 = vmatpush2.msra.mxu0 0.0
    %3206 = vmatprep.mubr.f32.mxu0 0.0
    %v3207 = vand.u32 %v2962, 4294901760
    %v3208 = vsub.f32 %v2962, %v3207
    %3209 = vmatmul.mubr.f32.gmra.mxu0 %v3208
    %v3210 = vpop.f32.mrf.mxu0
    %v3211 = vadd.f32 %v3131, %v3210
    %v3212 = vpop.f32.mrf.mxu0
    %3213 = vdwg.mxu0
    %3214 = vmatprep.subr.mxu0 0.0
    %3215 = vmatpush1.msra.mxu0 0.0
    %3216 = vmatprep.subr.mxu0 0.0
    %3217 = vmatpush1.msra.mxu0 0.0
    %3218 = vmatprep.subr.mxu0 0.0
    %3219 = vmatpush1.msra.mxu0 0.0
    %3220 = vmatprep.subr.mxu0 0.0
    %3221 = vmatpush1.msra.mxu0 0.0
    %3222 = vmatprep.subr.mxu0 0.0
    %3223 = vmatpush1.msra.mxu0 0.0
    %3224 = vmatprep.subr.mxu0 0.0
    %3225 = vmatpush1.msra.mxu0 0.0
    %3226 = vmatprep.subr.mxu0 0.0
    %3227 = vmatpush1.msra.mxu0 0.0
    %3228 = vmatprep.subr.mxu0 0.0
    %3229 = vmatpush1.msra.mxu0 0.0
    %3230 = vmatprep.subr.mxu0 0.0
    %3231 = vmatpush1.msra.mxu0 0.0
    %3232 = vmatprep.subr.mxu0 0.0
    %3233 = vmatpush1.msra.mxu0 0.0
    %3234 = vmatprep.subr.mxu0 0.0
    %3235 = vmatpush1.msra.mxu0 0.0
    %3236 = vmatprep.subr.mxu0 0.0
    %3237 = vmatpush1.msra.mxu0 0.0
    %3238 = vmatprep.subr.mxu0 0.0
    %v3239 = vand.u32 %v884, 4294901760
    %3240 = vmatpush1.msra.mxu0 %v3239
    %3241 = vmatprep.subr.mxu0 0.0
    %v3242 = vand.u32 %v883, 4294901760
    %3243 = vmatpush1.msra.mxu0 %v3242
    %3244 = vmatprep.subr.mxu0 0.0
    %v3245 = vand.u32 %v882, 4294901760
    %3246 = vmatpush1.msra.mxu0 %v3245
    %3247 = vmatprep.subr.mxu0 0.0
    %v3248 = vand.u32 %v881, 4294901760
    %3249 = vmatpush1.msra.mxu0 %v3248
    %3250 = vmatprep.subr.mxu0 0.0
    %3251 = vmatpush2.msra.mxu0 0.0
    %3252 = vmatprep.subr.mxu0 0.0
    %3253 = vmatpush2.msra.mxu0 0.0
    %3254 = vmatprep.subr.mxu0 0.0
    %3255 = vmatpush2.msra.mxu0 0.0
    %3256 = vmatprep.subr.mxu0 0.0
    %3257 = vmatpush2.msra.mxu0 0.0
    %3258 = vmatprep.subr.mxu0 0.0
    %3259 = vmatpush2.msra.mxu0 0.0
    %3260 = vmatprep.subr.mxu0 0.0
    %3261 = vmatpush2.msra.mxu0 0.0
    %3262 = vmatprep.subr.mxu0 0.0
    %3263 = vmatpush2.msra.mxu0 0.0
    %3264 = vmatprep.subr.mxu0 0.0
    %3265 = vmatpush2.msra.mxu0 0.0
    %3266 = vmatprep.subr.mxu0 0.0
    %3267 = vmatpush2.msra.mxu0 0.0
    %3268 = vmatprep.subr.mxu0 0.0
    %3269 = vmatpush2.msra.mxu0 0.0
    %3270 = vmatprep.subr.mxu0 0.0
    %3271 = vmatpush2.msra.mxu0 0.0
    %3272 = vmatprep.subr.mxu0 0.0
    %3273 = vmatpush2.msra.mxu0 0.0
    %3274 = vmatprep.subr.mxu0 0.0
    %3275 = vmatpush2.msra.mxu0 0.0
    %3276 = vmatprep.subr.mxu0 0.0
    %3277 = vmatpush2.msra.mxu0 0.0
    %3278 = vmatprep.subr.mxu0 0.0
    %3279 = vmatpush2.msra.mxu0 0.0
    %3280 = vmatprep.subr.mxu0 0.0
    %3281 = vmatpush2.msra.mxu0 0.0
    %3282 = vmatprep.mubr.f32.mxu0 0.0
    %v3283 = vand.u32 %v2962, 4294901760
    %v3284 = vsub.f32 %v2962, %v3283
    %v3285 = vand.u32 %v3284, 4294901760
    %3286 = vmatmul.mubr.f32.gmra.mxu0 %v3285
    %v3287 = vpop.f32.mrf.mxu0
    %v3288 = vadd.f32 %v3211, %v3287
    %v3289 = vpop.f32.mrf.mxu0
    %3290 = vdwg.mxu0
    %3291 = vmatprep.subr.mxu0 0.0
    %3292 = vmatpush1.msra.mxu0 0.0
    %3293 = vmatprep.subr.mxu0 0.0
    %3294 = vmatpush1.msra.mxu0 0.0
    %3295 = vmatprep.subr.mxu0 0.0
    %3296 = vmatpush1.msra.mxu0 0.0
    %3297 = vmatprep.subr.mxu0 0.0
    %3298 = vmatpush1.msra.mxu0 0.0
    %3299 = vmatprep.subr.mxu0 0.0
    %3300 = vmatpush1.msra.mxu0 0.0
    %3301 = vmatprep.subr.mxu0 0.0
    %3302 = vmatpush1.msra.mxu0 0.0
    %3303 = vmatprep.subr.mxu0 0.0
    %3304 = vmatpush1.msra.mxu0 0.0
    %3305 = vmatprep.subr.mxu0 0.0
    %3306 = vmatpush1.msra.mxu0 0.0
    %3307 = vmatprep.subr.mxu0 0.0
    %3308 = vmatpush1.msra.mxu0 0.0
    %3309 = vmatprep.subr.mxu0 0.0
    %3310 = vmatpush1.msra.mxu0 0.0
    %3311 = vmatprep.subr.mxu0 0.0
    %3312 = vmatpush1.msra.mxu0 0.0
    %3313 = vmatprep.subr.mxu0 0.0
    %3314 = vmatpush1.msra.mxu0 0.0
    %3315 = vmatprep.subr.mxu0 0.0
    %v3316 = vand.u32 %v884, 4294901760
    %v3317 = vsub.f32 %v884, %v3316
    %v3318 = vand.u32 %v3317, 4294901760
    %3319 = vmatpush1.msra.mxu0 %v3318
    %3320 = vmatprep.subr.mxu0 0.0
    %v3321 = vand.u32 %v883, 4294901760
    %v3322 = vsub.f32 %v883, %v3321
    %v3323 = vand.u32 %v3322, 4294901760
    %3324 = vmatpush1.msra.mxu0 %v3323
    %3325 = vmatprep.subr.mxu0 0.0
    %v3326 = vand.u32 %v882, 4294901760
    %v3327 = vsub.f32 %v882, %v3326
    %v3328 = vand.u32 %v3327, 4294901760
    %3329 = vmatpush1.msra.mxu0 %v3328
    %3330 = vmatprep.subr.mxu0 0.0
    %v3331 = vand.u32 %v881, 4294901760
    %v3332 = vsub.f32 %v881, %v3331
    %v3333 = vand.u32 %v3332, 4294901760
    %3334 = vmatpush1.msra.mxu0 %v3333
    %3335 = vmatprep.subr.mxu0 0.0
    %3336 = vmatpush2.msra.mxu0 0.0
    %3337 = vmatprep.subr.mxu0 0.0
    %3338 = vmatpush2.msra.mxu0 0.0
    %3339 = vmatprep.subr.mxu0 0.0
    %3340 = vmatpush2.msra.mxu0 0.0
    %3341 = vmatprep.subr.mxu0 0.0
    %3342 = vmatpush2.msra.mxu0 0.0
    %3343 = vmatprep.subr.mxu0 0.0
    %3344 = vmatpush2.msra.mxu0 0.0
    %3345 = vmatprep.subr.mxu0 0.0
    %3346 = vmatpush2.msra.mxu0 0.0
    %3347 = vmatprep.subr.mxu0 0.0
    %3348 = vmatpush2.msra.mxu0 0.0
    %3349 = vmatprep.subr.mxu0 0.0
    %3350 = vmatpush2.msra.mxu0 0.0
    %3351 = vmatprep.subr.mxu0 0.0
    %3352 = vmatpush2.msra.mxu0 0.0
    %3353 = vmatprep.subr.mxu0 0.0
    %3354 = vmatpush2.msra.mxu0 0.0
    %3355 = vmatprep.subr.mxu0 0.0
    %3356 = vmatpush2.msra.mxu0 0.0
    %3357 = vmatprep.subr.mxu0 0.0
    %3358 = vmatpush2.msra.mxu0 0.0
    %3359 = vmatprep.subr.mxu0 0.0
    %3360 = vmatpush2.msra.mxu0 0.0
    %3361 = vmatprep.subr.mxu0 0.0
    %3362 = vmatpush2.msra.mxu0 0.0
    %3363 = vmatprep.subr.mxu0 0.0
    %3364 = vmatpush2.msra.mxu0 0.0
    %3365 = vmatprep.subr.mxu0 0.0
    %3366 = vmatpush2.msra.mxu0 0.0
    %3367 = vmatprep.mubr.f32.mxu0 0.0
    %v3368 = vand.u32 %v2962, 4294901760
    %3369 = vmatmul.mubr.f32.gmra.mxu0 %v3368
    %v3370 = vpop.f32.mrf.mxu0
    %v3371 = vadd.f32 %v3288, %v3370
    %v3372 = vpop.f32.mrf.mxu0
    %3373 = vdwg.mxu0
    %3374 = vmatprep.subr.mxu0 0.0
    %3375 = vmatpush1.msra.mxu0 0.0
    %3376 = vmatprep.subr.mxu0 0.0
    %3377 = vmatpush1.msra.mxu0 0.0
    %3378 = vmatprep.subr.mxu0 0.0
    %3379 = vmatpush1.msra.mxu0 0.0
    %3380 = vmatprep.subr.mxu0 0.0
    %3381 = vmatpush1.msra.mxu0 0.0
    %3382 = vmatprep.subr.mxu0 0.0
    %3383 = vmatpush1.msra.mxu0 0.0
    %3384 = vmatprep.subr.mxu0 0.0
    %3385 = vmatpush1.msra.mxu0 0.0
    %3386 = vmatprep.subr.mxu0 0.0
    %3387 = vmatpush1.msra.mxu0 0.0
    %3388 = vmatprep.subr.mxu0 0.0
    %3389 = vmatpush1.msra.mxu0 0.0
    %3390 = vmatprep.subr.mxu0 0.0
    %3391 = vmatpush1.msra.mxu0 0.0
    %3392 = vmatprep.subr.mxu0 0.0
    %3393 = vmatpush1.msra.mxu0 0.0
    %3394 = vmatprep.subr.mxu0 0.0
    %3395 = vmatpush1.msra.mxu0 0.0
    %3396 = vmatprep.subr.mxu0 0.0
    %3397 = vmatpush1.msra.mxu0 0.0
    %3398 = vmatprep.subr.mxu0 0.0
    %v3399 = vand.u32 %v884, 4294901760
    %3400 = vmatpush1.msra.mxu0 %v3399
    %3401 = vmatprep.subr.mxu0 0.0
    %v3402 = vand.u32 %v883, 4294901760
    %3403 = vmatpush1.msra.mxu0 %v3402
    %3404 = vmatprep.subr.mxu0 0.0
    %v3405 = vand.u32 %v882, 4294901760
    %3406 = vmatpush1.msra.mxu0 %v3405
    %3407 = vmatprep.subr.mxu0 0.0
    %v3408 = vand.u32 %v881, 4294901760
    %3409 = vmatpush1.msra.mxu0 %v3408
    %3410 = vmatprep.subr.mxu0 0.0
    %3411 = vmatpush2.msra.mxu0 0.0
    %3412 = vmatprep.subr.mxu0 0.0
    %3413 = vmatpush2.msra.mxu0 0.0
    %3414 = vmatprep.subr.mxu0 0.0
    %3415 = vmatpush2.msra.mxu0 0.0
    %3416 = vmatprep.subr.mxu0 0.0
    %3417 = vmatpush2.msra.mxu0 0.0
    %3418 = vmatprep.subr.mxu0 0.0
    %3419 = vmatpush2.msra.mxu0 0.0
    %3420 = vmatprep.subr.mxu0 0.0
    %3421 = vmatpush2.msra.mxu0 0.0
    %3422 = vmatprep.subr.mxu0 0.0
    %3423 = vmatpush2.msra.mxu0 0.0
    %3424 = vmatprep.subr.mxu0 0.0
    %3425 = vmatpush2.msra.mxu0 0.0
    %3426 = vmatprep.subr.mxu0 0.0
    %3427 = vmatpush2.msra.mxu0 0.0
    %3428 = vmatprep.subr.mxu0 0.0
    %3429 = vmatpush2.msra.mxu0 0.0
    %3430 = vmatprep.subr.mxu0 0.0
    %3431 = vmatpush2.msra.mxu0 0.0
    %3432 = vmatprep.subr.mxu0 0.0
    %3433 = vmatpush2.msra.mxu0 0.0
    %3434 = vmatprep.subr.mxu0 0.0
    %3435 = vmatpush2.msra.mxu0 0.0
    %3436 = vmatprep.subr.mxu0 0.0
    %3437 = vmatpush2.msra.mxu0 0.0
    %3438 = vmatprep.subr.mxu0 0.0
    %3439 = vmatpush2.msra.mxu0 0.0
    %3440 = vmatprep.subr.mxu0 0.0
    %3441 = vmatpush2.msra.mxu0 0.0
    %3442 = vmatprep.mubr.f32.mxu0 0.0
    %v3443 = vand.u32 %v2962, 4294901760
    %3444 = vmatmul.mubr.f32.gmra.mxu0 %v3443
    %v3445 = vpop.f32.mrf.mxu0
    %v3446 = vadd.f32 %v3371, %v3445
    %v3447 = vpop.f32.mrf.mxu0
    %3448 = vdwg.mxu0
    %v3449 = vadd.f32 %v2958, %v3446
    %v3450 = vmul.f32 %v3449, 0.5
    %v3451 = vsel %vm889, %v3449, %v3450
    %v3452 = vtanh.pop %v3451
    %v3453 = vmul.f32 %v3452, 0.5
    %v3454 = vadd.f32 %v3453, 0.5
    %v3455 = vsel %vm889, %v3452, %v3454
    %v3456 = vmul.f32 %v3455, %v2950
    %3458 = vrot.lane.b32.xlu0 %v3455, 64
    %v3459 = vpop.permute.xlu0 %3458
    %v3461 = vmul.f32 %v3455, %v3459
    %3463 = vrot.lane.b32.xlu0 %v3461, 32
    %v3464 = vpop.permute.xlu0 %3463
    %v3466 = vadd.f32 %v3456, %v3464
    %v3467 = vtanh.pop %v3466
    %3469 = vrot.lane.b32.xlu0 %v3467, 64
    %v3470 = vpop.permute.xlu0 %3469
    %v3472 = vmul.f32 %v3455, %v3470
    %s3473 = scalar_lea.vmem [#allocation4], 40
    %v3474 = vld [vmem:[%s3473] sm:$0xff]
    %3476 = vrot.lane.b32.xlu0 %v3472, 32
    %v3477 = vpop.permute.xlu0 %3476
    %v3478 = vsel %vm62, %v3477, 0
    %3480 = vmatprep.subr.mxu0 0.0
    %3481 = vmatpush1.msra.mxu0 0.0
    %3482 = vmatprep.subr.mxu0 0.0
    %3483 = vmatpush1.msra.mxu0 0.0
    %3484 = vmatprep.subr.mxu0 0.0
    %3485 = vmatpush1.msra.mxu0 0.0
    %3486 = vmatprep.subr.mxu0 0.0
    %3487 = vmatpush1.msra.mxu0 0.0
    %3488 = vmatprep.subr.mxu0 0.0
    %3489 = vmatpush1.msra.mxu0 0.0
    %3490 = vmatprep.subr.mxu0 0.0
    %3491 = vmatpush1.msra.mxu0 0.0
    %3492 = vmatprep.subr.mxu0 0.0
    %3493 = vmatpush1.msra.mxu0 0.0
    %3494 = vmatprep.subr.mxu0 0.0
    %3495 = vmatpush1.msra.mxu0 0.0
    %3496 = vmatprep.subr.mxu0 0.0
    %3497 = vmatpush1.msra.mxu0 0.0
    %3498 = vmatprep.subr.mxu0 0.0
    %3499 = vmatpush1.msra.mxu0 0.0
    %3500 = vmatprep.subr.mxu0 0.0
    %3501 = vmatpush1.msra.mxu0 0.0
    %3502 = vmatprep.subr.mxu0 0.0
    %3503 = vmatpush1.msra.mxu0 0.0
    %3504 = vmatprep.subr.mxu0 0.0
    %v3505 = vand.u32 %v884, 4294901760
    %3506 = vmatpush1.msra.mxu0 %v3505
    %3507 = vmatprep.subr.mxu0 0.0
    %v3508 = vand.u32 %v883, 4294901760
    %3509 = vmatpush1.msra.mxu0 %v3508
    %3510 = vmatprep.subr.mxu0 0.0
    %v3511 = vand.u32 %v882, 4294901760
    %3512 = vmatpush1.msra.mxu0 %v3511
    %3513 = vmatprep.subr.mxu0 0.0
    %v3514 = vand.u32 %v881, 4294901760
    %3515 = vmatpush1.msra.mxu0 %v3514
    %3516 = vmatprep.subr.mxu0 0.0
    %3517 = vmatpush2.msra.mxu0 0.0
    %3518 = vmatprep.subr.mxu0 0.0
    %3519 = vmatpush2.msra.mxu0 0.0
    %3520 = vmatprep.subr.mxu0 0.0
    %3521 = vmatpush2.msra.mxu0 0.0
    %3522 = vmatprep.subr.mxu0 0.0
    %3523 = vmatpush2.msra.mxu0 0.0
    %3524 = vmatprep.subr.mxu0 0.0
    %3525 = vmatpush2.msra.mxu0 0.0
    %3526 = vmatprep.subr.mxu0 0.0
    %3527 = vmatpush2.msra.mxu0 0.0
    %3528 = vmatprep.subr.mxu0 0.0
    %3529 = vmatpush2.msra.mxu0 0.0
    %3530 = vmatprep.subr.mxu0 0.0
    %3531 = vmatpush2.msra.mxu0 0.0
    %3532 = vmatprep.subr.mxu0 0.0
    %3533 = vmatpush2.msra.mxu0 0.0
    %3534 = vmatprep.subr.mxu0 0.0
    %3535 = vmatpush2.msra.mxu0 0.0
    %3536 = vmatprep.subr.mxu0 0.0
    %3537 = vmatpush2.msra.mxu0 0.0
    %3538 = vmatprep.subr.mxu0 0.0
    %3539 = vmatpush2.msra.mxu0 0.0
    %3540 = vmatprep.subr.mxu0 0.0
    %3541 = vmatpush2.msra.mxu0 0.0
    %3542 = vmatprep.subr.mxu0 0.0
    %3543 = vmatpush2.msra.mxu0 0.0
    %3544 = vmatprep.subr.mxu0 0.0
    %3545 = vmatpush2.msra.mxu0 0.0
    %3546 = vmatprep.subr.mxu0 0.0
    %3547 = vmatpush2.msra.mxu0 0.0
    %3548 = vmatprep.mubr.f32.mxu0 0.0
    %v3549 = vand.u32 %v3478, 4294901760
    %v3550 = vsub.f32 %v3478, %v3549
    %v3551 = vand.u32 %v3550, 4294901760
    %v3552 = vsub.f32 %v3550, %v3551
    %v3553 = vand.u32 %v3552, 4294901760
    %3554 = vmatmul.mubr.f32.gmra.mxu0 %v3553
    %v3555 = vpop.f32.mrf.mxu0
    %v3556 = vadd.f32 0.0, %v3555
    %v3557 = vpop.f32.mrf.mxu0
    %3558 = vdwg.mxu0
    %3559 = vmatprep.subr.mxu0 0.0
    %3560 = vmatpush1.msra.mxu0 0.0
    %3561 = vmatprep.subr.mxu0 0.0
    %3562 = vmatpush1.msra.mxu0 0.0
    %3563 = vmatprep.subr.mxu0 0.0
    %3564 = vmatpush1.msra.mxu0 0.0
    %3565 = vmatprep.subr.mxu0 0.0
    %3566 = vmatpush1.msra.mxu0 0.0
    %3567 = vmatprep.subr.mxu0 0.0
    %3568 = vmatpush1.msra.mxu0 0.0
    %3569 = vmatprep.subr.mxu0 0.0
    %3570 = vmatpush1.msra.mxu0 0.0
    %3571 = vmatprep.subr.mxu0 0.0
    %3572 = vmatpush1.msra.mxu0 0.0
    %3573 = vmatprep.subr.mxu0 0.0
    %3574 = vmatpush1.msra.mxu0 0.0
    %3575 = vmatprep.subr.mxu0 0.0
    %3576 = vmatpush1.msra.mxu0 0.0
    %3577 = vmatprep.subr.mxu0 0.0
    %3578 = vmatpush1.msra.mxu0 0.0
    %3579 = vmatprep.subr.mxu0 0.0
    %3580 = vmatpush1.msra.mxu0 0.0
    %3581 = vmatprep.subr.mxu0 0.0
    %3582 = vmatpush1.msra.mxu0 0.0
    %3583 = vmatprep.subr.mxu0 0.0
    %v3584 = vand.u32 %v884, 4294901760
    %v3585 = vsub.f32 %v884, %v3584
    %v3586 = vand.u32 %v3585, 4294901760
    %v3587 = vsub.f32 %v3585, %v3586
    %v3588 = vand.u32 %v3587, 4294901760
    %3589 = vmatpush1.msra.mxu0 %v3588
    %3590 = vmatprep.subr.mxu0 0.0
    %v3591 = vand.u32 %v883, 4294901760
    %v3592 = vsub.f32 %v883, %v3591
    %v3593 = vand.u32 %v3592, 4294901760
    %v3594 = vsub.f32 %v3592, %v3593
    %v3595 = vand.u32 %v3594, 4294901760
    %3596 = vmatpush1.msra.mxu0 %v3595
    %3597 = vmatprep.subr.mxu0 0.0
    %v3598 = vand.u32 %v882, 4294901760
    %v3599 = vsub.f32 %v882, %v3598
    %v3600 = vand.u32 %v3599, 4294901760
    %v3601 = vsub.f32 %v3599, %v3600
    %v3602 = vand.u32 %v3601, 4294901760
    %3603 = vmatpush1.msra.mxu0 %v3602
    %3604 = vmatprep.subr.mxu0 0.0
    %v3605 = vand.u32 %v881, 4294901760
    %v3606 = vsub.f32 %v881, %v3605
    %v3607 = vand.u32 %v3606, 4294901760
    %v3608 = vsub.f32 %v3606, %v3607
    %v3609 = vand.u32 %v3608, 4294901760
    %3610 = vmatpush1.msra.mxu0 %v3609
    %3611 = vmatprep.subr.mxu0 0.0
    %3612 = vmatpush2.msra.mxu0 0.0
    %3613 = vmatprep.subr.mxu0 0.0
    %3614 = vmatpush2.msra.mxu0 0.0
    %3615 = vmatprep.subr.mxu0 0.0
    %3616 = vmatpush2.msra.mxu0 0.0
    %3617 = vmatprep.subr.mxu0 0.0
    %3618 = vmatpush2.msra.mxu0 0.0
    %3619 = vmatprep.subr.mxu0 0.0
    %3620 = vmatpush2.msra.mxu0 0.0
    %3621 = vmatprep.subr.mxu0 0.0
    %3622 = vmatpush2.msra.mxu0 0.0
    %3623 = vmatprep.subr.mxu0 0.0
    %3624 = vmatpush2.msra.mxu0 0.0
    %3625 = vmatprep.subr.mxu0 0.0
    %3626 = vmatpush2.msra.mxu0 0.0
    %3627 = vmatprep.subr.mxu0 0.0
    %3628 = vmatpush2.msra.mxu0 0.0
    %3629 = vmatprep.subr.mxu0 0.0
    %3630 = vmatpush2.msra.mxu0 0.0
    %3631 = vmatprep.subr.mxu0 0.0
    %3632 = vmatpush2.msra.mxu0 0.0
    %3633 = vmatprep.subr.mxu0 0.0
    %3634 = vmatpush2.msra.mxu0 0.0
    %3635 = vmatprep.subr.mxu0 0.0
    %3636 = vmatpush2.msra.mxu0 0.0
    %3637 = vmatprep.subr.mxu0 0.0
    %3638 = vmatpush2.msra.mxu0 0.0
    %3639 = vmatprep.subr.mxu0 0.0
    %3640 = vmatpush2.msra.mxu0 0.0
    %3641 = vmatprep.subr.mxu0 0.0
    %3642 = vmatpush2.msra.mxu0 0.0
    %3643 = vmatprep.mubr.f32.mxu0 0.0
    %v3644 = vand.u32 %v3478, 4294901760
    %3645 = vmatmul.mubr.f32.gmra.mxu0 %v3644
    %v3646 = vpop.f32.mrf.mxu0
    %v3647 = vadd.f32 %v3556, %v3646
    %v3648 = vpop.f32.mrf.mxu0
    %3649 = vdwg.mxu0
    %3650 = vmatprep.subr.mxu0 0.0
    %3651 = vmatpush1.msra.mxu0 0.0
    %3652 = vmatprep.subr.mxu0 0.0
    %3653 = vmatpush1.msra.mxu0 0.0
    %3654 = vmatprep.subr.mxu0 0.0
    %3655 = vmatpush1.msra.mxu0 0.0
    %3656 = vmatprep.subr.mxu0 0.0
    %3657 = vmatpush1.msra.mxu0 0.0
    %3658 = vmatprep.subr.mxu0 0.0
    %3659 = vmatpush1.msra.mxu0 0.0
    %3660 = vmatprep.subr.mxu0 0.0
    %3661 = vmatpush1.msra.mxu0 0.0
    %3662 = vmatprep.subr.mxu0 0.0
    %3663 = vmatpush1.msra.mxu0 0.0
    %3664 = vmatprep.subr.mxu0 0.0
    %3665 = vmatpush1.msra.mxu0 0.0
    %3666 = vmatprep.subr.mxu0 0.0
    %3667 = vmatpush1.msra.mxu0 0.0
    %3668 = vmatprep.subr.mxu0 0.0
    %3669 = vmatpush1.msra.mxu0 0.0
    %3670 = vmatprep.subr.mxu0 0.0
    %3671 = vmatpush1.msra.mxu0 0.0
    %3672 = vmatprep.subr.mxu0 0.0
    %3673 = vmatpush1.msra.mxu0 0.0
    %3674 = vmatprep.subr.mxu0 0.0
    %v3675 = vand.u32 %v884, 4294901760
    %v3676 = vsub.f32 %v884, %v3675
    %3677 = vmatpush1.msra.mxu0 %v3676
    %3678 = vmatprep.subr.mxu0 0.0
    %v3679 = vand.u32 %v883, 4294901760
    %v3680 = vsub.f32 %v883, %v3679
    %3681 = vmatpush1.msra.mxu0 %v3680
    %3682 = vmatprep.subr.mxu0 0.0
    %v3683 = vand.u32 %v882, 4294901760
    %v3684 = vsub.f32 %v882, %v3683
    %3685 = vmatpush1.msra.mxu0 %v3684
    %3686 = vmatprep.subr.mxu0 0.0
    %v3687 = vand.u32 %v881, 4294901760
    %v3688 = vsub.f32 %v881, %v3687
    %3689 = vmatpush1.msra.mxu0 %v3688
    %3690 = vmatprep.subr.mxu0 0.0
    %3691 = vmatpush2.msra.mxu0 0.0
    %3692 = vmatprep.subr.mxu0 0.0
    %3693 = vmatpush2.msra.mxu0 0.0
    %3694 = vmatprep.subr.mxu0 0.0
    %3695 = vmatpush2.msra.mxu0 0.0
    %3696 = vmatprep.subr.mxu0 0.0
    %3697 = vmatpush2.msra.mxu0 0.0
    %3698 = vmatprep.subr.mxu0 0.0
    %3699 = vmatpush2.msra.mxu0 0.0
    %3700 = vmatprep.subr.mxu0 0.0
    %3701 = vmatpush2.msra.mxu0 0.0
    %3702 = vmatprep.subr.mxu0 0.0
    %3703 = vmatpush2.msra.mxu0 0.0
    %3704 = vmatprep.subr.mxu0 0.0
    %3705 = vmatpush2.msra.mxu0 0.0
    %3706 = vmatprep.subr.mxu0 0.0
    %3707 = vmatpush2.msra.mxu0 0.0
    %3708 = vmatprep.subr.mxu0 0.0
    %3709 = vmatpush2.msra.mxu0 0.0
    %3710 = vmatprep.subr.mxu0 0.0
    %3711 = vmatpush2.msra.mxu0 0.0
    %3712 = vmatprep.subr.mxu0 0.0
    %3713 = vmatpush2.msra.mxu0 0.0
    %3714 = vmatprep.subr.mxu0 0.0
    %3715 = vmatpush2.msra.mxu0 0.0
    %3716 = vmatprep.subr.mxu0 0.0
    %3717 = vmatpush2.msra.mxu0 0.0
    %3718 = vmatprep.subr.mxu0 0.0
    %3719 = vmatpush2.msra.mxu0 0.0
    %3720 = vmatprep.subr.mxu0 0.0
    %3721 = vmatpush2.msra.mxu0 0.0
    %3722 = vmatprep.mubr.f32.mxu0 0.0
    %v3723 = vand.u32 %v3478, 4294901760
    %v3724 = vsub.f32 %v3478, %v3723
    %3725 = vmatmul.mubr.f32.gmra.mxu0 %v3724
    %v3726 = vpop.f32.mrf.mxu0
    %v3727 = vadd.f32 %v3647, %v3726
    %v3728 = vpop.f32.mrf.mxu0
    %3729 = vdwg.mxu0
    %3730 = vmatprep.subr.mxu0 0.0
    %3731 = vmatpush1.msra.mxu0 0.0
    %3732 = vmatprep.subr.mxu0 0.0
    %3733 = vmatpush1.msra.mxu0 0.0
    %3734 = vmatprep.subr.mxu0 0.0
    %3735 = vmatpush1.msra.mxu0 0.0
    %3736 = vmatprep.subr.mxu0 0.0
    %3737 = vmatpush1.msra.mxu0 0.0
    %3738 = vmatprep.subr.mxu0 0.0
    %3739 = vmatpush1.msra.mxu0 0.0
    %3740 = vmatprep.subr.mxu0 0.0
    %3741 = vmatpush1.msra.mxu0 0.0
    %3742 = vmatprep.subr.mxu0 0.0
    %3743 = vmatpush1.msra.mxu0 0.0
    %3744 = vmatprep.subr.mxu0 0.0
    %3745 = vmatpush1.msra.mxu0 0.0
    %3746 = vmatprep.subr.mxu0 0.0
    %3747 = vmatpush1.msra.mxu0 0.0
    %3748 = vmatprep.subr.mxu0 0.0
    %3749 = vmatpush1.msra.mxu0 0.0
    %3750 = vmatprep.subr.mxu0 0.0
    %3751 = vmatpush1.msra.mxu0 0.0
    %3752 = vmatprep.subr.mxu0 0.0
    %3753 = vmatpush1.msra.mxu0 0.0
    %3754 = vmatprep.subr.mxu0 0.0
    %v3755 = vand.u32 %v884, 4294901760
    %3756 = vmatpush1.msra.mxu0 %v3755
    %3757 = vmatprep.subr.mxu0 0.0
    %v3758 = vand.u32 %v883, 4294901760
    %3759 = vmatpush1.msra.mxu0 %v3758
    %3760 = vmatprep.subr.mxu0 0.0
    %v3761 = vand.u32 %v882, 4294901760
    %3762 = vmatpush1.msra.mxu0 %v3761
    %3763 = vmatprep.subr.mxu0 0.0
    %v3764 = vand.u32 %v881, 4294901760
    %3765 = vmatpush1.msra.mxu0 %v3764
    %3766 = vmatprep.subr.mxu0 0.0
    %3767 = vmatpush2.msra.mxu0 0.0
    %3768 = vmatprep.subr.mxu0 0.0
    %3769 = vmatpush2.msra.mxu0 0.0
    %3770 = vmatprep.subr.mxu0 0.0
    %3771 = vmatpush2.msra.mxu0 0.0
    %3772 = vmatprep.subr.mxu0 0.0
    %3773 = vmatpush2.msra.mxu0 0.0
    %3774 = vmatprep.subr.mxu0 0.0
    %3775 = vmatpush2.msra.mxu0 0.0
    %3776 = vmatprep.subr.mxu0 0.0
    %3777 = vmatpush2.msra.mxu0 0.0
    %3778 = vmatprep.subr.mxu0 0.0
    %3779 = vmatpush2.msra.mxu0 0.0
    %3780 = vmatprep.subr.mxu0 0.0
    %3781 = vmatpush2.msra.mxu0 0.0
    %3782 = vmatprep.subr.mxu0 0.0
    %3783 = vmatpush2.msra.mxu0 0.0
    %3784 = vmatprep.subr.mxu0 0.0
    %3785 = vmatpush2.msra.mxu0 0.0
    %3786 = vmatprep.subr.mxu0 0.0
    %3787 = vmatpush2.msra.mxu0 0.0
    %3788 = vmatprep.subr.mxu0 0.0
    %3789 = vmatpush2.msra.mxu0 0.0
    %3790 = vmatprep.subr.mxu0 0.0
    %3791 = vmatpush2.msra.mxu0 0.0
    %3792 = vmatprep.subr.mxu0 0.0
    %3793 = vmatpush2.msra.mxu0 0.0
    %3794 = vmatprep.subr.mxu0 0.0
    %3795 = vmatpush2.msra.mxu0 0.0
    %3796 = vmatprep.subr.mxu0 0.0
    %3797 = vmatpush2.msra.mxu0 0.0
    %3798 = vmatprep.mubr.f32.mxu0 0.0
    %v3799 = vand.u32 %v3478, 4294901760
    %v3800 = vsub.f32 %v3478, %v3799
    %v3801 = vand.u32 %v3800, 4294901760
    %3802 = vmatmul.mubr.f32.gmra.mxu0 %v3801
    %v3803 = vpop.f32.mrf.mxu0
    %v3804 = vadd.f32 %v3727, %v3803
    %v3805 = vpop.f32.mrf.mxu0
    %3806 = vdwg.mxu0
    %3807 = vmatprep.subr.mxu0 0.0
    %3808 = vmatpush1.msra.mxu0 0.0
    %3809 = vmatprep.subr.mxu0 0.0
    %3810 = vmatpush1.msra.mxu0 0.0
    %3811 = vmatprep.subr.mxu0 0.0
    %3812 = vmatpush1.msra.mxu0 0.0
    %3813 = vmatprep.subr.mxu0 0.0
    %3814 = vmatpush1.msra.mxu0 0.0
    %3815 = vmatprep.subr.mxu0 0.0
    %3816 = vmatpush1.msra.mxu0 0.0
    %3817 = vmatprep.subr.mxu0 0.0
    %3818 = vmatpush1.msra.mxu0 0.0
    %3819 = vmatprep.subr.mxu0 0.0
    %3820 = vmatpush1.msra.mxu0 0.0
    %3821 = vmatprep.subr.mxu0 0.0
    %3822 = vmatpush1.msra.mxu0 0.0
    %3823 = vmatprep.subr.mxu0 0.0
    %3824 = vmatpush1.msra.mxu0 0.0
    %3825 = vmatprep.subr.mxu0 0.0
    %3826 = vmatpush1.msra.mxu0 0.0
    %3827 = vmatprep.subr.mxu0 0.0
    %3828 = vmatpush1.msra.mxu0 0.0
    %3829 = vmatprep.subr.mxu0 0.0
    %3830 = vmatpush1.msra.mxu0 0.0
    %3831 = vmatprep.subr.mxu0 0.0
    %v3832 = vand.u32 %v884, 4294901760
    %v3833 = vsub.f32 %v884, %v3832
    %v3834 = vand.u32 %v3833, 4294901760
    %3835 = vmatpush1.msra.mxu0 %v3834
    %3836 = vmatprep.subr.mxu0 0.0
    %v3837 = vand.u32 %v883, 4294901760
    %v3838 = vsub.f32 %v883, %v3837
    %v3839 = vand.u32 %v3838, 4294901760
    %3840 = vmatpush1.msra.mxu0 %v3839
    %3841 = vmatprep.subr.mxu0 0.0
    %v3842 = vand.u32 %v882, 4294901760
    %v3843 = vsub.f32 %v882, %v3842
    %v3844 = vand.u32 %v3843, 4294901760
    %3845 = vmatpush1.msra.mxu0 %v3844
    %3846 = vmatprep.subr.mxu0 0.0
    %v3847 = vand.u32 %v881, 4294901760
    %v3848 = vsub.f32 %v881, %v3847
    %v3849 = vand.u32 %v3848, 4294901760
    %3850 = vmatpush1.msra.mxu0 %v3849
    %3851 = vmatprep.subr.mxu0 0.0
    %3852 = vmatpush2.msra.mxu0 0.0
    %3853 = vmatprep.subr.mxu0 0.0
    %3854 = vmatpush2.msra.mxu0 0.0
    %3855 = vmatprep.subr.mxu0 0.0
    %3856 = vmatpush2.msra.mxu0 0.0
    %3857 = vmatprep.subr.mxu0 0.0
    %3858 = vmatpush2.msra.mxu0 0.0
    %3859 = vmatprep.subr.mxu0 0.0
    %3860 = vmatpush2.msra.mxu0 0.0
    %3861 = vmatprep.subr.mxu0 0.0
    %3862 = vmatpush2.msra.mxu0 0.0
    %3863 = vmatprep.subr.mxu0 0.0
    %3864 = vmatpush2.msra.mxu0 0.0
    %3865 = vmatprep.subr.mxu0 0.0
    %3866 = vmatpush2.msra.mxu0 0.0
    %3867 = vmatprep.subr.mxu0 0.0
    %3868 = vmatpush2.msra.mxu0 0.0
    %3869 = vmatprep.subr.mxu0 0.0
    %3870 = vmatpush2.msra.mxu0 0.0
    %3871 = vmatprep.subr.mxu0 0.0
    %3872 = vmatpush2.msra.mxu0 0.0
    %3873 = vmatprep.subr.mxu0 0.0
    %3874 = vmatpush2.msra.mxu0 0.0
    %3875 = vmatprep.subr.mxu0 0.0
    %3876 = vmatpush2.msra.mxu0 0.0
    %3877 = vmatprep.subr.mxu0 0.0
    %3878 = vmatpush2.msra.mxu0 0.0
    %3879 = vmatprep.subr.mxu0 0.0
    %3880 = vmatpush2.msra.mxu0 0.0
    %3881 = vmatprep.subr.mxu0 0.0
    %3882 = vmatpush2.msra.mxu0 0.0
    %3883 = vmatprep.mubr.f32.mxu0 0.0
    %v3884 = vand.u32 %v3478, 4294901760
    %3885 = vmatmul.mubr.f32.gmra.mxu0 %v3884
    %v3886 = vpop.f32.mrf.mxu0
    %v3887 = vadd.f32 %v3804, %v3886
    %v3888 = vpop.f32.mrf.mxu0
    %3889 = vdwg.mxu0
    %3890 = vmatprep.subr.mxu0 0.0
    %3891 = vmatpush1.msra.mxu0 0.0
    %3892 = vmatprep.subr.mxu0 0.0
    %3893 = vmatpush1.msra.mxu0 0.0
    %3894 = vmatprep.subr.mxu0 0.0
    %3895 = vmatpush1.msra.mxu0 0.0
    %3896 = vmatprep.subr.mxu0 0.0
    %3897 = vmatpush1.msra.mxu0 0.0
    %3898 = vmatprep.subr.mxu0 0.0
    %3899 = vmatpush1.msra.mxu0 0.0
    %3900 = vmatprep.subr.mxu0 0.0
    %3901 = vmatpush1.msra.mxu0 0.0
    %3902 = vmatprep.subr.mxu0 0.0
    %3903 = vmatpush1.msra.mxu0 0.0
    %3904 = vmatprep.subr.mxu0 0.0
    %3905 = vmatpush1.msra.mxu0 0.0
    %3906 = vmatprep.subr.mxu0 0.0
    %3907 = vmatpush1.msra.mxu0 0.0
    %3908 = vmatprep.subr.mxu0 0.0
    %3909 = vmatpush1.msra.mxu0 0.0
    %3910 = vmatprep.subr.mxu0 0.0
    %3911 = vmatpush1.msra.mxu0 0.0
    %3912 = vmatprep.subr.mxu0 0.0
    %3913 = vmatpush1.msra.mxu0 0.0
    %3914 = vmatprep.subr.mxu0 0.0
    %v3915 = vand.u32 %v884, 4294901760
    %3916 = vmatpush1.msra.mxu0 %v3915
    %3917 = vmatprep.subr.mxu0 0.0
    %v3918 = vand.u32 %v883, 4294901760
    %3919 = vmatpush1.msra.mxu0 %v3918
    %3920 = vmatprep.subr.mxu0 0.0
    %v3921 = vand.u32 %v882, 4294901760
    %3922 = vmatpush1.msra.mxu0 %v3921
    %3923 = vmatprep.subr.mxu0 0.0
    %v3924 = vand.u32 %v881, 4294901760
    %3925 = vmatpush1.msra.mxu0 %v3924
    %3926 = vmatprep.subr.mxu0 0.0
    %3927 = vmatpush2.msra.mxu0 0.0
    %3928 = vmatprep.subr.mxu0 0.0
    %3929 = vmatpush2.msra.mxu0 0.0
    %3930 = vmatprep.subr.mxu0 0.0
    %3931 = vmatpush2.msra.mxu0 0.0
    %3932 = vmatprep.subr.mxu0 0.0
    %3933 = vmatpush2.msra.mxu0 0.0
    %3934 = vmatprep.subr.mxu0 0.0
    %3935 = vmatpush2.msra.mxu0 0.0
    %3936 = vmatprep.subr.mxu0 0.0
    %3937 = vmatpush2.msra.mxu0 0.0
    %3938 = vmatprep.subr.mxu0 0.0
    %3939 = vmatpush2.msra.mxu0 0.0
    %3940 = vmatprep.subr.mxu0 0.0
    %3941 = vmatpush2.msra.mxu0 0.0
    %3942 = vmatprep.subr.mxu0 0.0
    %3943 = vmatpush2.msra.mxu0 0.0
    %3944 = vmatprep.subr.mxu0 0.0
    %3945 = vmatpush2.msra.mxu0 0.0
    %3946 = vmatprep.subr.mxu0 0.0
    %3947 = vmatpush2.msra.mxu0 0.0
    %3948 = vmatprep.subr.mxu0 0.0
    %3949 = vmatpush2.msra.mxu0 0.0
    %3950 = vmatprep.subr.mxu0 0.0
    %3951 = vmatpush2.msra.mxu0 0.0
    %3952 = vmatprep.subr.mxu0 0.0
    %3953 = vmatpush2.msra.mxu0 0.0
    %3954 = vmatprep.subr.mxu0 0.0
    %3955 = vmatpush2.msra.mxu0 0.0
    %3956 = vmatprep.subr.mxu0 0.0
    %3957 = vmatpush2.msra.mxu0 0.0
    %3958 = vmatprep.mubr.f32.mxu0 0.0
    %v3959 = vand.u32 %v3478, 4294901760
    %3960 = vmatmul.mubr.f32.gmra.mxu0 %v3959
    %v3961 = vpop.f32.mrf.mxu0
    %v3962 = vadd.f32 %v3887, %v3961
    %v3963 = vpop.f32.mrf.mxu0
    %3964 = vdwg.mxu0
    %v3965 = vadd.f32 %v3474, %v3962
    %v3966 = vmul.f32 %v3965, 0.5
    %v3967 = vsel %vm889, %v3965, %v3966
    %v3968 = vtanh.pop %v3967
    %v3969 = vmul.f32 %v3968, 0.5
    %v3970 = vadd.f32 %v3969, 0.5
    %v3971 = vsel %vm889, %v3968, %v3970
    %v3972 = vmul.f32 %v3971, %v3466
    %3974 = vrot.lane.b32.xlu0 %v3971, 64
    %v3975 = vpop.permute.xlu0 %3974
    %v3977 = vmul.f32 %v3971, %v3975
    %3979 = vrot.lane.b32.xlu0 %v3977, 32
    %v3980 = vpop.permute.xlu0 %3979
    %v3982 = vadd.f32 %v3972, %v3980
    %v3983 = vtanh.pop %v3982
    %3985 = vrot.lane.b32.xlu0 %v3983, 64
    %v3986 = vpop.permute.xlu0 %3985
    %v3988 = vmul.f32 %v3971, %v3986
    %s3989 = scalar_lea.vmem [#allocation4], 48
    %v3990 = vld [vmem:[%s3989] sm:$0xff]
    %3992 = vrot.lane.b32.xlu0 %v3988, 32
    %v3993 = vpop.permute.xlu0 %3992
    %v3994 = vsel %vm62, %v3993, 0
    %3996 = vmatprep.subr.mxu0 0.0
    %3997 = vmatpush1.msra.mxu0 0.0
    %3998 = vmatprep.subr.mxu0 0.0
    %3999 = vmatpush1.msra.mxu0 0.0
    %4000 = vmatprep.subr.mxu0 0.0
    %4001 = vmatpush1.msra.mxu0 0.0
    %4002 = vmatprep.subr.mxu0 0.0
    %4003 = vmatpush1.msra.mxu0 0.0
    %4004 = vmatprep.subr.mxu0 0.0
    %4005 = vmatpush1.msra.mxu0 0.0
    %4006 = vmatprep.subr.mxu0 0.0
    %4007 = vmatpush1.msra.mxu0 0.0
    %4008 = vmatprep.subr.mxu0 0.0
    %4009 = vmatpush1.msra.mxu0 0.0
    %4010 = vmatprep.subr.mxu0 0.0
    %4011 = vmatpush1.msra.mxu0 0.0
    %4012 = vmatprep.subr.mxu0 0.0
    %4013 = vmatpush1.msra.mxu0 0.0
    %4014 = vmatprep.subr.mxu0 0.0
    %4015 = vmatpush1.msra.mxu0 0.0
    %4016 = vmatprep.subr.mxu0 0.0
    %4017 = vmatpush1.msra.mxu0 0.0
    %4018 = vmatprep.subr.mxu0 0.0
    %4019 = vmatpush1.msra.mxu0 0.0
    %4020 = vmatprep.subr.mxu0 0.0
    %v4021 = vand.u32 %v884, 4294901760
    %4022 = vmatpush1.msra.mxu0 %v4021
    %4023 = vmatprep.subr.mxu0 0.0
    %v4024 = vand.u32 %v883, 4294901760
    %4025 = vmatpush1.msra.mxu0 %v4024
    %4026 = vmatprep.subr.mxu0 0.0
    %v4027 = vand.u32 %v882, 4294901760
    %4028 = vmatpush1.msra.mxu0 %v4027
    %4029 = vmatprep.subr.mxu0 0.0
    %v4030 = vand.u32 %v881, 4294901760
    %4031 = vmatpush1.msra.mxu0 %v4030
    %4032 = vmatprep.subr.mxu0 0.0
    %4033 = vmatpush2.msra.mxu0 0.0
    %4034 = vmatprep.subr.mxu0 0.0
    %4035 = vmatpush2.msra.mxu0 0.0
    %4036 = vmatprep.subr.mxu0 0.0
    %4037 = vmatpush2.msra.mxu0 0.0
    %4038 = vmatprep.subr.mxu0 0.0
    %4039 = vmatpush2.msra.mxu0 0.0
    %4040 = vmatprep.subr.mxu0 0.0
    %4041 = vmatpush2.msra.mxu0 0.0
    %4042 = vmatprep.subr.mxu0 0.0
    %4043 = vmatpush2.msra.mxu0 0.0
    %4044 = vmatprep.subr.mxu0 0.0
    %4045 = vmatpush2.msra.mxu0 0.0
    %4046 = vmatprep.subr.mxu0 0.0
    %4047 = vmatpush2.msra.mxu0 0.0
    %4048 = vmatprep.subr.mxu0 0.0
    %4049 = vmatpush2.msra.mxu0 0.0
    %4050 = vmatprep.subr.mxu0 0.0
    %4051 = vmatpush2.msra.mxu0 0.0
    %4052 = vmatprep.subr.mxu0 0.0
    %4053 = vmatpush2.msra.mxu0 0.0
    %4054 = vmatprep.subr.mxu0 0.0
    %4055 = vmatpush2.msra.mxu0 0.0
    %4056 = vmatprep.subr.mxu0 0.0
    %4057 = vmatpush2.msra.mxu0 0.0
    %4058 = vmatprep.subr.mxu0 0.0
    %4059 = vmatpush2.msra.mxu0 0.0
    %4060 = vmatprep.subr.mxu0 0.0
    %4061 = vmatpush2.msra.mxu0 0.0
    %4062 = vmatprep.subr.mxu0 0.0
    %4063 = vmatpush2.msra.mxu0 0.0
    %4064 = vmatprep.mubr.f32.mxu0 0.0
    %v4065 = vand.u32 %v3994, 4294901760
    %v4066 = vsub.f32 %v3994, %v4065
    %v4067 = vand.u32 %v4066, 4294901760
    %v4068 = vsub.f32 %v4066, %v4067
    %v4069 = vand.u32 %v4068, 4294901760
    %4070 = vmatmul.mubr.f32.gmra.mxu0 %v4069
    %v4071 = vpop.f32.mrf.mxu0
    %v4072 = vadd.f32 0.0, %v4071
    %v4073 = vpop.f32.mrf.mxu0
    %4074 = vdwg.mxu0
    %4075 = vmatprep.subr.mxu0 0.0
    %4076 = vmatpush1.msra.mxu0 0.0
    %4077 = vmatprep.subr.mxu0 0.0
    %4078 = vmatpush1.msra.mxu0 0.0
    %4079 = vmatprep.subr.mxu0 0.0
    %4080 = vmatpush1.msra.mxu0 0.0
    %4081 = vmatprep.subr.mxu0 0.0
    %4082 = vmatpush1.msra.mxu0 0.0
    %4083 = vmatprep.subr.mxu0 0.0
    %4084 = vmatpush1.msra.mxu0 0.0
    %4085 = vmatprep.subr.mxu0 0.0
    %4086 = vmatpush1.msra.mxu0 0.0
    %4087 = vmatprep.subr.mxu0 0.0
    %4088 = vmatpush1.msra.mxu0 0.0
    %4089 = vmatprep.subr.mxu0 0.0
    %4090 = vmatpush1.msra.mxu0 0.0
    %4091 = vmatprep.subr.mxu0 0.0
    %4092 = vmatpush1.msra.mxu0 0.0
    %4093 = vmatprep.subr.mxu0 0.0
    %4094 = vmatpush1.msra.mxu0 0.0
    %4095 = vmatprep.subr.mxu0 0.0
    %4096 = vmatpush1.msra.mxu0 0.0
    %4097 = vmatprep.subr.mxu0 0.0
    %4098 = vmatpush1.msra.mxu0 0.0
    %4099 = vmatprep.subr.mxu0 0.0
    %v4100 = vand.u32 %v884, 4294901760
    %v4101 = vsub.f32 %v884, %v4100
    %v4102 = vand.u32 %v4101, 4294901760
    %v4103 = vsub.f32 %v4101, %v4102
    %v4104 = vand.u32 %v4103, 4294901760
    %4105 = vmatpush1.msra.mxu0 %v4104
    %4106 = vmatprep.subr.mxu0 0.0
    %v4107 = vand.u32 %v883, 4294901760
    %v4108 = vsub.f32 %v883, %v4107
    %v4109 = vand.u32 %v4108, 4294901760
    %v4110 = vsub.f32 %v4108, %v4109
    %v4111 = vand.u32 %v4110, 4294901760
    %4112 = vmatpush1.msra.mxu0 %v4111
    %4113 = vmatprep.subr.mxu0 0.0
    %v4114 = vand.u32 %v882, 4294901760
    %v4115 = vsub.f32 %v882, %v4114
    %v4116 = vand.u32 %v4115, 4294901760
    %v4117 = vsub.f32 %v4115, %v4116
    %v4118 = vand.u32 %v4117, 4294901760
    %4119 = vmatpush1.msra.mxu0 %v4118
    %4120 = vmatprep.subr.mxu0 0.0
    %v4121 = vand.u32 %v881, 4294901760
    %v4122 = vsub.f32 %v881, %v4121
    %v4123 = vand.u32 %v4122, 4294901760
    %v4124 = vsub.f32 %v4122, %v4123
    %v4125 = vand.u32 %v4124, 4294901760
    %4126 = vmatpush1.msra.mxu0 %v4125
    %4127 = vmatprep.subr.mxu0 0.0
    %4128 = vmatpush2.msra.mxu0 0.0
    %4129 = vmatprep.subr.mxu0 0.0
    %4130 = vmatpush2.msra.mxu0 0.0
    %4131 = vmatprep.subr.mxu0 0.0
    %4132 = vmatpush2.msra.mxu0 0.0
    %4133 = vmatprep.subr.mxu0 0.0
    %4134 = vmatpush2.msra.mxu0 0.0
    %4135 = vmatprep.subr.mxu0 0.0
    %4136 = vmatpush2.msra.mxu0 0.0
    %4137 = vmatprep.subr.mxu0 0.0
    %4138 = vmatpush2.msra.mxu0 0.0
    %4139 = vmatprep.subr.mxu0 0.0
    %4140 = vmatpush2.msra.mxu0 0.0
    %4141 = vmatprep.subr.mxu0 0.0
    %4142 = vmatpush2.msra.mxu0 0.0
    %4143 = vmatprep.subr.mxu0 0.0
    %4144 = vmatpush2.msra.mxu0 0.0
    %4145 = vmatprep.subr.mxu0 0.0
    %4146 = vmatpush2.msra.mxu0 0.0
    %4147 = vmatprep.subr.mxu0 0.0
    %4148 = vmatpush2.msra.mxu0 0.0
    %4149 = vmatprep.subr.mxu0 0.0
    %4150 = vmatpush2.msra.mxu0 0.0
    %4151 = vmatprep.subr.mxu0 0.0
    %4152 = vmatpush2.msra.mxu0 0.0
    %4153 = vmatprep.subr.mxu0 0.0
    %4154 = vmatpush2.msra.mxu0 0.0
    %4155 = vmatprep.subr.mxu0 0.0
    %4156 = vmatpush2.msra.mxu0 0.0
    %4157 = vmatprep.subr.mxu0 0.0
    %4158 = vmatpush2.msra.mxu0 0.0
    %4159 = vmatprep.mubr.f32.mxu0 0.0
    %v4160 = vand.u32 %v3994, 4294901760
    %4161 = vmatmul.mubr.f32.gmra.mxu0 %v4160
    %v4162 = vpop.f32.mrf.mxu0
    %v4163 = vadd.f32 %v4072, %v4162
    %v4164 = vpop.f32.mrf.mxu0
    %4165 = vdwg.mxu0
    %4166 = vmatprep.subr.mxu0 0.0
    %4167 = vmatpush1.msra.mxu0 0.0
    %4168 = vmatprep.subr.mxu0 0.0
    %4169 = vmatpush1.msra.mxu0 0.0
    %4170 = vmatprep.subr.mxu0 0.0
    %4171 = vmatpush1.msra.mxu0 0.0
    %4172 = vmatprep.subr.mxu0 0.0
    %4173 = vmatpush1.msra.mxu0 0.0
    %4174 = vmatprep.subr.mxu0 0.0
    %4175 = vmatpush1.msra.mxu0 0.0
    %4176 = vmatprep.subr.mxu0 0.0
    %4177 = vmatpush1.msra.mxu0 0.0
    %4178 = vmatprep.subr.mxu0 0.0
    %4179 = vmatpush1.msra.mxu0 0.0
    %4180 = vmatprep.subr.mxu0 0.0
    %4181 = vmatpush1.msra.mxu0 0.0
    %4182 = vmatprep.subr.mxu0 0.0
    %4183 = vmatpush1.msra.mxu0 0.0
    %4184 = vmatprep.subr.mxu0 0.0
    %4185 = vmatpush1.msra.mxu0 0.0
    %4186 = vmatprep.subr.mxu0 0.0
    %4187 = vmatpush1.msra.mxu0 0.0
    %4188 = vmatprep.subr.mxu0 0.0
    %4189 = vmatpush1.msra.mxu0 0.0
    %4190 = vmatprep.subr.mxu0 0.0
    %v4191 = vand.u32 %v884, 4294901760
    %v4192 = vsub.f32 %v884, %v4191
    %4193 = vmatpush1.msra.mxu0 %v4192
    %4194 = vmatprep.subr.mxu0 0.0
    %v4195 = vand.u32 %v883, 4294901760
    %v4196 = vsub.f32 %v883, %v4195
    %4197 = vmatpush1.msra.mxu0 %v4196
    %4198 = vmatprep.subr.mxu0 0.0
    %v4199 = vand.u32 %v882, 4294901760
    %v4200 = vsub.f32 %v882, %v4199
    %4201 = vmatpush1.msra.mxu0 %v4200
    %4202 = vmatprep.subr.mxu0 0.0
    %v4203 = vand.u32 %v881, 4294901760
    %v4204 = vsub.f32 %v881, %v4203
    %4205 = vmatpush1.msra.mxu0 %v4204
    %4206 = vmatprep.subr.mxu0 0.0
    %4207 = vmatpush2.msra.mxu0 0.0
    %4208 = vmatprep.subr.mxu0 0.0
    %4209 = vmatpush2.msra.mxu0 0.0
    %4210 = vmatprep.subr.mxu0 0.0
    %4211 = vmatpush2.msra.mxu0 0.0
    %4212 = vmatprep.subr.mxu0 0.0
    %4213 = vmatpush2.msra.mxu0 0.0
    %4214 = vmatprep.subr.mxu0 0.0
    %4215 = vmatpush2.msra.mxu0 0.0
    %4216 = vmatprep.subr.mxu0 0.0
    %4217 = vmatpush2.msra.mxu0 0.0
    %4218 = vmatprep.subr.mxu0 0.0
    %4219 = vmatpush2.msra.mxu0 0.0
    %4220 = vmatprep.subr.mxu0 0.0
    %4221 = vmatpush2.msra.mxu0 0.0
    %4222 = vmatprep.subr.mxu0 0.0
    %4223 = vmatpush2.msra.mxu0 0.0
    %4224 = vmatprep.subr.mxu0 0.0
    %4225 = vmatpush2.msra.mxu0 0.0
    %4226 = vmatprep.subr.mxu0 0.0
    %4227 = vmatpush2.msra.mxu0 0.0
    %4228 = vmatprep.subr.mxu0 0.0
    %4229 = vmatpush2.msra.mxu0 0.0
    %4230 = vmatprep.subr.mxu0 0.0
    %4231 = vmatpush2.msra.mxu0 0.0
    %4232 = vmatprep.subr.mxu0 0.0
    %4233 = vmatpush2.msra.mxu0 0.0
    %4234 = vmatprep.subr.mxu0 0.0
    %4235 = vmatpush2.msra.mxu0 0.0
    %4236 = vmatprep.subr.mxu0 0.0
    %4237 = vmatpush2.msra.mxu0 0.0
    %4238 = vmatprep.mubr.f32.mxu0 0.0
    %v4239 = vand.u32 %v3994, 4294901760
    %v4240 = vsub.f32 %v3994, %v4239
    %4241 = vmatmul.mubr.f32.gmra.mxu0 %v4240
    %v4242 = vpop.f32.mrf.mxu0
    %v4243 = vadd.f32 %v4163, %v4242
    %v4244 = vpop.f32.mrf.mxu0
    %4245 = vdwg.mxu0
    %4246 = vmatprep.subr.mxu0 0.0
    %4247 = vmatpush1.msra.mxu0 0.0
    %4248 = vmatprep.subr.mxu0 0.0
    %4249 = vmatpush1.msra.mxu0 0.0
    %4250 = vmatprep.subr.mxu0 0.0
    %4251 = vmatpush1.msra.mxu0 0.0
    %4252 = vmatprep.subr.mxu0 0.0
    %4253 = vmatpush1.msra.mxu0 0.0
    %4254 = vmatprep.subr.mxu0 0.0
    %4255 = vmatpush1.msra.mxu0 0.0
    %4256 = vmatprep.subr.mxu0 0.0
    %4257 = vmatpush1.msra.mxu0 0.0
    %4258 = vmatprep.subr.mxu0 0.0
    %4259 = vmatpush1.msra.mxu0 0.0
    %4260 = vmatprep.subr.mxu0 0.0
    %4261 = vmatpush1.msra.mxu0 0.0
    %4262 = vmatprep.subr.mxu0 0.0
    %4263 = vmatpush1.msra.mxu0 0.0
    %4264 = vmatprep.subr.mxu0 0.0
    %4265 = vmatpush1.msra.mxu0 0.0
    %4266 = vmatprep.subr.mxu0 0.0
    %4267 = vmatpush1.msra.mxu0 0.0
    %4268 = vmatprep.subr.mxu0 0.0
    %4269 = vmatpush1.msra.mxu0 0.0
    %4270 = vmatprep.subr.mxu0 0.0
    %v4271 = vand.u32 %v884, 4294901760
    %4272 = vmatpush1.msra.mxu0 %v4271
    %4273 = vmatprep.subr.mxu0 0.0
    %v4274 = vand.u32 %v883, 4294901760
    %4275 = vmatpush1.msra.mxu0 %v4274
    %4276 = vmatprep.subr.mxu0 0.0
    %v4277 = vand.u32 %v882, 4294901760
    %4278 = vmatpush1.msra.mxu0 %v4277
    %4279 = vmatprep.subr.mxu0 0.0
    %v4280 = vand.u32 %v881, 4294901760
    %4281 = vmatpush1.msra.mxu0 %v4280
    %4282 = vmatprep.subr.mxu0 0.0
    %4283 = vmatpush2.msra.mxu0 0.0
    %4284 = vmatprep.subr.mxu0 0.0
    %4285 = vmatpush2.msra.mxu0 0.0
    %4286 = vmatprep.subr.mxu0 0.0
    %4287 = vmatpush2.msra.mxu0 0.0
    %4288 = vmatprep.subr.mxu0 0.0
    %4289 = vmatpush2.msra.mxu0 0.0
    %4290 = vmatprep.subr.mxu0 0.0
    %4291 = vmatpush2.msra.mxu0 0.0
    %4292 = vmatprep.subr.mxu0 0.0
    %4293 = vmatpush2.msra.mxu0 0.0
    %4294 = vmatprep.subr.mxu0 0.0
    %4295 = vmatpush2.msra.mxu0 0.0
    %4296 = vmatprep.subr.mxu0 0.0
    %4297 = vmatpush2.msra.mxu0 0.0
    %4298 = vmatprep.subr.mxu0 0.0
    %4299 = vmatpush2.msra.mxu0 0.0
    %4300 = vmatprep.subr.mxu0 0.0
    %4301 = vmatpush2.msra.mxu0 0.0
    %4302 = vmatprep.subr.mxu0 0.0
    %4303 = vmatpush2.msra.mxu0 0.0
    %4304 = vmatprep.subr.mxu0 0.0
    %4305 = vmatpush2.msra.mxu0 0.0
    %4306 = vmatprep.subr.mxu0 0.0
    %4307 = vmatpush2.msra.mxu0 0.0
    %4308 = vmatprep.subr.mxu0 0.0
    %4309 = vmatpush2.msra.mxu0 0.0
    %4310 = vmatprep.subr.mxu0 0.0
    %4311 = vmatpush2.msra.mxu0 0.0
    %4312 = vmatprep.subr.mxu0 0.0
    %4313 = vmatpush2.msra.mxu0 0.0
    %4314 = vmatprep.mubr.f32.mxu0 0.0
    %v4315 = vand.u32 %v3994, 4294901760
    %v4316 = vsub.f32 %v3994, %v4315
    %v4317 = vand.u32 %v4316, 4294901760
    %4318 = vmatmul.mubr.f32.gmra.mxu0 %v4317
    %v4319 = vpop.f32.mrf.mxu0
    %v4320 = vadd.f32 %v4243, %v4319
    %v4321 = vpop.f32.mrf.mxu0
    %4322 = vdwg.mxu0
    %4323 = vmatprep.subr.mxu0 0.0
    %4324 = vmatpush1.msra.mxu0 0.0
    %4325 = vmatprep.subr.mxu0 0.0
    %4326 = vmatpush1.msra.mxu0 0.0
    %4327 = vmatprep.subr.mxu0 0.0
    %4328 = vmatpush1.msra.mxu0 0.0
    %4329 = vmatprep.subr.mxu0 0.0
    %4330 = vmatpush1.msra.mxu0 0.0
    %4331 = vmatprep.subr.mxu0 0.0
    %4332 = vmatpush1.msra.mxu0 0.0
    %4333 = vmatprep.subr.mxu0 0.0
    %4334 = vmatpush1.msra.mxu0 0.0
    %4335 = vmatprep.subr.mxu0 0.0
    %4336 = vmatpush1.msra.mxu0 0.0
    %4337 = vmatprep.subr.mxu0 0.0
    %4338 = vmatpush1.msra.mxu0 0.0
    %4339 = vmatprep.subr.mxu0 0.0
    %4340 = vmatpush1.msra.mxu0 0.0
    %4341 = vmatprep.subr.mxu0 0.0
    %4342 = vmatpush1.msra.mxu0 0.0
    %4343 = vmatprep.subr.mxu0 0.0
    %4344 = vmatpush1.msra.mxu0 0.0
    %4345 = vmatprep.subr.mxu0 0.0
    %4346 = vmatpush1.msra.mxu0 0.0
    %4347 = vmatprep.subr.mxu0 0.0
    %v4348 = vand.u32 %v884, 4294901760
    %v4349 = vsub.f32 %v884, %v4348
    %v4350 = vand.u32 %v4349, 4294901760
    %4351 = vmatpush1.msra.mxu0 %v4350
    %4352 = vmatprep.subr.mxu0 0.0
    %v4353 = vand.u32 %v883, 4294901760
    %v4354 = vsub.f32 %v883, %v4353
    %v4355 = vand.u32 %v4354, 4294901760
    %4356 = vmatpush1.msra.mxu0 %v4355
    %4357 = vmatprep.subr.mxu0 0.0
    %v4358 = vand.u32 %v882, 4294901760
    %v4359 = vsub.f32 %v882, %v4358
    %v4360 = vand.u32 %v4359, 4294901760
    %4361 = vmatpush1.msra.mxu0 %v4360
    %4362 = vmatprep.subr.mxu0 0.0
    %v4363 = vand.u32 %v881, 4294901760
    %v4364 = vsub.f32 %v881, %v4363
    %v4365 = vand.u32 %v4364, 4294901760
    %4366 = vmatpush1.msra.mxu0 %v4365
    %4367 = vmatprep.subr.mxu0 0.0
    %4368 = vmatpush2.msra.mxu0 0.0
    %4369 = vmatprep.subr.mxu0 0.0
    %4370 = vmatpush2.msra.mxu0 0.0
    %4371 = vmatprep.subr.mxu0 0.0
    %4372 = vmatpush2.msra.mxu0 0.0
    %4373 = vmatprep.subr.mxu0 0.0
    %4374 = vmatpush2.msra.mxu0 0.0
    %4375 = vmatprep.subr.mxu0 0.0
    %4376 = vmatpush2.msra.mxu0 0.0
    %4377 = vmatprep.subr.mxu0 0.0
    %4378 = vmatpush2.msra.mxu0 0.0
    %4379 = vmatprep.subr.mxu0 0.0
    %4380 = vmatpush2.msra.mxu0 0.0
    %4381 = vmatprep.subr.mxu0 0.0
    %4382 = vmatpush2.msra.mxu0 0.0
    %4383 = vmatprep.subr.mxu0 0.0
    %4384 = vmatpush2.msra.mxu0 0.0
    %4385 = vmatprep.subr.mxu0 0.0
    %4386 = vmatpush2.msra.mxu0 0.0
    %4387 = vmatprep.subr.mxu0 0.0
    %4388 = vmatpush2.msra.mxu0 0.0
    %4389 = vmatprep.subr.mxu0 0.0
    %4390 = vmatpush2.msra.mxu0 0.0
    %4391 = vmatprep.subr.mxu0 0.0
    %4392 = vmatpush2.msra.mxu0 0.0
    %4393 = vmatprep.subr.mxu0 0.0
    %4394 = vmatpush2.msra.mxu0 0.0
    %4395 = vmatprep.subr.mxu0 0.0
    %4396 = vmatpush2.msra.mxu0 0.0
    %4397 = vmatprep.subr.mxu0 0.0
    %4398 = vmatpush2.msra.mxu0 0.0
    %4399 = vmatprep.mubr.f32.mxu0 0.0
    %v4400 = vand.u32 %v3994, 4294901760
    %4401 = vmatmul.mubr.f32.gmra.mxu0 %v4400
    %v4402 = vpop.f32.mrf.mxu0
    %v4403 = vadd.f32 %v4320, %v4402
    %v4404 = vpop.f32.mrf.mxu0
    %4405 = vdwg.mxu0
    %4406 = vmatprep.subr.mxu0 0.0
    %4407 = vmatpush1.msra.mxu0 0.0
    %4408 = vmatprep.subr.mxu0 0.0
    %4409 = vmatpush1.msra.mxu0 0.0
    %4410 = vmatprep.subr.mxu0 0.0
    %4411 = vmatpush1.msra.mxu0 0.0
    %4412 = vmatprep.subr.mxu0 0.0
    %4413 = vmatpush1.msra.mxu0 0.0
    %4414 = vmatprep.subr.mxu0 0.0
    %4415 = vmatpush1.msra.mxu0 0.0
    %4416 = vmatprep.subr.mxu0 0.0
    %4417 = vmatpush1.msra.mxu0 0.0
    %4418 = vmatprep.subr.mxu0 0.0
    %4419 = vmatpush1.msra.mxu0 0.0
    %4420 = vmatprep.subr.mxu0 0.0
    %4421 = vmatpush1.msra.mxu0 0.0
    %4422 = vmatprep.subr.mxu0 0.0
    %4423 = vmatpush1.msra.mxu0 0.0
    %4424 = vmatprep.subr.mxu0 0.0
    %4425 = vmatpush1.msra.mxu0 0.0
    %4426 = vmatprep.subr.mxu0 0.0
    %4427 = vmatpush1.msra.mxu0 0.0
    %4428 = vmatprep.subr.mxu0 0.0
    %4429 = vmatpush1.msra.mxu0 0.0
    %4430 = vmatprep.subr.mxu0 0.0
    %v4431 = vand.u32 %v884, 4294901760
    %4432 = vmatpush1.msra.mxu0 %v4431
    %4433 = vmatprep.subr.mxu0 0.0
    %v4434 = vand.u32 %v883, 4294901760
    %4435 = vmatpush1.msra.mxu0 %v4434
    %4436 = vmatprep.subr.mxu0 0.0
    %v4437 = vand.u32 %v882, 4294901760
    %4438 = vmatpush1.msra.mxu0 %v4437
    %4439 = vmatprep.subr.mxu0 0.0
    %v4440 = vand.u32 %v881, 4294901760
    %4441 = vmatpush1.msra.mxu0 %v4440
    %4442 = vmatprep.subr.mxu0 0.0
    %4443 = vmatpush2.msra.mxu0 0.0
    %4444 = vmatprep.subr.mxu0 0.0
    %4445 = vmatpush2.msra.mxu0 0.0
    %4446 = vmatprep.subr.mxu0 0.0
    %4447 = vmatpush2.msra.mxu0 0.0
    %4448 = vmatprep.subr.mxu0 0.0
    %4449 = vmatpush2.msra.mxu0 0.0
    %4450 = vmatprep.subr.mxu0 0.0
    %4451 = vmatpush2.msra.mxu0 0.0
    %4452 = vmatprep.subr.mxu0 0.0
    %4453 = vmatpush2.msra.mxu0 0.0
    %4454 = vmatprep.subr.mxu0 0.0
    %4455 = vmatpush2.msra.mxu0 0.0
    %4456 = vmatprep.subr.mxu0 0.0
    %4457 = vmatpush2.msra.mxu0 0.0
    %4458 = vmatprep.subr.mxu0 0.0
    %4459 = vmatpush2.msra.mxu0 0.0
    %4460 = vmatprep.subr.mxu0 0.0
    %4461 = vmatpush2.msra.mxu0 0.0
    %4462 = vmatprep.subr.mxu0 0.0
    %4463 = vmatpush2.msra.mxu0 0.0
    %4464 = vmatprep.subr.mxu0 0.0
    %4465 = vmatpush2.msra.mxu0 0.0
    %4466 = vmatprep.subr.mxu0 0.0
    %4467 = vmatpush2.msra.mxu0 0.0
    %4468 = vmatprep.subr.mxu0 0.0
    %4469 = vmatpush2.msra.mxu0 0.0
    %4470 = vmatprep.subr.mxu0 0.0
    %4471 = vmatpush2.msra.mxu0 0.0
    %4472 = vmatprep.subr.mxu0 0.0
    %4473 = vmatpush2.msra.mxu0 0.0
    %4474 = vmatprep.mubr.f32.mxu0 0.0
    %v4475 = vand.u32 %v3994, 4294901760
    %4476 = vmatmul.mubr.f32.gmra.mxu0 %v4475
    %v4477 = vpop.f32.mrf.mxu0
    %v4478 = vadd.f32 %v4403, %v4477
    %v4479 = vpop.f32.mrf.mxu0
    %4480 = vdwg.mxu0
    %v4481 = vadd.f32 %v3990, %v4478
    %v4482 = vmul.f32 %v4481, 0.5
    %v4483 = vsel %vm889, %v4481, %v4482
    %v4484 = vtanh.pop %v4483
    %v4485 = vmul.f32 %v4484, 0.5
    %v4486 = vadd.f32 %v4485, 0.5
    %v4487 = vsel %vm889, %v4484, %v4486
    %v4488 = vmul.f32 %v4487, %v3982
    %4490 = vrot.lane.b32.xlu0 %v4487, 64
    %v4491 = vpop.permute.xlu0 %4490
    %v4493 = vmul.f32 %v4487, %v4491
    %4495 = vrot.lane.b32.xlu0 %v4493, 32
    %v4496 = vpop.permute.xlu0 %4495
    %v4498 = vadd.f32 %v4488, %v4496
    %v4499 = vtanh.pop %v4498
    %4501 = vrot.lane.b32.xlu0 %v4499, 64
    %v4502 = vpop.permute.xlu0 %4501
    %v4504 = vmul.f32 %v4487, %v4502
    %s4505 = scalar_lea.vmem [#allocation4], 56
    %v4506 = vld [vmem:[%s4505] sm:$0xff]
    %4508 = vrot.lane.b32.xlu0 %v4504, 32
    %v4509 = vpop.permute.xlu0 %4508
    %v4510 = vsel %vm62, %v4509, 0
    %4512 = vmatprep.subr.mxu0 0.0
    %4513 = vmatpush1.msra.mxu0 0.0
    %4514 = vmatprep.subr.mxu0 0.0
    %4515 = vmatpush1.msra.mxu0 0.0
    %4516 = vmatprep.subr.mxu0 0.0
    %4517 = vmatpush1.msra.mxu0 0.0
    %4518 = vmatprep.subr.mxu0 0.0
    %4519 = vmatpush1.msra.mxu0 0.0
    %4520 = vmatprep.subr.mxu0 0.0
    %4521 = vmatpush1.msra.mxu0 0.0
    %4522 = vmatprep.subr.mxu0 0.0
    %4523 = vmatpush1.msra.mxu0 0.0
    %4524 = vmatprep.subr.mxu0 0.0
    %4525 = vmatpush1.msra.mxu0 0.0
    %4526 = vmatprep.subr.mxu0 0.0
    %4527 = vmatpush1.msra.mxu0 0.0
    %4528 = vmatprep.subr.mxu0 0.0
    %4529 = vmatpush1.msra.mxu0 0.0
    %4530 = vmatprep.subr.mxu0 0.0
    %4531 = vmatpush1.msra.mxu0 0.0
    %4532 = vmatprep.subr.mxu0 0.0
    %4533 = vmatpush1.msra.mxu0 0.0
    %4534 = vmatprep.subr.mxu0 0.0
    %4535 = vmatpush1.msra.mxu0 0.0
    %4536 = vmatprep.subr.mxu0 0.0
    %v4537 = vand.u32 %v884, 4294901760
    %4538 = vmatpush1.msra.mxu0 %v4537
    %4539 = vmatprep.subr.mxu0 0.0
    %v4540 = vand.u32 %v883, 4294901760
    %4541 = vmatpush1.msra.mxu0 %v4540
    %4542 = vmatprep.subr.mxu0 0.0
    %v4543 = vand.u32 %v882, 4294901760
    %4544 = vmatpush1.msra.mxu0 %v4543
    %4545 = vmatprep.subr.mxu0 0.0
    %v4546 = vand.u32 %v881, 4294901760
    %4547 = vmatpush1.msra.mxu0 %v4546
    %4548 = vmatprep.subr.mxu0 0.0
    %4549 = vmatpush2.msra.mxu0 0.0
    %4550 = vmatprep.subr.mxu0 0.0
    %4551 = vmatpush2.msra.mxu0 0.0
    %4552 = vmatprep.subr.mxu0 0.0
    %4553 = vmatpush2.msra.mxu0 0.0
    %4554 = vmatprep.subr.mxu0 0.0
    %4555 = vmatpush2.msra.mxu0 0.0
    %4556 = vmatprep.subr.mxu0 0.0
    %4557 = vmatpush2.msra.mxu0 0.0
    %4558 = vmatprep.subr.mxu0 0.0
    %4559 = vmatpush2.msra.mxu0 0.0
    %4560 = vmatprep.subr.mxu0 0.0
    %4561 = vmatpush2.msra.mxu0 0.0
    %4562 = vmatprep.subr.mxu0 0.0
    %4563 = vmatpush2.msra.mxu0 0.0
    %4564 = vmatprep.subr.mxu0 0.0
    %4565 = vmatpush2.msra.mxu0 0.0
    %4566 = vmatprep.subr.mxu0 0.0
    %4567 = vmatpush2.msra.mxu0 0.0
    %4568 = vmatprep.subr.mxu0 0.0
    %4569 = vmatpush2.msra.mxu0 0.0
    %4570 = vmatprep.subr.mxu0 0.0
    %4571 = vmatpush2.msra.mxu0 0.0
    %4572 = vmatprep.subr.mxu0 0.0
    %4573 = vmatpush2.msra.mxu0 0.0
    %4574 = vmatprep.subr.mxu0 0.0
    %4575 = vmatpush2.msra.mxu0 0.0
    %4576 = vmatprep.subr.mxu0 0.0
    %4577 = vmatpush2.msra.mxu0 0.0
    %4578 = vmatprep.subr.mxu0 0.0
    %4579 = vmatpush2.msra.mxu0 0.0
    %4580 = vmatprep.mubr.f32.mxu0 0.0
    %v4581 = vand.u32 %v4510, 4294901760
    %v4582 = vsub.f32 %v4510, %v4581
    %v4583 = vand.u32 %v4582, 4294901760
    %v4584 = vsub.f32 %v4582, %v4583
    %v4585 = vand.u32 %v4584, 4294901760
    %4586 = vmatmul.mubr.f32.gmra.mxu0 %v4585
    %v4587 = vpop.f32.mrf.mxu0
    %v4588 = vadd.f32 0.0, %v4587
    %v4589 = vpop.f32.mrf.mxu0
    %4590 = vdwg.mxu0
    %4591 = vmatprep.subr.mxu0 0.0
    %4592 = vmatpush1.msra.mxu0 0.0
    %4593 = vmatprep.subr.mxu0 0.0
    %4594 = vmatpush1.msra.mxu0 0.0
    %4595 = vmatprep.subr.mxu0 0.0
    %4596 = vmatpush1.msra.mxu0 0.0
    %4597 = vmatprep.subr.mxu0 0.0
    %4598 = vmatpush1.msra.mxu0 0.0
    %4599 = vmatprep.subr.mxu0 0.0
    %4600 = vmatpush1.msra.mxu0 0.0
    %4601 = vmatprep.subr.mxu0 0.0
    %4602 = vmatpush1.msra.mxu0 0.0
    %4603 = vmatprep.subr.mxu0 0.0
    %4604 = vmatpush1.msra.mxu0 0.0
    %4605 = vmatprep.subr.mxu0 0.0
    %4606 = vmatpush1.msra.mxu0 0.0
    %4607 = vmatprep.subr.mxu0 0.0
    %4608 = vmatpush1.msra.mxu0 0.0
    %4609 = vmatprep.subr.mxu0 0.0
    %4610 = vmatpush1.msra.mxu0 0.0
    %4611 = vmatprep.subr.mxu0 0.0
    %4612 = vmatpush1.msra.mxu0 0.0
    %4613 = vmatprep.subr.mxu0 0.0
    %4614 = vmatpush1.msra.mxu0 0.0
    %4615 = vmatprep.subr.mxu0 0.0
    %v4616 = vand.u32 %v884, 4294901760
    %v4617 = vsub.f32 %v884, %v4616
    %v4618 = vand.u32 %v4617, 4294901760
    %v4619 = vsub.f32 %v4617, %v4618
    %v4620 = vand.u32 %v4619, 4294901760
    %4621 = vmatpush1.msra.mxu0 %v4620
    %4622 = vmatprep.subr.mxu0 0.0
    %v4623 = vand.u32 %v883, 4294901760
    %v4624 = vsub.f32 %v883, %v4623
    %v4625 = vand.u32 %v4624, 4294901760
    %v4626 = vsub.f32 %v4624, %v4625
    %v4627 = vand.u32 %v4626, 4294901760
    %4628 = vmatpush1.msra.mxu0 %v4627
    %4629 = vmatprep.subr.mxu0 0.0
    %v4630 = vand.u32 %v882, 4294901760
    %v4631 = vsub.f32 %v882, %v4630
    %v4632 = vand.u32 %v4631, 4294901760
    %v4633 = vsub.f32 %v4631, %v4632
    %v4634 = vand.u32 %v4633, 4294901760
    %4635 = vmatpush1.msra.mxu0 %v4634
    %4636 = vmatprep.subr.mxu0 0.0
    %v4637 = vand.u32 %v881, 4294901760
    %v4638 = vsub.f32 %v881, %v4637
    %v4639 = vand.u32 %v4638, 4294901760
    %v4640 = vsub.f32 %v4638, %v4639
    %v4641 = vand.u32 %v4640, 4294901760
    %4642 = vmatpush1.msra.mxu0 %v4641
    %4643 = vmatprep.subr.mxu0 0.0
    %4644 = vmatpush2.msra.mxu0 0.0
    %4645 = vmatprep.subr.mxu0 0.0
    %4646 = vmatpush2.msra.mxu0 0.0
    %4647 = vmatprep.subr.mxu0 0.0
    %4648 = vmatpush2.msra.mxu0 0.0
    %4649 = vmatprep.subr.mxu0 0.0
    %4650 = vmatpush2.msra.mxu0 0.0
    %4651 = vmatprep.subr.mxu0 0.0
    %4652 = vmatpush2.msra.mxu0 0.0
    %4653 = vmatprep.subr.mxu0 0.0
    %4654 = vmatpush2.msra.mxu0 0.0
    %4655 = vmatprep.subr.mxu0 0.0
    %4656 = vmatpush2.msra.mxu0 0.0
    %4657 = vmatprep.subr.mxu0 0.0
    %4658 = vmatpush2.msra.mxu0 0.0
    %4659 = vmatprep.subr.mxu0 0.0
    %4660 = vmatpush2.msra.mxu0 0.0
    %4661 = vmatprep.subr.mxu0 0.0
    %4662 = vmatpush2.msra.mxu0 0.0
    %4663 = vmatprep.subr.mxu0 0.0
    %4664 = vmatpush2.msra.mxu0 0.0
    %4665 = vmatprep.subr.mxu0 0.0
    %4666 = vmatpush2.msra.mxu0 0.0
    %4667 = vmatprep.subr.mxu0 0.0
    %4668 = vmatpush2.msra.mxu0 0.0
    %4669 = vmatprep.subr.mxu0 0.0
    %4670 = vmatpush2.msra.mxu0 0.0
    %4671 = vmatprep.subr.mxu0 0.0
    %4672 = vmatpush2.msra.mxu0 0.0
    %4673 = vmatprep.subr.mxu0 0.0
    %4674 = vmatpush2.msra.mxu0 0.0
    %4675 = vmatprep.mubr.f32.mxu0 0.0
    %v4676 = vand.u32 %v4510, 4294901760
    %4677 = vmatmul.mubr.f32.gmra.mxu0 %v4676
    %v4678 = vpop.f32.mrf.mxu0
    %v4679 = vadd.f32 %v4588, %v4678
    %v4680 = vpop.f32.mrf.mxu0
    %4681 = vdwg.mxu0
    %4682 = vmatprep.subr.mxu0 0.0
    %4683 = vmatpush1.msra.mxu0 0.0
    %4684 = vmatprep.subr.mxu0 0.0
    %4685 = vmatpush1.msra.mxu0 0.0
    %4686 = vmatprep.subr.mxu0 0.0
    %4687 = vmatpush1.msra.mxu0 0.0
    %4688 = vmatprep.subr.mxu0 0.0
    %4689 = vmatpush1.msra.mxu0 0.0
    %4690 = vmatprep.subr.mxu0 0.0
    %4691 = vmatpush1.msra.mxu0 0.0
    %4692 = vmatprep.subr.mxu0 0.0
    %4693 = vmatpush1.msra.mxu0 0.0
    %4694 = vmatprep.subr.mxu0 0.0
    %4695 = vmatpush1.msra.mxu0 0.0
    %4696 = vmatprep.subr.mxu0 0.0
    %4697 = vmatpush1.msra.mxu0 0.0
    %4698 = vmatprep.subr.mxu0 0.0
    %4699 = vmatpush1.msra.mxu0 0.0
    %4700 = vmatprep.subr.mxu0 0.0
    %4701 = vmatpush1.msra.mxu0 0.0
    %4702 = vmatprep.subr.mxu0 0.0
    %4703 = vmatpush1.msra.mxu0 0.0
    %4704 = vmatprep.subr.mxu0 0.0
    %4705 = vmatpush1.msra.mxu0 0.0
    %4706 = vmatprep.subr.mxu0 0.0
    %v4707 = vand.u32 %v884, 4294901760
    %v4708 = vsub.f32 %v884, %v4707
    %4709 = vmatpush1.msra.mxu0 %v4708
    %4710 = vmatprep.subr.mxu0 0.0
    %v4711 = vand.u32 %v883, 4294901760
    %v4712 = vsub.f32 %v883, %v4711
    %4713 = vmatpush1.msra.mxu0 %v4712
    %4714 = vmatprep.subr.mxu0 0.0
    %v4715 = vand.u32 %v882, 4294901760
    %v4716 = vsub.f32 %v882, %v4715
    %4717 = vmatpush1.msra.mxu0 %v4716
    %4718 = vmatprep.subr.mxu0 0.0
    %v4719 = vand.u32 %v881, 4294901760
    %v4720 = vsub.f32 %v881, %v4719
    %4721 = vmatpush1.msra.mxu0 %v4720
    %4722 = vmatprep.subr.mxu0 0.0
    %4723 = vmatpush2.msra.mxu0 0.0
    %4724 = vmatprep.subr.mxu0 0.0
    %4725 = vmatpush2.msra.mxu0 0.0
    %4726 = vmatprep.subr.mxu0 0.0
    %4727 = vmatpush2.msra.mxu0 0.0
    %4728 = vmatprep.subr.mxu0 0.0
    %4729 = vmatpush2.msra.mxu0 0.0
    %4730 = vmatprep.subr.mxu0 0.0
    %4731 = vmatpush2.msra.mxu0 0.0
    %4732 = vmatprep.subr.mxu0 0.0
    %4733 = vmatpush2.msra.mxu0 0.0
    %4734 = vmatprep.subr.mxu0 0.0
    %4735 = vmatpush2.msra.mxu0 0.0
    %4736 = vmatprep.subr.mxu0 0.0
    %4737 = vmatpush2.msra.mxu0 0.0
    %4738 = vmatprep.subr.mxu0 0.0
    %4739 = vmatpush2.msra.mxu0 0.0
    %4740 = vmatprep.subr.mxu0 0.0
    %4741 = vmatpush2.msra.mxu0 0.0
    %4742 = vmatprep.subr.mxu0 0.0
    %4743 = vmatpush2.msra.mxu0 0.0
    %4744 = vmatprep.subr.mxu0 0.0
    %4745 = vmatpush2.msra.mxu0 0.0
    %4746 = vmatprep.subr.mxu0 0.0
    %4747 = vmatpush2.msra.mxu0 0.0
    %4748 = vmatprep.subr.mxu0 0.0
    %4749 = vmatpush2.msra.mxu0 0.0
    %4750 = vmatprep.subr.mxu0 0.0
    %4751 = vmatpush2.msra.mxu0 0.0
    %4752 = vmatprep.subr.mxu0 0.0
    %4753 = vmatpush2.msra.mxu0 0.0
    %4754 = vmatprep.mubr.f32.mxu0 0.0
    %v4755 = vand.u32 %v4510, 4294901760
    %v4756 = vsub.f32 %v4510, %v4755
    %4757 = vmatmul.mubr.f32.gmra.mxu0 %v4756
    %v4758 = vpop.f32.mrf.mxu0
    %v4759 = vadd.f32 %v4679, %v4758
    %v4760 = vpop.f32.mrf.mxu0
    %4761 = vdwg.mxu0
    %4762 = vmatprep.subr.mxu0 0.0
    %4763 = vmatpush1.msra.mxu0 0.0
    %4764 = vmatprep.subr.mxu0 0.0
    %4765 = vmatpush1.msra.mxu0 0.0
    %4766 = vmatprep.subr.mxu0 0.0
    %4767 = vmatpush1.msra.mxu0 0.0
    %4768 = vmatprep.subr.mxu0 0.0
    %4769 = vmatpush1.msra.mxu0 0.0
    %4770 = vmatprep.subr.mxu0 0.0
    %4771 = vmatpush1.msra.mxu0 0.0
    %4772 = vmatprep.subr.mxu0 0.0
    %4773 = vmatpush1.msra.mxu0 0.0
    %4774 = vmatprep.subr.mxu0 0.0
    %4775 = vmatpush1.msra.mxu0 0.0
    %4776 = vmatprep.subr.mxu0 0.0
    %4777 = vmatpush1.msra.mxu0 0.0
    %4778 = vmatprep.subr.mxu0 0.0
    %4779 = vmatpush1.msra.mxu0 0.0
    %4780 = vmatprep.subr.mxu0 0.0
    %4781 = vmatpush1.msra.mxu0 0.0
    %4782 = vmatprep.subr.mxu0 0.0
    %4783 = vmatpush1.msra.mxu0 0.0
    %4784 = vmatprep.subr.mxu0 0.0
    %4785 = vmatpush1.msra.mxu0 0.0
    %4786 = vmatprep.subr.mxu0 0.0
    %v4787 = vand.u32 %v884, 4294901760
    %4788 = vmatpush1.msra.mxu0 %v4787
    %4789 = vmatprep.subr.mxu0 0.0
    %v4790 = vand.u32 %v883, 4294901760
    %4791 = vmatpush1.msra.mxu0 %v4790
    %4792 = vmatprep.subr.mxu0 0.0
    %v4793 = vand.u32 %v882, 4294901760
    %4794 = vmatpush1.msra.mxu0 %v4793
    %4795 = vmatprep.subr.mxu0 0.0
    %v4796 = vand.u32 %v881, 4294901760
    %4797 = vmatpush1.msra.mxu0 %v4796
    %4798 = vmatprep.subr.mxu0 0.0
    %4799 = vmatpush2.msra.mxu0 0.0
    %4800 = vmatprep.subr.mxu0 0.0
    %4801 = vmatpush2.msra.mxu0 0.0
    %4802 = vmatprep.subr.mxu0 0.0
    %4803 = vmatpush2.msra.mxu0 0.0
    %4804 = vmatprep.subr.mxu0 0.0
    %4805 = vmatpush2.msra.mxu0 0.0
    %4806 = vmatprep.subr.mxu0 0.0
    %4807 = vmatpush2.msra.mxu0 0.0
    %4808 = vmatprep.subr.mxu0 0.0
    %4809 = vmatpush2.msra.mxu0 0.0
    %4810 = vmatprep.subr.mxu0 0.0
    %4811 = vmatpush2.msra.mxu0 0.0
    %4812 = vmatprep.subr.mxu0 0.0
    %4813 = vmatpush2.msra.mxu0 0.0
    %4814 = vmatprep.subr.mxu0 0.0
    %4815 = vmatpush2.msra.mxu0 0.0
    %4816 = vmatprep.subr.mxu0 0.0
    %4817 = vmatpush2.msra.mxu0 0.0
    %4818 = vmatprep.subr.mxu0 0.0
    %4819 = vmatpush2.msra.mxu0 0.0
    %4820 = vmatprep.subr.mxu0 0.0
    %4821 = vmatpush2.msra.mxu0 0.0
    %4822 = vmatprep.subr.mxu0 0.0
    %4823 = vmatpush2.msra.mxu0 0.0
    %4824 = vmatprep.subr.mxu0 0.0
    %4825 = vmatpush2.msra.mxu0 0.0
    %4826 = vmatprep.subr.mxu0 0.0
    %4827 = vmatpush2.msra.mxu0 0.0
    %4828 = vmatprep.subr.mxu0 0.0
    %4829 = vmatpush2.msra.mxu0 0.0
    %4830 = vmatprep.mubr.f32.mxu0 0.0
    %v4831 = vand.u32 %v4510, 4294901760
    %v4832 = vsub.f32 %v4510, %v4831
    %v4833 = vand.u32 %v4832, 4294901760
    %4834 = vmatmul.mubr.f32.gmra.mxu0 %v4833
    %v4835 = vpop.f32.mrf.mxu0
    %v4836 = vadd.f32 %v4759, %v4835
    %v4837 = vpop.f32.mrf.mxu0
    %4838 = vdwg.mxu0
    %4839 = vmatprep.subr.mxu0 0.0
    %4840 = vmatpush1.msra.mxu0 0.0
    %4841 = vmatprep.subr.mxu0 0.0
    %4842 = vmatpush1.msra.mxu0 0.0
    %4843 = vmatprep.subr.mxu0 0.0
    %4844 = vmatpush1.msra.mxu0 0.0
    %4845 = vmatprep.subr.mxu0 0.0
    %4846 = vmatpush1.msra.mxu0 0.0
    %4847 = vmatprep.subr.mxu0 0.0
    %4848 = vmatpush1.msra.mxu0 0.0
    %4849 = vmatprep.subr.mxu0 0.0
    %4850 = vmatpush1.msra.mxu0 0.0
    %4851 = vmatprep.subr.mxu0 0.0
    %4852 = vmatpush1.msra.mxu0 0.0
    %4853 = vmatprep.subr.mxu0 0.0
    %4854 = vmatpush1.msra.mxu0 0.0
    %4855 = vmatprep.subr.mxu0 0.0
    %4856 = vmatpush1.msra.mxu0 0.0
    %4857 = vmatprep.subr.mxu0 0.0
    %4858 = vmatpush1.msra.mxu0 0.0
    %4859 = vmatprep.subr.mxu0 0.0
    %4860 = vmatpush1.msra.mxu0 0.0
    %4861 = vmatprep.subr.mxu0 0.0
    %4862 = vmatpush1.msra.mxu0 0.0
    %4863 = vmatprep.subr.mxu0 0.0
    %v4864 = vand.u32 %v884, 4294901760
    %v4865 = vsub.f32 %v884, %v4864
    %v4866 = vand.u32 %v4865, 4294901760
    %4867 = vmatpush1.msra.mxu0 %v4866
    %4868 = vmatprep.subr.mxu0 0.0
    %v4869 = vand.u32 %v883, 4294901760
    %v4870 = vsub.f32 %v883, %v4869
    %v4871 = vand.u32 %v4870, 4294901760
    %4872 = vmatpush1.msra.mxu0 %v4871
    %4873 = vmatprep.subr.mxu0 0.0
    %v4874 = vand.u32 %v882, 4294901760
    %v4875 = vsub.f32 %v882, %v4874
    %v4876 = vand.u32 %v4875, 4294901760
    %4877 = vmatpush1.msra.mxu0 %v4876
    %4878 = vmatprep.subr.mxu0 0.0
    %v4879 = vand.u32 %v881, 4294901760
    %v4880 = vsub.f32 %v881, %v4879
    %v4881 = vand.u32 %v4880, 4294901760
    %4882 = vmatpush1.msra.mxu0 %v4881
    %4883 = vmatprep.subr.mxu0 0.0
    %4884 = vmatpush2.msra.mxu0 0.0
    %4885 = vmatprep.subr.mxu0 0.0
    %4886 = vmatpush2.msra.mxu0 0.0
    %4887 = vmatprep.subr.mxu0 0.0
    %4888 = vmatpush2.msra.mxu0 0.0
    %4889 = vmatprep.subr.mxu0 0.0
    %4890 = vmatpush2.msra.mxu0 0.0
    %4891 = vmatprep.subr.mxu0 0.0
    %4892 = vmatpush2.msra.mxu0 0.0
    %4893 = vmatprep.subr.mxu0 0.0
    %4894 = vmatpush2.msra.mxu0 0.0
    %4895 = vmatprep.subr.mxu0 0.0
    %4896 = vmatpush2.msra.mxu0 0.0
    %4897 = vmatprep.subr.mxu0 0.0
    %4898 = vmatpush2.msra.mxu0 0.0
    %4899 = vmatprep.subr.mxu0 0.0
    %4900 = vmatpush2.msra.mxu0 0.0
    %4901 = vmatprep.subr.mxu0 0.0
    %4902 = vmatpush2.msra.mxu0 0.0
    %4903 = vmatprep.subr.mxu0 0.0
    %4904 = vmatpush2.msra.mxu0 0.0
    %4905 = vmatprep.subr.mxu0 0.0
    %4906 = vmatpush2.msra.mxu0 0.0
    %4907 = vmatprep.subr.mxu0 0.0
    %4908 = vmatpush2.msra.mxu0 0.0
    %4909 = vmatprep.subr.mxu0 0.0
    %4910 = vmatpush2.msra.mxu0 0.0
    %4911 = vmatprep.subr.mxu0 0.0
    %4912 = vmatpush2.msra.mxu0 0.0
    %4913 = vmatprep.subr.mxu0 0.0
    %4914 = vmatpush2.msra.mxu0 0.0
    %4915 = vmatprep.mubr.f32.mxu0 0.0
    %v4916 = vand.u32 %v4510, 4294901760
    %4917 = vmatmul.mubr.f32.gmra.mxu0 %v4916
    %v4918 = vpop.f32.mrf.mxu0
    %v4919 = vadd.f32 %v4836, %v4918
    %v4920 = vpop.f32.mrf.mxu0
    %4921 = vdwg.mxu0
    %4922 = vmatprep.subr.mxu0 0.0
    %4923 = vmatpush1.msra.mxu0 0.0
    %4924 = vmatprep.subr.mxu0 0.0
    %4925 = vmatpush1.msra.mxu0 0.0
    %4926 = vmatprep.subr.mxu0 0.0
    %4927 = vmatpush1.msra.mxu0 0.0
    %4928 = vmatprep.subr.mxu0 0.0
    %4929 = vmatpush1.msra.mxu0 0.0
    %4930 = vmatprep.subr.mxu0 0.0
    %4931 = vmatpush1.msra.mxu0 0.0
    %4932 = vmatprep.subr.mxu0 0.0
    %4933 = vmatpush1.msra.mxu0 0.0
    %4934 = vmatprep.subr.mxu0 0.0
    %4935 = vmatpush1.msra.mxu0 0.0
    %4936 = vmatprep.subr.mxu0 0.0
    %4937 = vmatpush1.msra.mxu0 0.0
    %4938 = vmatprep.subr.mxu0 0.0
    %4939 = vmatpush1.msra.mxu0 0.0
    %4940 = vmatprep.subr.mxu0 0.0
    %4941 = vmatpush1.msra.mxu0 0.0
    %4942 = vmatprep.subr.mxu0 0.0
    %4943 = vmatpush1.msra.mxu0 0.0
    %4944 = vmatprep.subr.mxu0 0.0
    %4945 = vmatpush1.msra.mxu0 0.0
    %4946 = vmatprep.subr.mxu0 0.0
    %v4947 = vand.u32 %v884, 4294901760
    %4948 = vmatpush1.msra.mxu0 %v4947
    %4949 = vmatprep.subr.mxu0 0.0
    %v4950 = vand.u32 %v883, 4294901760
    %4951 = vmatpush1.msra.mxu0 %v4950
    %4952 = vmatprep.subr.mxu0 0.0
    %v4953 = vand.u32 %v882, 4294901760
    %4954 = vmatpush1.msra.mxu0 %v4953
    %4955 = vmatprep.subr.mxu0 0.0
    %v4956 = vand.u32 %v881, 4294901760
    %4957 = vmatpush1.msra.mxu0 %v4956
    %4958 = vmatprep.subr.mxu0 0.0
    %4959 = vmatpush2.msra.mxu0 0.0
    %4960 = vmatprep.subr.mxu0 0.0
    %4961 = vmatpush2.msra.mxu0 0.0
    %4962 = vmatprep.subr.mxu0 0.0
    %4963 = vmatpush2.msra.mxu0 0.0
    %4964 = vmatprep.subr.mxu0 0.0
    %4965 = vmatpush2.msra.mxu0 0.0
    %4966 = vmatprep.subr.mxu0 0.0
    %4967 = vmatpush2.msra.mxu0 0.0
    %4968 = vmatprep.subr.mxu0 0.0
    %4969 = vmatpush2.msra.mxu0 0.0
    %4970 = vmatprep.subr.mxu0 0.0
    %4971 = vmatpush2.msra.mxu0 0.0
    %4972 = vmatprep.subr.mxu0 0.0
    %4973 = vmatpush2.msra.mxu0 0.0
    %4974 = vmatprep.subr.mxu0 0.0
    %4975 = vmatpush2.msra.mxu0 0.0
    %4976 = vmatprep.subr.mxu0 0.0
    %4977 = vmatpush2.msra.mxu0 0.0
    %4978 = vmatprep.subr.mxu0 0.0
    %4979 = vmatpush2.msra.mxu0 0.0
    %4980 = vmatprep.subr.mxu0 0.0
    %4981 = vmatpush2.msra.mxu0 0.0
    %4982 = vmatprep.subr.mxu0 0.0
    %4983 = vmatpush2.msra.mxu0 0.0
    %4984 = vmatprep.subr.mxu0 0.0
    %4985 = vmatpush2.msra.mxu0 0.0
    %4986 = vmatprep.subr.mxu0 0.0
    %4987 = vmatpush2.msra.mxu0 0.0
    %4988 = vmatprep.subr.mxu0 0.0
    %4989 = vmatpush2.msra.mxu0 0.0
    %4990 = vmatprep.mubr.f32.mxu0 0.0
    %v4991 = vand.u32 %v4510, 4294901760
    %4992 = vmatmul.mubr.f32.gmra.mxu0 %v4991
    %v4993 = vpop.f32.mrf.mxu0
    %v4994 = vadd.f32 %v4919, %v4993
    %v4995 = vpop.f32.mrf.mxu0
    %4996 = vdwg.mxu0
    %v4997 = vadd.f32 %v4506, %v4994
    %v4998 = vmul.f32 %v4997, 0.5
    %v4999 = vsel %vm889, %v4997, %v4998
    %v5000 = vtanh.pop %v4999
    %v5001 = vmul.f32 %v5000, 0.5
    %v5002 = vadd.f32 %v5001, 0.5
    %v5003 = vsel %vm889, %v5000, %v5002
    %v5004 = vmul.f32 %v5003, %v4498
    %5006 = vrot.lane.b32.xlu0 %v5003, 64
    %v5007 = vpop.permute.xlu0 %5006
    %v5009 = vmul.f32 %v5003, %v5007
    %5011 = vrot.lane.b32.xlu0 %v5009, 32
    %v5012 = vpop.permute.xlu0 %5011
    %v5014 = vadd.f32 %v5004, %v5012
    %v5015 = vtanh.pop %v5014
    %5017 = vrot.lane.b32.xlu0 %v5015, 64
    %v5018 = vpop.permute.xlu0 %5017
    %v5020 = vmul.f32 %v5003, %v5018
    %5022 = vrot.lane.b32.xlu0 %v5020, 32
    %v5023 = vpop.permute.xlu0 %5022
    %5025 = vst.msk [vmem:[#allocation2] sm:$0xff] %vm62, %v5023
    %5027 = vrot.lane.b32.xlu0 %v5014, 96
    %v5028 = vpop.permute.xlu0 %5027
    %5030 = vst.msk [vmem:[#allocation3] sm:$0xff] %vm62, %v5028
    // Predicated region
    $region46: #{tpu_custom_call.1} parent=1 // pred_check
      %p5031 = pneg %p36
    $region47: #{tpu_custom_call.1} parent=1 // pred_check_branch
      %5033 = sbr.rel (%p5031) target = $region49
    $region48: #{tpu_custom_call.1} parent=1 // pred_region
      %v5034 = vld [vmem:[%s5] sm:$0xff]
      %v5035 = vld [vmem:[%s5 + $0x8] sm:$0xff]
      %v5036 = vld [vmem:[%s5 + $0x10] sm:$0xff]
      %v5037 = vld [vmem:[%s5 + $0x18] sm:$0xff]
      %v5038 = vld [vmem:[%s4] sm:$0xff]
      %v5039 = vld [vmem:[%s6] sm:$0xff]
      %v5040 = vld [vmem:[%s6 + $0x8] sm:$0xff]
      %vm5041 = vcmask 130048
      %v5043 = vsel %vm5041, %v5038, 0
      %5045 = vmatprep.subr.mxu0 0.0
      %5046 = vmatpush1.msra.mxu0 0.0
      %5047 = vmatprep.subr.mxu0 0.0
      %5048 = vmatpush1.msra.mxu0 0.0
      %5049 = vmatprep.subr.mxu0 0.0
      %5050 = vmatpush1.msra.mxu0 0.0
      %5051 = vmatprep.subr.mxu0 0.0
      %5052 = vmatpush1.msra.mxu0 0.0
      %5053 = vmatprep.subr.mxu0 0.0
      %5054 = vmatpush1.msra.mxu0 0.0
      %5055 = vmatprep.subr.mxu0 0.0
      %5056 = vmatpush1.msra.mxu0 0.0
      %5057 = vmatprep.subr.mxu0 0.0
      %5058 = vmatpush1.msra.mxu0 0.0
      %5059 = vmatprep.subr.mxu0 0.0
      %5060 = vmatpush1.msra.mxu0 0.0
      %5061 = vmatprep.subr.mxu0 0.0
      %5062 = vmatpush1.msra.mxu0 0.0
      %5063 = vmatprep.subr.mxu0 0.0
      %5064 = vmatpush1.msra.mxu0 0.0
      %5065 = vmatprep.subr.mxu0 0.0
      %5066 = vmatpush1.msra.mxu0 0.0
      %5067 = vmatprep.subr.mxu0 0.0
      %5068 = vmatpush1.msra.mxu0 0.0
      %5069 = vmatprep.subr.mxu0 0.0
      %5070 = vmatpush1.msra.mxu0 0.0
      %5071 = vmatprep.subr.mxu0 0.0
      %5072 = vmatpush1.msra.mxu0 0.0
      %5073 = vmatprep.subr.mxu0 0.0
      %v5074 = vand.u32 %v5040, 4294901760
      %5075 = vmatpush1.msra.mxu0 %v5074
      %5076 = vmatprep.subr.mxu0 0.0
      %v5077 = vand.u32 %v5039, 4294901760
      %5078 = vmatpush1.msra.mxu0 %v5077
      %5079 = vmatprep.subr.mxu0 0.0
      %5080 = vmatpush2.msra.mxu0 0.0
      %5081 = vmatprep.subr.mxu0 0.0
      %5082 = vmatpush2.msra.mxu0 0.0
      %5083 = vmatprep.subr.mxu0 0.0
      %5084 = vmatpush2.msra.mxu0 0.0
      %5085 = vmatprep.subr.mxu0 0.0
      %5086 = vmatpush2.msra.mxu0 0.0
      %5087 = vmatprep.subr.mxu0 0.0
      %5088 = vmatpush2.msra.mxu0 0.0
      %5089 = vmatprep.subr.mxu0 0.0
      %5090 = vmatpush2.msra.mxu0 0.0
      %5091 = vmatprep.subr.mxu0 0.0
      %5092 = vmatpush2.msra.mxu0 0.0
      %5093 = vmatprep.subr.mxu0 0.0
      %5094 = vmatpush2.msra.mxu0 0.0
      %5095 = vmatprep.subr.mxu0 0.0
      %5096 = vmatpush2.msra.mxu0 0.0
      %5097 = vmatprep.subr.mxu0 0.0
      %5098 = vmatpush2.msra.mxu0 0.0
      %5099 = vmatprep.subr.mxu0 0.0
      %5100 = vmatpush2.msra.mxu0 0.0
      %5101 = vmatprep.subr.mxu0 0.0
      %5102 = vmatpush2.msra.mxu0 0.0
      %5103 = vmatprep.subr.mxu0 0.0
      %5104 = vmatpush2.msra.mxu0 0.0
      %5105 = vmatprep.subr.mxu0 0.0
      %5106 = vmatpush2.msra.mxu0 0.0
      %5107 = vmatprep.subr.mxu0 0.0
      %5108 = vmatpush2.msra.mxu0 0.0
      %5109 = vmatprep.subr.mxu0 0.0
      %5110 = vmatpush2.msra.mxu0 0.0
      %5111 = vmatprep.mubr.f32.mxu0 0.0
      %v5112 = vand.u32 %v5043, 4294901760
      %v5113 = vsub.f32 %v5043, %v5112
      %v5114 = vand.u32 %v5113, 4294901760
      %v5115 = vsub.f32 %v5113, %v5114
      %v5116 = vand.u32 %v5115, 4294901760
      %5117 = vmatmul.mubr.f32.gmra.mxu0 %v5116
      %v5118 = vpop.f32.mrf.mxu0
      %v5119 = vadd.f32 0.0, %v5118
      %v5120 = vpop.f32.mrf.mxu0
      %5121 = vdwg.mxu0
      %5122 = vmatprep.subr.mxu0 0.0
      %5123 = vmatpush1.msra.mxu0 0.0
      %5124 = vmatprep.subr.mxu0 0.0
      %5125 = vmatpush1.msra.mxu0 0.0
      %5126 = vmatprep.subr.mxu0 0.0
      %5127 = vmatpush1.msra.mxu0 0.0
      %5128 = vmatprep.subr.mxu0 0.0
      %5129 = vmatpush1.msra.mxu0 0.0
      %5130 = vmatprep.subr.mxu0 0.0
      %5131 = vmatpush1.msra.mxu0 0.0
      %5132 = vmatprep.subr.mxu0 0.0
      %5133 = vmatpush1.msra.mxu0 0.0
      %5134 = vmatprep.subr.mxu0 0.0
      %5135 = vmatpush1.msra.mxu0 0.0
      %5136 = vmatprep.subr.mxu0 0.0
      %5137 = vmatpush1.msra.mxu0 0.0
      %5138 = vmatprep.subr.mxu0 0.0
      %5139 = vmatpush1.msra.mxu0 0.0
      %5140 = vmatprep.subr.mxu0 0.0
      %5141 = vmatpush1.msra.mxu0 0.0
      %5142 = vmatprep.subr.mxu0 0.0
      %5143 = vmatpush1.msra.mxu0 0.0
      %5144 = vmatprep.subr.mxu0 0.0
      %5145 = vmatpush1.msra.mxu0 0.0
      %5146 = vmatprep.subr.mxu0 0.0
      %5147 = vmatpush1.msra.mxu0 0.0
      %5148 = vmatprep.subr.mxu0 0.0
      %5149 = vmatpush1.msra.mxu0 0.0
      %5150 = vmatprep.subr.mxu0 0.0
      %v5151 = vand.u32 %v5040, 4294901760
      %v5152 = vsub.f32 %v5040, %v5151
      %v5153 = vand.u32 %v5152, 4294901760
      %v5154 = vsub.f32 %v5152, %v5153
      %v5155 = vand.u32 %v5154, 4294901760
      %5156 = vmatpush1.msra.mxu0 %v5155
      %5157 = vmatprep.subr.mxu0 0.0
      %v5158 = vand.u32 %v5039, 4294901760
      %v5159 = vsub.f32 %v5039, %v5158
      %v5160 = vand.u32 %v5159, 4294901760
      %v5161 = vsub.f32 %v5159, %v5160
      %v5162 = vand.u32 %v5161, 4294901760
      %5163 = vmatpush1.msra.mxu0 %v5162
      %5164 = vmatprep.subr.mxu0 0.0
      %5165 = vmatpush2.msra.mxu0 0.0
      %5166 = vmatprep.subr.mxu0 0.0
      %5167 = vmatpush2.msra.mxu0 0.0
      %5168 = vmatprep.subr.mxu0 0.0
      %5169 = vmatpush2.msra.mxu0 0.0
      %5170 = vmatprep.subr.mxu0 0.0
      %5171 = vmatpush2.msra.mxu0 0.0
      %5172 = vmatprep.subr.mxu0 0.0
      %5173 = vmatpush2.msra.mxu0 0.0
      %5174 = vmatprep.subr.mxu0 0.0
      %5175 = vmatpush2.msra.mxu0 0.0
      %5176 = vmatprep.subr.mxu0 0.0
      %5177 = vmatpush2.msra.mxu0 0.0
      %5178 = vmatprep.subr.mxu0 0.0
      %5179 = vmatpush2.msra.mxu0 0.0
      %5180 = vmatprep.subr.mxu0 0.0
      %5181 = vmatpush2.msra.mxu0 0.0
      %5182 = vmatprep.subr.mxu0 0.0
      %5183 = vmatpush2.msra.mxu0 0.0
      %5184 = vmatprep.subr.mxu0 0.0
      %5185 = vmatpush2.msra.mxu0 0.0
      %5186 = vmatprep.subr.mxu0 0.0
      %5187 = vmatpush2.msra.mxu0 0.0
      %5188 = vmatprep.subr.mxu0 0.0
      %5189 = vmatpush2.msra.mxu0 0.0
      %5190 = vmatprep.subr.mxu0 0.0
      %5191 = vmatpush2.msra.mxu0 0.0
      %5192 = vmatprep.subr.mxu0 0.0
      %5193 = vmatpush2.msra.mxu0 0.0
      %5194 = vmatprep.subr.mxu0 0.0
      %5195 = vmatpush2.msra.mxu0 0.0
      %5196 = vmatprep.mubr.f32.mxu0 0.0
      %v5197 = vand.u32 %v5043, 4294901760
      %5198 = vmatmul.mubr.f32.gmra.mxu0 %v5197
      %v5199 = vpop.f32.mrf.mxu0
      %v5200 = vadd.f32 %v5119, %v5199
      %v5201 = vpop.f32.mrf.mxu0
      %5202 = vdwg.mxu0
      %5203 = vmatprep.subr.mxu0 0.0
      %5204 = vmatpush1.msra.mxu0 0.0
      %5205 = vmatprep.subr.mxu0 0.0
      %5206 = vmatpush1.msra.mxu0 0.0
      %5207 = vmatprep.subr.mxu0 0.0
      %5208 = vmatpush1.msra.mxu0 0.0
      %5209 = vmatprep.subr.mxu0 0.0
      %5210 = vmatpush1.msra.mxu0 0.0
      %5211 = vmatprep.subr.mxu0 0.0
      %5212 = vmatpush1.msra.mxu0 0.0
      %5213 = vmatprep.subr.mxu0 0.0
      %5214 = vmatpush1.msra.mxu0 0.0
      %5215 = vmatprep.subr.mxu0 0.0
      %5216 = vmatpush1.msra.mxu0 0.0
      %5217 = vmatprep.subr.mxu0 0.0
      %5218 = vmatpush1.msra.mxu0 0.0
      %5219 = vmatprep.subr.mxu0 0.0
      %5220 = vmatpush1.msra.mxu0 0.0
      %5221 = vmatprep.subr.mxu0 0.0
      %5222 = vmatpush1.msra.mxu0 0.0
      %5223 = vmatprep.subr.mxu0 0.0
      %5224 = vmatpush1.msra.mxu0 0.0
      %5225 = vmatprep.subr.mxu0 0.0
      %5226 = vmatpush1.msra.mxu0 0.0
      %5227 = vmatprep.subr.mxu0 0.0
      %5228 = vmatpush1.msra.mxu0 0.0
      %5229 = vmatprep.subr.mxu0 0.0
      %5230 = vmatpush1.msra.mxu0 0.0
      %5231 = vmatprep.subr.mxu0 0.0
      %v5232 = vand.u32 %v5040, 4294901760
      %v5233 = vsub.f32 %v5040, %v5232
      %5234 = vmatpush1.msra.mxu0 %v5233
      %5235 = vmatprep.subr.mxu0 0.0
      %v5236 = vand.u32 %v5039, 4294901760
      %v5237 = vsub.f32 %v5039, %v5236
      %5238 = vmatpush1.msra.mxu0 %v5237
      %5239 = vmatprep.subr.mxu0 0.0
      %5240 = vmatpush2.msra.mxu0 0.0
      %5241 = vmatprep.subr.mxu0 0.0
      %5242 = vmatpush2.msra.mxu0 0.0
      %5243 = vmatprep.subr.mxu0 0.0
      %5244 = vmatpush2.msra.mxu0 0.0
      %5245 = vmatprep.subr.mxu0 0.0
      %5246 = vmatpush2.msra.mxu0 0.0
      %5247 = vmatprep.subr.mxu0 0.0
      %5248 = vmatpush2.msra.mxu0 0.0
      %5249 = vmatprep.subr.mxu0 0.0
      %5250 = vmatpush2.msra.mxu0 0.0
      %5251 = vmatprep.subr.mxu0 0.0
      %5252 = vmatpush2.msra.mxu0 0.0
      %5253 = vmatprep.subr.mxu0 0.0
      %5254 = vmatpush2.msra.mxu0 0.0
      %5255 = vmatprep.subr.mxu0 0.0
      %5256 = vmatpush2.msra.mxu0 0.0
      %5257 = vmatprep.subr.mxu0 0.0
      %5258 = vmatpush2.msra.mxu0 0.0
      %5259 = vmatprep.subr.mxu0 0.0
      %5260 = vmatpush2.msra.mxu0 0.0
      %5261 = vmatprep.subr.mxu0 0.0
      %5262 = vmatpush2.msra.mxu0 0.0
      %5263 = vmatprep.subr.mxu0 0.0
      %5264 = vmatpush2.msra.mxu0 0.0
      %5265 = vmatprep.subr.mxu0 0.0
      %5266 = vmatpush2.msra.mxu0 0.0
      %5267 = vmatprep.subr.mxu0 0.0
      %5268 = vmatpush2.msra.mxu0 0.0
      %5269 = vmatprep.subr.mxu0 0.0
      %5270 = vmatpush2.msra.mxu0 0.0
      %5271 = vmatprep.mubr.f32.mxu0 0.0
      %v5272 = vand.u32 %v5043, 4294901760
      %v5273 = vsub.f32 %v5043, %v5272
      %5274 = vmatmul.mubr.f32.gmra.mxu0 %v5273
      %v5275 = vpop.f32.mrf.mxu0
      %v5276 = vadd.f32 %v5200, %v5275
      %v5277 = vpop.f32.mrf.mxu0
      %5278 = vdwg.mxu0
      %5279 = vmatprep.subr.mxu0 0.0
      %5280 = vmatpush1.msra.mxu0 0.0
      %5281 = vmatprep.subr.mxu0 0.0
      %5282 = vmatpush1.msra.mxu0 0.0
      %5283 = vmatprep.subr.mxu0 0.0
      %5284 = vmatpush1.msra.mxu0 0.0
      %5285 = vmatprep.subr.mxu0 0.0
      %5286 = vmatpush1.msra.mxu0 0.0
      %5287 = vmatprep.subr.mxu0 0.0
      %5288 = vmatpush1.msra.mxu0 0.0
      %5289 = vmatprep.subr.mxu0 0.0
      %5290 = vmatpush1.msra.mxu0 0.0
      %5291 = vmatprep.subr.mxu0 0.0
      %5292 = vmatpush1.msra.mxu0 0.0
      %5293 = vmatprep.subr.mxu0 0.0
      %5294 = vmatpush1.msra.mxu0 0.0
      %5295 = vmatprep.subr.mxu0 0.0
      %5296 = vmatpush1.msra.mxu0 0.0
      %5297 = vmatprep.subr.mxu0 0.0
      %5298 = vmatpush1.msra.mxu0 0.0
      %5299 = vmatprep.subr.mxu0 0.0
      %5300 = vmatpush1.msra.mxu0 0.0
      %5301 = vmatprep.subr.mxu0 0.0
      %5302 = vmatpush1.msra.mxu0 0.0
      %5303 = vmatprep.subr.mxu0 0.0
      %5304 = vmatpush1.msra.mxu0 0.0
      %5305 = vmatprep.subr.mxu0 0.0
      %5306 = vmatpush1.msra.mxu0 0.0
      %5307 = vmatprep.subr.mxu0 0.0
      %v5308 = vand.u32 %v5040, 4294901760
      %5309 = vmatpush1.msra.mxu0 %v5308
      %5310 = vmatprep.subr.mxu0 0.0
      %v5311 = vand.u32 %v5039, 4294901760
      %5312 = vmatpush1.msra.mxu0 %v5311
      %5313 = vmatprep.subr.mxu0 0.0
      %5314 = vmatpush2.msra.mxu0 0.0
      %5315 = vmatprep.subr.mxu0 0.0
      %5316 = vmatpush2.msra.mxu0 0.0
      %5317 = vmatprep.subr.mxu0 0.0
      %5318 = vmatpush2.msra.mxu0 0.0
      %5319 = vmatprep.subr.mxu0 0.0
      %5320 = vmatpush2.msra.mxu0 0.0
      %5321 = vmatprep.subr.mxu0 0.0
      %5322 = vmatpush2.msra.mxu0 0.0
      %5323 = vmatprep.subr.mxu0 0.0
      %5324 = vmatpush2.msra.mxu0 0.0
      %5325 = vmatprep.subr.mxu0 0.0
      %5326 = vmatpush2.msra.mxu0 0.0
      %5327 = vmatprep.subr.mxu0 0.0
      %5328 = vmatpush2.msra.mxu0 0.0
      %5329 = vmatprep.subr.mxu0 0.0
      %5330 = vmatpush2.msra.mxu0 0.0
      %5331 = vmatprep.subr.mxu0 0.0
      %5332 = vmatpush2.msra.mxu0 0.0
      %5333 = vmatprep.subr.mxu0 0.0
      %5334 = vmatpush2.msra.mxu0 0.0
      %5335 = vmatprep.subr.mxu0 0.0
      %5336 = vmatpush2.msra.mxu0 0.0
      %5337 = vmatprep.subr.mxu0 0.0
      %5338 = vmatpush2.msra.mxu0 0.0
      %5339 = vmatprep.subr.mxu0 0.0
      %5340 = vmatpush2.msra.mxu0 0.0
      %5341 = vmatprep.subr.mxu0 0.0
      %5342 = vmatpush2.msra.mxu0 0.0
      %5343 = vmatprep.subr.mxu0 0.0
      %5344 = vmatpush2.msra.mxu0 0.0
      %5345 = vmatprep.mubr.f32.mxu0 0.0
      %v5346 = vand.u32 %v5043, 4294901760
      %v5347 = vsub.f32 %v5043, %v5346
      %v5348 = vand.u32 %v5347, 4294901760
      %5349 = vmatmul.mubr.f32.gmra.mxu0 %v5348
      %v5350 = vpop.f32.mrf.mxu0
      %v5351 = vadd.f32 %v5276, %v5350
      %v5352 = vpop.f32.mrf.mxu0
      %5353 = vdwg.mxu0
      %5354 = vmatprep.subr.mxu0 0.0
      %5355 = vmatpush1.msra.mxu0 0.0
      %5356 = vmatprep.subr.mxu0 0.0
      %5357 = vmatpush1.msra.mxu0 0.0
      %5358 = vmatprep.subr.mxu0 0.0
      %5359 = vmatpush1.msra.mxu0 0.0
      %5360 = vmatprep.subr.mxu0 0.0
      %5361 = vmatpush1.msra.mxu0 0.0
      %5362 = vmatprep.subr.mxu0 0.0
      %5363 = vmatpush1.msra.mxu0 0.0
      %5364 = vmatprep.subr.mxu0 0.0
      %5365 = vmatpush1.msra.mxu0 0.0
      %5366 = vmatprep.subr.mxu0 0.0
      %5367 = vmatpush1.msra.mxu0 0.0
      %5368 = vmatprep.subr.mxu0 0.0
      %5369 = vmatpush1.msra.mxu0 0.0
      %5370 = vmatprep.subr.mxu0 0.0
      %5371 = vmatpush1.msra.mxu0 0.0
      %5372 = vmatprep.subr.mxu0 0.0
      %5373 = vmatpush1.msra.mxu0 0.0
      %5374 = vmatprep.subr.mxu0 0.0
      %5375 = vmatpush1.msra.mxu0 0.0
      %5376 = vmatprep.subr.mxu0 0.0
      %5377 = vmatpush1.msra.mxu0 0.0
      %5378 = vmatprep.subr.mxu0 0.0
      %5379 = vmatpush1.msra.mxu0 0.0
      %5380 = vmatprep.subr.mxu0 0.0
      %5381 = vmatpush1.msra.mxu0 0.0
      %5382 = vmatprep.subr.mxu0 0.0
      %v5383 = vand.u32 %v5040, 4294901760
      %v5384 = vsub.f32 %v5040, %v5383
      %v5385 = vand.u32 %v5384, 4294901760
      %5386 = vmatpush1.msra.mxu0 %v5385
      %5387 = vmatprep.subr.mxu0 0.0
      %v5388 = vand.u32 %v5039, 4294901760
      %v5389 = vsub.f32 %v5039, %v5388
      %v5390 = vand.u32 %v5389, 4294901760
      %5391 = vmatpush1.msra.mxu0 %v5390
      %5392 = vmatprep.subr.mxu0 0.0
      %5393 = vmatpush2.msra.mxu0 0.0
      %5394 = vmatprep.subr.mxu0 0.0
      %5395 = vmatpush2.msra.mxu0 0.0
      %5396 = vmatprep.subr.mxu0 0.0
      %5397 = vmatpush2.msra.mxu0 0.0
      %5398 = vmatprep.subr.mxu0 0.0
      %5399 = vmatpush2.msra.mxu0 0.0
      %5400 = vmatprep.subr.mxu0 0.0
      %5401 = vmatpush2.msra.mxu0 0.0
      %5402 = vmatprep.subr.mxu0 0.0
      %5403 = vmatpush2.msra.mxu0 0.0
      %5404 = vmatprep.subr.mxu0 0.0
      %5405 = vmatpush2.msra.mxu0 0.0
      %5406 = vmatprep.subr.mxu0 0.0
      %5407 = vmatpush2.msra.mxu0 0.0
      %5408 = vmatprep.subr.mxu0 0.0
      %5409 = vmatpush2.msra.mxu0 0.0
      %5410 = vmatprep.subr.mxu0 0.0
      %5411 = vmatpush2.msra.mxu0 0.0
      %5412 = vmatprep.subr.mxu0 0.0
      %5413 = vmatpush2.msra.mxu0 0.0
      %5414 = vmatprep.subr.mxu0 0.0
      %5415 = vmatpush2.msra.mxu0 0.0
      %5416 = vmatprep.subr.mxu0 0.0
      %5417 = vmatpush2.msra.mxu0 0.0
      %5418 = vmatprep.subr.mxu0 0.0
      %5419 = vmatpush2.msra.mxu0 0.0
      %5420 = vmatprep.subr.mxu0 0.0
      %5421 = vmatpush2.msra.mxu0 0.0
      %5422 = vmatprep.subr.mxu0 0.0
      %5423 = vmatpush2.msra.mxu0 0.0
      %5424 = vmatprep.mubr.f32.mxu0 0.0
      %v5425 = vand.u32 %v5043, 4294901760
      %5426 = vmatmul.mubr.f32.gmra.mxu0 %v5425
      %v5427 = vpop.f32.mrf.mxu0
      %v5428 = vadd.f32 %v5351, %v5427
      %v5429 = vpop.f32.mrf.mxu0
      %5430 = vdwg.mxu0
      %5431 = vmatprep.subr.mxu0 0.0
      %5432 = vmatpush1.msra.mxu0 0.0
      %5433 = vmatprep.subr.mxu0 0.0
      %5434 = vmatpush1.msra.mxu0 0.0
      %5435 = vmatprep.subr.mxu0 0.0
      %5436 = vmatpush1.msra.mxu0 0.0
      %5437 = vmatprep.subr.mxu0 0.0
      %5438 = vmatpush1.msra.mxu0 0.0
      %5439 = vmatprep.subr.mxu0 0.0
      %5440 = vmatpush1.msra.mxu0 0.0
      %5441 = vmatprep.subr.mxu0 0.0
      %5442 = vmatpush1.msra.mxu0 0.0
      %5443 = vmatprep.subr.mxu0 0.0
      %5444 = vmatpush1.msra.mxu0 0.0
      %5445 = vmatprep.subr.mxu0 0.0
      %5446 = vmatpush1.msra.mxu0 0.0
      %5447 = vmatprep.subr.mxu0 0.0
      %5448 = vmatpush1.msra.mxu0 0.0
      %5449 = vmatprep.subr.mxu0 0.0
      %5450 = vmatpush1.msra.mxu0 0.0
      %5451 = vmatprep.subr.mxu0 0.0
      %5452 = vmatpush1.msra.mxu0 0.0
      %5453 = vmatprep.subr.mxu0 0.0
      %5454 = vmatpush1.msra.mxu0 0.0
      %5455 = vmatprep.subr.mxu0 0.0
      %5456 = vmatpush1.msra.mxu0 0.0
      %5457 = vmatprep.subr.mxu0 0.0
      %5458 = vmatpush1.msra.mxu0 0.0
      %5459 = vmatprep.subr.mxu0 0.0
      %v5460 = vand.u32 %v5040, 4294901760
      %5461 = vmatpush1.msra.mxu0 %v5460
      %5462 = vmatprep.subr.mxu0 0.0
      %v5463 = vand.u32 %v5039, 4294901760
      %5464 = vmatpush1.msra.mxu0 %v5463
      %5465 = vmatprep.subr.mxu0 0.0
      %5466 = vmatpush2.msra.mxu0 0.0
      %5467 = vmatprep.subr.mxu0 0.0
      %5468 = vmatpush2.msra.mxu0 0.0
      %5469 = vmatprep.subr.mxu0 0.0
      %5470 = vmatpush2.msra.mxu0 0.0
      %5471 = vmatprep.subr.mxu0 0.0
      %5472 = vmatpush2.msra.mxu0 0.0
      %5473 = vmatprep.subr.mxu0 0.0
      %5474 = vmatpush2.msra.mxu0 0.0
      %5475 = vmatprep.subr.mxu0 0.0
      %5476 = vmatpush2.msra.mxu0 0.0
      %5477 = vmatprep.subr.mxu0 0.0
      %5478 = vmatpush2.msra.mxu0 0.0
      %5479 = vmatprep.subr.mxu0 0.0
      %5480 = vmatpush2.msra.mxu0 0.0
      %5481 = vmatprep.subr.mxu0 0.0
      %5482 = vmatpush2.msra.mxu0 0.0
      %5483 = vmatprep.subr.mxu0 0.0
      %5484 = vmatpush2.msra.mxu0 0.0
      %5485 = vmatprep.subr.mxu0 0.0
      %5486 = vmatpush2.msra.mxu0 0.0
      %5487 = vmatprep.subr.mxu0 0.0
      %5488 = vmatpush2.msra.mxu0 0.0
      %5489 = vmatprep.subr.mxu0 0.0
      %5490 = vmatpush2.msra.mxu0 0.0
      %5491 = vmatprep.subr.mxu0 0.0
      %5492 = vmatpush2.msra.mxu0 0.0
      %5493 = vmatprep.subr.mxu0 0.0
      %5494 = vmatpush2.msra.mxu0 0.0
      %5495 = vmatprep.subr.mxu0 0.0
      %5496 = vmatpush2.msra.mxu0 0.0
      %5497 = vmatprep.mubr.f32.mxu0 0.0
      %v5498 = vand.u32 %v5043, 4294901760
      %5499 = vmatmul.mubr.f32.gmra.mxu0 %v5498
      %v5500 = vpop.f32.mrf.mxu0
      %v5501 = vadd.f32 %v5428, %v5500
      %v5502 = vpop.f32.mrf.mxu0
      %5503 = vdwg.mxu0
      %v5504 = vsel %vm62, %v5023, 0
      %5506 = vmatprep.subr.mxu0 0.0
      %5507 = vmatpush1.msra.mxu0 0.0
      %5508 = vmatprep.subr.mxu0 0.0
      %5509 = vmatpush1.msra.mxu0 0.0
      %5510 = vmatprep.subr.mxu0 0.0
      %5511 = vmatpush1.msra.mxu0 0.0
      %5512 = vmatprep.subr.mxu0 0.0
      %5513 = vmatpush1.msra.mxu0 0.0
      %5514 = vmatprep.subr.mxu0 0.0
      %5515 = vmatpush1.msra.mxu0 0.0
      %5516 = vmatprep.subr.mxu0 0.0
      %5517 = vmatpush1.msra.mxu0 0.0
      %5518 = vmatprep.subr.mxu0 0.0
      %5519 = vmatpush1.msra.mxu0 0.0
      %5520 = vmatprep.subr.mxu0 0.0
      %5521 = vmatpush1.msra.mxu0 0.0
      %5522 = vmatprep.subr.mxu0 0.0
      %5523 = vmatpush1.msra.mxu0 0.0
      %5524 = vmatprep.subr.mxu0 0.0
      %5525 = vmatpush1.msra.mxu0 0.0
      %5526 = vmatprep.subr.mxu0 0.0
      %5527 = vmatpush1.msra.mxu0 0.0
      %5528 = vmatprep.subr.mxu0 0.0
      %5529 = vmatpush1.msra.mxu0 0.0
      %5530 = vmatprep.subr.mxu0 0.0
      %v5531 = vand.u32 %v5037, 4294901760
      %5532 = vmatpush1.msra.mxu0 %v5531
      %5533 = vmatprep.subr.mxu0 0.0
      %v5534 = vand.u32 %v5036, 4294901760
      %5535 = vmatpush1.msra.mxu0 %v5534
      %5536 = vmatprep.subr.mxu0 0.0
      %v5537 = vand.u32 %v5035, 4294901760
      %5538 = vmatpush1.msra.mxu0 %v5537
      %5539 = vmatprep.subr.mxu0 0.0
      %v5540 = vand.u32 %v5034, 4294901760
      %5541 = vmatpush1.msra.mxu0 %v5540
      %5542 = vmatprep.subr.mxu0 0.0
      %5543 = vmatpush2.msra.mxu0 0.0
      %5544 = vmatprep.subr.mxu0 0.0
      %5545 = vmatpush2.msra.mxu0 0.0
      %5546 = vmatprep.subr.mxu0 0.0
      %5547 = vmatpush2.msra.mxu0 0.0
      %5548 = vmatprep.subr.mxu0 0.0
      %5549 = vmatpush2.msra.mxu0 0.0
      %5550 = vmatprep.subr.mxu0 0.0
      %5551 = vmatpush2.msra.mxu0 0.0
      %5552 = vmatprep.subr.mxu0 0.0
      %5553 = vmatpush2.msra.mxu0 0.0
      %5554 = vmatprep.subr.mxu0 0.0
      %5555 = vmatpush2.msra.mxu0 0.0
      %5556 = vmatprep.subr.mxu0 0.0
      %5557 = vmatpush2.msra.mxu0 0.0
      %5558 = vmatprep.subr.mxu0 0.0
      %5559 = vmatpush2.msra.mxu0 0.0
      %5560 = vmatprep.subr.mxu0 0.0
      %5561 = vmatpush2.msra.mxu0 0.0
      %5562 = vmatprep.subr.mxu0 0.0
      %5563 = vmatpush2.msra.mxu0 0.0
      %5564 = vmatprep.subr.mxu0 0.0
      %5565 = vmatpush2.msra.mxu0 0.0
      %5566 = vmatprep.subr.mxu0 0.0
      %5567 = vmatpush2.msra.mxu0 0.0
      %5568 = vmatprep.subr.mxu0 0.0
      %5569 = vmatpush2.msra.mxu0 0.0
      %5570 = vmatprep.subr.mxu0 0.0
      %5571 = vmatpush2.msra.mxu0 0.0
      %5572 = vmatprep.subr.mxu0 0.0
      %5573 = vmatpush2.msra.mxu0 0.0
      %5574 = vmatprep.mubr.f32.mxu0 0.0
      %v5575 = vand.u32 %v5504, 4294901760
      %v5576 = vsub.f32 %v5504, %v5575
      %v5577 = vand.u32 %v5576, 4294901760
      %v5578 = vsub.f32 %v5576, %v5577
      %v5579 = vand.u32 %v5578, 4294901760
      %5580 = vmatmul.mubr.f32.gmra.mxu0 %v5579
      %v5581 = vpop.f32.mrf.mxu0
      %v5582 = vadd.f32 %v5501, %v5581
      %v5583 = vpop.f32.mrf.mxu0
      %5584 = vdwg.mxu0
      %5585 = vmatprep.subr.mxu0 0.0
      %5586 = vmatpush1.msra.mxu0 0.0
      %5587 = vmatprep.subr.mxu0 0.0
      %5588 = vmatpush1.msra.mxu0 0.0
      %5589 = vmatprep.subr.mxu0 0.0
      %5590 = vmatpush1.msra.mxu0 0.0
      %5591 = vmatprep.subr.mxu0 0.0
      %5592 = vmatpush1.msra.mxu0 0.0
      %5593 = vmatprep.subr.mxu0 0.0
      %5594 = vmatpush1.msra.mxu0 0.0
      %5595 = vmatprep.subr.mxu0 0.0
      %5596 = vmatpush1.msra.mxu0 0.0
      %5597 = vmatprep.subr.mxu0 0.0
      %5598 = vmatpush1.msra.mxu0 0.0
      %5599 = vmatprep.subr.mxu0 0.0
      %5600 = vmatpush1.msra.mxu0 0.0
      %5601 = vmatprep.subr.mxu0 0.0
      %5602 = vmatpush1.msra.mxu0 0.0
      %5603 = vmatprep.subr.mxu0 0.0
      %5604 = vmatpush1.msra.mxu0 0.0
      %5605 = vmatprep.subr.mxu0 0.0
      %5606 = vmatpush1.msra.mxu0 0.0
      %5607 = vmatprep.subr.mxu0 0.0
      %5608 = vmatpush1.msra.mxu0 0.0
      %5609 = vmatprep.subr.mxu0 0.0
      %v5610 = vand.u32 %v5037, 4294901760
      %v5611 = vsub.f32 %v5037, %v5610
      %v5612 = vand.u32 %v5611, 4294901760
      %v5613 = vsub.f32 %v5611, %v5612
      %v5614 = vand.u32 %v5613, 4294901760
      %5615 = vmatpush1.msra.mxu0 %v5614
      %5616 = vmatprep.subr.mxu0 0.0
      %v5617 = vand.u32 %v5036, 4294901760
      %v5618 = vsub.f32 %v5036, %v5617
      %v5619 = vand.u32 %v5618, 4294901760
      %v5620 = vsub.f32 %v5618, %v5619
      %v5621 = vand.u32 %v5620, 4294901760
      %5622 = vmatpush1.msra.mxu0 %v5621
      %5623 = vmatprep.subr.mxu0 0.0
      %v5624 = vand.u32 %v5035, 4294901760
      %v5625 = vsub.f32 %v5035, %v5624
      %v5626 = vand.u32 %v5625, 4294901760
      %v5627 = vsub.f32 %v5625, %v5626
      %v5628 = vand.u32 %v5627, 4294901760
      %5629 = vmatpush1.msra.mxu0 %v5628
      %5630 = vmatprep.subr.mxu0 0.0
      %v5631 = vand.u32 %v5034, 4294901760
      %v5632 = vsub.f32 %v5034, %v5631
      %v5633 = vand.u32 %v5632, 4294901760
      %v5634 = vsub.f32 %v5632, %v5633
      %v5635 = vand.u32 %v5634, 4294901760
      %5636 = vmatpush1.msra.mxu0 %v5635
      %5637 = vmatprep.subr.mxu0 0.0
      %5638 = vmatpush2.msra.mxu0 0.0
      %5639 = vmatprep.subr.mxu0 0.0
      %5640 = vmatpush2.msra.mxu0 0.0
      %5641 = vmatprep.subr.mxu0 0.0
      %5642 = vmatpush2.msra.mxu0 0.0
      %5643 = vmatprep.subr.mxu0 0.0
      %5644 = vmatpush2.msra.mxu0 0.0
      %5645 = vmatprep.subr.mxu0 0.0
      %5646 = vmatpush2.msra.mxu0 0.0
      %5647 = vmatprep.subr.mxu0 0.0
      %5648 = vmatpush2.msra.mxu0 0.0
      %5649 = vmatprep.subr.mxu0 0.0
      %5650 = vmatpush2.msra.mxu0 0.0
      %5651 = vmatprep.subr.mxu0 0.0
      %5652 = vmatpush2.msra.mxu0 0.0
      %5653 = vmatprep.subr.mxu0 0.0
      %5654 = vmatpush2.msra.mxu0 0.0
      %5655 = vmatprep.subr.mxu0 0.0
      %5656 = vmatpush2.msra.mxu0 0.0
      %5657 = vmatprep.subr.mxu0 0.0
      %5658 = vmatpush2.msra.mxu0 0.0
      %5659 = vmatprep.subr.mxu0 0.0
      %5660 = vmatpush2.msra.mxu0 0.0
      %5661 = vmatprep.subr.mxu0 0.0
      %5662 = vmatpush2.msra.mxu0 0.0
      %5663 = vmatprep.subr.mxu0 0.0
      %5664 = vmatpush2.msra.mxu0 0.0
      %5665 = vmatprep.subr.mxu0 0.0
      %5666 = vmatpush2.msra.mxu0 0.0
      %5667 = vmatprep.subr.mxu0 0.0
      %5668 = vmatpush2.msra.mxu0 0.0
      %5669 = vmatprep.mubr.f32.mxu0 0.0
      %v5670 = vand.u32 %v5504, 4294901760
      %5671 = vmatmul.mubr.f32.gmra.mxu0 %v5670
      %v5672 = vpop.f32.mrf.mxu0
      %v5673 = vadd.f32 %v5582, %v5672
      %v5674 = vpop.f32.mrf.mxu0
      %5675 = vdwg.mxu0
      %5676 = vmatprep.subr.mxu0 0.0
      %5677 = vmatpush1.msra.mxu0 0.0
      %5678 = vmatprep.subr.mxu0 0.0
      %5679 = vmatpush1.msra.mxu0 0.0
      %5680 = vmatprep.subr.mxu0 0.0
      %5681 = vmatpush1.msra.mxu0 0.0
      %5682 = vmatprep.subr.mxu0 0.0
      %5683 = vmatpush1.msra.mxu0 0.0
      %5684 = vmatprep.subr.mxu0 0.0
      %5685 = vmatpush1.msra.mxu0 0.0
      %5686 = vmatprep.subr.mxu0 0.0
      %5687 = vmatpush1.msra.mxu0 0.0
      %5688 = vmatprep.subr.mxu0 0.0
      %5689 = vmatpush1.msra.mxu0 0.0
      %5690 = vmatprep.subr.mxu0 0.0
      %5691 = vmatpush1.msra.mxu0 0.0
      %5692 = vmatprep.subr.mxu0 0.0
      %5693 = vmatpush1.msra.mxu0 0.0
      %5694 = vmatprep.subr.mxu0 0.0
      %5695 = vmatpush1.msra.mxu0 0.0
      %5696 = vmatprep.subr.mxu0 0.0
      %5697 = vmatpush1.msra.mxu0 0.0
      %5698 = vmatprep.subr.mxu0 0.0
      %5699 = vmatpush1.msra.mxu0 0.0
      %5700 = vmatprep.subr.mxu0 0.0
      %v5701 = vand.u32 %v5037, 4294901760
      %v5702 = vsub.f32 %v5037, %v5701
      %5703 = vmatpush1.msra.mxu0 %v5702
      %5704 = vmatprep.subr.mxu0 0.0
      %v5705 = vand.u32 %v5036, 4294901760
      %v5706 = vsub.f32 %v5036, %v5705
      %5707 = vmatpush1.msra.mxu0 %v5706
      %5708 = vmatprep.subr.mxu0 0.0
      %v5709 = vand.u32 %v5035, 4294901760
      %v5710 = vsub.f32 %v5035, %v5709
      %5711 = vmatpush1.msra.mxu0 %v5710
      %5712 = vmatprep.subr.mxu0 0.0
      %v5713 = vand.u32 %v5034, 4294901760
      %v5714 = vsub.f32 %v5034, %v5713
      %5715 = vmatpush1.msra.mxu0 %v5714
      %5716 = vmatprep.subr.mxu0 0.0
      %5717 = vmatpush2.msra.mxu0 0.0
      %5718 = vmatprep.subr.mxu0 0.0
      %5719 = vmatpush2.msra.mxu0 0.0
      %5720 = vmatprep.subr.mxu0 0.0
      %5721 = vmatpush2.msra.mxu0 0.0
      %5722 = vmatprep.subr.mxu0 0.0
      %5723 = vmatpush2.msra.mxu0 0.0
      %5724 = vmatprep.subr.mxu0 0.0
      %5725 = vmatpush2.msra.mxu0 0.0
      %5726 = vmatprep.subr.mxu0 0.0
      %5727 = vmatpush2.msra.mxu0 0.0
      %5728 = vmatprep.subr.mxu0 0.0
      %5729 = vmatpush2.msra.mxu0 0.0
      %5730 = vmatprep.subr.mxu0 0.0
      %5731 = vmatpush2.msra.mxu0 0.0
      %5732 = vmatprep.subr.mxu0 0.0
      %5733 = vmatpush2.msra.mxu0 0.0
      %5734 = vmatprep.subr.mxu0 0.0
      %5735 = vmatpush2.msra.mxu0 0.0
      %5736 = vmatprep.subr.mxu0 0.0
      %5737 = vmatpush2.msra.mxu0 0.0
      %5738 = vmatprep.subr.mxu0 0.0
      %5739 = vmatpush2.msra.mxu0 0.0
      %5740 = vmatprep.subr.mxu0 0.0
      %5741 = vmatpush2.msra.mxu0 0.0
      %5742 = vmatprep.subr.mxu0 0.0
      %5743 = vmatpush2.msra.mxu0 0.0
      %5744 = vmatprep.subr.mxu0 0.0
      %5745 = vmatpush2.msra.mxu0 0.0
      %5746 = vmatprep.subr.mxu0 0.0
      %5747 = vmatpush2.msra.mxu0 0.0
      %5748 = vmatprep.mubr.f32.mxu0 0.0
      %v5749 = vand.u32 %v5504, 4294901760
      %v5750 = vsub.f32 %v5504, %v5749
      %5751 = vmatmul.mubr.f32.gmra.mxu0 %v5750
      %v5752 = vpop.f32.mrf.mxu0
      %v5753 = vadd.f32 %v5673, %v5752
      %v5754 = vpop.f32.mrf.mxu0
      %5755 = vdwg.mxu0
      %5756 = vmatprep.subr.mxu0 0.0
      %5757 = vmatpush1.msra.mxu0 0.0
      %5758 = vmatprep.subr.mxu0 0.0
      %5759 = vmatpush1.msra.mxu0 0.0
      %5760 = vmatprep.subr.mxu0 0.0
      %5761 = vmatpush1.msra.mxu0 0.0
      %5762 = vmatprep.subr.mxu0 0.0
      %5763 = vmatpush1.msra.mxu0 0.0
      %5764 = vmatprep.subr.mxu0 0.0
      %5765 = vmatpush1.msra.mxu0 0.0
      %5766 = vmatprep.subr.mxu0 0.0
      %5767 = vmatpush1.msra.mxu0 0.0
      %5768 = vmatprep.subr.mxu0 0.0
      %5769 = vmatpush1.msra.mxu0 0.0
      %5770 = vmatprep.subr.mxu0 0.0
      %5771 = vmatpush1.msra.mxu0 0.0
      %5772 = vmatprep.subr.mxu0 0.0
      %5773 = vmatpush1.msra.mxu0 0.0
      %5774 = vmatprep.subr.mxu0 0.0
      %5775 = vmatpush1.msra.mxu0 0.0
      %5776 = vmatprep.subr.mxu0 0.0
      %5777 = vmatpush1.msra.mxu0 0.0
      %5778 = vmatprep.subr.mxu0 0.0
      %5779 = vmatpush1.msra.mxu0 0.0
      %5780 = vmatprep.subr.mxu0 0.0
      %v5781 = vand.u32 %v5037, 4294901760
      %5782 = vmatpush1.msra.mxu0 %v5781
      %5783 = vmatprep.subr.mxu0 0.0
      %v5784 = vand.u32 %v5036, 4294901760
      %5785 = vmatpush1.msra.mxu0 %v5784
      %5786 = vmatprep.subr.mxu0 0.0
      %v5787 = vand.u32 %v5035, 4294901760
      %5788 = vmatpush1.msra.mxu0 %v5787
      %5789 = vmatprep.subr.mxu0 0.0
      %v5790 = vand.u32 %v5034, 4294901760
      %5791 = vmatpush1.msra.mxu0 %v5790
      %5792 = vmatprep.subr.mxu0 0.0
      %5793 = vmatpush2.msra.mxu0 0.0
      %5794 = vmatprep.subr.mxu0 0.0
      %5795 = vmatpush2.msra.mxu0 0.0
      %5796 = vmatprep.subr.mxu0 0.0
      %5797 = vmatpush2.msra.mxu0 0.0
      %5798 = vmatprep.subr.mxu0 0.0
      %5799 = vmatpush2.msra.mxu0 0.0
      %5800 = vmatprep.subr.mxu0 0.0
      %5801 = vmatpush2.msra.mxu0 0.0
      %5802 = vmatprep.subr.mxu0 0.0
      %5803 = vmatpush2.msra.mxu0 0.0
      %5804 = vmatprep.subr.mxu0 0.0
      %5805 = vmatpush2.msra.mxu0 0.0
      %5806 = vmatprep.subr.mxu0 0.0
      %5807 = vmatpush2.msra.mxu0 0.0
      %5808 = vmatprep.subr.mxu0 0.0
      %5809 = vmatpush2.msra.mxu0 0.0
      %5810 = vmatprep.subr.mxu0 0.0
      %5811 = vmatpush2.msra.mxu0 0.0
      %5812 = vmatprep.subr.mxu0 0.0
      %5813 = vmatpush2.msra.mxu0 0.0
      %5814 = vmatprep.subr.mxu0 0.0
      %5815 = vmatpush2.msra.mxu0 0.0
      %5816 = vmatprep.subr.mxu0 0.0
      %5817 = vmatpush2.msra.mxu0 0.0
      %5818 = vmatprep.subr.mxu0 0.0
      %5819 = vmatpush2.msra.mxu0 0.0
      %5820 = vmatprep.subr.mxu0 0.0
      %5821 = vmatpush2.msra.mxu0 0.0
      %5822 = vmatprep.subr.mxu0 0.0
      %5823 = vmatpush2.msra.mxu0 0.0
      %5824 = vmatprep.mubr.f32.mxu0 0.0
      %v5825 = vand.u32 %v5504, 4294901760
      %v5826 = vsub.f32 %v5504, %v5825
      %v5827 = vand.u32 %v5826, 4294901760
      %5828 = vmatmul.mubr.f32.gmra.mxu0 %v5827
      %v5829 = vpop.f32.mrf.mxu0
      %v5830 = vadd.f32 %v5753, %v5829
      %v5831 = vpop.f32.mrf.mxu0
      %5832 = vdwg.mxu0
      %5833 = vmatprep.subr.mxu0 0.0
      %5834 = vmatpush1.msra.mxu0 0.0
      %5835 = vmatprep.subr.mxu0 0.0
      %5836 = vmatpush1.msra.mxu0 0.0
      %5837 = vmatprep.subr.mxu0 0.0
      %5838 = vmatpush1.msra.mxu0 0.0
      %5839 = vmatprep.subr.mxu0 0.0
      %5840 = vmatpush1.msra.mxu0 0.0
      %5841 = vmatprep.subr.mxu0 0.0
      %5842 = vmatpush1.msra.mxu0 0.0
      %5843 = vmatprep.subr.mxu0 0.0
      %5844 = vmatpush1.msra.mxu0 0.0
      %5845 = vmatprep.subr.mxu0 0.0
      %5846 = vmatpush1.msra.mxu0 0.0
      %5847 = vmatprep.subr.mxu0 0.0
      %5848 = vmatpush1.msra.mxu0 0.0
      %5849 = vmatprep.subr.mxu0 0.0
      %5850 = vmatpush1.msra.mxu0 0.0
      %5851 = vmatprep.subr.mxu0 0.0
      %5852 = vmatpush1.msra.mxu0 0.0
      %5853 = vmatprep.subr.mxu0 0.0
      %5854 = vmatpush1.msra.mxu0 0.0
      %5855 = vmatprep.subr.mxu0 0.0
      %5856 = vmatpush1.msra.mxu0 0.0
      %5857 = vmatprep.subr.mxu0 0.0
      %v5858 = vand.u32 %v5037, 4294901760
      %v5859 = vsub.f32 %v5037, %v5858
      %v5860 = vand.u32 %v5859, 4294901760
      %5861 = vmatpush1.msra.mxu0 %v5860
      %5862 = vmatprep.subr.mxu0 0.0
      %v5863 = vand.u32 %v5036, 4294901760
      %v5864 = vsub.f32 %v5036, %v5863
      %v5865 = vand.u32 %v5864, 4294901760
      %5866 = vmatpush1.msra.mxu0 %v5865
      %5867 = vmatprep.subr.mxu0 0.0
      %v5868 = vand.u32 %v5035, 4294901760
      %v5869 = vsub.f32 %v5035, %v5868
      %v5870 = vand.u32 %v5869, 4294901760
      %5871 = vmatpush1.msra.mxu0 %v5870
      %5872 = vmatprep.subr.mxu0 0.0
      %v5873 = vand.u32 %v5034, 4294901760
      %v5874 = vsub.f32 %v5034, %v5873
      %v5875 = vand.u32 %v5874, 4294901760
      %5876 = vmatpush1.msra.mxu0 %v5875
      %5877 = vmatprep.subr.mxu0 0.0
      %5878 = vmatpush2.msra.mxu0 0.0
      %5879 = vmatprep.subr.mxu0 0.0
      %5880 = vmatpush2.msra.mxu0 0.0
      %5881 = vmatprep.subr.mxu0 0.0
      %5882 = vmatpush2.msra.mxu0 0.0
      %5883 = vmatprep.subr.mxu0 0.0
      %5884 = vmatpush2.msra.mxu0 0.0
      %5885 = vmatprep.subr.mxu0 0.0
      %5886 = vmatpush2.msra.mxu0 0.0
      %5887 = vmatprep.subr.mxu0 0.0
      %5888 = vmatpush2.msra.mxu0 0.0
      %5889 = vmatprep.subr.mxu0 0.0
      %5890 = vmatpush2.msra.mxu0 0.0
      %5891 = vmatprep.subr.mxu0 0.0
      %5892 = vmatpush2.msra.mxu0 0.0
      %5893 = vmatprep.subr.mxu0 0.0
      %5894 = vmatpush2.msra.mxu0 0.0
      %5895 = vmatprep.subr.mxu0 0.0
      %5896 = vmatpush2.msra.mxu0 0.0
      %5897 = vmatprep.subr.mxu0 0.0
      %5898 = vmatpush2.msra.mxu0 0.0
      %5899 = vmatprep.subr.mxu0 0.0
      %5900 = vmatpush2.msra.mxu0 0.0
      %5901 = vmatprep.subr.mxu0 0.0
      %5902 = vmatpush2.msra.mxu0 0.0
      %5903 = vmatprep.subr.mxu0 0.0
      %5904 = vmatpush2.msra.mxu0 0.0
      %5905 = vmatprep.subr.mxu0 0.0
      %5906 = vmatpush2.msra.mxu0 0.0
      %5907 = vmatprep.subr.mxu0 0.0
      %5908 = vmatpush2.msra.mxu0 0.0
      %5909 = vmatprep.mubr.f32.mxu0 0.0
      %v5910 = vand.u32 %v5504, 4294901760
      %5911 = vmatmul.mubr.f32.gmra.mxu0 %v5910
      %v5912 = vpop.f32.mrf.mxu0
      %v5913 = vadd.f32 %v5830, %v5912
      %v5914 = vpop.f32.mrf.mxu0
      %5915 = vdwg.mxu0
      %5916 = vmatprep.subr.mxu0 0.0
      %5917 = vmatpush1.msra.mxu0 0.0
      %5918 = vmatprep.subr.mxu0 0.0
      %5919 = vmatpush1.msra.mxu0 0.0
      %5920 = vmatprep.subr.mxu0 0.0
      %5921 = vmatpush1.msra.mxu0 0.0
      %5922 = vmatprep.subr.mxu0 0.0
      %5923 = vmatpush1.msra.mxu0 0.0
      %5924 = vmatprep.subr.mxu0 0.0
      %5925 = vmatpush1.msra.mxu0 0.0
      %5926 = vmatprep.subr.mxu0 0.0
      %5927 = vmatpush1.msra.mxu0 0.0
      %5928 = vmatprep.subr.mxu0 0.0
      %5929 = vmatpush1.msra.mxu0 0.0
      %5930 = vmatprep.subr.mxu0 0.0
      %5931 = vmatpush1.msra.mxu0 0.0
      %5932 = vmatprep.subr.mxu0 0.0
      %5933 = vmatpush1.msra.mxu0 0.0
      %5934 = vmatprep.subr.mxu0 0.0
      %5935 = vmatpush1.msra.mxu0 0.0
      %5936 = vmatprep.subr.mxu0 0.0
      %5937 = vmatpush1.msra.mxu0 0.0
      %5938 = vmatprep.subr.mxu0 0.0
      %5939 = vmatpush1.msra.mxu0 0.0
      %5940 = vmatprep.subr.mxu0 0.0
      %v5941 = vand.u32 %v5037, 4294901760
      %5942 = vmatpush1.msra.mxu0 %v5941
      %5943 = vmatprep.subr.mxu0 0.0
      %v5944 = vand.u32 %v5036, 4294901760
      %5945 = vmatpush1.msra.mxu0 %v5944
      %5946 = vmatprep.subr.mxu0 0.0
      %v5947 = vand.u32 %v5035, 4294901760
      %5948 = vmatpush1.msra.mxu0 %v5947
      %5949 = vmatprep.subr.mxu0 0.0
      %v5950 = vand.u32 %v5034, 4294901760
      %5951 = vmatpush1.msra.mxu0 %v5950
      %5952 = vmatprep.subr.mxu0 0.0
      %5953 = vmatpush2.msra.mxu0 0.0
      %5954 = vmatprep.subr.mxu0 0.0
      %5955 = vmatpush2.msra.mxu0 0.0
      %5956 = vmatprep.subr.mxu0 0.0
      %5957 = vmatpush2.msra.mxu0 0.0
      %5958 = vmatprep.subr.mxu0 0.0
      %5959 = vmatpush2.msra.mxu0 0.0
      %5960 = vmatprep.subr.mxu0 0.0
      %5961 = vmatpush2.msra.mxu0 0.0
      %5962 = vmatprep.subr.mxu0 0.0
      %5963 = vmatpush2.msra.mxu0 0.0
      %5964 = vmatprep.subr.mxu0 0.0
      %5965 = vmatpush2.msra.mxu0 0.0
      %5966 = vmatprep.subr.mxu0 0.0
      %5967 = vmatpush2.msra.mxu0 0.0
      %5968 = vmatprep.subr.mxu0 0.0
      %5969 = vmatpush2.msra.mxu0 0.0
      %5970 = vmatprep.subr.mxu0 0.0
      %5971 = vmatpush2.msra.mxu0 0.0
      %5972 = vmatprep.subr.mxu0 0.0
      %5973 = vmatpush2.msra.mxu0 0.0
      %5974 = vmatprep.subr.mxu0 0.0
      %5975 = vmatpush2.msra.mxu0 0.0
      %5976 = vmatprep.subr.mxu0 0.0
      %5977 = vmatpush2.msra.mxu0 0.0
      %5978 = vmatprep.subr.mxu0 0.0
      %5979 = vmatpush2.msra.mxu0 0.0
      %5980 = vmatprep.subr.mxu0 0.0
      %5981 = vmatpush2.msra.mxu0 0.0
      %5982 = vmatprep.subr.mxu0 0.0
      %5983 = vmatpush2.msra.mxu0 0.0
      %5984 = vmatprep.mubr.f32.mxu0 0.0
      %v5985 = vand.u32 %v5504, 4294901760
      %5986 = vmatmul.mubr.f32.gmra.mxu0 %v5985
      %v5987 = vpop.f32.mrf.mxu0
      %v5988 = vadd.f32 %v5913, %v5987
      %v5989 = vpop.f32.mrf.mxu0
      %5990 = vdwg.mxu0
      %v5991 = vld [vmem:[%s7] sm:$0x1]
      %v5993 = vlaneseq
      %v5994 = vshrl.u32 %v5993, 7
      %v5995 = vsub.s32 0, %v5994
      %v5996 = vrot.slane %v5991, %v5995
      %v5998 = vadd.f32 %v5988, %v5996
      %v5999 = vmax.f32 %v5998, 0.0
      %v6000 = vld [vmem:[%s8] sm:$0xff]
      %v6001 = vld [vmem:[%s8 + $0x8] sm:$0xff]
      %v6002 = vld [vmem:[%s8 + $0x10] sm:$0xff]
      %v6003 = vld [vmem:[%s8 + $0x18] sm:$0xff]
      %v6004 = vld [vmem:[%s8 + $0x20] sm:$0xff]
      %v6005 = vld [vmem:[%s8 + $0x28] sm:$0xff]
      %v6006 = vld [vmem:[%s8 + $0x30] sm:$0xff]
      %v6007 = vld [vmem:[%s8 + $0x38] sm:$0xff]
      %v6008 = vld [vmem:[%s9] sm:$0x1]
      %v6010 = vlaneseq
      %v6011 = vshrl.u32 %v6010, 7
      %v6012 = vsub.s32 0, %v6011
      %v6013 = vrot.slane %v6008, %v6012
      %vm6015 = vcmask 523264
      %v6017 = vsel %vm6015, %v5999, 0
      %6019 = vmatprep.subr.mxu0 0.0
      %6020 = vmatpush1.msra.mxu0 0.0
      %6021 = vmatprep.subr.mxu0 0.0
      %6022 = vmatpush1.msra.mxu0 0.0
      %6023 = vmatprep.subr.mxu0 0.0
      %6024 = vmatpush1.msra.mxu0 0.0
      %6025 = vmatprep.subr.mxu0 0.0
      %6026 = vmatpush1.msra.mxu0 0.0
      %6027 = vmatprep.subr.mxu0 0.0
      %6028 = vmatpush1.msra.mxu0 0.0
      %6029 = vmatprep.subr.mxu0 0.0
      %6030 = vmatpush1.msra.mxu0 0.0
      %6031 = vmatprep.subr.mxu0 0.0
      %6032 = vmatpush1.msra.mxu0 0.0
      %6033 = vmatprep.subr.mxu0 0.0
      %6034 = vmatpush1.msra.mxu0 0.0
      %6035 = vmatprep.subr.mxu0 0.0
      %v6036 = vand.u32 %v6007, 4294901760
      %6037 = vmatpush1.msra.mxu0 %v6036
      %6038 = vmatprep.subr.mxu0 0.0
      %v6039 = vand.u32 %v6006, 4294901760
      %6040 = vmatpush1.msra.mxu0 %v6039
      %6041 = vmatprep.subr.mxu0 0.0
      %v6042 = vand.u32 %v6005, 4294901760
      %6043 = vmatpush1.msra.mxu0 %v6042
      %6044 = vmatprep.subr.mxu0 0.0
      %v6045 = vand.u32 %v6004, 4294901760
      %6046 = vmatpush1.msra.mxu0 %v6045
      %6047 = vmatprep.subr.mxu0 0.0
      %v6048 = vand.u32 %v6003, 4294901760
      %6049 = vmatpush1.msra.mxu0 %v6048
      %6050 = vmatprep.subr.mxu0 0.0
      %v6051 = vand.u32 %v6002, 4294901760
      %6052 = vmatpush1.msra.mxu0 %v6051
      %6053 = vmatprep.subr.mxu0 0.0
      %v6054 = vand.u32 %v6001, 4294901760
      %6055 = vmatpush1.msra.mxu0 %v6054
      %6056 = vmatprep.subr.mxu0 0.0
      %v6057 = vand.u32 %v6000, 4294901760
      %6058 = vmatpush1.msra.mxu0 %v6057
      %6059 = vmatprep.subr.mxu0 0.0
      %6060 = vmatpush2.msra.mxu0 0.0
      %6061 = vmatprep.subr.mxu0 0.0
      %6062 = vmatpush2.msra.mxu0 0.0
      %6063 = vmatprep.subr.mxu0 0.0
      %6064 = vmatpush2.msra.mxu0 0.0
      %6065 = vmatprep.subr.mxu0 0.0
      %6066 = vmatpush2.msra.mxu0 0.0
      %6067 = vmatprep.subr.mxu0 0.0
      %6068 = vmatpush2.msra.mxu0 0.0
      %6069 = vmatprep.subr.mxu0 0.0
      %6070 = vmatpush2.msra.mxu0 0.0
      %6071 = vmatprep.subr.mxu0 0.0
      %6072 = vmatpush2.msra.mxu0 0.0
      %6073 = vmatprep.subr.mxu0 0.0
      %6074 = vmatpush2.msra.mxu0 0.0
      %6075 = vmatprep.subr.mxu0 0.0
      %6076 = vmatpush2.msra.mxu0 0.0
      %6077 = vmatprep.subr.mxu0 0.0
      %6078 = vmatpush2.msra.mxu0 0.0
      %6079 = vmatprep.subr.mxu0 0.0
      %6080 = vmatpush2.msra.mxu0 0.0
      %6081 = vmatprep.subr.mxu0 0.0
      %6082 = vmatpush2.msra.mxu0 0.0
      %6083 = vmatprep.subr.mxu0 0.0
      %6084 = vmatpush2.msra.mxu0 0.0
      %6085 = vmatprep.subr.mxu0 0.0
      %6086 = vmatpush2.msra.mxu0 0.0
      %6087 = vmatprep.subr.mxu0 0.0
      %6088 = vmatpush2.msra.mxu0 0.0
      %6089 = vmatprep.subr.mxu0 0.0
      %6090 = vmatpush2.msra.mxu0 0.0
      %6091 = vmatprep.mubr.f32.mxu0 0.0
      %v6092 = vand.u32 %v6017, 4294901760
      %v6093 = vsub.f32 %v6017, %v6092
      %v6094 = vand.u32 %v6093, 4294901760
      %v6095 = vsub.f32 %v6093, %v6094
      %v6096 = vand.u32 %v6095, 4294901760
      %6097 = vmatmul.mubr.f32.gmra.mxu0 %v6096
      %v6098 = vpop.f32.mrf.mxu0
      %v6099 = vadd.f32 %v6013, %v6098
      %v6100 = vpop.f32.mrf.mxu0
      %6101 = vdwg.mxu0
      %6102 = vmatprep.subr.mxu0 0.0
      %6103 = vmatpush1.msra.mxu0 0.0
      %6104 = vmatprep.subr.mxu0 0.0
      %6105 = vmatpush1.msra.mxu0 0.0
      %6106 = vmatprep.subr.mxu0 0.0
      %6107 = vmatpush1.msra.mxu0 0.0
      %6108 = vmatprep.subr.mxu0 0.0
      %6109 = vmatpush1.msra.mxu0 0.0
      %6110 = vmatprep.subr.mxu0 0.0
      %6111 = vmatpush1.msra.mxu0 0.0
      %6112 = vmatprep.subr.mxu0 0.0
      %6113 = vmatpush1.msra.mxu0 0.0
      %6114 = vmatprep.subr.mxu0 0.0
      %6115 = vmatpush1.msra.mxu0 0.0
      %6116 = vmatprep.subr.mxu0 0.0
      %6117 = vmatpush1.msra.mxu0 0.0
      %6118 = vmatprep.subr.mxu0 0.0
      %v6119 = vand.u32 %v6007, 4294901760
      %v6120 = vsub.f32 %v6007, %v6119
      %v6121 = vand.u32 %v6120, 4294901760
      %v6122 = vsub.f32 %v6120, %v6121
      %v6123 = vand.u32 %v6122, 4294901760
      %6124 = vmatpush1.msra.mxu0 %v6123
      %6125 = vmatprep.subr.mxu0 0.0
      %v6126 = vand.u32 %v6006, 4294901760
      %v6127 = vsub.f32 %v6006, %v6126
      %v6128 = vand.u32 %v6127, 4294901760
      %v6129 = vsub.f32 %v6127, %v6128
      %v6130 = vand.u32 %v6129, 4294901760
      %6131 = vmatpush1.msra.mxu0 %v6130
      %6132 = vmatprep.subr.mxu0 0.0
      %v6133 = vand.u32 %v6005, 4294901760
      %v6134 = vsub.f32 %v6005, %v6133
      %v6135 = vand.u32 %v6134, 4294901760
      %v6136 = vsub.f32 %v6134, %v6135
      %v6137 = vand.u32 %v6136, 4294901760
      %6138 = vmatpush1.msra.mxu0 %v6137
      %6139 = vmatprep.subr.mxu0 0.0
      %v6140 = vand.u32 %v6004, 4294901760
      %v6141 = vsub.f32 %v6004, %v6140
      %v6142 = vand.u32 %v6141, 4294901760
      %v6143 = vsub.f32 %v6141, %v6142
      %v6144 = vand.u32 %v6143, 4294901760
      %6145 = vmatpush1.msra.mxu0 %v6144
      %6146 = vmatprep.subr.mxu0 0.0
      %v6147 = vand.u32 %v6003, 4294901760
      %v6148 = vsub.f32 %v6003, %v6147
      %v6149 = vand.u32 %v6148, 4294901760
      %v6150 = vsub.f32 %v6148, %v6149
      %v6151 = vand.u32 %v6150, 4294901760
      %6152 = vmatpush1.msra.mxu0 %v6151
      %6153 = vmatprep.subr.mxu0 0.0
      %v6154 = vand.u32 %v6002, 4294901760
      %v6155 = vsub.f32 %v6002, %v6154
      %v6156 = vand.u32 %v6155, 4294901760
      %v6157 = vsub.f32 %v6155, %v6156
      %v6158 = vand.u32 %v6157, 4294901760
      %6159 = vmatpush1.msra.mxu0 %v6158
      %6160 = vmatprep.subr.mxu0 0.0
      %v6161 = vand.u32 %v6001, 4294901760
      %v6162 = vsub.f32 %v6001, %v6161
      %v6163 = vand.u32 %v6162, 4294901760
      %v6164 = vsub.f32 %v6162, %v6163
      %v6165 = vand.u32 %v6164, 4294901760
      %6166 = vmatpush1.msra.mxu0 %v6165
      %6167 = vmatprep.subr.mxu0 0.0
      %v6168 = vand.u32 %v6000, 4294901760
      %v6169 = vsub.f32 %v6000, %v6168
      %v6170 = vand.u32 %v6169, 4294901760
      %v6171 = vsub.f32 %v6169, %v6170
      %v6172 = vand.u32 %v6171, 4294901760
      %6173 = vmatpush1.msra.mxu0 %v6172
      %6174 = vmatprep.subr.mxu0 0.0
      %6175 = vmatpush2.msra.mxu0 0.0
      %6176 = vmatprep.subr.mxu0 0.0
      %6177 = vmatpush2.msra.mxu0 0.0
      %6178 = vmatprep.subr.mxu0 0.0
      %6179 = vmatpush2.msra.mxu0 0.0
      %6180 = vmatprep.subr.mxu0 0.0
      %6181 = vmatpush2.msra.mxu0 0.0
      %6182 = vmatprep.subr.mxu0 0.0
      %6183 = vmatpush2.msra.mxu0 0.0
      %6184 = vmatprep.subr.mxu0 0.0
      %6185 = vmatpush2.msra.mxu0 0.0
      %6186 = vmatprep.subr.mxu0 0.0
      %6187 = vmatpush2.msra.mxu0 0.0
      %6188 = vmatprep.subr.mxu0 0.0
      %6189 = vmatpush2.msra.mxu0 0.0
      %6190 = vmatprep.subr.mxu0 0.0
      %6191 = vmatpush2.msra.mxu0 0.0
      %6192 = vmatprep.subr.mxu0 0.0
      %6193 = vmatpush2.msra.mxu0 0.0
      %6194 = vmatprep.subr.mxu0 0.0
      %6195 = vmatpush2.msra.mxu0 0.0
      %6196 = vmatprep.subr.mxu0 0.0
      %6197 = vmatpush2.msra.mxu0 0.0
      %6198 = vmatprep.subr.mxu0 0.0
      %6199 = vmatpush2.msra.mxu0 0.0
      %6200 = vmatprep.subr.mxu0 0.0
      %6201 = vmatpush2.msra.mxu0 0.0
      %6202 = vmatprep.subr.mxu0 0.0
      %6203 = vmatpush2.msra.mxu0 0.0
      %6204 = vmatprep.subr.mxu0 0.0
      %6205 = vmatpush2.msra.mxu0 0.0
      %6206 = vmatprep.mubr.f32.mxu0 0.0
      %v6207 = vand.u32 %v6017, 4294901760
      %6208 = vmatmul.mubr.f32.gmra.mxu0 %v6207
      %v6209 = vpop.f32.mrf.mxu0
      %v6210 = vadd.f32 %v6099, %v6209
      %v6211 = vpop.f32.mrf.mxu0
      %6212 = vdwg.mxu0
      %6213 = vmatprep.subr.mxu0 0.0
      %6214 = vmatpush1.msra.mxu0 0.0
      %6215 = vmatprep.subr.mxu0 0.0
      %6216 = vmatpush1.msra.mxu0 0.0
      %6217 = vmatprep.subr.mxu0 0.0
      %6218 = vmatpush1.msra.mxu0 0.0
      %6219 = vmatprep.subr.mxu0 0.0
      %6220 = vmatpush1.msra.mxu0 0.0
      %6221 = vmatprep.subr.mxu0 0.0
      %6222 = vmatpush1.msra.mxu0 0.0
      %6223 = vmatprep.subr.mxu0 0.0
      %6224 = vmatpush1.msra.mxu0 0.0
      %6225 = vmatprep.subr.mxu0 0.0
      %6226 = vmatpush1.msra.mxu0 0.0
      %6227 = vmatprep.subr.mxu0 0.0
      %6228 = vmatpush1.msra.mxu0 0.0
      %6229 = vmatprep.subr.mxu0 0.0
      %v6230 = vand.u32 %v6007, 4294901760
      %v6231 = vsub.f32 %v6007, %v6230
      %6232 = vmatpush1.msra.mxu0 %v6231
      %6233 = vmatprep.subr.mxu0 0.0
      %v6234 = vand.u32 %v6006, 4294901760
      %v6235 = vsub.f32 %v6006, %v6234
      %6236 = vmatpush1.msra.mxu0 %v6235
      %6237 = vmatprep.subr.mxu0 0.0
      %v6238 = vand.u32 %v6005, 4294901760
      %v6239 = vsub.f32 %v6005, %v6238
      %6240 = vmatpush1.msra.mxu0 %v6239
      %6241 = vmatprep.subr.mxu0 0.0
      %v6242 = vand.u32 %v6004, 4294901760
      %v6243 = vsub.f32 %v6004, %v6242
      %6244 = vmatpush1.msra.mxu0 %v6243
      %6245 = vmatprep.subr.mxu0 0.0
      %v6246 = vand.u32 %v6003, 4294901760
      %v6247 = vsub.f32 %v6003, %v6246
      %6248 = vmatpush1.msra.mxu0 %v6247
      %6249 = vmatprep.subr.mxu0 0.0
      %v6250 = vand.u32 %v6002, 4294901760
      %v6251 = vsub.f32 %v6002, %v6250
      %6252 = vmatpush1.msra.mxu0 %v6251
      %6253 = vmatprep.subr.mxu0 0.0
      %v6254 = vand.u32 %v6001, 4294901760
      %v6255 = vsub.f32 %v6001, %v6254
      %6256 = vmatpush1.msra.mxu0 %v6255
      %6257 = vmatprep.subr.mxu0 0.0
      %v6258 = vand.u32 %v6000, 4294901760
      %v6259 = vsub.f32 %v6000, %v6258
      %6260 = vmatpush1.msra.mxu0 %v6259
      %6261 = vmatprep.subr.mxu0 0.0
      %6262 = vmatpush2.msra.mxu0 0.0
      %6263 = vmatprep.subr.mxu0 0.0
      %6264 = vmatpush2.msra.mxu0 0.0
      %6265 = vmatprep.subr.mxu0 0.0
      %6266 = vmatpush2.msra.mxu0 0.0
      %6267 = vmatprep.subr.mxu0 0.0
      %6268 = vmatpush2.msra.mxu0 0.0
      %6269 = vmatprep.subr.mxu0 0.0
      %6270 = vmatpush2.msra.mxu0 0.0
      %6271 = vmatprep.subr.mxu0 0.0
      %6272 = vmatpush2.msra.mxu0 0.0
      %6273 = vmatprep.subr.mxu0 0.0
      %6274 = vmatpush2.msra.mxu0 0.0
      %6275 = vmatprep.subr.mxu0 0.0
      %6276 = vmatpush2.msra.mxu0 0.0
      %6277 = vmatprep.subr.mxu0 0.0
      %6278 = vmatpush2.msra.mxu0 0.0
      %6279 = vmatprep.subr.mxu0 0.0
      %6280 = vmatpush2.msra.mxu0 0.0
      %6281 = vmatprep.subr.mxu0 0.0
      %6282 = vmatpush2.msra.mxu0 0.0
      %6283 = vmatprep.subr.mxu0 0.0
      %6284 = vmatpush2.msra.mxu0 0.0
      %6285 = vmatprep.subr.mxu0 0.0
      %6286 = vmatpush2.msra.mxu0 0.0
      %6287 = vmatprep.subr.mxu0 0.0
      %6288 = vmatpush2.msra.mxu0 0.0
      %6289 = vmatprep.subr.mxu0 0.0
      %6290 = vmatpush2.msra.mxu0 0.0
      %6291 = vmatprep.subr.mxu0 0.0
      %6292 = vmatpush2.msra.mxu0 0.0
      %6293 = vmatprep.mubr.f32.mxu0 0.0
      %v6294 = vand.u32 %v6017, 4294901760
      %v6295 = vsub.f32 %v6017, %v6294
      %6296 = vmatmul.mubr.f32.gmra.mxu0 %v6295
      %v6297 = vpop.f32.mrf.mxu0
      %v6298 = vadd.f32 %v6210, %v6297
      %v6299 = vpop.f32.mrf.mxu0
      %6300 = vdwg.mxu0
      %6301 = vmatprep.subr.mxu0 0.0
      %6302 = vmatpush1.msra.mxu0 0.0
      %6303 = vmatprep.subr.mxu0 0.0
      %6304 = vmatpush1.msra.mxu0 0.0
      %6305 = vmatprep.subr.mxu0 0.0
      %6306 = vmatpush1.msra.mxu0 0.0
      %6307 = vmatprep.subr.mxu0 0.0
      %6308 = vmatpush1.msra.mxu0 0.0
      %6309 = vmatprep.subr.mxu0 0.0
      %6310 = vmatpush1.msra.mxu0 0.0
      %6311 = vmatprep.subr.mxu0 0.0
      %6312 = vmatpush1.msra.mxu0 0.0
      %6313 = vmatprep.subr.mxu0 0.0
      %6314 = vmatpush1.msra.mxu0 0.0
      %6315 = vmatprep.subr.mxu0 0.0
      %6316 = vmatpush1.msra.mxu0 0.0
      %6317 = vmatprep.subr.mxu0 0.0
      %v6318 = vand.u32 %v6007, 4294901760
      %6319 = vmatpush1.msra.mxu0 %v6318
      %6320 = vmatprep.subr.mxu0 0.0
      %v6321 = vand.u32 %v6006, 4294901760
      %6322 = vmatpush1.msra.mxu0 %v6321
      %6323 = vmatprep.subr.mxu0 0.0
      %v6324 = vand.u32 %v6005, 4294901760
      %6325 = vmatpush1.msra.mxu0 %v6324
      %6326 = vmatprep.subr.mxu0 0.0
      %v6327 = vand.u32 %v6004, 4294901760
      %6328 = vmatpush1.msra.mxu0 %v6327
      %6329 = vmatprep.subr.mxu0 0.0
      %v6330 = vand.u32 %v6003, 4294901760
      %6331 = vmatpush1.msra.mxu0 %v6330
      %6332 = vmatprep.subr.mxu0 0.0
      %v6333 = vand.u32 %v6002, 4294901760
      %6334 = vmatpush1.msra.mxu0 %v6333
      %6335 = vmatprep.subr.mxu0 0.0
      %v6336 = vand.u32 %v6001, 4294901760
      %6337 = vmatpush1.msra.mxu0 %v6336
      %6338 = vmatprep.subr.mxu0 0.0
      %v6339 = vand.u32 %v6000, 4294901760
      %6340 = vmatpush1.msra.mxu0 %v6339
      %6341 = vmatprep.subr.mxu0 0.0
      %6342 = vmatpush2.msra.mxu0 0.0
      %6343 = vmatprep.subr.mxu0 0.0
      %6344 = vmatpush2.msra.mxu0 0.0
      %6345 = vmatprep.subr.mxu0 0.0
      %6346 = vmatpush2.msra.mxu0 0.0
      %6347 = vmatprep.subr.mxu0 0.0
      %6348 = vmatpush2.msra.mxu0 0.0
      %6349 = vmatprep.subr.mxu0 0.0
      %6350 = vmatpush2.msra.mxu0 0.0
      %6351 = vmatprep.subr.mxu0 0.0
      %6352 = vmatpush2.msra.mxu0 0.0
      %6353 = vmatprep.subr.mxu0 0.0
      %6354 = vmatpush2.msra.mxu0 0.0
      %6355 = vmatprep.subr.mxu0 0.0
      %6356 = vmatpush2.msra.mxu0 0.0
      %6357 = vmatprep.subr.mxu0 0.0
      %6358 = vmatpush2.msra.mxu0 0.0
      %6359 = vmatprep.subr.mxu0 0.0
      %6360 = vmatpush2.msra.mxu0 0.0
      %6361 = vmatprep.subr.mxu0 0.0
      %6362 = vmatpush2.msra.mxu0 0.0
      %6363 = vmatprep.subr.mxu0 0.0
      %6364 = vmatpush2.msra.mxu0 0.0
      %6365 = vmatprep.subr.mxu0 0.0
      %6366 = vmatpush2.msra.mxu0 0.0
      %6367 = vmatprep.subr.mxu0 0.0
      %6368 = vmatpush2.msra.mxu0 0.0
      %6369 = vmatprep.subr.mxu0 0.0
      %6370 = vmatpush2.msra.mxu0 0.0
      %6371 = vmatprep.subr.mxu0 0.0
      %6372 = vmatpush2.msra.mxu0 0.0
      %6373 = vmatprep.mubr.f32.mxu0 0.0
      %v6374 = vand.u32 %v6017, 4294901760
      %v6375 = vsub.f32 %v6017, %v6374
      %v6376 = vand.u32 %v6375, 4294901760
      %6377 = vmatmul.mubr.f32.gmra.mxu0 %v6376
      %v6378 = vpop.f32.mrf.mxu0
      %v6379 = vadd.f32 %v6298, %v6378
      %v6380 = vpop.f32.mrf.mxu0
      %6381 = vdwg.mxu0
      %6382 = vmatprep.subr.mxu0 0.0
      %6383 = vmatpush1.msra.mxu0 0.0
      %6384 = vmatprep.subr.mxu0 0.0
      %6385 = vmatpush1.msra.mxu0 0.0
      %6386 = vmatprep.subr.mxu0 0.0
      %6387 = vmatpush1.msra.mxu0 0.0
      %6388 = vmatprep.subr.mxu0 0.0
      %6389 = vmatpush1.msra.mxu0 0.0
      %6390 = vmatprep.subr.mxu0 0.0
      %6391 = vmatpush1.msra.mxu0 0.0
      %6392 = vmatprep.subr.mxu0 0.0
      %6393 = vmatpush1.msra.mxu0 0.0
      %6394 = vmatprep.subr.mxu0 0.0
      %6395 = vmatpush1.msra.mxu0 0.0
      %6396 = vmatprep.subr.mxu0 0.0
      %6397 = vmatpush1.msra.mxu0 0.0
      %6398 = vmatprep.subr.mxu0 0.0
      %v6399 = vand.u32 %v6007, 4294901760
      %v6400 = vsub.f32 %v6007, %v6399
      %v6401 = vand.u32 %v6400, 4294901760
      %6402 = vmatpush1.msra.mxu0 %v6401
      %6403 = vmatprep.subr.mxu0 0.0
      %v6404 = vand.u32 %v6006, 4294901760
      %v6405 = vsub.f32 %v6006, %v6404
      %v6406 = vand.u32 %v6405, 4294901760
      %6407 = vmatpush1.msra.mxu0 %v6406
      %6408 = vmatprep.subr.mxu0 0.0
      %v6409 = vand.u32 %v6005, 4294901760
      %v6410 = vsub.f32 %v6005, %v6409
      %v6411 = vand.u32 %v6410, 4294901760
      %6412 = vmatpush1.msra.mxu0 %v6411
      %6413 = vmatprep.subr.mxu0 0.0
      %v6414 = vand.u32 %v6004, 4294901760
      %v6415 = vsub.f32 %v6004, %v6414
      %v6416 = vand.u32 %v6415, 4294901760
      %6417 = vmatpush1.msra.mxu0 %v6416
      %6418 = vmatprep.subr.mxu0 0.0
      %v6419 = vand.u32 %v6003, 4294901760
      %v6420 = vsub.f32 %v6003, %v6419
      %v6421 = vand.u32 %v6420, 4294901760
      %6422 = vmatpush1.msra.mxu0 %v6421
      %6423 = vmatprep.subr.mxu0 0.0
      %v6424 = vand.u32 %v6002, 4294901760
      %v6425 = vsub.f32 %v6002, %v6424
      %v6426 = vand.u32 %v6425, 4294901760
      %6427 = vmatpush1.msra.mxu0 %v6426
      %6428 = vmatprep.subr.mxu0 0.0
      %v6429 = vand.u32 %v6001, 4294901760
      %v6430 = vsub.f32 %v6001, %v6429
      %v6431 = vand.u32 %v6430, 4294901760
      %6432 = vmatpush1.msra.mxu0 %v6431
      %6433 = vmatprep.subr.mxu0 0.0
      %v6434 = vand.u32 %v6000, 4294901760
      %v6435 = vsub.f32 %v6000, %v6434
      %v6436 = vand.u32 %v6435, 4294901760
      %6437 = vmatpush1.msra.mxu0 %v6436
      %6438 = vmatprep.subr.mxu0 0.0
      %6439 = vmatpush2.msra.mxu0 0.0
      %6440 = vmatprep.subr.mxu0 0.0
      %6441 = vmatpush2.msra.mxu0 0.0
      %6442 = vmatprep.subr.mxu0 0.0
      %6443 = vmatpush2.msra.mxu0 0.0
      %6444 = vmatprep.subr.mxu0 0.0
      %6445 = vmatpush2.msra.mxu0 0.0
      %6446 = vmatprep.subr.mxu0 0.0
      %6447 = vmatpush2.msra.mxu0 0.0
      %6448 = vmatprep.subr.mxu0 0.0
      %6449 = vmatpush2.msra.mxu0 0.0
      %6450 = vmatprep.subr.mxu0 0.0
      %6451 = vmatpush2.msra.mxu0 0.0
      %6452 = vmatprep.subr.mxu0 0.0
      %6453 = vmatpush2.msra.mxu0 0.0
      %6454 = vmatprep.subr.mxu0 0.0
      %6455 = vmatpush2.msra.mxu0 0.0
      %6456 = vmatprep.subr.mxu0 0.0
      %6457 = vmatpush2.msra.mxu0 0.0
      %6458 = vmatprep.subr.mxu0 0.0
      %6459 = vmatpush2.msra.mxu0 0.0
      %6460 = vmatprep.subr.mxu0 0.0
      %6461 = vmatpush2.msra.mxu0 0.0
      %6462 = vmatprep.subr.mxu0 0.0
      %6463 = vmatpush2.msra.mxu0 0.0
      %6464 = vmatprep.subr.mxu0 0.0
      %6465 = vmatpush2.msra.mxu0 0.0
      %6466 = vmatprep.subr.mxu0 0.0
      %6467 = vmatpush2.msra.mxu0 0.0
      %6468 = vmatprep.subr.mxu0 0.0
      %6469 = vmatpush2.msra.mxu0 0.0
      %6470 = vmatprep.mubr.f32.mxu0 0.0
      %v6471 = vand.u32 %v6017, 4294901760
      %6472 = vmatmul.mubr.f32.gmra.mxu0 %v6471
      %v6473 = vpop.f32.mrf.mxu0
      %v6474 = vadd.f32 %v6379, %v6473
      %v6475 = vpop.f32.mrf.mxu0
      %6476 = vdwg.mxu0
      %6477 = vmatprep.subr.mxu0 0.0
      %6478 = vmatpush1.msra.mxu0 0.0
      %6479 = vmatprep.subr.mxu0 0.0
      %6480 = vmatpush1.msra.mxu0 0.0
      %6481 = vmatprep.subr.mxu0 0.0
      %6482 = vmatpush1.msra.mxu0 0.0
      %6483 = vmatprep.subr.mxu0 0.0
      %6484 = vmatpush1.msra.mxu0 0.0
      %6485 = vmatprep.subr.mxu0 0.0
      %6486 = vmatpush1.msra.mxu0 0.0
      %6487 = vmatprep.subr.mxu0 0.0
      %6488 = vmatpush1.msra.mxu0 0.0
      %6489 = vmatprep.subr.mxu0 0.0
      %6490 = vmatpush1.msra.mxu0 0.0
      %6491 = vmatprep.subr.mxu0 0.0
      %6492 = vmatpush1.msra.mxu0 0.0
      %6493 = vmatprep.subr.mxu0 0.0
      %v6494 = vand.u32 %v6007, 4294901760
      %6495 = vmatpush1.msra.mxu0 %v6494
      %6496 = vmatprep.subr.mxu0 0.0
      %v6497 = vand.u32 %v6006, 4294901760
      %6498 = vmatpush1.msra.mxu0 %v6497
      %6499 = vmatprep.subr.mxu0 0.0
      %v6500 = vand.u32 %v6005, 4294901760
      %6501 = vmatpush1.msra.mxu0 %v6500
      %6502 = vmatprep.subr.mxu0 0.0
      %v6503 = vand.u32 %v6004, 4294901760
      %6504 = vmatpush1.msra.mxu0 %v6503
      %6505 = vmatprep.subr.mxu0 0.0
      %v6506 = vand.u32 %v6003, 4294901760
      %6507 = vmatpush1.msra.mxu0 %v6506
      %6508 = vmatprep.subr.mxu0 0.0
      %v6509 = vand.u32 %v6002, 4294901760
      %6510 = vmatpush1.msra.mxu0 %v6509
      %6511 = vmatprep.subr.mxu0 0.0
      %v6512 = vand.u32 %v6001, 4294901760
      %6513 = vmatpush1.msra.mxu0 %v6512
      %6514 = vmatprep.subr.mxu0 0.0
      %v6515 = vand.u32 %v6000, 4294901760
      %6516 = vmatpush1.msra.mxu0 %v6515
      %6517 = vmatprep.subr.mxu0 0.0
      %6518 = vmatpush2.msra.mxu0 0.0
      %6519 = vmatprep.subr.mxu0 0.0
      %6520 = vmatpush2.msra.mxu0 0.0
      %6521 = vmatprep.subr.mxu0 0.0
      %6522 = vmatpush2.msra.mxu0 0.0
      %6523 = vmatprep.subr.mxu0 0.0
      %6524 = vmatpush2.msra.mxu0 0.0
      %6525 = vmatprep.subr.mxu0 0.0
      %6526 = vmatpush2.msra.mxu0 0.0
      %6527 = vmatprep.subr.mxu0 0.0
      %6528 = vmatpush2.msra.mxu0 0.0
      %6529 = vmatprep.subr.mxu0 0.0
      %6530 = vmatpush2.msra.mxu0 0.0
      %6531 = vmatprep.subr.mxu0 0.0
      %6532 = vmatpush2.msra.mxu0 0.0
      %6533 = vmatprep.subr.mxu0 0.0
      %6534 = vmatpush2.msra.mxu0 0.0
      %6535 = vmatprep.subr.mxu0 0.0
      %6536 = vmatpush2.msra.mxu0 0.0
      %6537 = vmatprep.subr.mxu0 0.0
      %6538 = vmatpush2.msra.mxu0 0.0
      %6539 = vmatprep.subr.mxu0 0.0
      %6540 = vmatpush2.msra.mxu0 0.0
      %6541 = vmatprep.subr.mxu0 0.0
      %6542 = vmatpush2.msra.mxu0 0.0
      %6543 = vmatprep.subr.mxu0 0.0
      %6544 = vmatpush2.msra.mxu0 0.0
      %6545 = vmatprep.subr.mxu0 0.0
      %6546 = vmatpush2.msra.mxu0 0.0
      %6547 = vmatprep.subr.mxu0 0.0
      %6548 = vmatpush2.msra.mxu0 0.0
      %6549 = vmatprep.mubr.f32.mxu0 0.0
      %v6550 = vand.u32 %v6017, 4294901760
      %6551 = vmatmul.mubr.f32.gmra.mxu0 %v6550
      %v6552 = vpop.f32.mrf.mxu0
      %v6553 = vadd.f32 %v6474, %v6552
      %v6554 = vpop.f32.mrf.mxu0
      %6555 = vdwg.mxu0
      %6556 = vst.msk [vmem:[#allocation5] sm:$0xff] %vm62, %v6553
    $region49: #{tpu_custom_call.1} parent=1 // pred_fallthru
      _
    // Predicated region
    $region50: #{tpu_custom_call.1} parent=1 // pred_check
      _
    $region51: #{tpu_custom_call.1} parent=1 // pred_check_branch
      %6558 = sbr.rel (0) target = $region53
    $region52: #{tpu_custom_call.1} parent=1 // pred_region
      %s6560 = ssub.s32 128, 128
      %6561 = vsyncadd [#allocation6], %s6560
      %s6563 = sshll.u32 [#allocation5], 4
      %s6564 = int_to_ptr.vmem [resolvable:$true] %s6563
      %6566 = dma.vmem_to_hbm [thread:$0]  %s6564, 128, %s10, [#allocation6]
    $region53: #{tpu_custom_call.1} parent=1 // pred_fallthru
      _
    // Predicated region
    $region54: #{tpu_custom_call.1} parent=1 // pred_check
      _
    $region55: #{tpu_custom_call.1} parent=1 // pred_check_branch
      %6568 = sbr.rel (0) target = $region57
    $region56: #{tpu_custom_call.1} parent=1 // pred_region
      %6569 = dma.done [#allocation6], 128
    $region57: #{tpu_custom_call.1} parent=1 // pred_fallthru
      _
    %6570 = vsyncpa [#allocation6], 1

</llo_original>
